<compile_context>
chip_gen: v7x
topology: tpu7x:2x2x1
jax: 0.10.0
libtpu: 0.0.40
codegen_flags: <defaults>
</compile_context>

<pallas_src>
import jax
import jax.numpy as jnp
from jax.experimental import pallas as pl
from jax.experimental.pallas import tpu as pltpu

_VMEM = pl.BlockSpec(memory_space=pltpu.MemorySpace.VMEM)

# Fixed small, shape-consistent configuration of the fuzzed torch module
# (the original module cannot run at any shape: self.linear's in_features never match).
B = 2          # batch
H = W = 16     # input spatial size
C1 = 32        # first conv out channels
S = 8          # spatial size after the (B,32,16,4) -> (B,32,8,8) reshape
C2 = 64        # second conv out channels
NA = 4         # Linear A out features (acts on the width axis: 16 -> 4)
NB = 64        # Linear B out features (4096 -> 64)
KK = 5         # conv kernel size


# ----------------------------------------------------------------------------
# Single fused kernel: conv1 -> relu -> linA -> reshape -> conv2 -> relu -> linB
# ----------------------------------------------------------------------------
def _fused_forward_kernel(col1_ref, w1_ref, b1_ref, wa_ref, ba_ref,
                          w2_ref, b2_ref, wb_ref, bb_ref,
                          o_ref, col2_ref, v9_ref):
    # ---- v1/v2: conv(1->32, 5x5, pad 2) + ReLU as ONE im2col matmul (K = 25) ----
    # col1: (B*H*W, 25) rows (b,h,w);  w1: (25, 32)
    h1 = jnp.dot(col1_ref[...], w1_ref[...], preferred_element_type=jnp.float32)
    h1 = jnp.maximum(h1 + b1_ref[...], 0.0)                      # (B*H*W, C1)
    # v3 = dropout2d(v2)
    # TODO(synk): Dropout2d is implemented as eval-mode identity (deterministic).

    # ---- v4/v6: Linear(16->4) over the width axis, then NCHW reshape to (B,32,8,8).
    # wa is the block-diagonal kron(I_{B*H}, linA_w), so the whole step is a single
    # MXU matmul over rows (no in-kernel transpose); rows come out as (b, h, n) which
    # is exactly the (b, i, j) order of the reshaped tensor -> pure row relabel.
    v4 = jnp.dot(wa_ref[...], h1, preferred_element_type=jnp.float32) + ba_ref[...]
    # TODO(synk): Dropout(0.3) is implemented as eval-mode identity (deterministic).
    v6 = v4.reshape(B, S, S, C1)                                 # NHWC view of v6

    # ---- v7/v8: conv1(32->64, 5x5, pad 2) + ReLU: build the im2col slab once in
    # VMEM (K = 25*32 = 800, zero-fill handles the pad-2 halo), then ONE matmul. ----
    col2_ref[...] = jnp.zeros_like(col2_ref)
    for kh in range(KK):
        dy = kh - 2
        i0, i1 = max(0, -dy), S - max(0, dy)
        for kw in range(KK):
            dx = kw - 2
            j0, j1 = max(0, -dx), S - max(0, dx)
            t = kh * KK + kw
            col2_ref[:, i0:i1, j0:j1, t * C1:(t + 1) * C1] = (
                v6[:, i0 + dy:i1 + dy, j0 + dx:j1 + dx, :])
    col2 = col2_ref[...].reshape(B * S * S, KK * KK * C1)        # (128, 800) rows (b,i,j)
    v8 = jnp.dot(col2, w2_ref[...], preferred_element_type=jnp.float32)
    v8 = jnp.maximum(v8 + b2_ref[...], 0.0)                      # (128, 64) rows (b,i,j)

    # ---- v9/v10: flatten(NCHW) + Linear(4096->64). The (co,i,j)->(i,j,co) flatten
    # permutation is folded into the pre-permuted wb rows; here we only move the
    # (i,j) index from sublanes into lanes through a small VMEM scratch. ----
    v8_3d = v8.reshape(B, S * S, C2)                             # row split (relabel)
    for g in range(S * S):
        v9_ref[:, g * C2:(g + 1) * C2] = v8_3d[:, g, :]
    o_ref[...] = jnp.dot(v9_ref[...], wb_ref[...],
                         preferred_element_type=jnp.float32) + bb_ref[...]


# ----------------------------------------------------------------------------
# Wrapper: input-side im2col (XLA, input path only) + the single pallas_call
# ----------------------------------------------------------------------------
def _im2col_5x5_cin1(x_nchw):
    """im2col for the first conv (Cin=1, 5x5, stride 1, pad 2). Rows are (b, h, w)."""
    b, _, h, w = x_nchw.shape
    xp = jnp.pad(x_nchw[:, 0], ((0, 0), (2, 2), (2, 2)))
    taps = [xp[:, kh:kh + h, kw:kw + w] for kh in range(KK) for kw in range(KK)]
    return jnp.stack(taps, axis=-1).reshape(b * h * w, KK * KK)


def forward(x1, p):
    col1 = _im2col_5x5_cin1(x1)                                  # (B*H*W, 25)
    return pl.pallas_call(
        _fused_forward_kernel,
        out_shape=jax.ShapeDtypeStruct((B, NB), jnp.float32),
        in_specs=[_VMEM] * 9,
        out_specs=_VMEM,
        scratch_shapes=[
            pltpu.VMEM((B, S, S, KK * KK * C1), jnp.float32),    # conv2 im2col slab
            pltpu.VMEM((B, S * S * C2), jnp.float32),            # flattened conv2 out
        ],
    )(col1, p["w1m"], p["b1"], p["wa_blk"], p["ba_col"],
      p["w2m"], p["b2"], p["wb2"], p["bb"])


# ----------------------------------------------------------------------------
# Parameters (PyTorch convention -> kernel-ready layouts, converted ONCE here)
# ----------------------------------------------------------------------------
def init_params(key):
    ks = jax.random.split(key, 8)
    conv_w  = 0.10 * jax.random.normal(ks[0], (C1, 1, KK, KK), jnp.float32)   # (co,ci,kh,kw)
    conv_b  = 0.10 * jax.random.normal(ks[1], (C1,), jnp.float32)
    linA_w  = 0.10 * jax.random.normal(ks[2], (NA, W), jnp.float32)           # (out, in)
    linA_b  = 0.10 * jax.random.normal(ks[3], (NA,), jnp.float32)
    conv1_w = 0.05 * jax.random.normal(ks[4], (C2, C1, KK, KK), jnp.float32)
    conv1_b = 0.05 * jax.random.normal(ks[5], (C2,), jnp.float32)
    linB_w  = 0.02 * jax.random.normal(ks[6], (NB, C2 * S * S), jnp.float32)  # in = (co,i,j)
    linB_b  = 0.02 * jax.random.normal(ks[7], (NB,), jnp.float32)

    p = {}
    # conv1 as im2col weight: rows (kh*5+kw), cols co
    p["w1m"] = jnp.transpose(conv_w[:, 0], (1, 2, 0)).reshape(KK * KK, C1)
    p["b1"] = conv_b.reshape(1, C1)
    # linA as a block-diagonal matrix over the (b, h) groups (fixed B, H config),
    # plus its bias as a per-row column vector.
    p["wa_blk"] = jnp.kron(jnp.eye(B * H, dtype=jnp.float32), linA_w)         # (B*64, B*256)
    p["ba_col"] = jnp.tile(linA_b, B * H).reshape(B * H * NA, 1)              # (B*64, 1)
    # conv2 as im2col weight: rows ((kh*5+kw)*32 + ci), cols co
    p["w2m"] = jnp.transpose(conv1_w, (2, 3, 1, 0)).reshape(KK * KK * C1, C2)
    p["b2"] = conv1_b.reshape(1, C2)
    # linB pre-transposed to (in, out) with rows re-ordered to the (i, j, co) feature
    # order produced by the kernel (folds the NCHW flatten permutation in).
    p["wb2"] = jnp.transpose(linB_w.reshape(NB, C2, S, S), (2, 3, 1, 0)).reshape(S * S * C2, NB)
    p["bb"] = linB_b.reshape(1, NB)
    return p


if __name__ == "__main__":
    key = jax.random.PRNGKey(0)
    k_x, k_p = jax.random.split(key)
    x1 = jax.random.normal(k_x, (B, 1, H, W), jnp.float32)       # NCHW, like torch
    params = init_params(k_p)

    out = jax.jit(forward)(x1, params)
    jax.block_until_ready(out)
    assert out.shape == (B, NB) and out.dtype == jnp.float32
    assert bool(jnp.all(jnp.isfinite(out)))
    print("KERNEL_OK")
</pallas_src>

<mosaic_0001>
module attributes {stable_mosaic.version = 11 : i64} {
  func.func @_fused_forward_kernel(%arg0: memref<512x25xf32, #tpu.memory_space<vmem>>, %arg1: memref<25x32xf32, #tpu.memory_space<vmem>>, %arg2: memref<1x32xf32, #tpu.memory_space<vmem>>, %arg3: memref<128x512xf32, #tpu.memory_space<vmem>>, %arg4: memref<128x1xf32, #tpu.memory_space<vmem>>, %arg5: memref<800x64xf32, #tpu.memory_space<vmem>>, %arg6: memref<1x64xf32, #tpu.memory_space<vmem>>, %arg7: memref<4096x64xf32, #tpu.memory_space<vmem>>, %arg8: memref<1x64xf32, #tpu.memory_space<vmem>>, %arg9: memref<2x64xf32, #tpu.memory_space<vmem>>, %arg10: memref<2x8x8x800xf32, #tpu.memory_space<vmem>>, %arg11: memref<2x4096xf32, #tpu.memory_space<vmem>>) attributes {dimension_semantics = [], scalar_prefetch = 0 : i64, scratch_operands = 2 : i64, tpu.core_type = #tpu.core_type<tc>} {
    %c0 = arith.constant 0 : index
    %c0_0 = arith.constant 0 : index
    %0 = vector.load %arg0[%c0, %c0_0] : memref<512x25xf32, #tpu.memory_space<vmem>>, vector<512x25xf32>
    %c0_1 = arith.constant 0 : index
    %c0_2 = arith.constant 0 : index
    %1 = vector.load %arg1[%c0_1, %c0_2] : memref<25x32xf32, #tpu.memory_space<vmem>>, vector<25x32xf32>
    %cst = arith.constant dense<0.000000e+00> : vector<512x32xf32>
    %2 = tpu.matmul %0, %1, %cst {dimension_numbers = #tpu.dot_dimension_numbers<[1], [0], [0], [1], [0, 0, 1, 1], [], []>} : vector<512x25xf32>, vector<25x32xf32>, vector<512x32xf32> -> vector<512x32xf32>
    %c0_3 = arith.constant 0 : index
    %c0_4 = arith.constant 0 : index
    %3 = vector.load %arg2[%c0_3, %c0_4] : memref<1x32xf32, #tpu.memory_space<vmem>>, vector<1x32xf32>
    %4 = vector.broadcast %3 : vector<1x32xf32> to vector<512x32xf32>
    %5 = arith.addf %2, %4 : vector<512x32xf32>
    %cst_5 = arith.constant 0.000000e+00 : f32
    %6 = vector.broadcast %cst_5 : f32 to vector<512x32xf32>
    %7 = arith.maximumf %5, %6 : vector<512x32xf32>
    %c0_6 = arith.constant 0 : index
    %c0_7 = arith.constant 0 : index
    %8 = vector.load %arg3[%c0_6, %c0_7] : memref<128x512xf32, #tpu.memory_space<vmem>>, vector<128x512xf32>
    %cst_8 = arith.constant dense<0.000000e+00> : vector<128x32xf32>
    %9 = tpu.matmul %8, %7, %cst_8 {dimension_numbers = #tpu.dot_dimension_numbers<[1], [0], [0], [1], [0, 0, 1, 1], [], []>} : vector<128x512xf32>, vector<512x32xf32>, vector<128x32xf32> -> vector<128x32xf32>
    %c0_9 = arith.constant 0 : index
    %c0_10 = arith.constant 0 : index
    %10 = vector.load %arg4[%c0_9, %c0_10] : memref<128x1xf32, #tpu.memory_space<vmem>>, vector<128x1xf32>
    %11 = vector.broadcast %10 : vector<128x1xf32> to vector<128x32xf32>
    %12 = arith.addf %9, %11 : vector<128x32xf32>
    %13 = vector.shape_cast %12 : vector<128x32xf32> to vector<2x8x8x32xf32>
    %cst_11 = arith.constant 0.000000e+00 : f32
    %14 = vector.broadcast %cst_11 : f32 to vector<2x8x8x800xf32>
    %c0_12 = arith.constant 0 : index
    %c0_13 = arith.constant 0 : index
    %c0_14 = arith.constant 0 : index
    %c0_15 = arith.constant 0 : index
    %15 = vector.load %arg10[%c0_12, %c0_13, %c0_14, %c0_15] : memref<2x8x8x800xf32, #tpu.memory_space<vmem>>, vector<2x8x8x800xf32>
    tpu.vector_store %arg10[%c0_12, %c0_13, %c0_14, %c0_15], %14 {strides = array<i32>} : memref<2x8x8x800xf32, #tpu.memory_space<vmem>>, vector<2x8x8x800xf32>,
    %16 = vector.extract_strided_slice %13 {offsets = [0, 0, 0, 0], sizes = [2, 6, 6, 32], strides = [1, 1, 1, 1]} : vector<2x8x8x32xf32> to vector<2x6x6x32xf32>
    %c0_16 = arith.constant 0 : index
    %c2 = arith.constant 2 : index
    %c2_17 = arith.constant 2 : index
    %c0_18 = arith.constant 0 : index
    %17 = vector.load %arg10[%c0_16, %c2, %c2_17, %c0_18] : memref<2x8x8x800xf32, #tpu.memory_space<vmem>>, vector<2x6x6x32xf32>
    tpu.vector_store %arg10[%c0_16, %c2, %c2_17, %c0_18], %16 {strides = array<i32>} : memref<2x8x8x800xf32, #tpu.memory_space<vmem>>, vector<2x6x6x32xf32>,
    %18 = vector.extract_strided_slice %13 {offsets = [0, 0, 0, 0], sizes = [2, 6, 7, 32], strides = [1, 1, 1, 1]} : vector<2x8x8x32xf32> to vector<2x6x7x32xf32>
    %c0_19 = arith.constant 0 : index
    %c2_20 = arith.constant 2 : index
    %c1 = arith.constant 1 : index
    %c32 = arith.constant 32 : index
    %19 = vector.load %arg10[%c0_19, %c2_20, %c1, %c32] : memref<2x8x8x800xf32, #tpu.memory_space<vmem>>, vector<2x6x7x32xf32>
    tpu.vector_store %arg10[%c0_19, %c2_20, %c1, %c32], %18 {strides = array<i32>} : memref<2x8x8x800xf32, #tpu.memory_space<vmem>>, vector<2x6x7x32xf32>,
    %20 = vector.extract_strided_slice %13 {offsets = [0, 0, 0, 0], sizes = [2, 6, 8, 32], strides = [1, 1, 1, 1]} : vector<2x8x8x32xf32> to vector<2x6x8x32xf32>
    %c0_21 = arith.constant 0 : index
    %c2_22 = arith.constant 2 : index
    %c0_23 = arith.constant 0 : index
    %c64 = arith.constant 64 : index
    %21 = vector.load %arg10[%c0_21, %c2_22, %c0_23, %c64] : memref<2x8x8x800xf32, #tpu.memory_space<vmem>>, vector<2x6x8x32xf32>
    tpu.vector_store %arg10[%c0_21, %c2_22, %c0_23, %c64], %20 {strides = array<i32>} : memref<2x8x8x800xf32, #tpu.memory_space<vmem>>, vector<2x6x8x32xf32>,
    %22 = vector.extract_strided_slice %13 {offsets = [0, 0, 1, 0], sizes = [2, 6, 7, 32], strides = [1, 1, 1, 1]} : vector<2x8x8x32xf32> to vector<2x6x7x32xf32>
    %c0_24 = arith.constant 0 : index
    %c2_25 = arith.constant 2 : index
    %c0_26 = arith.constant 0 : index
    %c96 = arith.constant 96 : index
    %23 = vector.load %arg10[%c0_24, %c2_25, %c0_26, %c96] : memref<2x8x8x800xf32, #tpu.memory_space<vmem>>, vector<2x6x7x32xf32>
    tpu.vector_store %arg10[%c0_24, %c2_25, %c0_26, %c96], %22 {strides = array<i32>} : memref<2x8x8x800xf32, #tpu.memory_space<vmem>>, vector<2x6x7x32xf32>,
    %24 = vector.extract_strided_slice %13 {offsets = [0, 0, 2, 0], sizes = [2, 6, 6, 32], strides = [1, 1, 1, 1]} : vector<2x8x8x32xf32> to vector<2x6x6x32xf32>
    %c0_27 = arith.constant 0 : index
    %c2_28 = arith.constant 2 : index
    %c0_29 = arith.constant 0 : index
    %c128 = arith.constant 128 : index
    %25 = vector.load %arg10[%c0_27, %c2_28, %c0_29, %c128] : memref<2x8x8x800xf32, #tpu.memory_space<vmem>>, vector<2x6x6x32xf32>
    tpu.vector_store %arg10[%c0_27, %c2_28, %c0_29, %c128], %24 {strides = array<i32>} : memref<2x8x8x800xf32, #tpu.memory_space<vmem>>, vector<2x6x6x32xf32>,
    %26 = vector.extract_strided_slice %13 {offsets = [0, 0, 0, 0], sizes = [2, 7, 6, 32], strides = [1, 1, 1, 1]} : vector<2x8x8x32xf32> to vector<2x7x6x32xf32>
    %c0_30 = arith.constant 0 : index
    %c1_31 = arith.constant 1 : index
    %c2_32 = arith.constant 2 : index
    %c160 = arith.constant 160 : index
    %27 = vector.load %arg10[%c0_30, %c1_31, %c2_32, %c160] : memref<2x8x8x800xf32, #tpu.memory_space<vmem>>, vector<2x7x6x32xf32>
    tpu.vector_store %arg10[%c0_30, %c1_31, %c2_32, %c160], %26 {strides = array<i32>} : memref<2x8x8x800xf32, #tpu.memory_space<vmem>>, vector<2x7x6x32xf32>,
    %28 = vector.extract_strided_slice %13 {offsets = [0, 0, 0, 0], sizes = [2, 7, 7, 32], strides = [1, 1, 1, 1]} : vector<2x8x8x32xf32> to vector<2x7x7x32xf32>
    %c0_33 = arith.constant 0 : index
    %c1_34 = arith.constant 1 : index
    %c1_35 = arith.constant 1 : index
    %c192 = arith.constant 192 : index
    %29 = vector.load %arg10[%c0_33, %c1_34, %c1_35, %c192] : memref<2x8x8x800xf32, #tpu.memory_space<vmem>>, vector<2x7x7x32xf32>
    tpu.vector_store %arg10[%c0_33, %c1_34, %c1_35, %c192], %28 {strides = array<i32>} : memref<2x8x8x800xf32, #tpu.memory_space<vmem>>, vector<2x7x7x32xf32>,
    %30 = vector.extract_strided_slice %13 {offsets = [0, 0, 0, 0], sizes = [2, 7, 8, 32], strides = [1, 1, 1, 1]} : vector<2x8x8x32xf32> to vector<2x7x8x32xf32>
    %c0_36 = arith.constant 0 : index
    %c1_37 = arith.constant 1 : index
    %c0_38 = arith.constant 0 : index
    %c224 = arith.constant 224 : index
    %31 = vector.load %arg10[%c0_36, %c1_37, %c0_38, %c224] : memref<2x8x8x800xf32, #tpu.memory_space<vmem>>, vector<2x7x8x32xf32>
    tpu.vector_store %arg10[%c0_36, %c1_37, %c0_38, %c224], %30 {strides = array<i32>} : memref<2x8x8x800xf32, #tpu.memory_space<vmem>>, vector<2x7x8x32xf32>,
    %32 = vector.extract_strided_slice %13 {offsets = [0, 0, 1, 0], sizes = [2, 7, 7, 32], strides = [1, 1, 1, 1]} : vector<2x8x8x32xf32> to vector<2x7x7x32xf32>
    %c0_39 = arith.constant 0 : index
    %c1_40 = arith.constant 1 : index
    %c0_41 = arith.constant 0 : index
    %c256 = arith.constant 256 : index
    %33 = vector.load %arg10[%c0_39, %c1_40, %c0_41, %c256] : memref<2x8x8x800xf32, #tpu.memory_space<vmem>>, vector<2x7x7x32xf32>
    tpu.vector_store %arg10[%c0_39, %c1_40, %c0_41, %c256], %32 {strides = array<i32>} : memref<2x8x8x800xf32, #tpu.memory_space<vmem>>, vector<2x7x7x32xf32>,
    %34 = vector.extract_strided_slice %13 {offsets = [0, 0, 2, 0], sizes = [2, 7, 6, 32], strides = [1, 1, 1, 1]} : vector<2x8x8x32xf32> to vector<2x7x6x32xf32>
    %c0_42 = arith.constant 0 : index
    %c1_43 = arith.constant 1 : index
    %c0_44 = arith.constant 0 : index
    %c288 = arith.constant 288 : index
    %35 = vector.load %arg10[%c0_42, %c1_43, %c0_44, %c288] : memref<2x8x8x800xf32, #tpu.memory_space<vmem>>, vector<2x7x6x32xf32>
    tpu.vector_store %arg10[%c0_42, %c1_43, %c0_44, %c288], %34 {strides = array<i32>} : memref<2x8x8x800xf32, #tpu.memory_space<vmem>>, vector<2x7x6x32xf32>,
    %36 = vector.extract_strided_slice %13 {offsets = [0, 0, 0, 0], sizes = [2, 8, 6, 32], strides = [1, 1, 1, 1]} : vector<2x8x8x32xf32> to vector<2x8x6x32xf32>
    %c0_45 = arith.constant 0 : index
    %c0_46 = arith.constant 0 : index
    %c2_47 = arith.constant 2 : index
    %c320 = arith.constant 320 : index
    %37 = vector.load %arg10[%c0_45, %c0_46, %c2_47, %c320] : memref<2x8x8x800xf32, #tpu.memory_space<vmem>>, vector<2x8x6x32xf32>
    tpu.vector_store %arg10[%c0_45, %c0_46, %c2_47, %c320], %36 {strides = array<i32>} : memref<2x8x8x800xf32, #tpu.memory_space<vmem>>, vector<2x8x6x32xf32>,
    %38 = vector.extract_strided_slice %13 {offsets = [0, 0, 0, 0], sizes = [2, 8, 7, 32], strides = [1, 1, 1, 1]} : vector<2x8x8x32xf32> to vector<2x8x7x32xf32>
    %c0_48 = arith.constant 0 : index
    %c0_49 = arith.constant 0 : index
    %c1_50 = arith.constant 1 : index
    %c352 = arith.constant 352 : index
    %39 = vector.load %arg10[%c0_48, %c0_49, %c1_50, %c352] : memref<2x8x8x800xf32, #tpu.memory_space<vmem>>, vector<2x8x7x32xf32>
    tpu.vector_store %arg10[%c0_48, %c0_49, %c1_50, %c352], %38 {strides = array<i32>} : memref<2x8x8x800xf32, #tpu.memory_space<vmem>>, vector<2x8x7x32xf32>,
    %c0_51 = arith.constant 0 : index
    %c0_52 = arith.constant 0 : index
    %c0_53 = arith.constant 0 : index
    %c384 = arith.constant 384 : index
    %40 = vector.load %arg10[%c0_51, %c0_52, %c0_53, %c384] : memref<2x8x8x800xf32, #tpu.memory_space<vmem>>, vector<2x8x8x32xf32>
    tpu.vector_store %arg10[%c0_51, %c0_52, %c0_53, %c384], %13 {strides = array<i32>} : memref<2x8x8x800xf32, #tpu.memory_space<vmem>>, vector<2x8x8x32xf32>,
    %41 = vector.extract_strided_slice %13 {offsets = [0, 0, 1, 0], sizes = [2, 8, 7, 32], strides = [1, 1, 1, 1]} : vector<2x8x8x32xf32> to vector<2x8x7x32xf32>
    %c0_54 = arith.constant 0 : index
    %c0_55 = arith.constant 0 : index
    %c0_56 = arith.constant 0 : index
    %c416 = arith.constant 416 : index
    %42 = vector.load %arg10[%c0_54, %c0_55, %c0_56, %c416] : memref<2x8x8x800xf32, #tpu.memory_space<vmem>>, vector<2x8x7x32xf32>
    tpu.vector_store %arg10[%c0_54, %c0_55, %c0_56, %c416], %41 {strides = array<i32>} : memref<2x8x8x800xf32, #tpu.memory_space<vmem>>, vector<2x8x7x32xf32>,
    %43 = vector.extract_strided_slice %13 {offsets = [0, 0, 2, 0], sizes = [2, 8, 6, 32], strides = [1, 1, 1, 1]} : vector<2x8x8x32xf32> to vector<2x8x6x32xf32>
    %c0_57 = arith.constant 0 : index
    %c0_58 = arith.constant 0 : index
    %c0_59 = arith.constant 0 : index
    %c448 = arith.constant 448 : index
    %44 = vector.load %arg10[%c0_57, %c0_58, %c0_59, %c448] : memref<2x8x8x800xf32, #tpu.memory_space<vmem>>, vector<2x8x6x32xf32>
    tpu.vector_store %arg10[%c0_57, %c0_58, %c0_59, %c448], %43 {strides = array<i32>} : memref<2x8x8x800xf32, #tpu.memory_space<vmem>>, vector<2x8x6x32xf32>,
    %45 = vector.extract_strided_slice %13 {offsets = [0, 1, 0, 0], sizes = [2, 7, 6, 32], strides = [1, 1, 1, 1]} : vector<2x8x8x32xf32> to vector<2x7x6x32xf32>
    %c0_60 = arith.constant 0 : index
    %c0_61 = arith.constant 0 : index
    %c2_62 = arith.constant 2 : index
    %c480 = arith.constant 480 : index
    %46 = vector.load %arg10[%c0_60, %c0_61, %c2_62, %c480] : memref<2x8x8x800xf32, #tpu.memory_space<vmem>>, vector<2x7x6x32xf32>
    tpu.vector_store %arg10[%c0_60, %c0_61, %c2_62, %c480], %45 {strides = array<i32>} : memref<2x8x8x800xf32, #tpu.memory_space<vmem>>, vector<2x7x6x32xf32>,
    %47 = vector.extract_strided_slice %13 {offsets = [0, 1, 0, 0], sizes = [2, 7, 7, 32], strides = [1, 1, 1, 1]} : vector<2x8x8x32xf32> to vector<2x7x7x32xf32>
    %c0_63 = arith.constant 0 : index
    %c0_64 = arith.constant 0 : index
    %c1_65 = arith.constant 1 : index
    %c512 = arith.constant 512 : index
    %48 = vector.load %arg10[%c0_63, %c0_64, %c1_65, %c512] : memref<2x8x8x800xf32, #tpu.memory_space<vmem>>, vector<2x7x7x32xf32>
    tpu.vector_store %arg10[%c0_63, %c0_64, %c1_65, %c512], %47 {strides = array<i32>} : memref<2x8x8x800xf32, #tpu.memory_space<vmem>>, vector<2x7x7x32xf32>,
    %49 = vector.extract_strided_slice %13 {offsets = [0, 1, 0, 0], sizes = [2, 7, 8, 32], strides = [1, 1, 1, 1]} : vector<2x8x8x32xf32> to vector<2x7x8x32xf32>
    %c0_66 = arith.constant 0 : index
    %c0_67 = arith.constant 0 : index
    %c0_68 = arith.constant 0 : index
    %c544 = arith.constant 544 : index
    %50 = vector.load %arg10[%c0_66, %c0_67, %c0_68, %c544] : memref<2x8x8x800xf32, #tpu.memory_space<vmem>>, vector<2x7x8x32xf32>
    tpu.vector_store %arg10[%c0_66, %c0_67, %c0_68, %c544], %49 {strides = array<i32>} : memref<2x8x8x800xf32, #tpu.memory_space<vmem>>, vector<2x7x8x32xf32>,
    %51 = vector.extract_strided_slice %13 {offsets = [0, 1, 1, 0], sizes = [2, 7, 7, 32], strides = [1, 1, 1, 1]} : vector<2x8x8x32xf32> to vector<2x7x7x32xf32>
    %c0_69 = arith.constant 0 : index
    %c0_70 = arith.constant 0 : index
    %c0_71 = arith.constant 0 : index
    %c576 = arith.constant 576 : index
    %52 = vector.load %arg10[%c0_69, %c0_70, %c0_71, %c576] : memref<2x8x8x800xf32, #tpu.memory_space<vmem>>, vector<2x7x7x32xf32>
    tpu.vector_store %arg10[%c0_69, %c0_70, %c0_71, %c576], %51 {strides = array<i32>} : memref<2x8x8x800xf32, #tpu.memory_space<vmem>>, vector<2x7x7x32xf32>,
    %53 = vector.extract_strided_slice %13 {offsets = [0, 1, 2, 0], sizes = [2, 7, 6, 32], strides = [1, 1, 1, 1]} : vector<2x8x8x32xf32> to vector<2x7x6x32xf32>
    %c0_72 = arith.constant 0 : index
    %c0_73 = arith.constant 0 : index
    %c0_74 = arith.constant 0 : index
    %c608 = arith.constant 608 : index
    %54 = vector.load %arg10[%c0_72, %c0_73, %c0_74, %c608] : memref<2x8x8x800xf32, #tpu.memory_space<vmem>>, vector<2x7x6x32xf32>
    tpu.vector_store %arg10[%c0_72, %c0_73, %c0_74, %c608], %53 {strides = array<i32>} : memref<2x8x8x800xf32, #tpu.memory_space<vmem>>, vector<2x7x6x32xf32>,
    %55 = vector.extract_strided_slice %13 {offsets = [0, 2, 0, 0], sizes = [2, 6, 6, 32], strides = [1, 1, 1, 1]} : vector<2x8x8x32xf32> to vector<2x6x6x32xf32>
    %c0_75 = arith.constant 0 : index
    %c0_76 = arith.constant 0 : index
    %c2_77 = arith.constant 2 : index
    %c640 = arith.constant 640 : index
    %56 = vector.load %arg10[%c0_75, %c0_76, %c2_77, %c640] : memref<2x8x8x800xf32, #tpu.memory_space<vmem>>, vector<2x6x6x32xf32>
    tpu.vector_store %arg10[%c0_75, %c0_76, %c2_77, %c640], %55 {strides = array<i32>} : memref<2x8x8x800xf32, #tpu.memory_space<vmem>>, vector<2x6x6x32xf32>,
    %57 = vector.extract_strided_slice %13 {offsets = [0, 2, 0, 0], sizes = [2, 6, 7, 32], strides = [1, 1, 1, 1]} : vector<2x8x8x32xf32> to vector<2x6x7x32xf32>
    %c0_78 = arith.constant 0 : index
    %c0_79 = arith.constant 0 : index
    %c1_80 = arith.constant 1 : index
    %c672 = arith.constant 672 : index
    %58 = vector.load %arg10[%c0_78, %c0_79, %c1_80, %c672] : memref<2x8x8x800xf32, #tpu.memory_space<vmem>>, vector<2x6x7x32xf32>
    tpu.vector_store %arg10[%c0_78, %c0_79, %c1_80, %c672], %57 {strides = array<i32>} : memref<2x8x8x800xf32, #tpu.memory_space<vmem>>, vector<2x6x7x32xf32>,
    %59 = vector.extract_strided_slice %13 {offsets = [0, 2, 0, 0], sizes = [2, 6, 8, 32], strides = [1, 1, 1, 1]} : vector<2x8x8x32xf32> to vector<2x6x8x32xf32>
    %c0_81 = arith.constant 0 : index
    %c0_82 = arith.constant 0 : index
    %c0_83 = arith.constant 0 : index
    %c704 = arith.constant 704 : index
    %60 = vector.load %arg10[%c0_81, %c0_82, %c0_83, %c704] : memref<2x8x8x800xf32, #tpu.memory_space<vmem>>, vector<2x6x8x32xf32>
    tpu.vector_store %arg10[%c0_81, %c0_82, %c0_83, %c704], %59 {strides = array<i32>} : memref<2x8x8x800xf32, #tpu.memory_space<vmem>>, vector<2x6x8x32xf32>,
    %61 = vector.extract_strided_slice %13 {offsets = [0, 2, 1, 0], sizes = [2, 6, 7, 32], strides = [1, 1, 1, 1]} : vector<2x8x8x32xf32> to vector<2x6x7x32xf32>
    %c0_84 = arith.constant 0 : index
    %c0_85 = arith.constant 0 : index
    %c0_86 = arith.constant 0 : index
    %c736 = arith.constant 736 : index
    %62 = vector.load %arg10[%c0_84, %c0_85, %c0_86, %c736] : memref<2x8x8x800xf32, #tpu.memory_space<vmem>>, vector<2x6x7x32xf32>
    tpu.vector_store %arg10[%c0_84, %c0_85, %c0_86, %c736], %61 {strides = array<i32>} : memref<2x8x8x800xf32, #tpu.memory_space<vmem>>, vector<2x6x7x32xf32>,
    %63 = vector.extract_strided_slice %13 {offsets = [0, 2, 2, 0], sizes = [2, 6, 6, 32], strides = [1, 1, 1, 1]} : vector<2x8x8x32xf32> to vector<2x6x6x32xf32>
    %c0_87 = arith.constant 0 : index
    %c0_88 = arith.constant 0 : index
    %c0_89 = arith.constant 0 : index
    %c768 = arith.constant 768 : index
    %64 = vector.load %arg10[%c0_87, %c0_88, %c0_89, %c768] : memref<2x8x8x800xf32, #tpu.memory_space<vmem>>, vector<2x6x6x32xf32>
    tpu.vector_store %arg10[%c0_87, %c0_88, %c0_89, %c768], %63 {strides = array<i32>} : memref<2x8x8x800xf32, #tpu.memory_space<vmem>>, vector<2x6x6x32xf32>,
    %c0_90 = arith.constant 0 : index
    %c0_91 = arith.constant 0 : index
    %c0_92 = arith.constant 0 : index
    %c0_93 = arith.constant 0 : index
    %65 = vector.load %arg10[%c0_90, %c0_91, %c0_92, %c0_93] : memref<2x8x8x800xf32, #tpu.memory_space<vmem>>, vector<2x8x8x800xf32>
    %66 = vector.shape_cast %65 : vector<2x8x8x800xf32> to vector<128x800xf32>
    %c0_94 = arith.constant 0 : index
    %c0_95 = arith.constant 0 : index
    %67 = vector.load %arg5[%c0_94, %c0_95] : memref<800x64xf32, #tpu.memory_space<vmem>>, vector<800x64xf32>
    %cst_96 = arith.constant dense<0.000000e+00> : vector<128x64xf32>
    %68 = tpu.matmul %66, %67, %cst_96 {dimension_numbers = #tpu.dot_dimension_numbers<[1], [0], [0], [1], [0, 0, 1, 1], [], []>} : vector<128x800xf32>, vector<800x64xf32>, vector<128x64xf32> -> vector<128x64xf32>
    %c0_97 = arith.constant 0 : index
    %c0_98 = arith.constant 0 : index
    %69 = vector.load %arg6[%c0_97, %c0_98] : memref<1x64xf32, #tpu.memory_space<vmem>>, vector<1x64xf32>
    %70 = vector.broadcast %69 : vector<1x64xf32> to vector<128x64xf32>
    %71 = arith.addf %68, %70 : vector<128x64xf32>
    %cst_99 = arith.constant 0.000000e+00 : f32
    %72 = vector.broadcast %cst_99 : f32 to vector<128x64xf32>
    %73 = arith.maximumf %71, %72 : vector<128x64xf32>
    %74 = vector.shape_cast %73 : vector<128x64xf32> to vector<2x64x64xf32>
    %75 = vector.extract_strided_slice %74 {offsets = [0, 0, 0], sizes = [2, 1, 64], strides = [1, 1, 1]} : vector<2x64x64xf32> to vector<2x1x64xf32>
    %76 = vector.shape_cast %75 : vector<2x1x64xf32> to vector<2x64xf32>
    %c0_100 = arith.constant 0 : index
    %c0_101 = arith.constant 0 : index
    %77 = vector.load %arg11[%c0_100, %c0_101] : memref<2x4096xf32, #tpu.memory_space<vmem>>, vector<2x64xf32>
    tpu.vector_store %arg11[%c0_100, %c0_101], %76 {strides = array<i32>} : memref<2x4096xf32, #tpu.memory_space<vmem>>, vector<2x64xf32>,
    %78 = vector.extract_strided_slice %74 {offsets = [0, 1, 0], sizes = [2, 1, 64], strides = [1, 1, 1]} : vector<2x64x64xf32> to vector<2x1x64xf32>
    %79 = vector.shape_cast %78 : vector<2x1x64xf32> to vector<2x64xf32>
    %c0_102 = arith.constant 0 : index
    %c64_103 = arith.constant 64 : index
    %80 = vector.load %arg11[%c0_102, %c64_103] : memref<2x4096xf32, #tpu.memory_space<vmem>>, vector<2x64xf32>
    tpu.vector_store %arg11[%c0_102, %c64_103], %79 {strides = array<i32>} : memref<2x4096xf32, #tpu.memory_space<vmem>>, vector<2x64xf32>,
    %81 = vector.extract_strided_slice %74 {offsets = [0, 2, 0], sizes = [2, 1, 64], strides = [1, 1, 1]} : vector<2x64x64xf32> to vector<2x1x64xf32>
    %82 = vector.shape_cast %81 : vector<2x1x64xf32> to vector<2x64xf32>
    %c0_104 = arith.constant 0 : index
    %c128_105 = arith.constant 128 : index
    %83 = vector.load %arg11[%c0_104, %c128_105] : memref<2x4096xf32, #tpu.memory_space<vmem>>, vector<2x64xf32>
    tpu.vector_store %arg11[%c0_104, %c128_105], %82 {strides = array<i32>} : memref<2x4096xf32, #tpu.memory_space<vmem>>, vector<2x64xf32>,
    %84 = vector.extract_strided_slice %74 {offsets = [0, 3, 0], sizes = [2, 1, 64], strides = [1, 1, 1]} : vector<2x64x64xf32> to vector<2x1x64xf32>
    %85 = vector.shape_cast %84 : vector<2x1x64xf32> to vector<2x64xf32>
    %c0_106 = arith.constant 0 : index
    %c192_107 = arith.constant 192 : index
    %86 = vector.load %arg11[%c0_106, %c192_107] : memref<2x4096xf32, #tpu.memory_space<vmem>>, vector<2x64xf32>
    tpu.vector_store %arg11[%c0_106, %c192_107], %85 {strides = array<i32>} : memref<2x4096xf32, #tpu.memory_space<vmem>>, vector<2x64xf32>,
    %87 = vector.extract_strided_slice %74 {offsets = [0, 4, 0], sizes = [2, 1, 64], strides = [1, 1, 1]} : vector<2x64x64xf32> to vector<2x1x64xf32>
    %88 = vector.shape_cast %87 : vector<2x1x64xf32> to vector<2x64xf32>
    %c0_108 = arith.constant 0 : index
    %c256_109 = arith.constant 256 : index
    %89 = vector.load %arg11[%c0_108, %c256_109] : memref<2x4096xf32, #tpu.memory_space<vmem>>, vector<2x64xf32>
    tpu.vector_store %arg11[%c0_108, %c256_109], %88 {strides = array<i32>} : memref<2x4096xf32, #tpu.memory_space<vmem>>, vector<2x64xf32>,
    %90 = vector.extract_strided_slice %74 {offsets = [0, 5, 0], sizes = [2, 1, 64], strides = [1, 1, 1]} : vector<2x64x64xf32> to vector<2x1x64xf32>
    %91 = vector.shape_cast %90 : vector<2x1x64xf32> to vector<2x64xf32>
    %c0_110 = arith.constant 0 : index
    %c320_111 = arith.constant 320 : index
    %92 = vector.load %arg11[%c0_110, %c320_111] : memref<2x4096xf32, #tpu.memory_space<vmem>>, vector<2x64xf32>
    tpu.vector_store %arg11[%c0_110, %c320_111], %91 {strides = array<i32>} : memref<2x4096xf32, #tpu.memory_space<vmem>>, vector<2x64xf32>,
    %93 = vector.extract_strided_slice %74 {offsets = [0, 6, 0], sizes = [2, 1, 64], strides = [1, 1, 1]} : vector<2x64x64xf32> to vector<2x1x64xf32>
    %94 = vector.shape_cast %93 : vector<2x1x64xf32> to vector<2x64xf32>
    %c0_112 = arith.constant 0 : index
    %c384_113 = arith.constant 384 : index
    %95 = vector.load %arg11[%c0_112, %c384_113] : memref<2x4096xf32, #tpu.memory_space<vmem>>, vector<2x64xf32>
    tpu.vector_store %arg11[%c0_112, %c384_113], %94 {strides = array<i32>} : memref<2x4096xf32, #tpu.memory_space<vmem>>, vector<2x64xf32>,
    %96 = vector.extract_strided_slice %74 {offsets = [0, 7, 0], sizes = [2, 1, 64], strides = [1, 1, 1]} : vector<2x64x64xf32> to vector<2x1x64xf32>
    %97 = vector.shape_cast %96 : vector<2x1x64xf32> to vector<2x64xf32>
    %c0_114 = arith.constant 0 : index
    %c448_115 = arith.constant 448 : index
    %98 = vector.load %arg11[%c0_114, %c448_115] : memref<2x4096xf32, #tpu.memory_space<vmem>>, vector<2x64xf32>
    tpu.vector_store %arg11[%c0_114, %c448_115], %97 {strides = array<i32>} : memref<2x4096xf32, #tpu.memory_space<vmem>>, vector<2x64xf32>,
    %99 = vector.extract_strided_slice %74 {offsets = [0, 8, 0], sizes = [2, 1, 64], strides = [1, 1, 1]} : vector<2x64x64xf32> to vector<2x1x64xf32>
    %100 = vector.shape_cast %99 : vector<2x1x64xf32> to vector<2x64xf32>
    %c0_116 = arith.constant 0 : index
    %c512_117 = arith.constant 512 : index
    %101 = vector.load %arg11[%c0_116, %c512_117] : memref<2x4096xf32, #tpu.memory_space<vmem>>, vector<2x64xf32>
    tpu.vector_store %arg11[%c0_116, %c512_117], %100 {strides = array<i32>} : memref<2x4096xf32, #tpu.memory_space<vmem>>, vector<2x64xf32>,
    %102 = vector.extract_strided_slice %74 {offsets = [0, 9, 0], sizes = [2, 1, 64], strides = [1, 1, 1]} : vector<2x64x64xf32> to vector<2x1x64xf32>
    %103 = vector.shape_cast %102 : vector<2x1x64xf32> to vector<2x64xf32>
    %c0_118 = arith.constant 0 : index
    %c576_119 = arith.constant 576 : index
    %104 = vector.load %arg11[%c0_118, %c576_119] : memref<2x4096xf32, #tpu.memory_space<vmem>>, vector<2x64xf32>
    tpu.vector_store %arg11[%c0_118, %c576_119], %103 {strides = array<i32>} : memref<2x4096xf32, #tpu.memory_space<vmem>>, vector<2x64xf32>,
    %105 = vector.extract_strided_slice %74 {offsets = [0, 10, 0], sizes = [2, 1, 64], strides = [1, 1, 1]} : vector<2x64x64xf32> to vector<2x1x64xf32>
    %106 = vector.shape_cast %105 : vector<2x1x64xf32> to vector<2x64xf32>
    %c0_120 = arith.constant 0 : index
    %c640_121 = arith.constant 640 : index
    %107 = vector.load %arg11[%c0_120, %c640_121] : memref<2x4096xf32, #tpu.memory_space<vmem>>, vector<2x64xf32>
    tpu.vector_store %arg11[%c0_120, %c640_121], %106 {strides = array<i32>} : memref<2x4096xf32, #tpu.memory_space<vmem>>, vector<2x64xf32>,
    %108 = vector.extract_strided_slice %74 {offsets = [0, 11, 0], sizes = [2, 1, 64], strides = [1, 1, 1]} : vector<2x64x64xf32> to vector<2x1x64xf32>
    %109 = vector.shape_cast %108 : vector<2x1x64xf32> to vector<2x64xf32>
    %c0_122 = arith.constant 0 : index
    %c704_123 = arith.constant 704 : index
    %110 = vector.load %arg11[%c0_122, %c704_123] : memref<2x4096xf32, #tpu.memory_space<vmem>>, vector<2x64xf32>
    tpu.vector_store %arg11[%c0_122, %c704_123], %109 {strides = array<i32>} : memref<2x4096xf32, #tpu.memory_space<vmem>>, vector<2x64xf32>,
    %111 = vector.extract_strided_slice %74 {offsets = [0, 12, 0], sizes = [2, 1, 64], strides = [1, 1, 1]} : vector<2x64x64xf32> to vector<2x1x64xf32>
    %112 = vector.shape_cast %111 : vector<2x1x64xf32> to vector<2x64xf32>
    %c0_124 = arith.constant 0 : index
    %c768_125 = arith.constant 768 : index
    %113 = vector.load %arg11[%c0_124, %c768_125] : memref<2x4096xf32, #tpu.memory_space<vmem>>, vector<2x64xf32>
    tpu.vector_store %arg11[%c0_124, %c768_125], %112 {strides = array<i32>} : memref<2x4096xf32, #tpu.memory_space<vmem>>, vector<2x64xf32>,
    %114 = vector.extract_strided_slice %74 {offsets = [0, 13, 0], sizes = [2, 1, 64], strides = [1, 1, 1]} : vector<2x64x64xf32> to vector<2x1x64xf32>
    %115 = vector.shape_cast %114 : vector<2x1x64xf32> to vector<2x64xf32>
    %c0_126 = arith.constant 0 : index
    %c832 = arith.constant 832 : index
    %116 = vector.load %arg11[%c0_126, %c832] : memref<2x4096xf32, #tpu.memory_space<vmem>>, vector<2x64xf32>
    tpu.vector_store %arg11[%c0_126, %c832], %115 {strides = array<i32>} : memref<2x4096xf32, #tpu.memory_space<vmem>>, vector<2x64xf32>,
    %117 = vector.extract_strided_slice %74 {offsets = [0, 14, 0], sizes = [2, 1, 64], strides = [1, 1, 1]} : vector<2x64x64xf32> to vector<2x1x64xf32>
    %118 = vector.shape_cast %117 : vector<2x1x64xf32> to vector<2x64xf32>
    %c0_127 = arith.constant 0 : index
    %c896 = arith.constant 896 : index
    %119 = vector.load %arg11[%c0_127, %c896] : memref<2x4096xf32, #tpu.memory_space<vmem>>, vector<2x64xf32>
    tpu.vector_store %arg11[%c0_127, %c896], %118 {strides = array<i32>} : memref<2x4096xf32, #tpu.memory_space<vmem>>, vector<2x64xf32>,
    %120 = vector.extract_strided_slice %74 {offsets = [0, 15, 0], sizes = [2, 1, 64], strides = [1, 1, 1]} : vector<2x64x64xf32> to vector<2x1x64xf32>
    %121 = vector.shape_cast %120 : vector<2x1x64xf32> to vector<2x64xf32>
    %c0_128 = arith.constant 0 : index
    %c960 = arith.constant 960 : index
    %122 = vector.load %arg11[%c0_128, %c960] : memref<2x4096xf32, #tpu.memory_space<vmem>>, vector<2x64xf32>
    tpu.vector_store %arg11[%c0_128, %c960], %121 {strides = array<i32>} : memref<2x4096xf32, #tpu.memory_space<vmem>>, vector<2x64xf32>,
    %123 = vector.extract_strided_slice %74 {offsets = [0, 16, 0], sizes = [2, 1, 64], strides = [1, 1, 1]} : vector<2x64x64xf32> to vector<2x1x64xf32>
    %124 = vector.shape_cast %123 : vector<2x1x64xf32> to vector<2x64xf32>
    %c0_129 = arith.constant 0 : index
    %c1024 = arith.constant 1024 : index
    %125 = vector.load %arg11[%c0_129, %c1024] : memref<2x4096xf32, #tpu.memory_space<vmem>>, vector<2x64xf32>
    tpu.vector_store %arg11[%c0_129, %c1024], %124 {strides = array<i32>} : memref<2x4096xf32, #tpu.memory_space<vmem>>, vector<2x64xf32>,
    %126 = vector.extract_strided_slice %74 {offsets = [0, 17, 0], sizes = [2, 1, 64], strides = [1, 1, 1]} : vector<2x64x64xf32> to vector<2x1x64xf32>
    %127 = vector.shape_cast %126 : vector<2x1x64xf32> to vector<2x64xf32>
    %c0_130 = arith.constant 0 : index
    %c1088 = arith.constant 1088 : index
    %128 = vector.load %arg11[%c0_130, %c1088] : memref<2x4096xf32, #tpu.memory_space<vmem>>, vector<2x64xf32>
    tpu.vector_store %arg11[%c0_130, %c1088], %127 {strides = array<i32>} : memref<2x4096xf32, #tpu.memory_space<vmem>>, vector<2x64xf32>,
    %129 = vector.extract_strided_slice %74 {offsets = [0, 18, 0], sizes = [2, 1, 64], strides = [1, 1, 1]} : vector<2x64x64xf32> to vector<2x1x64xf32>
    %130 = vector.shape_cast %129 : vector<2x1x64xf32> to vector<2x64xf32>
    %c0_131 = arith.constant 0 : index
    %c1152 = arith.constant 1152 : index
    %131 = vector.load %arg11[%c0_131, %c1152] : memref<2x4096xf32, #tpu.memory_space<vmem>>, vector<2x64xf32>
    tpu.vector_store %arg11[%c0_131, %c1152], %130 {strides = array<i32>} : memref<2x4096xf32, #tpu.memory_space<vmem>>, vector<2x64xf32>,
    %132 = vector.extract_strided_slice %74 {offsets = [0, 19, 0], sizes = [2, 1, 64], strides = [1, 1, 1]} : vector<2x64x64xf32> to vector<2x1x64xf32>
    %133 = vector.shape_cast %132 : vector<2x1x64xf32> to vector<2x64xf32>
    %c0_132 = arith.constant 0 : index
    %c1216 = arith.constant 1216 : index
    %134 = vector.load %arg11[%c0_132, %c1216] : memref<2x4096xf32, #tpu.memory_space<vmem>>, vector<2x64xf32>
    tpu.vector_store %arg11[%c0_132, %c1216], %133 {strides = array<i32>} : memref<2x4096xf32, #tpu.memory_space<vmem>>, vector<2x64xf32>,
    %135 = vector.extract_strided_slice %74 {offsets = [0, 20, 0], sizes = [2, 1, 64], strides = [1, 1, 1]} : vector<2x64x64xf32> to vector<2x1x64xf32>
    %136 = vector.shape_cast %135 : vector<2x1x64xf32> to vector<2x64xf32>
    %c0_133 = arith.constant 0 : index
    %c1280 = arith.constant 1280 : index
    %137 = vector.load %arg11[%c0_133, %c1280] : memref<2x4096xf32, #tpu.memory_space<vmem>>, vector<2x64xf32>
    tpu.vector_store %arg11[%c0_133, %c1280], %136 {strides = array<i32>} : memref<2x4096xf32, #tpu.memory_space<vmem>>, vector<2x64xf32>,
    %138 = vector.extract_strided_slice %74 {offsets = [0, 21, 0], sizes = [2, 1, 64], strides = [1, 1, 1]} : vector<2x64x64xf32> to vector<2x1x64xf32>
    %139 = vector.shape_cast %138 : vector<2x1x64xf32> to vector<2x64xf32>
    %c0_134 = arith.constant 0 : index
    %c1344 = arith.constant 1344 : index
    %140 = vector.load %arg11[%c0_134, %c1344] : memref<2x4096xf32, #tpu.memory_space<vmem>>, vector<2x64xf32>
    tpu.vector_store %arg11[%c0_134, %c1344], %139 {strides = array<i32>} : memref<2x4096xf32, #tpu.memory_space<vmem>>, vector<2x64xf32>,
    %141 = vector.extract_strided_slice %74 {offsets = [0, 22, 0], sizes = [2, 1, 64], strides = [1, 1, 1]} : vector<2x64x64xf32> to vector<2x1x64xf32>
    %142 = vector.shape_cast %141 : vector<2x1x64xf32> to vector<2x64xf32>
    %c0_135 = arith.constant 0 : index
    %c1408 = arith.constant 1408 : index
    %143 = vector.load %arg11[%c0_135, %c1408] : memref<2x4096xf32, #tpu.memory_space<vmem>>, vector<2x64xf32>
    tpu.vector_store %arg11[%c0_135, %c1408], %142 {strides = array<i32>} : memref<2x4096xf32, #tpu.memory_space<vmem>>, vector<2x64xf32>,
    %144 = vector.extract_strided_slice %74 {offsets = [0, 23, 0], sizes = [2, 1, 64], strides = [1, 1, 1]} : vector<2x64x64xf32> to vector<2x1x64xf32>
    %145 = vector.shape_cast %144 : vector<2x1x64xf32> to vector<2x64xf32>
    %c0_136 = arith.constant 0 : index
    %c1472 = arith.constant 1472 : index
    %146 = vector.load %arg11[%c0_136, %c1472] : memref<2x4096xf32, #tpu.memory_space<vmem>>, vector<2x64xf32>
    tpu.vector_store %arg11[%c0_136, %c1472], %145 {strides = array<i32>} : memref<2x4096xf32, #tpu.memory_space<vmem>>, vector<2x64xf32>,
    %147 = vector.extract_strided_slice %74 {offsets = [0, 24, 0], sizes = [2, 1, 64], strides = [1, 1, 1]} : vector<2x64x64xf32> to vector<2x1x64xf32>
    %148 = vector.shape_cast %147 : vector<2x1x64xf32> to vector<2x64xf32>
    %c0_137 = arith.constant 0 : index
    %c1536 = arith.constant 1536 : index
    %149 = vector.load %arg11[%c0_137, %c1536] : memref<2x4096xf32, #tpu.memory_space<vmem>>, vector<2x64xf32>
    tpu.vector_store %arg11[%c0_137, %c1536], %148 {strides = array<i32>} : memref<2x4096xf32, #tpu.memory_space<vmem>>, vector<2x64xf32>,
    %150 = vector.extract_strided_slice %74 {offsets = [0, 25, 0], sizes = [2, 1, 64], strides = [1, 1, 1]} : vector<2x64x64xf32> to vector<2x1x64xf32>
    %151 = vector.shape_cast %150 : vector<2x1x64xf32> to vector<2x64xf32>
    %c0_138 = arith.constant 0 : index
    %c1600 = arith.constant 1600 : index
    %152 = vector.load %arg11[%c0_138, %c1600] : memref<2x4096xf32, #tpu.memory_space<vmem>>, vector<2x64xf32>
    tpu.vector_store %arg11[%c0_138, %c1600], %151 {strides = array<i32>} : memref<2x4096xf32, #tpu.memory_space<vmem>>, vector<2x64xf32>,
    %153 = vector.extract_strided_slice %74 {offsets = [0, 26, 0], sizes = [2, 1, 64], strides = [1, 1, 1]} : vector<2x64x64xf32> to vector<2x1x64xf32>
    %154 = vector.shape_cast %153 : vector<2x1x64xf32> to vector<2x64xf32>
    %c0_139 = arith.constant 0 : index
    %c1664 = arith.constant 1664 : index
    %155 = vector.load %arg11[%c0_139, %c1664] : memref<2x4096xf32, #tpu.memory_space<vmem>>, vector<2x64xf32>
    tpu.vector_store %arg11[%c0_139, %c1664], %154 {strides = array<i32>} : memref<2x4096xf32, #tpu.memory_space<vmem>>, vector<2x64xf32>,
    %156 = vector.extract_strided_slice %74 {offsets = [0, 27, 0], sizes = [2, 1, 64], strides = [1, 1, 1]} : vector<2x64x64xf32> to vector<2x1x64xf32>
    %157 = vector.shape_cast %156 : vector<2x1x64xf32> to vector<2x64xf32>
    %c0_140 = arith.constant 0 : index
    %c1728 = arith.constant 1728 : index
    %158 = vector.load %arg11[%c0_140, %c1728] : memref<2x4096xf32, #tpu.memory_space<vmem>>, vector<2x64xf32>
    tpu.vector_store %arg11[%c0_140, %c1728], %157 {strides = array<i32>} : memref<2x4096xf32, #tpu.memory_space<vmem>>, vector<2x64xf32>,
    %159 = vector.extract_strided_slice %74 {offsets = [0, 28, 0], sizes = [2, 1, 64], strides = [1, 1, 1]} : vector<2x64x64xf32> to vector<2x1x64xf32>
    %160 = vector.shape_cast %159 : vector<2x1x64xf32> to vector<2x64xf32>
    %c0_141 = arith.constant 0 : index
    %c1792 = arith.constant 1792 : index
    %161 = vector.load %arg11[%c0_141, %c1792] : memref<2x4096xf32, #tpu.memory_space<vmem>>, vector<2x64xf32>
    tpu.vector_store %arg11[%c0_141, %c1792], %160 {strides = array<i32>} : memref<2x4096xf32, #tpu.memory_space<vmem>>, vector<2x64xf32>,
    %162 = vector.extract_strided_slice %74 {offsets = [0, 29, 0], sizes = [2, 1, 64], strides = [1, 1, 1]} : vector<2x64x64xf32> to vector<2x1x64xf32>
    %163 = vector.shape_cast %162 : vector<2x1x64xf32> to vector<2x64xf32>
    %c0_142 = arith.constant 0 : index
    %c1856 = arith.constant 1856 : index
    %164 = vector.load %arg11[%c0_142, %c1856] : memref<2x4096xf32, #tpu.memory_space<vmem>>, vector<2x64xf32>
    tpu.vector_store %arg11[%c0_142, %c1856], %163 {strides = array<i32>} : memref<2x4096xf32, #tpu.memory_space<vmem>>, vector<2x64xf32>,
    %165 = vector.extract_strided_slice %74 {offsets = [0, 30, 0], sizes = [2, 1, 64], strides = [1, 1, 1]} : vector<2x64x64xf32> to vector<2x1x64xf32>
    %166 = vector.shape_cast %165 : vector<2x1x64xf32> to vector<2x64xf32>
    %c0_143 = arith.constant 0 : index
    %c1920 = arith.constant 1920 : index
    %167 = vector.load %arg11[%c0_143, %c1920] : memref<2x4096xf32, #tpu.memory_space<vmem>>, vector<2x64xf32>
    tpu.vector_store %arg11[%c0_143, %c1920], %166 {strides = array<i32>} : memref<2x4096xf32, #tpu.memory_space<vmem>>, vector<2x64xf32>,
    %168 = vector.extract_strided_slice %74 {offsets = [0, 31, 0], sizes = [2, 1, 64], strides = [1, 1, 1]} : vector<2x64x64xf32> to vector<2x1x64xf32>
    %169 = vector.shape_cast %168 : vector<2x1x64xf32> to vector<2x64xf32>
    %c0_144 = arith.constant 0 : index
    %c1984 = arith.constant 1984 : index
    %170 = vector.load %arg11[%c0_144, %c1984] : memref<2x4096xf32, #tpu.memory_space<vmem>>, vector<2x64xf32>
    tpu.vector_store %arg11[%c0_144, %c1984], %169 {strides = array<i32>} : memref<2x4096xf32, #tpu.memory_space<vmem>>, vector<2x64xf32>,
    %171 = vector.extract_strided_slice %74 {offsets = [0, 32, 0], sizes = [2, 1, 64], strides = [1, 1, 1]} : vector<2x64x64xf32> to vector<2x1x64xf32>
    %172 = vector.shape_cast %171 : vector<2x1x64xf32> to vector<2x64xf32>
    %c0_145 = arith.constant 0 : index
    %c2048 = arith.constant 2048 : index
    %173 = vector.load %arg11[%c0_145, %c2048] : memref<2x4096xf32, #tpu.memory_space<vmem>>, vector<2x64xf32>
    tpu.vector_store %arg11[%c0_145, %c2048], %172 {strides = array<i32>} : memref<2x4096xf32, #tpu.memory_space<vmem>>, vector<2x64xf32>,
    %174 = vector.extract_strided_slice %74 {offsets = [0, 33, 0], sizes = [2, 1, 64], strides = [1, 1, 1]} : vector<2x64x64xf32> to vector<2x1x64xf32>
    %175 = vector.shape_cast %174 : vector<2x1x64xf32> to vector<2x64xf32>
    %c0_146 = arith.constant 0 : index
    %c2112 = arith.constant 2112 : index
    %176 = vector.load %arg11[%c0_146, %c2112] : memref<2x4096xf32, #tpu.memory_space<vmem>>, vector<2x64xf32>
    tpu.vector_store %arg11[%c0_146, %c2112], %175 {strides = array<i32>} : memref<2x4096xf32, #tpu.memory_space<vmem>>, vector<2x64xf32>,
    %177 = vector.extract_strided_slice %74 {offsets = [0, 34, 0], sizes = [2, 1, 64], strides = [1, 1, 1]} : vector<2x64x64xf32> to vector<2x1x64xf32>
    %178 = vector.shape_cast %177 : vector<2x1x64xf32> to vector<2x64xf32>
    %c0_147 = arith.constant 0 : index
    %c2176 = arith.constant 2176 : index
    %179 = vector.load %arg11[%c0_147, %c2176] : memref<2x4096xf32, #tpu.memory_space<vmem>>, vector<2x64xf32>
    tpu.vector_store %arg11[%c0_147, %c2176], %178 {strides = array<i32>} : memref<2x4096xf32, #tpu.memory_space<vmem>>, vector<2x64xf32>,
    %180 = vector.extract_strided_slice %74 {offsets = [0, 35, 0], sizes = [2, 1, 64], strides = [1, 1, 1]} : vector<2x64x64xf32> to vector<2x1x64xf32>
    %181 = vector.shape_cast %180 : vector<2x1x64xf32> to vector<2x64xf32>
    %c0_148 = arith.constant 0 : index
    %c2240 = arith.constant 2240 : index
    %182 = vector.load %arg11[%c0_148, %c2240] : memref<2x4096xf32, #tpu.memory_space<vmem>>, vector<2x64xf32>
    tpu.vector_store %arg11[%c0_148, %c2240], %181 {strides = array<i32>} : memref<2x4096xf32, #tpu.memory_space<vmem>>, vector<2x64xf32>,
    %183 = vector.extract_strided_slice %74 {offsets = [0, 36, 0], sizes = [2, 1, 64], strides = [1, 1, 1]} : vector<2x64x64xf32> to vector<2x1x64xf32>
    %184 = vector.shape_cast %183 : vector<2x1x64xf32> to vector<2x64xf32>
    %c0_149 = arith.constant 0 : index
    %c2304 = arith.constant 2304 : index
    %185 = vector.load %arg11[%c0_149, %c2304] : memref<2x4096xf32, #tpu.memory_space<vmem>>, vector<2x64xf32>
    tpu.vector_store %arg11[%c0_149, %c2304], %184 {strides = array<i32>} : memref<2x4096xf32, #tpu.memory_space<vmem>>, vector<2x64xf32>,
    %186 = vector.extract_strided_slice %74 {offsets = [0, 37, 0], sizes = [2, 1, 64], strides = [1, 1, 1]} : vector<2x64x64xf32> to vector<2x1x64xf32>
    %187 = vector.shape_cast %186 : vector<2x1x64xf32> to vector<2x64xf32>
    %c0_150 = arith.constant 0 : index
    %c2368 = arith.constant 2368 : index
    %188 = vector.load %arg11[%c0_150, %c2368] : memref<2x4096xf32, #tpu.memory_space<vmem>>, vector<2x64xf32>
    tpu.vector_store %arg11[%c0_150, %c2368], %187 {strides = array<i32>} : memref<2x4096xf32, #tpu.memory_space<vmem>>, vector<2x64xf32>,
    %189 = vector.extract_strided_slice %74 {offsets = [0, 38, 0], sizes = [2, 1, 64], strides = [1, 1, 1]} : vector<2x64x64xf32> to vector<2x1x64xf32>
    %190 = vector.shape_cast %189 : vector<2x1x64xf32> to vector<2x64xf32>
    %c0_151 = arith.constant 0 : index
    %c2432 = arith.constant 2432 : index
    %191 = vector.load %arg11[%c0_151, %c2432] : memref<2x4096xf32, #tpu.memory_space<vmem>>, vector<2x64xf32>
    tpu.vector_store %arg11[%c0_151, %c2432], %190 {strides = array<i32>} : memref<2x4096xf32, #tpu.memory_space<vmem>>, vector<2x64xf32>,
    %192 = vector.extract_strided_slice %74 {offsets = [0, 39, 0], sizes = [2, 1, 64], strides = [1, 1, 1]} : vector<2x64x64xf32> to vector<2x1x64xf32>
    %193 = vector.shape_cast %192 : vector<2x1x64xf32> to vector<2x64xf32>
    %c0_152 = arith.constant 0 : index
    %c2496 = arith.constant 2496 : index
    %194 = vector.load %arg11[%c0_152, %c2496] : memref<2x4096xf32, #tpu.memory_space<vmem>>, vector<2x64xf32>
    tpu.vector_store %arg11[%c0_152, %c2496], %193 {strides = array<i32>} : memref<2x4096xf32, #tpu.memory_space<vmem>>, vector<2x64xf32>,
    %195 = vector.extract_strided_slice %74 {offsets = [0, 40, 0], sizes = [2, 1, 64], strides = [1, 1, 1]} : vector<2x64x64xf32> to vector<2x1x64xf32>
    %196 = vector.shape_cast %195 : vector<2x1x64xf32> to vector<2x64xf32>
    %c0_153 = arith.constant 0 : index
    %c2560 = arith.constant 2560 : index
    %197 = vector.load %arg11[%c0_153, %c2560] : memref<2x4096xf32, #tpu.memory_space<vmem>>, vector<2x64xf32>
    tpu.vector_store %arg11[%c0_153, %c2560], %196 {strides = array<i32>} : memref<2x4096xf32, #tpu.memory_space<vmem>>, vector<2x64xf32>,
    %198 = vector.extract_strided_slice %74 {offsets = [0, 41, 0], sizes = [2, 1, 64], strides = [1, 1, 1]} : vector<2x64x64xf32> to vector<2x1x64xf32>
    %199 = vector.shape_cast %198 : vector<2x1x64xf32> to vector<2x64xf32>
    %c0_154 = arith.constant 0 : index
    %c2624 = arith.constant 2624 : index
    %200 = vector.load %arg11[%c0_154, %c2624] : memref<2x4096xf32, #tpu.memory_space<vmem>>, vector<2x64xf32>
    tpu.vector_store %arg11[%c0_154, %c2624], %199 {strides = array<i32>} : memref<2x4096xf32, #tpu.memory_space<vmem>>, vector<2x64xf32>,
    %201 = vector.extract_strided_slice %74 {offsets = [0, 42, 0], sizes = [2, 1, 64], strides = [1, 1, 1]} : vector<2x64x64xf32> to vector<2x1x64xf32>
    %202 = vector.shape_cast %201 : vector<2x1x64xf32> to vector<2x64xf32>
    %c0_155 = arith.constant 0 : index
    %c2688 = arith.constant 2688 : index
    %203 = vector.load %arg11[%c0_155, %c2688] : memref<2x4096xf32, #tpu.memory_space<vmem>>, vector<2x64xf32>
    tpu.vector_store %arg11[%c0_155, %c2688], %202 {strides = array<i32>} : memref<2x4096xf32, #tpu.memory_space<vmem>>, vector<2x64xf32>,
    %204 = vector.extract_strided_slice %74 {offsets = [0, 43, 0], sizes = [2, 1, 64], strides = [1, 1, 1]} : vector<2x64x64xf32> to vector<2x1x64xf32>
    %205 = vector.shape_cast %204 : vector<2x1x64xf32> to vector<2x64xf32>
    %c0_156 = arith.constant 0 : index
    %c2752 = arith.constant 2752 : index
    %206 = vector.load %arg11[%c0_156, %c2752] : memref<2x4096xf32, #tpu.memory_space<vmem>>, vector<2x64xf32>
    tpu.vector_store %arg11[%c0_156, %c2752], %205 {strides = array<i32>} : memref<2x4096xf32, #tpu.memory_space<vmem>>, vector<2x64xf32>,
    %207 = vector.extract_strided_slice %74 {offsets = [0, 44, 0], sizes = [2, 1, 64], strides = [1, 1, 1]} : vector<2x64x64xf32> to vector<2x1x64xf32>
    %208 = vector.shape_cast %207 : vector<2x1x64xf32> to vector<2x64xf32>
    %c0_157 = arith.constant 0 : index
    %c2816 = arith.constant 2816 : index
    %209 = vector.load %arg11[%c0_157, %c2816] : memref<2x4096xf32, #tpu.memory_space<vmem>>, vector<2x64xf32>
    tpu.vector_store %arg11[%c0_157, %c2816], %208 {strides = array<i32>} : memref<2x4096xf32, #tpu.memory_space<vmem>>, vector<2x64xf32>,
    %210 = vector.extract_strided_slice %74 {offsets = [0, 45, 0], sizes = [2, 1, 64], strides = [1, 1, 1]} : vector<2x64x64xf32> to vector<2x1x64xf32>
    %211 = vector.shape_cast %210 : vector<2x1x64xf32> to vector<2x64xf32>
    %c0_158 = arith.constant 0 : index
    %c2880 = arith.constant 2880 : index
    %212 = vector.load %arg11[%c0_158, %c2880] : memref<2x4096xf32, #tpu.memory_space<vmem>>, vector<2x64xf32>
    tpu.vector_store %arg11[%c0_158, %c2880], %211 {strides = array<i32>} : memref<2x4096xf32, #tpu.memory_space<vmem>>, vector<2x64xf32>,
    %213 = vector.extract_strided_slice %74 {offsets = [0, 46, 0], sizes = [2, 1, 64], strides = [1, 1, 1]} : vector<2x64x64xf32> to vector<2x1x64xf32>
    %214 = vector.shape_cast %213 : vector<2x1x64xf32> to vector<2x64xf32>
    %c0_159 = arith.constant 0 : index
    %c2944 = arith.constant 2944 : index
    %215 = vector.load %arg11[%c0_159, %c2944] : memref<2x4096xf32, #tpu.memory_space<vmem>>, vector<2x64xf32>
    tpu.vector_store %arg11[%c0_159, %c2944], %214 {strides = array<i32>} : memref<2x4096xf32, #tpu.memory_space<vmem>>, vector<2x64xf32>,
    %216 = vector.extract_strided_slice %74 {offsets = [0, 47, 0], sizes = [2, 1, 64], strides = [1, 1, 1]} : vector<2x64x64xf32> to vector<2x1x64xf32>
    %217 = vector.shape_cast %216 : vector<2x1x64xf32> to vector<2x64xf32>
    %c0_160 = arith.constant 0 : index
    %c3008 = arith.constant 3008 : index
    %218 = vector.load %arg11[%c0_160, %c3008] : memref<2x4096xf32, #tpu.memory_space<vmem>>, vector<2x64xf32>
    tpu.vector_store %arg11[%c0_160, %c3008], %217 {strides = array<i32>} : memref<2x4096xf32, #tpu.memory_space<vmem>>, vector<2x64xf32>,
    %219 = vector.extract_strided_slice %74 {offsets = [0, 48, 0], sizes = [2, 1, 64], strides = [1, 1, 1]} : vector<2x64x64xf32> to vector<2x1x64xf32>
    %220 = vector.shape_cast %219 : vector<2x1x64xf32> to vector<2x64xf32>
    %c0_161 = arith.constant 0 : index
    %c3072 = arith.constant 3072 : index
    %221 = vector.load %arg11[%c0_161, %c3072] : memref<2x4096xf32, #tpu.memory_space<vmem>>, vector<2x64xf32>
    tpu.vector_store %arg11[%c0_161, %c3072], %220 {strides = array<i32>} : memref<2x4096xf32, #tpu.memory_space<vmem>>, vector<2x64xf32>,
    %222 = vector.extract_strided_slice %74 {offsets = [0, 49, 0], sizes = [2, 1, 64], strides = [1, 1, 1]} : vector<2x64x64xf32> to vector<2x1x64xf32>
    %223 = vector.shape_cast %222 : vector<2x1x64xf32> to vector<2x64xf32>
    %c0_162 = arith.constant 0 : index
    %c3136 = arith.constant 3136 : index
    %224 = vector.load %arg11[%c0_162, %c3136] : memref<2x4096xf32, #tpu.memory_space<vmem>>, vector<2x64xf32>
    tpu.vector_store %arg11[%c0_162, %c3136], %223 {strides = array<i32>} : memref<2x4096xf32, #tpu.memory_space<vmem>>, vector<2x64xf32>,
    %225 = vector.extract_strided_slice %74 {offsets = [0, 50, 0], sizes = [2, 1, 64], strides = [1, 1, 1]} : vector<2x64x64xf32> to vector<2x1x64xf32>
    %226 = vector.shape_cast %225 : vector<2x1x64xf32> to vector<2x64xf32>
    %c0_163 = arith.constant 0 : index
    %c3200 = arith.constant 3200 : index
    %227 = vector.load %arg11[%c0_163, %c3200] : memref<2x4096xf32, #tpu.memory_space<vmem>>, vector<2x64xf32>
    tpu.vector_store %arg11[%c0_163, %c3200], %226 {strides = array<i32>} : memref<2x4096xf32, #tpu.memory_space<vmem>>, vector<2x64xf32>,
    %228 = vector.extract_strided_slice %74 {offsets = [0, 51, 0], sizes = [2, 1, 64], strides = [1, 1, 1]} : vector<2x64x64xf32> to vector<2x1x64xf32>
    %229 = vector.shape_cast %228 : vector<2x1x64xf32> to vector<2x64xf32>
    %c0_164 = arith.constant 0 : index
    %c3264 = arith.constant 3264 : index
    %230 = vector.load %arg11[%c0_164, %c3264] : memref<2x4096xf32, #tpu.memory_space<vmem>>, vector<2x64xf32>
    tpu.vector_store %arg11[%c0_164, %c3264], %229 {strides = array<i32>} : memref<2x4096xf32, #tpu.memory_space<vmem>>, vector<2x64xf32>,
    %231 = vector.extract_strided_slice %74 {offsets = [0, 52, 0], sizes = [2, 1, 64], strides = [1, 1, 1]} : vector<2x64x64xf32> to vector<2x1x64xf32>
    %232 = vector.shape_cast %231 : vector<2x1x64xf32> to vector<2x64xf32>
    %c0_165 = arith.constant 0 : index
    %c3328 = arith.constant 3328 : index
    %233 = vector.load %arg11[%c0_165, %c3328] : memref<2x4096xf32, #tpu.memory_space<vmem>>, vector<2x64xf32>
    tpu.vector_store %arg11[%c0_165, %c3328], %232 {strides = array<i32>} : memref<2x4096xf32, #tpu.memory_space<vmem>>, vector<2x64xf32>,
    %234 = vector.extract_strided_slice %74 {offsets = [0, 53, 0], sizes = [2, 1, 64], strides = [1, 1, 1]} : vector<2x64x64xf32> to vector<2x1x64xf32>
    %235 = vector.shape_cast %234 : vector<2x1x64xf32> to vector<2x64xf32>
    %c0_166 = arith.constant 0 : index
    %c3392 = arith.constant 3392 : index
    %236 = vector.load %arg11[%c0_166, %c3392] : memref<2x4096xf32, #tpu.memory_space<vmem>>, vector<2x64xf32>
    tpu.vector_store %arg11[%c0_166, %c3392], %235 {strides = array<i32>} : memref<2x4096xf32, #tpu.memory_space<vmem>>, vector<2x64xf32>,
    %237 = vector.extract_strided_slice %74 {offsets = [0, 54, 0], sizes = [2, 1, 64], strides = [1, 1, 1]} : vector<2x64x64xf32> to vector<2x1x64xf32>
    %238 = vector.shape_cast %237 : vector<2x1x64xf32> to vector<2x64xf32>
    %c0_167 = arith.constant 0 : index
    %c3456 = arith.constant 3456 : index
    %239 = vector.load %arg11[%c0_167, %c3456] : memref<2x4096xf32, #tpu.memory_space<vmem>>, vector<2x64xf32>
    tpu.vector_store %arg11[%c0_167, %c3456], %238 {strides = array<i32>} : memref<2x4096xf32, #tpu.memory_space<vmem>>, vector<2x64xf32>,
    %240 = vector.extract_strided_slice %74 {offsets = [0, 55, 0], sizes = [2, 1, 64], strides = [1, 1, 1]} : vector<2x64x64xf32> to vector<2x1x64xf32>
    %241 = vector.shape_cast %240 : vector<2x1x64xf32> to vector<2x64xf32>
    %c0_168 = arith.constant 0 : index
    %c3520 = arith.constant 3520 : index
    %242 = vector.load %arg11[%c0_168, %c3520] : memref<2x4096xf32, #tpu.memory_space<vmem>>, vector<2x64xf32>
    tpu.vector_store %arg11[%c0_168, %c3520], %241 {strides = array<i32>} : memref<2x4096xf32, #tpu.memory_space<vmem>>, vector<2x64xf32>,
    %243 = vector.extract_strided_slice %74 {offsets = [0, 56, 0], sizes = [2, 1, 64], strides = [1, 1, 1]} : vector<2x64x64xf32> to vector<2x1x64xf32>
    %244 = vector.shape_cast %243 : vector<2x1x64xf32> to vector<2x64xf32>
    %c0_169 = arith.constant 0 : index
    %c3584 = arith.constant 3584 : index
    %245 = vector.load %arg11[%c0_169, %c3584] : memref<2x4096xf32, #tpu.memory_space<vmem>>, vector<2x64xf32>
    tpu.vector_store %arg11[%c0_169, %c3584], %244 {strides = array<i32>} : memref<2x4096xf32, #tpu.memory_space<vmem>>, vector<2x64xf32>,
    %246 = vector.extract_strided_slice %74 {offsets = [0, 57, 0], sizes = [2, 1, 64], strides = [1, 1, 1]} : vector<2x64x64xf32> to vector<2x1x64xf32>
    %247 = vector.shape_cast %246 : vector<2x1x64xf32> to vector<2x64xf32>
    %c0_170 = arith.constant 0 : index
    %c3648 = arith.constant 3648 : index
    %248 = vector.load %arg11[%c0_170, %c3648] : memref<2x4096xf32, #tpu.memory_space<vmem>>, vector<2x64xf32>
    tpu.vector_store %arg11[%c0_170, %c3648], %247 {strides = array<i32>} : memref<2x4096xf32, #tpu.memory_space<vmem>>, vector<2x64xf32>,
    %249 = vector.extract_strided_slice %74 {offsets = [0, 58, 0], sizes = [2, 1, 64], strides = [1, 1, 1]} : vector<2x64x64xf32> to vector<2x1x64xf32>
    %250 = vector.shape_cast %249 : vector<2x1x64xf32> to vector<2x64xf32>
    %c0_171 = arith.constant 0 : index
    %c3712 = arith.constant 3712 : index
    %251 = vector.load %arg11[%c0_171, %c3712] : memref<2x4096xf32, #tpu.memory_space<vmem>>, vector<2x64xf32>
    tpu.vector_store %arg11[%c0_171, %c3712], %250 {strides = array<i32>} : memref<2x4096xf32, #tpu.memory_space<vmem>>, vector<2x64xf32>,
    %252 = vector.extract_strided_slice %74 {offsets = [0, 59, 0], sizes = [2, 1, 64], strides = [1, 1, 1]} : vector<2x64x64xf32> to vector<2x1x64xf32>
    %253 = vector.shape_cast %252 : vector<2x1x64xf32> to vector<2x64xf32>
    %c0_172 = arith.constant 0 : index
    %c3776 = arith.constant 3776 : index
    %254 = vector.load %arg11[%c0_172, %c3776] : memref<2x4096xf32, #tpu.memory_space<vmem>>, vector<2x64xf32>
    tpu.vector_store %arg11[%c0_172, %c3776], %253 {strides = array<i32>} : memref<2x4096xf32, #tpu.memory_space<vmem>>, vector<2x64xf32>,
    %255 = vector.extract_strided_slice %74 {offsets = [0, 60, 0], sizes = [2, 1, 64], strides = [1, 1, 1]} : vector<2x64x64xf32> to vector<2x1x64xf32>
    %256 = vector.shape_cast %255 : vector<2x1x64xf32> to vector<2x64xf32>
    %c0_173 = arith.constant 0 : index
    %c3840 = arith.constant 3840 : index
    %257 = vector.load %arg11[%c0_173, %c3840] : memref<2x4096xf32, #tpu.memory_space<vmem>>, vector<2x64xf32>
    tpu.vector_store %arg11[%c0_173, %c3840], %256 {strides = array<i32>} : memref<2x4096xf32, #tpu.memory_space<vmem>>, vector<2x64xf32>,
    %258 = vector.extract_strided_slice %74 {offsets = [0, 61, 0], sizes = [2, 1, 64], strides = [1, 1, 1]} : vector<2x64x64xf32> to vector<2x1x64xf32>
    %259 = vector.shape_cast %258 : vector<2x1x64xf32> to vector<2x64xf32>
    %c0_174 = arith.constant 0 : index
    %c3904 = arith.constant 3904 : index
    %260 = vector.load %arg11[%c0_174, %c3904] : memref<2x4096xf32, #tpu.memory_space<vmem>>, vector<2x64xf32>
    tpu.vector_store %arg11[%c0_174, %c3904], %259 {strides = array<i32>} : memref<2x4096xf32, #tpu.memory_space<vmem>>, vector<2x64xf32>,
    %261 = vector.extract_strided_slice %74 {offsets = [0, 62, 0], sizes = [2, 1, 64], strides = [1, 1, 1]} : vector<2x64x64xf32> to vector<2x1x64xf32>
    %262 = vector.shape_cast %261 : vector<2x1x64xf32> to vector<2x64xf32>
    %c0_175 = arith.constant 0 : index
    %c3968 = arith.constant 3968 : index
    %263 = vector.load %arg11[%c0_175, %c3968] : memref<2x4096xf32, #tpu.memory_space<vmem>>, vector<2x64xf32>
    tpu.vector_store %arg11[%c0_175, %c3968], %262 {strides = array<i32>} : memref<2x4096xf32, #tpu.memory_space<vmem>>, vector<2x64xf32>,
    %264 = vector.extract_strided_slice %74 {offsets = [0, 63, 0], sizes = [2, 1, 64], strides = [1, 1, 1]} : vector<2x64x64xf32> to vector<2x1x64xf32>
    %265 = vector.shape_cast %264 : vector<2x1x64xf32> to vector<2x64xf32>
    %c0_176 = arith.constant 0 : index
    %c4032 = arith.constant 4032 : index
    %266 = vector.load %arg11[%c0_176, %c4032] : memref<2x4096xf32, #tpu.memory_space<vmem>>, vector<2x64xf32>
    tpu.vector_store %arg11[%c0_176, %c4032], %265 {strides = array<i32>} : memref<2x4096xf32, #tpu.memory_space<vmem>>, vector<2x64xf32>,
    %c0_177 = arith.constant 0 : index
    %c0_178 = arith.constant 0 : index
    %267 = vector.load %arg11[%c0_177, %c0_178] : memref<2x4096xf32, #tpu.memory_space<vmem>>, vector<2x4096xf32>
    %c0_179 = arith.constant 0 : index
    %c0_180 = arith.constant 0 : index
    %268 = vector.load %arg7[%c0_179, %c0_180] : memref<4096x64xf32, #tpu.memory_space<vmem>>, vector<4096x64xf32>
    %cst_181 = arith.constant dense<0.000000e+00> : vector<2x64xf32>
    %269 = tpu.matmul %267, %268, %cst_181 {dimension_numbers = #tpu.dot_dimension_numbers<[1], [0], [0], [1], [0, 0, 1, 1], [], []>} : vector<2x4096xf32>, vector<4096x64xf32>, vector<2x64xf32> -> vector<2x64xf32>
    %c0_182 = arith.constant 0 : index
    %c0_183 = arith.constant 0 : index
    %270 = vector.load %arg8[%c0_182, %c0_183] : memref<1x64xf32, #tpu.memory_space<vmem>>, vector<1x64xf32>
    %271 = vector.broadcast %270 : vector<1x64xf32> to vector<2x64xf32>
    %272 = arith.addf %269, %271 : vector<2x64xf32>
    %c0_184 = arith.constant 0 : index
    %c0_185 = arith.constant 0 : index
    %273 = vector.load %arg9[%c0_184, %c0_185] : memref<2x64xf32, #tpu.memory_space<vmem>>, vector<2x64xf32>
    tpu.vector_store %arg9[%c0_184, %c0_185], %272 {strides = array<i32>} : memref<2x64xf32, #tpu.memory_space<vmem>>, vector<2x64xf32>,
    return
  }
}

</mosaic_0001>

<llo_original>
// kernel: forward.1
$region0: #{forward.1}
  #allocation0 [shape = 'u32[]', space=smem, size = 0x4, offset = 0x4, fixed_abs, tag = 'smem constant byte address 0x4 - core index']
  #allocation1 [shape = 'u32[144,128]{1,0:T(1,128)}', space=vmem, size = 0x12000, scoped, tag = 'internal scratch']
  #allocation2 [shape = 'f32[2,8,8,800]{3,2,1,0:T(8,128)}', space=vmem, size = 0x70000, scoped, tag = 'scratch operand']
  #allocation3 [shape = 'f32[2,4096]{1,0:T(2,128)}', space=vmem, size = 0x8000, scoped, tag = 'scratch operand']
  %s0 = inlined_call_operand.vmem [shape: f32[512,25], index: 0, kind: input, shape index: {}]
  %s1 = inlined_call_operand.vmem [shape: f32[25,32], index: 1, kind: input, shape index: {}]
  %s2 = inlined_call_operand.vmem [shape: f32[1,32], index: 2, kind: input, shape index: {}]
  %s3 = inlined_call_operand.vmem [shape: f32[128,512], index: 3, kind: input, shape index: {}]
  %s4 = inlined_call_operand.vmem [shape: f32[128,1], index: 4, kind: input, shape index: {}]
  %s5 = inlined_call_operand.vmem [shape: f32[800,64], index: 5, kind: input, shape index: {}]
  %s6 = inlined_call_operand.vmem [shape: f32[1,64], index: 6, kind: input, shape index: {}]
  %s7 = inlined_call_operand.vmem [shape: f32[4096,64], index: 7, kind: input, shape index: {}]
  %s8 = inlined_call_operand.vmem [shape: f32[1,64], index: 8, kind: input, shape index: {}]
  %s9 = inlined_call_operand.hbm [shape: f32[2,64], index: 9, kind: output, shape index: {}]
  %s10 = sld [smem:[#allocation0]]
  $region46: #{forward.1} parent=0
    _
  %s12 = ssub.s32 1, %s10
  %s13 = scalar_select 0, %s12, %s10
  $region1: #{forward.1} parent=0
    #allocation4 [shape = 'u8[1024]{0}', space=vmem, size = 0x400, scoped, tag = 'output window, operand 0, single buffered']
    #allocation5 [shape = 's32[1]{0}', space=sflag, size = 0x4, scoped, tag = 'scoped memory for forward.1']
    %14 = vsyncpa [#allocation5], 0
    // Predicated region
    $region2: #{forward.1} parent=1 // pred_check
      _
    $region3: #{forward.1} parent=1 // pred_check_branch
      %16 = sbr.rel (0) target = $region5
    $region4: #{forward.1} parent=1 // pred_region
      _
    $region5: #{forward.1} parent=1 // pred_fallthru
      _
    // Predicated region
    $region6: #{forward.1} parent=1 // pred_check
      _
    $region7: #{forward.1} parent=1 // pred_check_branch
      %18 = sbr.rel (0) target = $region9
    $region8: #{forward.1} parent=1 // pred_region
      _
    $region9: #{forward.1} parent=1 // pred_fallthru
      _
    // Predicated region
    $region10: #{forward.1} parent=1 // pred_check
      _
    $region11: #{forward.1} parent=1 // pred_check_branch
      %20 = sbr.rel (0) target = $region13
    $region12: #{forward.1} parent=1 // pred_region
      _
    $region13: #{forward.1} parent=1 // pred_fallthru
      _
    // Predicated region
    $region14: #{forward.1} parent=1 // pred_check
      _
    $region15: #{forward.1} parent=1 // pred_check_branch
      %22 = sbr.rel (0) target = $region17
    $region16: #{forward.1} parent=1 // pred_region
      _
    $region17: #{forward.1} parent=1 // pred_fallthru
      _
    // Predicated region
    $region18: #{forward.1} parent=1 // pred_check
      _
    $region19: #{forward.1} parent=1 // pred_check_branch
      %24 = sbr.rel (0) target = $region21
    $region20: #{forward.1} parent=1 // pred_region
      _
    $region21: #{forward.1} parent=1 // pred_fallthru
      _
    // Predicated region
    $region22: #{forward.1} parent=1 // pred_check
      _
    $region23: #{forward.1} parent=1 // pred_check_branch
      %26 = sbr.rel (0) target = $region25
    $region24: #{forward.1} parent=1 // pred_region
      _
    $region25: #{forward.1} parent=1 // pred_fallthru
      _
    // Predicated region
    $region26: #{forward.1} parent=1 // pred_check
      _
    $region27: #{forward.1} parent=1 // pred_check_branch
      %28 = sbr.rel (0) target = $region29
    $region28: #{forward.1} parent=1 // pred_region
      _
    $region29: #{forward.1} parent=1 // pred_fallthru
      _
    // Predicated region
    $region30: #{forward.1} parent=1 // pred_check
      _
    $region31: #{forward.1} parent=1 // pred_check_branch
      %30 = sbr.rel (0) target = $region33
    $region32: #{forward.1} parent=1 // pred_region
      _
    $region33: #{forward.1} parent=1 // pred_fallthru
      _
    // Predicated region
    $region34: #{forward.1} parent=1 // pred_check
      _
    $region35: #{forward.1} parent=1 // pred_check_branch
      %32 = sbr.rel (0) target = $region37
    $region36: #{forward.1} parent=1 // pred_region
      _
    $region37: #{forward.1} parent=1 // pred_fallthru
      _
    %v33 = vld [vmem:[%s0] sm:$0xff]
    %v34 = vld [vmem:[%s0 + $0x8] sm:$0xff]
    %v35 = vld [vmem:[%s0 + $0x10] sm:$0xff]
    %v36 = vld [vmem:[%s0 + $0x18] sm:$0xff]
    %v37 = vld [vmem:[%s0 + $0x20] sm:$0xff]
    %v38 = vld [vmem:[%s0 + $0x28] sm:$0xff]
    %v39 = vld [vmem:[%s0 + $0x30] sm:$0xff]
    %v40 = vld [vmem:[%s0 + $0x38] sm:$0xff]
    %v41 = vld [vmem:[%s0 + $0x40] sm:$0xff]
    %v42 = vld [vmem:[%s0 + $0x48] sm:$0xff]
    %v43 = vld [vmem:[%s0 + $0x50] sm:$0xff]
    %v44 = vld [vmem:[%s0 + $0x58] sm:$0xff]
    %v45 = vld [vmem:[%s0 + $0x60] sm:$0xff]
    %v46 = vld [vmem:[%s0 + $0x68] sm:$0xff]
    %v47 = vld [vmem:[%s0 + $0x70] sm:$0xff]
    %v48 = vld [vmem:[%s0 + $0x78] sm:$0xff]
    %v49 = vld [vmem:[%s0 + $0x80] sm:$0xff]
    %v50 = vld [vmem:[%s0 + $0x88] sm:$0xff]
    %v51 = vld [vmem:[%s0 + $0x90] sm:$0xff]
    %v52 = vld [vmem:[%s0 + $0x98] sm:$0xff]
    %v53 = vld [vmem:[%s0 + $0xa0] sm:$0xff]
    %v54 = vld [vmem:[%s0 + $0xa8] sm:$0xff]
    %v55 = vld [vmem:[%s0 + $0xb0] sm:$0xff]
    %v56 = vld [vmem:[%s0 + $0xb8] sm:$0xff]
    %v57 = vld [vmem:[%s0 + $0xc0] sm:$0xff]
    %v58 = vld [vmem:[%s0 + $0xc8] sm:$0xff]
    %v59 = vld [vmem:[%s0 + $0xd0] sm:$0xff]
    %v60 = vld [vmem:[%s0 + $0xd8] sm:$0xff]
    %v61 = vld [vmem:[%s0 + $0xe0] sm:$0xff]
    %v62 = vld [vmem:[%s0 + $0xe8] sm:$0xff]
    %v63 = vld [vmem:[%s0 + $0xf0] sm:$0xff]
    %v64 = vld [vmem:[%s0 + $0xf8] sm:$0xff]
    %v65 = vld [vmem:[%s0 + $0x100] sm:$0xff]
    %v66 = vld [vmem:[%s0 + $0x108] sm:$0xff]
    %v67 = vld [vmem:[%s0 + $0x110] sm:$0xff]
    %v68 = vld [vmem:[%s0 + $0x118] sm:$0xff]
    %v69 = vld [vmem:[%s0 + $0x120] sm:$0xff]
    %v70 = vld [vmem:[%s0 + $0x128] sm:$0xff]
    %v71 = vld [vmem:[%s0 + $0x130] sm:$0xff]
    %v72 = vld [vmem:[%s0 + $0x138] sm:$0xff]
    %v73 = vld [vmem:[%s0 + $0x140] sm:$0xff]
    %v74 = vld [vmem:[%s0 + $0x148] sm:$0xff]
    %v75 = vld [vmem:[%s0 + $0x150] sm:$0xff]
    %v76 = vld [vmem:[%s0 + $0x158] sm:$0xff]
    %v77 = vld [vmem:[%s0 + $0x160] sm:$0xff]
    %v78 = vld [vmem:[%s0 + $0x168] sm:$0xff]
    %v79 = vld [vmem:[%s0 + $0x170] sm:$0xff]
    %v80 = vld [vmem:[%s0 + $0x178] sm:$0xff]
    %v81 = vld [vmem:[%s0 + $0x180] sm:$0xff]
    %v82 = vld [vmem:[%s0 + $0x188] sm:$0xff]
    %v83 = vld [vmem:[%s0 + $0x190] sm:$0xff]
    %v84 = vld [vmem:[%s0 + $0x198] sm:$0xff]
    %v85 = vld [vmem:[%s0 + $0x1a0] sm:$0xff]
    %v86 = vld [vmem:[%s0 + $0x1a8] sm:$0xff]
    %v87 = vld [vmem:[%s0 + $0x1b0] sm:$0xff]
    %v88 = vld [vmem:[%s0 + $0x1b8] sm:$0xff]
    %v89 = vld [vmem:[%s0 + $0x1c0] sm:$0xff]
    %v90 = vld [vmem:[%s0 + $0x1c8] sm:$0xff]
    %v91 = vld [vmem:[%s0 + $0x1d0] sm:$0xff]
    %v92 = vld [vmem:[%s0 + $0x1d8] sm:$0xff]
    %v93 = vld [vmem:[%s0 + $0x1e0] sm:$0xff]
    %v94 = vld [vmem:[%s0 + $0x1e8] sm:$0xff]
    %v95 = vld [vmem:[%s0 + $0x1f0] sm:$0xff]
    %v96 = vld [vmem:[%s0 + $0x1f8] sm:$0xff]
    %v97 = vld [vmem:[%s1] sm:$0xff]
    %v98 = vld [vmem:[%s1 + $0x8] sm:$0xff]
    %v99 = vld [vmem:[%s1 + $0x10] sm:$0xff]
    %v100 = vld [vmem:[%s1 + $0x18] sm:$0x1]
    %v101 = vld [vmem:[%s2] sm:$0x1]
    %v103 = vlaneseq
    %v104 = vshrl.u32 %v103, 7
    %v105 = vsub.s32 0, %v104
    %v106 = vrot.slane %v101, %v105
    %vm108 = vcmask 203776
    %v110 = vsel %vm108, %v33, 0
    %v113 = vsel %vm108, %v34, 0
    %v116 = vsel %vm108, %v35, 0
    %v119 = vsel %vm108, %v36, 0
    %v122 = vsel %vm108, %v37, 0
    %v125 = vsel %vm108, %v38, 0
    %v128 = vsel %vm108, %v39, 0
    %v131 = vsel %vm108, %v40, 0
    %v134 = vsel %vm108, %v41, 0
    %v137 = vsel %vm108, %v42, 0
    %v140 = vsel %vm108, %v43, 0
    %v143 = vsel %vm108, %v44, 0
    %v146 = vsel %vm108, %v45, 0
    %v149 = vsel %vm108, %v46, 0
    %v152 = vsel %vm108, %v47, 0
    %v155 = vsel %vm108, %v48, 0
    %v158 = vsel %vm108, %v49, 0
    %v161 = vsel %vm108, %v50, 0
    %v164 = vsel %vm108, %v51, 0
    %v167 = vsel %vm108, %v52, 0
    %v170 = vsel %vm108, %v53, 0
    %v173 = vsel %vm108, %v54, 0
    %v176 = vsel %vm108, %v55, 0
    %v179 = vsel %vm108, %v56, 0
    %v182 = vsel %vm108, %v57, 0
    %v185 = vsel %vm108, %v58, 0
    %v188 = vsel %vm108, %v59, 0
    %v191 = vsel %vm108, %v60, 0
    %v194 = vsel %vm108, %v61, 0
    %v197 = vsel %vm108, %v62, 0
    %v200 = vsel %vm108, %v63, 0
    %v203 = vsel %vm108, %v64, 0
    %v206 = vsel %vm108, %v65, 0
    %v209 = vsel %vm108, %v66, 0
    %v212 = vsel %vm108, %v67, 0
    %v215 = vsel %vm108, %v68, 0
    %v218 = vsel %vm108, %v69, 0
    %v221 = vsel %vm108, %v70, 0
    %v224 = vsel %vm108, %v71, 0
    %v227 = vsel %vm108, %v72, 0
    %v230 = vsel %vm108, %v73, 0
    %v233 = vsel %vm108, %v74, 0
    %v236 = vsel %vm108, %v75, 0
    %v239 = vsel %vm108, %v76, 0
    %v242 = vsel %vm108, %v77, 0
    %v245 = vsel %vm108, %v78, 0
    %v248 = vsel %vm108, %v79, 0
    %v251 = vsel %vm108, %v80, 0
    %v254 = vsel %vm108, %v81, 0
    %v257 = vsel %vm108, %v82, 0
    %v260 = vsel %vm108, %v83, 0
    %v263 = vsel %vm108, %v84, 0
    %v266 = vsel %vm108, %v85, 0
    %v269 = vsel %vm108, %v86, 0
    %v272 = vsel %vm108, %v87, 0
    %v275 = vsel %vm108, %v88, 0
    %v278 = vsel %vm108, %v89, 0
    %v281 = vsel %vm108, %v90, 0
    %v284 = vsel %vm108, %v91, 0
    %v287 = vsel %vm108, %v92, 0
    %v290 = vsel %vm108, %v93, 0
    %v293 = vsel %vm108, %v94, 0
    %v296 = vsel %vm108, %v95, 0
    %v299 = vsel %vm108, %v96, 0
    %vm301 = vcmask 1040384
    %v303 = vsel %vm301, %v100, 0
    %305 = vmatprep.subr.mxu0 0.0
    %306 = vmatpush1.msra.mxu0 %v97
    %307 = vmatprep.subr.mxu0 0.0
    %308 = vmatpush1.msra.mxu0 %v98
    %309 = vmatprep.subr.mxu0 0.0
    %310 = vmatpush1.msra.mxu0 %v99
    %311 = vmatprep.subr.mxu0 0.0
    %312 = vmatpush1.msra.mxu0 %v303
    %313 = vmatprep.subr.mxu0 0.0
    %314 = vmatpush1.msra.mxu0 0.0
    %315 = vmatprep.subr.mxu0 0.0
    %316 = vmatpush1.msra.mxu0 0.0
    %317 = vmatprep.subr.mxu0 0.0
    %318 = vmatpush1.msra.mxu0 0.0
    %319 = vmatprep.subr.mxu0 0.0
    %320 = vmatpush1.msra.mxu0 0.0
    %321 = vmatprep.subr.mxu0 0.0
    %322 = vmatpush1.msra.mxu0 0.0
    %323 = vmatprep.subr.mxu0 0.0
    %324 = vmatpush1.msra.mxu0 0.0
    %325 = vmatprep.subr.mxu0 0.0
    %326 = vmatpush1.msra.mxu0 0.0
    %327 = vmatprep.subr.mxu0 0.0
    %328 = vmatpush1.msra.mxu0 0.0
    %329 = vmatprep.subr.mxu0 0.0
    %330 = vmatpush1.msra.mxu0 0.0
    %331 = vmatprep.subr.mxu0 0.0
    %332 = vmatpush1.msra.mxu0 0.0
    %333 = vmatprep.subr.mxu0 0.0
    %334 = vmatpush1.msra.mxu0 0.0
    %335 = vmatprep.subr.mxu0 0.0
    %336 = vmatpush1.msra.mxu0 0.0
    %337 = vmatprep.subr.mxu0 0.0
    %338 = vmatpush1.msra.mxu0 0.0
    %339 = vmatprep.subr.mxu0 0.0
    %340 = vmatpush1.msra.mxu0 0.0
    %341 = vmatprep.subr.mxu0 0.0
    %342 = vmatpush1.msra.mxu0 0.0
    %343 = vmatprep.subr.mxu0 0.0
    %344 = vmatpush1.msra.mxu0 0.0
    %345 = vmatprep.subr.mxu0 0.0
    %346 = vmatpush1.msra.mxu0 0.0
    %347 = vmatprep.subr.mxu0 0.0
    %348 = vmatpush1.msra.mxu0 0.0
    %349 = vmatprep.subr.mxu0 0.0
    %350 = vmatpush1.msra.mxu0 0.0
    %351 = vmatprep.subr.mxu0 0.0
    %352 = vmatpush1.msra.mxu0 0.0
    %353 = vmatprep.subr.mxu0 0.0
    %354 = vmatpush1.msra.mxu0 0.0
    %355 = vmatprep.subr.mxu0 0.0
    %356 = vmatpush1.msra.mxu0 0.0
    %357 = vmatprep.subr.mxu0 0.0
    %358 = vmatpush1.msra.mxu0 0.0
    %359 = vmatprep.subr.mxu0 0.0
    %360 = vmatpush1.msra.mxu0 0.0
    %361 = vmatprep.subr.mxu0 0.0
    %362 = vmatpush1.msra.mxu0 0.0
    %363 = vmatprep.subr.mxu0 0.0
    %364 = vmatpush1.msra.mxu0 0.0
    %365 = vmatprep.subr.mxu0 0.0
    %366 = vmatpush1.msra.mxu0 0.0
    %367 = vmatprep.subr.mxu0 0.0
    %368 = vmatpush1.msra.mxu0 0.0
    %369 = vmatprep.mubr.f32.mxu0 0.0
    %370 = vmatmul.mubr.f32.gmra.mrb[0].mxu0 %v110
    %v371 = vpop.f32.mrb[0].mxu0
    %v372 = vadd.f32 %v106, %v371
    %v373 = vpop.f32.mrb[0].mxu0
    %374 = vmatprep.mubr.f32.mxu0 0.0
    %375 = vmatmul.mubr.f32.gmra.mrb[0].mxu0 %v113
    %v376 = vpop.f32.mrb[0].mxu0
    %v377 = vadd.f32 %v106, %v376
    %v378 = vpop.f32.mrb[0].mxu0
    %379 = vmatprep.mubr.f32.mxu0 0.0
    %380 = vmatmul.mubr.f32.gmra.mrb[0].mxu0 %v116
    %v381 = vpop.f32.mrb[0].mxu0
    %v382 = vadd.f32 %v106, %v381
    %v383 = vpop.f32.mrb[0].mxu0
    %384 = vmatprep.mubr.f32.mxu0 0.0
    %385 = vmatmul.mubr.f32.gmra.mrb[0].mxu0 %v119
    %v386 = vpop.f32.mrb[0].mxu0
    %v387 = vadd.f32 %v106, %v386
    %v388 = vpop.f32.mrb[0].mxu0
    %389 = vmatprep.mubr.f32.mxu0 0.0
    %390 = vmatmul.mubr.f32.gmra.mrb[0].mxu0 %v122
    %v391 = vpop.f32.mrb[0].mxu0
    %v392 = vadd.f32 %v106, %v391
    %v393 = vpop.f32.mrb[0].mxu0
    %394 = vmatprep.mubr.f32.mxu0 0.0
    %395 = vmatmul.mubr.f32.gmra.mrb[0].mxu0 %v125
    %v396 = vpop.f32.mrb[0].mxu0
    %v397 = vadd.f32 %v106, %v396
    %v398 = vpop.f32.mrb[0].mxu0
    %399 = vmatprep.mubr.f32.mxu0 0.0
    %400 = vmatmul.mubr.f32.gmra.mrb[0].mxu0 %v128
    %v401 = vpop.f32.mrb[0].mxu0
    %v402 = vadd.f32 %v106, %v401
    %v403 = vpop.f32.mrb[0].mxu0
    %404 = vmatprep.mubr.f32.mxu0 0.0
    %405 = vmatmul.mubr.f32.gmra.mrb[0].mxu0 %v131
    %v406 = vpop.f32.mrb[0].mxu0
    %v407 = vadd.f32 %v106, %v406
    %v408 = vpop.f32.mrb[0].mxu0
    %409 = vmatprep.mubr.f32.mxu0 0.0
    %410 = vmatmul.mubr.f32.gmra.mrb[0].mxu0 %v134
    %v411 = vpop.f32.mrb[0].mxu0
    %v412 = vadd.f32 %v106, %v411
    %v413 = vpop.f32.mrb[0].mxu0
    %414 = vmatprep.mubr.f32.mxu0 0.0
    %415 = vmatmul.mubr.f32.gmra.mrb[0].mxu0 %v137
    %v416 = vpop.f32.mrb[0].mxu0
    %v417 = vadd.f32 %v106, %v416
    %v418 = vpop.f32.mrb[0].mxu0
    %419 = vmatprep.mubr.f32.mxu0 0.0
    %420 = vmatmul.mubr.f32.gmra.mrb[0].mxu0 %v140
    %v421 = vpop.f32.mrb[0].mxu0
    %v422 = vadd.f32 %v106, %v421
    %v423 = vpop.f32.mrb[0].mxu0
    %424 = vmatprep.mubr.f32.mxu0 0.0
    %425 = vmatmul.mubr.f32.gmra.mrb[0].mxu0 %v143
    %v426 = vpop.f32.mrb[0].mxu0
    %v427 = vadd.f32 %v106, %v426
    %v428 = vpop.f32.mrb[0].mxu0
    %429 = vmatprep.mubr.f32.mxu0 0.0
    %430 = vmatmul.mubr.f32.gmra.mrb[0].mxu0 %v146
    %v431 = vpop.f32.mrb[0].mxu0
    %v432 = vadd.f32 %v106, %v431
    %v433 = vpop.f32.mrb[0].mxu0
    %434 = vmatprep.mubr.f32.mxu0 0.0
    %435 = vmatmul.mubr.f32.gmra.mrb[0].mxu0 %v149
    %v436 = vpop.f32.mrb[0].mxu0
    %v437 = vadd.f32 %v106, %v436
    %v438 = vpop.f32.mrb[0].mxu0
    %439 = vmatprep.mubr.f32.mxu0 0.0
    %440 = vmatmul.mubr.f32.gmra.mrb[0].mxu0 %v152
    %v441 = vpop.f32.mrb[0].mxu0
    %v442 = vadd.f32 %v106, %v441
    %v443 = vpop.f32.mrb[0].mxu0
    %444 = vmatprep.mubr.f32.mxu0 0.0
    %445 = vmatmul.mubr.f32.gmra.mrb[0].mxu0 %v155
    %v446 = vpop.f32.mrb[0].mxu0
    %v447 = vadd.f32 %v106, %v446
    %v448 = vpop.f32.mrb[0].mxu0
    %449 = vmatprep.mubr.f32.mxu0 0.0
    %450 = vmatmul.mubr.f32.gmra.mrb[0].mxu0 %v158
    %v451 = vpop.f32.mrb[0].mxu0
    %v452 = vadd.f32 %v106, %v451
    %v453 = vpop.f32.mrb[0].mxu0
    %454 = vmatprep.mubr.f32.mxu0 0.0
    %455 = vmatmul.mubr.f32.gmra.mrb[0].mxu0 %v161
    %v456 = vpop.f32.mrb[0].mxu0
    %v457 = vadd.f32 %v106, %v456
    %v458 = vpop.f32.mrb[0].mxu0
    %459 = vmatprep.mubr.f32.mxu0 0.0
    %460 = vmatmul.mubr.f32.gmra.mrb[0].mxu0 %v164
    %v461 = vpop.f32.mrb[0].mxu0
    %v462 = vadd.f32 %v106, %v461
    %v463 = vpop.f32.mrb[0].mxu0
    %464 = vmatprep.mubr.f32.mxu0 0.0
    %465 = vmatmul.mubr.f32.gmra.mrb[0].mxu0 %v167
    %v466 = vpop.f32.mrb[0].mxu0
    %v467 = vadd.f32 %v106, %v466
    %v468 = vpop.f32.mrb[0].mxu0
    %469 = vmatprep.mubr.f32.mxu0 0.0
    %470 = vmatmul.mubr.f32.gmra.mrb[0].mxu0 %v170
    %v471 = vpop.f32.mrb[0].mxu0
    %v472 = vadd.f32 %v106, %v471
    %v473 = vpop.f32.mrb[0].mxu0
    %474 = vmatprep.mubr.f32.mxu0 0.0
    %475 = vmatmul.mubr.f32.gmra.mrb[0].mxu0 %v173
    %v476 = vpop.f32.mrb[0].mxu0
    %v477 = vadd.f32 %v106, %v476
    %v478 = vpop.f32.mrb[0].mxu0
    %479 = vmatprep.mubr.f32.mxu0 0.0
    %480 = vmatmul.mubr.f32.gmra.mrb[0].mxu0 %v176
    %v481 = vpop.f32.mrb[0].mxu0
    %v482 = vadd.f32 %v106, %v481
    %v483 = vpop.f32.mrb[0].mxu0
    %484 = vmatprep.mubr.f32.mxu0 0.0
    %485 = vmatmul.mubr.f32.gmra.mrb[0].mxu0 %v179
    %v486 = vpop.f32.mrb[0].mxu0
    %v487 = vadd.f32 %v106, %v486
    %v488 = vpop.f32.mrb[0].mxu0
    %489 = vmatprep.mubr.f32.mxu0 0.0
    %490 = vmatmul.mubr.f32.gmra.mrb[0].mxu0 %v182
    %v491 = vpop.f32.mrb[0].mxu0
    %v492 = vadd.f32 %v106, %v491
    %v493 = vpop.f32.mrb[0].mxu0
    %494 = vmatprep.mubr.f32.mxu0 0.0
    %495 = vmatmul.mubr.f32.gmra.mrb[0].mxu0 %v185
    %v496 = vpop.f32.mrb[0].mxu0
    %v497 = vadd.f32 %v106, %v496
    %v498 = vpop.f32.mrb[0].mxu0
    %499 = vmatprep.mubr.f32.mxu0 0.0
    %500 = vmatmul.mubr.f32.gmra.mrb[0].mxu0 %v188
    %v501 = vpop.f32.mrb[0].mxu0
    %v502 = vadd.f32 %v106, %v501
    %v503 = vpop.f32.mrb[0].mxu0
    %504 = vmatprep.mubr.f32.mxu0 0.0
    %505 = vmatmul.mubr.f32.gmra.mrb[0].mxu0 %v191
    %v506 = vpop.f32.mrb[0].mxu0
    %v507 = vadd.f32 %v106, %v506
    %v508 = vpop.f32.mrb[0].mxu0
    %509 = vmatprep.mubr.f32.mxu0 0.0
    %510 = vmatmul.mubr.f32.gmra.mrb[0].mxu0 %v194
    %v511 = vpop.f32.mrb[0].mxu0
    %v512 = vadd.f32 %v106, %v511
    %v513 = vpop.f32.mrb[0].mxu0
    %514 = vmatprep.mubr.f32.mxu0 0.0
    %515 = vmatmul.mubr.f32.gmra.mrb[0].mxu0 %v197
    %v516 = vpop.f32.mrb[0].mxu0
    %v517 = vadd.f32 %v106, %v516
    %v518 = vpop.f32.mrb[0].mxu0
    %519 = vmatprep.mubr.f32.mxu0 0.0
    %520 = vmatmul.mubr.f32.gmra.mrb[0].mxu0 %v200
    %v521 = vpop.f32.mrb[0].mxu0
    %v522 = vadd.f32 %v106, %v521
    %v523 = vpop.f32.mrb[0].mxu0
    %524 = vmatprep.mubr.f32.mxu0 0.0
    %525 = vmatmul.mubr.f32.gmra.mrb[0].mxu0 %v203
    %v526 = vpop.f32.mrb[0].mxu0
    %v527 = vadd.f32 %v106, %v526
    %v528 = vpop.f32.mrb[0].mxu0
    %529 = vmatprep.mubr.f32.mxu0 0.0
    %530 = vmatmul.mubr.f32.gmra.mrb[0].mxu0 %v206
    %v531 = vpop.f32.mrb[0].mxu0
    %v532 = vadd.f32 %v106, %v531
    %v533 = vpop.f32.mrb[0].mxu0
    %534 = vmatprep.mubr.f32.mxu0 0.0
    %535 = vmatmul.mubr.f32.gmra.mrb[0].mxu0 %v209
    %v536 = vpop.f32.mrb[0].mxu0
    %v537 = vadd.f32 %v106, %v536
    %v538 = vpop.f32.mrb[0].mxu0
    %539 = vmatprep.mubr.f32.mxu0 0.0
    %540 = vmatmul.mubr.f32.gmra.mrb[0].mxu0 %v212
    %v541 = vpop.f32.mrb[0].mxu0
    %v542 = vadd.f32 %v106, %v541
    %v543 = vpop.f32.mrb[0].mxu0
    %544 = vmatprep.mubr.f32.mxu0 0.0
    %545 = vmatmul.mubr.f32.gmra.mrb[0].mxu0 %v215
    %v546 = vpop.f32.mrb[0].mxu0
    %v547 = vadd.f32 %v106, %v546
    %v548 = vpop.f32.mrb[0].mxu0
    %549 = vmatprep.mubr.f32.mxu0 0.0
    %550 = vmatmul.mubr.f32.gmra.mrb[0].mxu0 %v218
    %v551 = vpop.f32.mrb[0].mxu0
    %v552 = vadd.f32 %v106, %v551
    %v553 = vpop.f32.mrb[0].mxu0
    %554 = vmatprep.mubr.f32.mxu0 0.0
    %555 = vmatmul.mubr.f32.gmra.mrb[0].mxu0 %v221
    %v556 = vpop.f32.mrb[0].mxu0
    %v557 = vadd.f32 %v106, %v556
    %v558 = vpop.f32.mrb[0].mxu0
    %559 = vmatprep.mubr.f32.mxu0 0.0
    %560 = vmatmul.mubr.f32.gmra.mrb[0].mxu0 %v224
    %v561 = vpop.f32.mrb[0].mxu0
    %v562 = vadd.f32 %v106, %v561
    %v563 = vpop.f32.mrb[0].mxu0
    %564 = vmatprep.mubr.f32.mxu0 0.0
    %565 = vmatmul.mubr.f32.gmra.mrb[0].mxu0 %v227
    %v566 = vpop.f32.mrb[0].mxu0
    %v567 = vadd.f32 %v106, %v566
    %v568 = vpop.f32.mrb[0].mxu0
    %569 = vmatprep.mubr.f32.mxu0 0.0
    %570 = vmatmul.mubr.f32.gmra.mrb[0].mxu0 %v230
    %v571 = vpop.f32.mrb[0].mxu0
    %v572 = vadd.f32 %v106, %v571
    %v573 = vpop.f32.mrb[0].mxu0
    %574 = vmatprep.mubr.f32.mxu0 0.0
    %575 = vmatmul.mubr.f32.gmra.mrb[0].mxu0 %v233
    %v576 = vpop.f32.mrb[0].mxu0
    %v577 = vadd.f32 %v106, %v576
    %v578 = vpop.f32.mrb[0].mxu0
    %579 = vmatprep.mubr.f32.mxu0 0.0
    %580 = vmatmul.mubr.f32.gmra.mrb[0].mxu0 %v236
    %v581 = vpop.f32.mrb[0].mxu0
    %v582 = vadd.f32 %v106, %v581
    %v583 = vpop.f32.mrb[0].mxu0
    %584 = vmatprep.mubr.f32.mxu0 0.0
    %585 = vmatmul.mubr.f32.gmra.mrb[0].mxu0 %v239
    %v586 = vpop.f32.mrb[0].mxu0
    %v587 = vadd.f32 %v106, %v586
    %v588 = vpop.f32.mrb[0].mxu0
    %589 = vmatprep.mubr.f32.mxu0 0.0
    %590 = vmatmul.mubr.f32.gmra.mrb[0].mxu0 %v242
    %v591 = vpop.f32.mrb[0].mxu0
    %v592 = vadd.f32 %v106, %v591
    %v593 = vpop.f32.mrb[0].mxu0
    %594 = vmatprep.mubr.f32.mxu0 0.0
    %595 = vmatmul.mubr.f32.gmra.mrb[0].mxu0 %v245
    %v596 = vpop.f32.mrb[0].mxu0
    %v597 = vadd.f32 %v106, %v596
    %v598 = vpop.f32.mrb[0].mxu0
    %599 = vmatprep.mubr.f32.mxu0 0.0
    %600 = vmatmul.mubr.f32.gmra.mrb[0].mxu0 %v248
    %v601 = vpop.f32.mrb[0].mxu0
    %v602 = vadd.f32 %v106, %v601
    %v603 = vpop.f32.mrb[0].mxu0
    %604 = vmatprep.mubr.f32.mxu0 0.0
    %605 = vmatmul.mubr.f32.gmra.mrb[0].mxu0 %v251
    %v606 = vpop.f32.mrb[0].mxu0
    %v607 = vadd.f32 %v106, %v606
    %v608 = vpop.f32.mrb[0].mxu0
    %609 = vmatprep.mubr.f32.mxu0 0.0
    %610 = vmatmul.mubr.f32.gmra.mrb[0].mxu0 %v254
    %v611 = vpop.f32.mrb[0].mxu0
    %v612 = vadd.f32 %v106, %v611
    %v613 = vpop.f32.mrb[0].mxu0
    %614 = vmatprep.mubr.f32.mxu0 0.0
    %615 = vmatmul.mubr.f32.gmra.mrb[0].mxu0 %v257
    %v616 = vpop.f32.mrb[0].mxu0
    %v617 = vadd.f32 %v106, %v616
    %v618 = vpop.f32.mrb[0].mxu0
    %619 = vmatprep.mubr.f32.mxu0 0.0
    %620 = vmatmul.mubr.f32.gmra.mrb[0].mxu0 %v260
    %v621 = vpop.f32.mrb[0].mxu0
    %v622 = vadd.f32 %v106, %v621
    %v623 = vpop.f32.mrb[0].mxu0
    %624 = vmatprep.mubr.f32.mxu0 0.0
    %625 = vmatmul.mubr.f32.gmra.mrb[0].mxu0 %v263
    %v626 = vpop.f32.mrb[0].mxu0
    %v627 = vadd.f32 %v106, %v626
    %v628 = vpop.f32.mrb[0].mxu0
    %629 = vmatprep.mubr.f32.mxu0 0.0
    %630 = vmatmul.mubr.f32.gmra.mrb[0].mxu0 %v266
    %v631 = vpop.f32.mrb[0].mxu0
    %v632 = vadd.f32 %v106, %v631
    %v633 = vpop.f32.mrb[0].mxu0
    %634 = vmatprep.mubr.f32.mxu0 0.0
    %635 = vmatmul.mubr.f32.gmra.mrb[0].mxu0 %v269
    %v636 = vpop.f32.mrb[0].mxu0
    %v637 = vadd.f32 %v106, %v636
    %v638 = vpop.f32.mrb[0].mxu0
    %639 = vmatprep.mubr.f32.mxu0 0.0
    %640 = vmatmul.mubr.f32.gmra.mrb[0].mxu0 %v272
    %v641 = vpop.f32.mrb[0].mxu0
    %v642 = vadd.f32 %v106, %v641
    %v643 = vpop.f32.mrb[0].mxu0
    %644 = vmatprep.mubr.f32.mxu0 0.0
    %645 = vmatmul.mubr.f32.gmra.mrb[0].mxu0 %v275
    %v646 = vpop.f32.mrb[0].mxu0
    %v647 = vadd.f32 %v106, %v646
    %v648 = vpop.f32.mrb[0].mxu0
    %649 = vmatprep.mubr.f32.mxu0 0.0
    %650 = vmatmul.mubr.f32.gmra.mrb[0].mxu0 %v278
    %v651 = vpop.f32.mrb[0].mxu0
    %v652 = vadd.f32 %v106, %v651
    %v653 = vpop.f32.mrb[0].mxu0
    %654 = vmatprep.mubr.f32.mxu0 0.0
    %655 = vmatmul.mubr.f32.gmra.mrb[0].mxu0 %v281
    %v656 = vpop.f32.mrb[0].mxu0
    %v657 = vadd.f32 %v106, %v656
    %v658 = vpop.f32.mrb[0].mxu0
    %659 = vmatprep.mubr.f32.mxu0 0.0
    %660 = vmatmul.mubr.f32.gmra.mrb[0].mxu0 %v284
    %v661 = vpop.f32.mrb[0].mxu0
    %v662 = vadd.f32 %v106, %v661
    %v663 = vpop.f32.mrb[0].mxu0
    %664 = vmatprep.mubr.f32.mxu0 0.0
    %665 = vmatmul.mubr.f32.gmra.mrb[0].mxu0 %v287
    %v666 = vpop.f32.mrb[0].mxu0
    %v667 = vadd.f32 %v106, %v666
    %v668 = vpop.f32.mrb[0].mxu0
    %669 = vmatprep.mubr.f32.mxu0 0.0
    %670 = vmatmul.mubr.f32.gmra.mrb[0].mxu0 %v290
    %v671 = vpop.f32.mrb[0].mxu0
    %v672 = vadd.f32 %v106, %v671
    %v673 = vpop.f32.mrb[0].mxu0
    %674 = vmatprep.mubr.f32.mxu0 0.0
    %675 = vmatmul.mubr.f32.gmra.mrb[0].mxu0 %v293
    %v676 = vpop.f32.mrb[0].mxu0
    %v677 = vadd.f32 %v106, %v676
    %v678 = vpop.f32.mrb[0].mxu0
    %679 = vmatprep.mubr.f32.mxu0 0.0
    %680 = vmatmul.mubr.f32.gmra.mrb[0].mxu0 %v296
    %v681 = vpop.f32.mrb[0].mxu0
    %v682 = vadd.f32 %v106, %v681
    %v683 = vpop.f32.mrb[0].mxu0
    %684 = vmatprep.mubr.f32.mxu0 0.0
    %685 = vmatmul.mubr.f32.gmra.mrb[0].mxu0 %v299
    %v686 = vpop.f32.mrb[0].mxu0
    %v687 = vadd.f32 %v106, %v686
    %v688 = vpop.f32.mrb[0].mxu0
    %689 = vdwg.mxu0
    %v690 = vmax.f32 %v372, 0.0
    %v691 = vmax.f32 %v377, 0.0
    %v692 = vmax.f32 %v382, 0.0
    %v693 = vmax.f32 %v387, 0.0
    %v694 = vmax.f32 %v392, 0.0
    %v695 = vmax.f32 %v397, 0.0
    %v696 = vmax.f32 %v402, 0.0
    %v697 = vmax.f32 %v407, 0.0
    %v698 = vmax.f32 %v412, 0.0
    %v699 = vmax.f32 %v417, 0.0
    %v700 = vmax.f32 %v422, 0.0
    %v701 = vmax.f32 %v427, 0.0
    %v702 = vmax.f32 %v432, 0.0
    %v703 = vmax.f32 %v437, 0.0
    %v704 = vmax.f32 %v442, 0.0
    %v705 = vmax.f32 %v447, 0.0
    %v706 = vmax.f32 %v452, 0.0
    %v707 = vmax.f32 %v457, 0.0
    %v708 = vmax.f32 %v462, 0.0
    %v709 = vmax.f32 %v467, 0.0
    %v710 = vmax.f32 %v472, 0.0
    %v711 = vmax.f32 %v477, 0.0
    %v712 = vmax.f32 %v482, 0.0
    %v713 = vmax.f32 %v487, 0.0
    %v714 = vmax.f32 %v492, 0.0
    %v715 = vmax.f32 %v497, 0.0
    %v716 = vmax.f32 %v502, 0.0
    %v717 = vmax.f32 %v507, 0.0
    %v718 = vmax.f32 %v512, 0.0
    %v719 = vmax.f32 %v517, 0.0
    %v720 = vmax.f32 %v522, 0.0
    %v721 = vmax.f32 %v527, 0.0
    %v722 = vmax.f32 %v532, 0.0
    %v723 = vmax.f32 %v537, 0.0
    %v724 = vmax.f32 %v542, 0.0
    %v725 = vmax.f32 %v547, 0.0
    %v726 = vmax.f32 %v552, 0.0
    %v727 = vmax.f32 %v557, 0.0
    %v728 = vmax.f32 %v562, 0.0
    %v729 = vmax.f32 %v567, 0.0
    %v730 = vmax.f32 %v572, 0.0
    %v731 = vmax.f32 %v577, 0.0
    %v732 = vmax.f32 %v582, 0.0
    %v733 = vmax.f32 %v587, 0.0
    %v734 = vmax.f32 %v592, 0.0
    %v735 = vmax.f32 %v597, 0.0
    %v736 = vmax.f32 %v602, 0.0
    %v737 = vmax.f32 %v607, 0.0
    %v738 = vmax.f32 %v612, 0.0
    %v739 = vmax.f32 %v617, 0.0
    %v740 = vmax.f32 %v622, 0.0
    %v741 = vmax.f32 %v627, 0.0
    %v742 = vmax.f32 %v632, 0.0
    %v743 = vmax.f32 %v637, 0.0
    %v744 = vmax.f32 %v642, 0.0
    %v745 = vmax.f32 %v647, 0.0
    %v746 = vmax.f32 %v652, 0.0
    %v747 = vmax.f32 %v657, 0.0
    %v748 = vmax.f32 %v662, 0.0
    %v749 = vmax.f32 %v667, 0.0
    %v750 = vmax.f32 %v672, 0.0
    %v751 = vmax.f32 %v677, 0.0
    %v752 = vmax.f32 %v682, 0.0
    %v753 = vmax.f32 %v687, 0.0
    %v754 = vld [vmem:[%s3] sm:$0xff]
    %v755 = vld [vmem:[%s3 + $0x8] sm:$0xff]
    %v756 = vld [vmem:[%s3 + $0x10] sm:$0xff]
    %v757 = vld [vmem:[%s3 + $0x18] sm:$0xff]
    %v758 = vld [vmem:[%s3 + $0x20] sm:$0xff]
    %v759 = vld [vmem:[%s3 + $0x28] sm:$0xff]
    %v760 = vld [vmem:[%s3 + $0x30] sm:$0xff]
    %v761 = vld [vmem:[%s3 + $0x38] sm:$0xff]
    %v762 = vld [vmem:[%s3 + $0x40] sm:$0xff]
    %v763 = vld [vmem:[%s3 + $0x48] sm:$0xff]
    %v764 = vld [vmem:[%s3 + $0x50] sm:$0xff]
    %v765 = vld [vmem:[%s3 + $0x58] sm:$0xff]
    %v766 = vld [vmem:[%s3 + $0x60] sm:$0xff]
    %v767 = vld [vmem:[%s3 + $0x68] sm:$0xff]
    %v768 = vld [vmem:[%s3 + $0x70] sm:$0xff]
    %v769 = vld [vmem:[%s3 + $0x78] sm:$0xff]
    %v770 = vld [vmem:[%s3 + $0x80] sm:$0xff]
    %v771 = vld [vmem:[%s3 + $0x88] sm:$0xff]
    %v772 = vld [vmem:[%s3 + $0x90] sm:$0xff]
    %v773 = vld [vmem:[%s3 + $0x98] sm:$0xff]
    %v774 = vld [vmem:[%s3 + $0xa0] sm:$0xff]
    %v775 = vld [vmem:[%s3 + $0xa8] sm:$0xff]
    %v776 = vld [vmem:[%s3 + $0xb0] sm:$0xff]
    %v777 = vld [vmem:[%s3 + $0xb8] sm:$0xff]
    %v778 = vld [vmem:[%s3 + $0xc0] sm:$0xff]
    %v779 = vld [vmem:[%s3 + $0xc8] sm:$0xff]
    %v780 = vld [vmem:[%s3 + $0xd0] sm:$0xff]
    %v781 = vld [vmem:[%s3 + $0xd8] sm:$0xff]
    %v782 = vld [vmem:[%s3 + $0xe0] sm:$0xff]
    %v783 = vld [vmem:[%s3 + $0xe8] sm:$0xff]
    %v784 = vld [vmem:[%s3 + $0xf0] sm:$0xff]
    %v785 = vld [vmem:[%s3 + $0xf8] sm:$0xff]
    %v786 = vld [vmem:[%s3 + $0x100] sm:$0xff]
    %v787 = vld [vmem:[%s3 + $0x108] sm:$0xff]
    %v788 = vld [vmem:[%s3 + $0x110] sm:$0xff]
    %v789 = vld [vmem:[%s3 + $0x118] sm:$0xff]
    %v790 = vld [vmem:[%s3 + $0x120] sm:$0xff]
    %v791 = vld [vmem:[%s3 + $0x128] sm:$0xff]
    %v792 = vld [vmem:[%s3 + $0x130] sm:$0xff]
    %v793 = vld [vmem:[%s3 + $0x138] sm:$0xff]
    %v794 = vld [vmem:[%s3 + $0x140] sm:$0xff]
    %v795 = vld [vmem:[%s3 + $0x148] sm:$0xff]
    %v796 = vld [vmem:[%s3 + $0x150] sm:$0xff]
    %v797 = vld [vmem:[%s3 + $0x158] sm:$0xff]
    %v798 = vld [vmem:[%s3 + $0x160] sm:$0xff]
    %v799 = vld [vmem:[%s3 + $0x168] sm:$0xff]
    %v800 = vld [vmem:[%s3 + $0x170] sm:$0xff]
    %v801 = vld [vmem:[%s3 + $0x178] sm:$0xff]
    %v802 = vld [vmem:[%s3 + $0x180] sm:$0xff]
    %v803 = vld [vmem:[%s3 + $0x188] sm:$0xff]
    %v804 = vld [vmem:[%s3 + $0x190] sm:$0xff]
    %v805 = vld [vmem:[%s3 + $0x198] sm:$0xff]
    %v806 = vld [vmem:[%s3 + $0x1a0] sm:$0xff]
    %v807 = vld [vmem:[%s3 + $0x1a8] sm:$0xff]
    %v808 = vld [vmem:[%s3 + $0x1b0] sm:$0xff]
    %v809 = vld [vmem:[%s3 + $0x1b8] sm:$0xff]
    %v810 = vld [vmem:[%s3 + $0x1c0] sm:$0xff]
    %v811 = vld [vmem:[%s3 + $0x1c8] sm:$0xff]
    %v812 = vld [vmem:[%s3 + $0x1d0] sm:$0xff]
    %v813 = vld [vmem:[%s3 + $0x1d8] sm:$0xff]
    %v814 = vld [vmem:[%s3 + $0x1e0] sm:$0xff]
    %v815 = vld [vmem:[%s3 + $0x1e8] sm:$0xff]
    %v816 = vld [vmem:[%s3 + $0x1f0] sm:$0xff]
    %v817 = vld [vmem:[%s3 + $0x1f8] sm:$0xff]
    %v818 = vld [vmem:[%s4] sm:$0xff]
    %v819 = vld [vmem:[%s4 + $0x8] sm:$0xff]
    %v820 = vld [vmem:[%s4 + $0x10] sm:$0xff]
    %v821 = vld [vmem:[%s4 + $0x18] sm:$0xff]
    %v822 = vld [vmem:[%s4 + $0x20] sm:$0xff]
    %v823 = vld [vmem:[%s4 + $0x28] sm:$0xff]
    %v824 = vld [vmem:[%s4 + $0x30] sm:$0xff]
    %v825 = vld [vmem:[%s4 + $0x38] sm:$0xff]
    %v826 = vld [vmem:[%s4 + $0x40] sm:$0xff]
    %v827 = vld [vmem:[%s4 + $0x48] sm:$0xff]
    %v828 = vld [vmem:[%s4 + $0x50] sm:$0xff]
    %v829 = vld [vmem:[%s4 + $0x58] sm:$0xff]
    %v830 = vld [vmem:[%s4 + $0x60] sm:$0xff]
    %v831 = vld [vmem:[%s4 + $0x68] sm:$0xff]
    %v832 = vld [vmem:[%s4 + $0x70] sm:$0xff]
    %v833 = vld [vmem:[%s4 + $0x78] sm:$0xff]
    %835 = vset.pattern.permute.xlu0 0
    %836 = vperm.xlu0 %835, %v818
    %v837 = vpop.permute.xlu0 %836
    %840 = vset.pattern.permute.xlu0 0
    %841 = vperm.xlu0 %840, %v819
    %v842 = vpop.permute.xlu0 %841
    %845 = vset.pattern.permute.xlu0 0
    %846 = vperm.xlu0 %845, %v820
    %v847 = vpop.permute.xlu0 %846
    %850 = vset.pattern.permute.xlu0 0
    %851 = vperm.xlu0 %850, %v821
    %v852 = vpop.permute.xlu0 %851
    %855 = vset.pattern.permute.xlu0 0
    %856 = vperm.xlu0 %855, %v822
    %v857 = vpop.permute.xlu0 %856
    %860 = vset.pattern.permute.xlu0 0
    %861 = vperm.xlu0 %860, %v823
    %v862 = vpop.permute.xlu0 %861
    %865 = vset.pattern.permute.xlu0 0
    %866 = vperm.xlu0 %865, %v824
    %v867 = vpop.permute.xlu0 %866
    %870 = vset.pattern.permute.xlu0 0
    %871 = vperm.xlu0 %870, %v825
    %v872 = vpop.permute.xlu0 %871
    %875 = vset.pattern.permute.xlu0 0
    %876 = vperm.xlu0 %875, %v826
    %v877 = vpop.permute.xlu0 %876
    %880 = vset.pattern.permute.xlu0 0
    %881 = vperm.xlu0 %880, %v827
    %v882 = vpop.permute.xlu0 %881
    %885 = vset.pattern.permute.xlu0 0
    %886 = vperm.xlu0 %885, %v828
    %v887 = vpop.permute.xlu0 %886
    %890 = vset.pattern.permute.xlu0 0
    %891 = vperm.xlu0 %890, %v829
    %v892 = vpop.permute.xlu0 %891
    %895 = vset.pattern.permute.xlu0 0
    %896 = vperm.xlu0 %895, %v830
    %v897 = vpop.permute.xlu0 %896
    %900 = vset.pattern.permute.xlu0 0
    %901 = vperm.xlu0 %900, %v831
    %v902 = vpop.permute.xlu0 %901
    %905 = vset.pattern.permute.xlu0 0
    %906 = vperm.xlu0 %905, %v832
    %v907 = vpop.permute.xlu0 %906
    %910 = vset.pattern.permute.xlu0 0
    %911 = vperm.xlu0 %910, %v833
    %v912 = vpop.permute.xlu0 %911
    %914 = vmatprep.subr.mxu0 0.0
    %915 = vmatpush1.msra.mxu0 %v690
    %916 = vmatprep.subr.mxu0 0.0
    %917 = vmatpush1.msra.mxu0 %v691
    %918 = vmatprep.subr.mxu0 0.0
    %919 = vmatpush1.msra.mxu0 %v692
    %920 = vmatprep.subr.mxu0 0.0
    %921 = vmatpush1.msra.mxu0 %v693
    %922 = vmatprep.subr.mxu0 0.0
    %923 = vmatpush1.msra.mxu0 %v694
    %924 = vmatprep.subr.mxu0 0.0
    %925 = vmatpush1.msra.mxu0 %v695
    %926 = vmatprep.subr.mxu0 0.0
    %927 = vmatpush1.msra.mxu0 %v696
    %928 = vmatprep.subr.mxu0 0.0
    %929 = vmatpush1.msra.mxu0 %v697
    %930 = vmatprep.subr.mxu0 0.0
    %931 = vmatpush1.msra.mxu0 %v698
    %932 = vmatprep.subr.mxu0 0.0
    %933 = vmatpush1.msra.mxu0 %v699
    %934 = vmatprep.subr.mxu0 0.0
    %935 = vmatpush1.msra.mxu0 %v700
    %936 = vmatprep.subr.mxu0 0.0
    %937 = vmatpush1.msra.mxu0 %v701
    %938 = vmatprep.subr.mxu0 0.0
    %939 = vmatpush1.msra.mxu0 %v702
    %940 = vmatprep.subr.mxu0 0.0
    %941 = vmatpush1.msra.mxu0 %v703
    %942 = vmatprep.subr.mxu0 0.0
    %943 = vmatpush1.msra.mxu0 %v704
    %944 = vmatprep.subr.mxu0 0.0
    %945 = vmatpush1.msra.mxu0 %v705
    %946 = vmatprep.subr.mxu0 0.0
    %947 = vmatpush1.msra.mxu0 %v706
    %948 = vmatprep.subr.mxu0 0.0
    %949 = vmatpush1.msra.mxu0 %v707
    %950 = vmatprep.subr.mxu0 0.0
    %951 = vmatpush1.msra.mxu0 %v708
    %952 = vmatprep.subr.mxu0 0.0
    %953 = vmatpush1.msra.mxu0 %v709
    %954 = vmatprep.subr.mxu0 0.0
    %955 = vmatpush1.msra.mxu0 %v710
    %956 = vmatprep.subr.mxu0 0.0
    %957 = vmatpush1.msra.mxu0 %v711
    %958 = vmatprep.subr.mxu0 0.0
    %959 = vmatpush1.msra.mxu0 %v712
    %960 = vmatprep.subr.mxu0 0.0
    %961 = vmatpush1.msra.mxu0 %v713
    %962 = vmatprep.subr.mxu0 0.0
    %963 = vmatpush1.msra.mxu0 %v714
    %964 = vmatprep.subr.mxu0 0.0
    %965 = vmatpush1.msra.mxu0 %v715
    %966 = vmatprep.subr.mxu0 0.0
    %967 = vmatpush1.msra.mxu0 %v716
    %968 = vmatprep.subr.mxu0 0.0
    %969 = vmatpush1.msra.mxu0 %v717
    %970 = vmatprep.subr.mxu0 0.0
    %971 = vmatpush1.msra.mxu0 %v718
    %972 = vmatprep.subr.mxu0 0.0
    %973 = vmatpush1.msra.mxu0 %v719
    %974 = vmatprep.subr.mxu0 0.0
    %975 = vmatpush1.msra.mxu0 %v720
    %976 = vmatprep.subr.mxu0 0.0
    %977 = vmatpush1.msra.mxu0 %v721
    %978 = vmatprep.mubr.f32.mxu0 %v755
    %979 = vmatmul.mubr.f32.gmra.mrb[0].mxu0 %v754
    %v980 = vpop.f32.mrb[0].mxu0
    %v981 = vadd.f32 %v837, %v980
    %v982 = vpop.f32.mrb[0].mxu0
    %983 = vmatprep.mubr.f32.mxu0 %v759
    %984 = vmatmul.mubr.f32.gmra.mrb[0].mxu0 %v758
    %v985 = vpop.f32.mrb[0].mxu0
    %v986 = vadd.f32 %v842, %v985
    %v987 = vpop.f32.mrb[0].mxu0
    %988 = vmatprep.mubr.f32.mxu0 %v763
    %989 = vmatmul.mubr.f32.gmra.mrb[0].mxu0 %v762
    %v990 = vpop.f32.mrb[0].mxu0
    %v991 = vadd.f32 %v847, %v990
    %v992 = vpop.f32.mrb[0].mxu0
    %993 = vmatprep.mubr.f32.mxu0 %v767
    %994 = vmatmul.mubr.f32.gmra.mrb[0].mxu0 %v766
    %v995 = vpop.f32.mrb[0].mxu0
    %v996 = vadd.f32 %v852, %v995
    %v997 = vpop.f32.mrb[0].mxu0
    %998 = vmatprep.mubr.f32.mxu0 %v771
    %999 = vmatmul.mubr.f32.gmra.mrb[0].mxu0 %v770
    %v1000 = vpop.f32.mrb[0].mxu0
    %v1001 = vadd.f32 %v857, %v1000
    %v1002 = vpop.f32.mrb[0].mxu0
    %1003 = vmatprep.mubr.f32.mxu0 %v775
    %1004 = vmatmul.mubr.f32.gmra.mrb[0].mxu0 %v774
    %v1005 = vpop.f32.mrb[0].mxu0
    %v1006 = vadd.f32 %v862, %v1005
    %v1007 = vpop.f32.mrb[0].mxu0
    %1008 = vmatprep.mubr.f32.mxu0 %v779
    %1009 = vmatmul.mubr.f32.gmra.mrb[0].mxu0 %v778
    %v1010 = vpop.f32.mrb[0].mxu0
    %v1011 = vadd.f32 %v867, %v1010
    %v1012 = vpop.f32.mrb[0].mxu0
    %1013 = vmatprep.mubr.f32.mxu0 %v783
    %1014 = vmatmul.mubr.f32.gmra.mrb[0].mxu0 %v782
    %v1015 = vpop.f32.mrb[0].mxu0
    %v1016 = vadd.f32 %v872, %v1015
    %v1017 = vpop.f32.mrb[0].mxu0
    %1018 = vmatprep.mubr.f32.mxu0 %v787
    %1019 = vmatmul.mubr.f32.gmra.mrb[0].mxu0 %v786
    %v1020 = vpop.f32.mrb[0].mxu0
    %v1021 = vadd.f32 %v877, %v1020
    %v1022 = vpop.f32.mrb[0].mxu0
    %1023 = vmatprep.mubr.f32.mxu0 %v791
    %1024 = vmatmul.mubr.f32.gmra.mrb[0].mxu0 %v790
    %v1025 = vpop.f32.mrb[0].mxu0
    %v1026 = vadd.f32 %v882, %v1025
    %v1027 = vpop.f32.mrb[0].mxu0
    %1028 = vmatprep.mubr.f32.mxu0 %v795
    %1029 = vmatmul.mubr.f32.gmra.mrb[0].mxu0 %v794
    %v1030 = vpop.f32.mrb[0].mxu0
    %v1031 = vadd.f32 %v887, %v1030
    %v1032 = vpop.f32.mrb[0].mxu0
    %1033 = vmatprep.mubr.f32.mxu0 %v799
    %1034 = vmatmul.mubr.f32.gmra.mrb[0].mxu0 %v798
    %v1035 = vpop.f32.mrb[0].mxu0
    %v1036 = vadd.f32 %v892, %v1035
    %v1037 = vpop.f32.mrb[0].mxu0
    %1038 = vmatprep.mubr.f32.mxu0 %v803
    %1039 = vmatmul.mubr.f32.gmra.mrb[0].mxu0 %v802
    %v1040 = vpop.f32.mrb[0].mxu0
    %v1041 = vadd.f32 %v897, %v1040
    %v1042 = vpop.f32.mrb[0].mxu0
    %1043 = vmatprep.mubr.f32.mxu0 %v807
    %1044 = vmatmul.mubr.f32.gmra.mrb[0].mxu0 %v806
    %v1045 = vpop.f32.mrb[0].mxu0
    %v1046 = vadd.f32 %v902, %v1045
    %v1047 = vpop.f32.mrb[0].mxu0
    %1048 = vmatprep.mubr.f32.mxu0 %v811
    %1049 = vmatmul.mubr.f32.gmra.mrb[0].mxu0 %v810
    %v1050 = vpop.f32.mrb[0].mxu0
    %v1051 = vadd.f32 %v907, %v1050
    %v1052 = vpop.f32.mrb[0].mxu0
    %1053 = vmatprep.mubr.f32.mxu0 %v815
    %1054 = vmatmul.mubr.f32.gmra.mrb[0].mxu0 %v814
    %v1055 = vpop.f32.mrb[0].mxu0
    %v1056 = vadd.f32 %v912, %v1055
    %v1057 = vpop.f32.mrb[0].mxu0
    %1058 = vdwg.mxu0
    %1059 = vmatprep.subr.mxu0 0.0
    %1060 = vmatpush1.msra.mxu0 %v722
    %1061 = vmatprep.subr.mxu0 0.0
    %1062 = vmatpush1.msra.mxu0 %v723
    %1063 = vmatprep.subr.mxu0 0.0
    %1064 = vmatpush1.msra.mxu0 %v724
    %1065 = vmatprep.subr.mxu0 0.0
    %1066 = vmatpush1.msra.mxu0 %v725
    %1067 = vmatprep.subr.mxu0 0.0
    %1068 = vmatpush1.msra.mxu0 %v726
    %1069 = vmatprep.subr.mxu0 0.0
    %1070 = vmatpush1.msra.mxu0 %v727
    %1071 = vmatprep.subr.mxu0 0.0
    %1072 = vmatpush1.msra.mxu0 %v728
    %1073 = vmatprep.subr.mxu0 0.0
    %1074 = vmatpush1.msra.mxu0 %v729
    %1075 = vmatprep.subr.mxu0 0.0
    %1076 = vmatpush1.msra.mxu0 %v730
    %1077 = vmatprep.subr.mxu0 0.0
    %1078 = vmatpush1.msra.mxu0 %v731
    %1079 = vmatprep.subr.mxu0 0.0
    %1080 = vmatpush1.msra.mxu0 %v732
    %1081 = vmatprep.subr.mxu0 0.0
    %1082 = vmatpush1.msra.mxu0 %v733
    %1083 = vmatprep.subr.mxu0 0.0
    %1084 = vmatpush1.msra.mxu0 %v734
    %1085 = vmatprep.subr.mxu0 0.0
    %1086 = vmatpush1.msra.mxu0 %v735
    %1087 = vmatprep.subr.mxu0 0.0
    %1088 = vmatpush1.msra.mxu0 %v736
    %1089 = vmatprep.subr.mxu0 0.0
    %1090 = vmatpush1.msra.mxu0 %v737
    %1091 = vmatprep.subr.mxu0 0.0
    %1092 = vmatpush1.msra.mxu0 %v738
    %1093 = vmatprep.subr.mxu0 0.0
    %1094 = vmatpush1.msra.mxu0 %v739
    %1095 = vmatprep.subr.mxu0 0.0
    %1096 = vmatpush1.msra.mxu0 %v740
    %1097 = vmatprep.subr.mxu0 0.0
    %1098 = vmatpush1.msra.mxu0 %v741
    %1099 = vmatprep.subr.mxu0 0.0
    %1100 = vmatpush1.msra.mxu0 %v742
    %1101 = vmatprep.subr.mxu0 0.0
    %1102 = vmatpush1.msra.mxu0 %v743
    %1103 = vmatprep.subr.mxu0 0.0
    %1104 = vmatpush1.msra.mxu0 %v744
    %1105 = vmatprep.subr.mxu0 0.0
    %1106 = vmatpush1.msra.mxu0 %v745
    %1107 = vmatprep.subr.mxu0 0.0
    %1108 = vmatpush1.msra.mxu0 %v746
    %1109 = vmatprep.subr.mxu0 0.0
    %1110 = vmatpush1.msra.mxu0 %v747
    %1111 = vmatprep.subr.mxu0 0.0
    %1112 = vmatpush1.msra.mxu0 %v748
    %1113 = vmatprep.subr.mxu0 0.0
    %1114 = vmatpush1.msra.mxu0 %v749
    %1115 = vmatprep.subr.mxu0 0.0
    %1116 = vmatpush1.msra.mxu0 %v750
    %1117 = vmatprep.subr.mxu0 0.0
    %1118 = vmatpush1.msra.mxu0 %v751
    %1119 = vmatprep.subr.mxu0 0.0
    %1120 = vmatpush1.msra.mxu0 %v752
    %1121 = vmatprep.subr.mxu0 0.0
    %1122 = vmatpush1.msra.mxu0 %v753
    %1123 = vmatprep.mubr.f32.mxu0 %v757
    %1124 = vmatmul.mubr.f32.gmra.mrb[0].mxu0 %v756
    %v1125 = vpop.f32.mrb[0].mxu0
    %v1126 = vadd.f32 %v981, %v1125
    %v1127 = vpop.f32.mrb[0].mxu0
    %1128 = vmatprep.mubr.f32.mxu0 %v761
    %1129 = vmatmul.mubr.f32.gmra.mrb[0].mxu0 %v760
    %v1130 = vpop.f32.mrb[0].mxu0
    %v1131 = vadd.f32 %v986, %v1130
    %v1132 = vpop.f32.mrb[0].mxu0
    %1133 = vmatprep.mubr.f32.mxu0 %v765
    %1134 = vmatmul.mubr.f32.gmra.mrb[0].mxu0 %v764
    %v1135 = vpop.f32.mrb[0].mxu0
    %v1136 = vadd.f32 %v991, %v1135
    %v1137 = vpop.f32.mrb[0].mxu0
    %1138 = vmatprep.mubr.f32.mxu0 %v769
    %1139 = vmatmul.mubr.f32.gmra.mrb[0].mxu0 %v768
    %v1140 = vpop.f32.mrb[0].mxu0
    %v1141 = vadd.f32 %v996, %v1140
    %v1142 = vpop.f32.mrb[0].mxu0
    %1143 = vmatprep.mubr.f32.mxu0 %v773
    %1144 = vmatmul.mubr.f32.gmra.mrb[0].mxu0 %v772
    %v1145 = vpop.f32.mrb[0].mxu0
    %v1146 = vadd.f32 %v1001, %v1145
    %v1147 = vpop.f32.mrb[0].mxu0
    %1148 = vmatprep.mubr.f32.mxu0 %v777
    %1149 = vmatmul.mubr.f32.gmra.mrb[0].mxu0 %v776
    %v1150 = vpop.f32.mrb[0].mxu0
    %v1151 = vadd.f32 %v1006, %v1150
    %v1152 = vpop.f32.mrb[0].mxu0
    %1153 = vmatprep.mubr.f32.mxu0 %v781
    %1154 = vmatmul.mubr.f32.gmra.mrb[0].mxu0 %v780
    %v1155 = vpop.f32.mrb[0].mxu0
    %v1156 = vadd.f32 %v1011, %v1155
    %v1157 = vpop.f32.mrb[0].mxu0
    %1158 = vmatprep.mubr.f32.mxu0 %v785
    %1159 = vmatmul.mubr.f32.gmra.mrb[0].mxu0 %v784
    %v1160 = vpop.f32.mrb[0].mxu0
    %v1161 = vadd.f32 %v1016, %v1160
    %v1162 = vpop.f32.mrb[0].mxu0
    %1163 = vmatprep.mubr.f32.mxu0 %v789
    %1164 = vmatmul.mubr.f32.gmra.mrb[0].mxu0 %v788
    %v1165 = vpop.f32.mrb[0].mxu0
    %v1166 = vadd.f32 %v1021, %v1165
    %v1167 = vpop.f32.mrb[0].mxu0
    %1168 = vmatprep.mubr.f32.mxu0 %v793
    %1169 = vmatmul.mubr.f32.gmra.mrb[0].mxu0 %v792
    %v1170 = vpop.f32.mrb[0].mxu0
    %v1171 = vadd.f32 %v1026, %v1170
    %v1172 = vpop.f32.mrb[0].mxu0
    %1173 = vmatprep.mubr.f32.mxu0 %v797
    %1174 = vmatmul.mubr.f32.gmra.mrb[0].mxu0 %v796
    %v1175 = vpop.f32.mrb[0].mxu0
    %v1176 = vadd.f32 %v1031, %v1175
    %v1177 = vpop.f32.mrb[0].mxu0
    %1178 = vmatprep.mubr.f32.mxu0 %v801
    %1179 = vmatmul.mubr.f32.gmra.mrb[0].mxu0 %v800
    %v1180 = vpop.f32.mrb[0].mxu0
    %v1181 = vadd.f32 %v1036, %v1180
    %v1182 = vpop.f32.mrb[0].mxu0
    %1183 = vmatprep.mubr.f32.mxu0 %v805
    %1184 = vmatmul.mubr.f32.gmra.mrb[0].mxu0 %v804
    %v1185 = vpop.f32.mrb[0].mxu0
    %v1186 = vadd.f32 %v1041, %v1185
    %v1187 = vpop.f32.mrb[0].mxu0
    %1188 = vmatprep.mubr.f32.mxu0 %v809
    %1189 = vmatmul.mubr.f32.gmra.mrb[0].mxu0 %v808
    %v1190 = vpop.f32.mrb[0].mxu0
    %v1191 = vadd.f32 %v1046, %v1190
    %v1192 = vpop.f32.mrb[0].mxu0
    %1193 = vmatprep.mubr.f32.mxu0 %v813
    %1194 = vmatmul.mubr.f32.gmra.mrb[0].mxu0 %v812
    %v1195 = vpop.f32.mrb[0].mxu0
    %v1196 = vadd.f32 %v1051, %v1195
    %v1197 = vpop.f32.mrb[0].mxu0
    %1198 = vmatprep.mubr.f32.mxu0 %v817
    %1199 = vmatmul.mubr.f32.gmra.mrb[0].mxu0 %v816
    %v1200 = vpop.f32.mrb[0].mxu0
    %v1201 = vadd.f32 %v1056, %v1200
    %v1202 = vpop.f32.mrb[0].mxu0
    %1203 = vdwg.mxu0
    %1204 = vst [vmem:[#allocation2] sm:$0xff] 0.0
    %1205 = vst [vmem:[#allocation2 + $0x8] sm:$0xff] 0.0
    %1206 = vst [vmem:[#allocation2 + $0x10] sm:$0xff] 0.0
    %1207 = vst [vmem:[#allocation2 + $0x18] sm:$0xff] 0.0
    %1208 = vst [vmem:[#allocation2 + $0x20] sm:$0xff] 0.0
    %1209 = vst [vmem:[#allocation2 + $0x28] sm:$0xff] 0.0
    %vm1210 = vcmask 261120
    %1211 = vst.msk [vmem:[#allocation2 + $0x30] sm:$0xff] %vm1210, 0.0
    %1212 = vst [vmem:[#allocation2 + $0x38] sm:$0xff] 0.0
    %1213 = vst [vmem:[#allocation2 + $0x40] sm:$0xff] 0.0
    %1214 = vst [vmem:[#allocation2 + $0x48] sm:$0xff] 0.0
    %1215 = vst [vmem:[#allocation2 + $0x50] sm:$0xff] 0.0
    %1216 = vst [vmem:[#allocation2 + $0x58] sm:$0xff] 0.0
    %1217 = vst [vmem:[#allocation2 + $0x60] sm:$0xff] 0.0
    %1218 = vst.msk [vmem:[#allocation2 + $0x68] sm:$0xff] %vm1210, 0.0
    %1219 = vst [vmem:[#allocation2 + $0x70] sm:$0xff] 0.0
    %1220 = vst [vmem:[#allocation2 + $0x78] sm:$0xff] 0.0
    %1221 = vst [vmem:[#allocation2 + $0x80] sm:$0xff] 0.0
    %1222 = vst [vmem:[#allocation2 + $0x88] sm:$0xff] 0.0
    %1223 = vst [vmem:[#allocation2 + $0x90] sm:$0xff] 0.0
    %1224 = vst [vmem:[#allocation2 + $0x98] sm:$0xff] 0.0
    %1225 = vst.msk [vmem:[#allocation2 + $0xa0] sm:$0xff] %vm1210, 0.0
    %1226 = vst [vmem:[#allocation2 + $0xa8] sm:$0xff] 0.0
    %1227 = vst [vmem:[#allocation2 + $0xb0] sm:$0xff] 0.0
    %1228 = vst [vmem:[#allocation2 + $0xb8] sm:$0xff] 0.0
    %1229 = vst [vmem:[#allocation2 + $0xc0] sm:$0xff] 0.0
    %1230 = vst [vmem:[#allocation2 + $0xc8] sm:$0xff] 0.0
    %1231 = vst [vmem:[#allocation2 + $0xd0] sm:$0xff] 0.0
    %1232 = vst.msk [vmem:[#allocation2 + $0xd8] sm:$0xff] %vm1210, 0.0
    %1233 = vst [vmem:[#allocation2 + $0xe0] sm:$0xff] 0.0
    %1234 = vst [vmem:[#allocation2 + $0xe8] sm:$0xff] 0.0
    %1235 = vst [vmem:[#allocation2 + $0xf0] sm:$0xff] 0.0
    %1236 = vst [vmem:[#allocation2 + $0xf8] sm:$0xff] 0.0
    %1237 = vst [vmem:[#allocation2 + $0x100] sm:$0xff] 0.0
    %1238 = vst [vmem:[#allocation2 + $0x108] sm:$0xff] 0.0
    %1239 = vst.msk [vmem:[#allocation2 + $0x110] sm:$0xff] %vm1210, 0.0
    %1240 = vst [vmem:[#allocation2 + $0x118] sm:$0xff] 0.0
    %1241 = vst [vmem:[#allocation2 + $0x120] sm:$0xff] 0.0
    %1242 = vst [vmem:[#allocation2 + $0x128] sm:$0xff] 0.0
    %1243 = vst [vmem:[#allocation2 + $0x130] sm:$0xff] 0.0
    %1244 = vst [vmem:[#allocation2 + $0x138] sm:$0xff] 0.0
    %1245 = vst [vmem:[#allocation2 + $0x140] sm:$0xff] 0.0
    %1246 = vst.msk [vmem:[#allocation2 + $0x148] sm:$0xff] %vm1210, 0.0
    %1247 = vst [vmem:[#allocation2 + $0x150] sm:$0xff] 0.0
    %1248 = vst [vmem:[#allocation2 + $0x158] sm:$0xff] 0.0
    %1249 = vst [vmem:[#allocation2 + $0x160] sm:$0xff] 0.0
    %1250 = vst [vmem:[#allocation2 + $0x168] sm:$0xff] 0.0
    %1251 = vst [vmem:[#allocation2 + $0x170] sm:$0xff] 0.0
    %1252 = vst [vmem:[#allocation2 + $0x178] sm:$0xff] 0.0
    %1253 = vst.msk [vmem:[#allocation2 + $0x180] sm:$0xff] %vm1210, 0.0
    %1254 = vst [vmem:[#allocation2 + $0x188] sm:$0xff] 0.0
    %1255 = vst [vmem:[#allocation2 + $0x190] sm:$0xff] 0.0
    %1256 = vst [vmem:[#allocation2 + $0x198] sm:$0xff] 0.0
    %1257 = vst [vmem:[#allocation2 + $0x1a0] sm:$0xff] 0.0
    %1258 = vst [vmem:[#allocation2 + $0x1a8] sm:$0xff] 0.0
    %1259 = vst [vmem:[#allocation2 + $0x1b0] sm:$0xff] 0.0
    %1260 = vst.msk [vmem:[#allocation2 + $0x1b8] sm:$0xff] %vm1210, 0.0
    %1261 = vst [vmem:[#allocation2 + $0x1c0] sm:$0xff] 0.0
    %1262 = vst [vmem:[#allocation2 + $0x1c8] sm:$0xff] 0.0
    %1263 = vst [vmem:[#allocation2 + $0x1d0] sm:$0xff] 0.0
    %1264 = vst [vmem:[#allocation2 + $0x1d8] sm:$0xff] 0.0
    %1265 = vst [vmem:[#allocation2 + $0x1e0] sm:$0xff] 0.0
    %1266 = vst [vmem:[#allocation2 + $0x1e8] sm:$0xff] 0.0
    %1267 = vst.msk [vmem:[#allocation2 + $0x1f0] sm:$0xff] %vm1210, 0.0
    %1268 = vst [vmem:[#allocation2 + $0x1f8] sm:$0xff] 0.0
    %1269 = vst [vmem:[#allocation2 + $0x200] sm:$0xff] 0.0
    %1270 = vst [vmem:[#allocation2 + $0x208] sm:$0xff] 0.0
    %1271 = vst [vmem:[#allocation2 + $0x210] sm:$0xff] 0.0
    %1272 = vst [vmem:[#allocation2 + $0x218] sm:$0xff] 0.0
    %1273 = vst [vmem:[#allocation2 + $0x220] sm:$0xff] 0.0
    %1274 = vst.msk [vmem:[#allocation2 + $0x228] sm:$0xff] %vm1210, 0.0
    %1275 = vst [vmem:[#allocation2 + $0x230] sm:$0xff] 0.0
    %1276 = vst [vmem:[#allocation2 + $0x238] sm:$0xff] 0.0
    %1277 = vst [vmem:[#allocation2 + $0x240] sm:$0xff] 0.0
    %1278 = vst [vmem:[#allocation2 + $0x248] sm:$0xff] 0.0
    %1279 = vst [vmem:[#allocation2 + $0x250] sm:$0xff] 0.0
    %1280 = vst [vmem:[#allocation2 + $0x258] sm:$0xff] 0.0
    %1281 = vst.msk [vmem:[#allocation2 + $0x260] sm:$0xff] %vm1210, 0.0
    %1282 = vst [vmem:[#allocation2 + $0x268] sm:$0xff] 0.0
    %1283 = vst [vmem:[#allocation2 + $0x270] sm:$0xff] 0.0
    %1284 = vst [vmem:[#allocation2 + $0x278] sm:$0xff] 0.0
    %1285 = vst [vmem:[#allocation2 + $0x280] sm:$0xff] 0.0
    %1286 = vst [vmem:[#allocation2 + $0x288] sm:$0xff] 0.0
    %1287 = vst [vmem:[#allocation2 + $0x290] sm:$0xff] 0.0
    %1288 = vst.msk [vmem:[#allocation2 + $0x298] sm:$0xff] %vm1210, 0.0
    %1289 = vst [vmem:[#allocation2 + $0x2a0] sm:$0xff] 0.0
    %1290 = vst [vmem:[#allocation2 + $0x2a8] sm:$0xff] 0.0
    %1291 = vst [vmem:[#allocation2 + $0x2b0] sm:$0xff] 0.0
    %1292 = vst [vmem:[#allocation2 + $0x2b8] sm:$0xff] 0.0
    %1293 = vst [vmem:[#allocation2 + $0x2c0] sm:$0xff] 0.0
    %1294 = vst [vmem:[#allocation2 + $0x2c8] sm:$0xff] 0.0
    %1295 = vst.msk [vmem:[#allocation2 + $0x2d0] sm:$0xff] %vm1210, 0.0
    %1296 = vst [vmem:[#allocation2 + $0x2d8] sm:$0xff] 0.0
    %1297 = vst [vmem:[#allocation2 + $0x2e0] sm:$0xff] 0.0
    %1298 = vst [vmem:[#allocation2 + $0x2e8] sm:$0xff] 0.0
    %1299 = vst [vmem:[#allocation2 + $0x2f0] sm:$0xff] 0.0
    %1300 = vst [vmem:[#allocation2 + $0x2f8] sm:$0xff] 0.0
    %1301 = vst [vmem:[#allocation2 + $0x300] sm:$0xff] 0.0
    %1302 = vst.msk [vmem:[#allocation2 + $0x308] sm:$0xff] %vm1210, 0.0
    %1303 = vst [vmem:[#allocation2 + $0x310] sm:$0xff] 0.0
    %1304 = vst [vmem:[#allocation2 + $0x318] sm:$0xff] 0.0
    %1305 = vst [vmem:[#allocation2 + $0x320] sm:$0xff] 0.0
    %1306 = vst [vmem:[#allocation2 + $0x328] sm:$0xff] 0.0
    %1307 = vst [vmem:[#allocation2 + $0x330] sm:$0xff] 0.0
    %1308 = vst [vmem:[#allocation2 + $0x338] sm:$0xff] 0.0
    %1309 = vst.msk [vmem:[#allocation2 + $0x340] sm:$0xff] %vm1210, 0.0
    %1310 = vst [vmem:[#allocation2 + $0x348] sm:$0xff] 0.0
    %1311 = vst [vmem:[#allocation2 + $0x350] sm:$0xff] 0.0
    %1312 = vst [vmem:[#allocation2 + $0x358] sm:$0xff] 0.0
    %1313 = vst [vmem:[#allocation2 + $0x360] sm:$0xff] 0.0
    %1314 = vst [vmem:[#allocation2 + $0x368] sm:$0xff] 0.0
    %1315 = vst [vmem:[#allocation2 + $0x370] sm:$0xff] 0.0
    %1316 = vst.msk [vmem:[#allocation2 + $0x378] sm:$0xff] %vm1210, 0.0
    %v1329 = vrot.slane %v1126, 6
    %v1330 = vrot.slane %v1131, 6
    %v1331 = vrot.slane %v1136, 6
    %v1332 = vrot.slane %v1141, 6
    %v1333 = vrot.slane %v1146, 6
    %v1334 = vrot.slane %v1151, 6
    %v1335 = vrot.slane %v1166, 6
    %v1336 = vrot.slane %v1171, 6
    %v1337 = vrot.slane %v1176, 6
    %v1338 = vrot.slane %v1181, 6
    %v1339 = vrot.slane %v1186, 6
    %v1340 = vrot.slane %v1191, 6
    %s1353 = scalar_lea.vmem [#allocation2], 112
    %vm1354 = vcmask 261122
    %1355 = vst.msk [vmem:[%s1353] sm:$0xfc] %vm1354, %v1329
    %1356 = vst.msk [vmem:[%s1353 + $0x38] sm:$0xfc] %vm1354, %v1330
    %1357 = vst.msk [vmem:[%s1353 + $0x70] sm:$0xfc] %vm1354, %v1331
    %1358 = vst.msk [vmem:[%s1353 + $0xa8] sm:$0xfc] %vm1354, %v1332
    %1359 = vst.msk [vmem:[%s1353 + $0xe0] sm:$0xfc] %vm1354, %v1333
    %1360 = vst.msk [vmem:[%s1353 + $0x118] sm:$0xfc] %vm1354, %v1334
    %1361 = vst.msk [vmem:[%s1353 + $0x1c0] sm:$0xfc] %vm1354, %v1335
    %1362 = vst.msk [vmem:[%s1353 + $0x1f8] sm:$0xfc] %vm1354, %v1336
    %1363 = vst.msk [vmem:[%s1353 + $0x230] sm:$0xfc] %vm1354, %v1337
    %1364 = vst.msk [vmem:[%s1353 + $0x268] sm:$0xfc] %vm1354, %v1338
    %1365 = vst.msk [vmem:[%s1353 + $0x2a0] sm:$0xfc] %vm1354, %v1339
    %1366 = vst.msk [vmem:[%s1353 + $0x2d8] sm:$0xfc] %vm1354, %v1340
    %v1367 = vrot.slane %v1126, 7
    %v1368 = vrot.slane %v1131, 7
    %v1369 = vrot.slane %v1136, 7
    %v1370 = vrot.slane %v1141, 7
    %v1371 = vrot.slane %v1146, 7
    %v1372 = vrot.slane %v1151, 7
    %v1373 = vrot.slane %v1166, 7
    %v1374 = vrot.slane %v1171, 7
    %v1375 = vrot.slane %v1176, 7
    %v1376 = vrot.slane %v1181, 7
    %v1377 = vrot.slane %v1186, 7
    %v1378 = vrot.slane %v1191, 7
    %1379 = vrot.lane.b32.xlu0 %v1367, 32
    %v1380 = vpop.permute.xlu0 %1379
    %1381 = vrot.lane.b32.xlu0 %v1368, 32
    %v1382 = vpop.permute.xlu0 %1381
    %1383 = vrot.lane.b32.xlu0 %v1369, 32
    %v1384 = vpop.permute.xlu0 %1383
    %1385 = vrot.lane.b32.xlu0 %v1370, 32
    %v1386 = vpop.permute.xlu0 %1385
    %1387 = vrot.lane.b32.xlu0 %v1371, 32
    %v1388 = vpop.permute.xlu0 %1387
    %1389 = vrot.lane.b32.xlu0 %v1372, 32
    %v1390 = vpop.permute.xlu0 %1389
    %1391 = vrot.lane.b32.xlu0 %v1373, 32
    %v1392 = vpop.permute.xlu0 %1391
    %1393 = vrot.lane.b32.xlu0 %v1374, 32
    %v1394 = vpop.permute.xlu0 %1393
    %1395 = vrot.lane.b32.xlu0 %v1375, 32
    %v1396 = vpop.permute.xlu0 %1395
    %1397 = vrot.lane.b32.xlu0 %v1376, 32
    %v1398 = vpop.permute.xlu0 %1397
    %1399 = vrot.lane.b32.xlu0 %v1377, 32
    %v1400 = vpop.permute.xlu0 %1399
    %1401 = vrot.lane.b32.xlu0 %v1378, 32
    %v1402 = vpop.permute.xlu0 %1401
    %vm1415 = vcmask 523521
    %1416 = vst.msk [vmem:[%s1353] sm:$0xfe] %vm1415, %v1380
    %1417 = vst.msk [vmem:[%s1353 + $0x38] sm:$0xfe] %vm1415, %v1382
    %1418 = vst.msk [vmem:[%s1353 + $0x70] sm:$0xfe] %vm1415, %v1384
    %1419 = vst.msk [vmem:[%s1353 + $0xa8] sm:$0xfe] %vm1415, %v1386
    %1420 = vst.msk [vmem:[%s1353 + $0xe0] sm:$0xfe] %vm1415, %v1388
    %1421 = vst.msk [vmem:[%s1353 + $0x118] sm:$0xfe] %vm1415, %v1390
    %1422 = vst.msk [vmem:[%s1353 + $0x1c0] sm:$0xfe] %vm1415, %v1392
    %1423 = vst.msk [vmem:[%s1353 + $0x1f8] sm:$0xfe] %vm1415, %v1394
    %1424 = vst.msk [vmem:[%s1353 + $0x230] sm:$0xfe] %vm1415, %v1396
    %1425 = vst.msk [vmem:[%s1353 + $0x268] sm:$0xfe] %vm1415, %v1398
    %1426 = vst.msk [vmem:[%s1353 + $0x2a0] sm:$0xfe] %vm1415, %v1400
    %1427 = vst.msk [vmem:[%s1353 + $0x2d8] sm:$0xfe] %vm1415, %v1402
    %1428 = vrot.lane.b32.xlu0 %v1126, 64
    %v1429 = vpop.permute.xlu0 %1428
    %1430 = vrot.lane.b32.xlu0 %v1131, 64
    %v1431 = vpop.permute.xlu0 %1430
    %1432 = vrot.lane.b32.xlu0 %v1136, 64
    %v1433 = vpop.permute.xlu0 %1432
    %1434 = vrot.lane.b32.xlu0 %v1141, 64
    %v1435 = vpop.permute.xlu0 %1434
    %1436 = vrot.lane.b32.xlu0 %v1146, 64
    %v1437 = vpop.permute.xlu0 %1436
    %1438 = vrot.lane.b32.xlu0 %v1151, 64
    %v1439 = vpop.permute.xlu0 %1438
    %1440 = vrot.lane.b32.xlu0 %v1166, 64
    %v1441 = vpop.permute.xlu0 %1440
    %1442 = vrot.lane.b32.xlu0 %v1171, 64
    %v1443 = vpop.permute.xlu0 %1442
    %1444 = vrot.lane.b32.xlu0 %v1176, 64
    %v1445 = vpop.permute.xlu0 %1444
    %1446 = vrot.lane.b32.xlu0 %v1181, 64
    %v1447 = vpop.permute.xlu0 %1446
    %1448 = vrot.lane.b32.xlu0 %v1186, 64
    %v1449 = vpop.permute.xlu0 %1448
    %1450 = vrot.lane.b32.xlu0 %v1191, 64
    %v1451 = vpop.permute.xlu0 %1450
    %vm1464 = vcmask 785920
    %1465 = vst.msk [vmem:[%s1353] sm:$0xff] %vm1464, %v1429
    %1466 = vst.msk [vmem:[%s1353 + $0x38] sm:$0xff] %vm1464, %v1431
    %1467 = vst.msk [vmem:[%s1353 + $0x70] sm:$0xff] %vm1464, %v1433
    %1468 = vst.msk [vmem:[%s1353 + $0xa8] sm:$0xff] %vm1464, %v1435
    %1469 = vst.msk [vmem:[%s1353 + $0xe0] sm:$0xff] %vm1464, %v1437
    %1470 = vst.msk [vmem:[%s1353 + $0x118] sm:$0xff] %vm1464, %v1439
    %1471 = vst.msk [vmem:[%s1353 + $0x1c0] sm:$0xff] %vm1464, %v1441
    %1472 = vst.msk [vmem:[%s1353 + $0x1f8] sm:$0xff] %vm1464, %v1443
    %1473 = vst.msk [vmem:[%s1353 + $0x230] sm:$0xff] %vm1464, %v1445
    %1474 = vst.msk [vmem:[%s1353 + $0x268] sm:$0xff] %vm1464, %v1447
    %1475 = vst.msk [vmem:[%s1353 + $0x2a0] sm:$0xff] %vm1464, %v1449
    %1476 = vst.msk [vmem:[%s1353 + $0x2d8] sm:$0xff] %vm1464, %v1451
    %v1477 = vrot.slane %v1126, 1
    %v1478 = vrot.slane %v1131, 1
    %v1479 = vrot.slane %v1136, 1
    %v1480 = vrot.slane %v1141, 1
    %v1481 = vrot.slane %v1146, 1
    %v1482 = vrot.slane %v1151, 1
    %v1483 = vrot.slane %v1166, 1
    %v1484 = vrot.slane %v1171, 1
    %v1485 = vrot.slane %v1176, 1
    %v1486 = vrot.slane %v1181, 1
    %v1487 = vrot.slane %v1186, 1
    %v1488 = vrot.slane %v1191, 1
    %1489 = vrot.lane.b32.xlu0 %v1477, 96
    %v1490 = vpop.permute.xlu0 %1489
    %1491 = vrot.lane.b32.xlu0 %v1478, 96
    %v1492 = vpop.permute.xlu0 %1491
    %1493 = vrot.lane.b32.xlu0 %v1479, 96
    %v1494 = vpop.permute.xlu0 %1493
    %1495 = vrot.lane.b32.xlu0 %v1480, 96
    %v1496 = vpop.permute.xlu0 %1495
    %1497 = vrot.lane.b32.xlu0 %v1481, 96
    %v1498 = vpop.permute.xlu0 %1497
    %1499 = vrot.lane.b32.xlu0 %v1482, 96
    %v1500 = vpop.permute.xlu0 %1499
    %1501 = vrot.lane.b32.xlu0 %v1483, 96
    %v1502 = vpop.permute.xlu0 %1501
    %1503 = vrot.lane.b32.xlu0 %v1484, 96
    %v1504 = vpop.permute.xlu0 %1503
    %1505 = vrot.lane.b32.xlu0 %v1485, 96
    %v1506 = vpop.permute.xlu0 %1505
    %1507 = vrot.lane.b32.xlu0 %v1486, 96
    %v1508 = vpop.permute.xlu0 %1507
    %1509 = vrot.lane.b32.xlu0 %v1487, 96
    %v1510 = vpop.permute.xlu0 %1509
    %1511 = vrot.lane.b32.xlu0 %v1488, 96
    %v1512 = vpop.permute.xlu0 %1511
    %vm1525 = vcmask 1047296
    %1526 = vst.msk [vmem:[%s1353] sm:$0x7f] %vm1525, %v1490
    %1527 = vst.msk [vmem:[%s1353 + $0x38] sm:$0x7f] %vm1525, %v1492
    %1528 = vst.msk [vmem:[%s1353 + $0x70] sm:$0x7f] %vm1525, %v1494
    %1529 = vst.msk [vmem:[%s1353 + $0xa8] sm:$0x7f] %vm1525, %v1496
    %1530 = vst.msk [vmem:[%s1353 + $0xe0] sm:$0x7f] %vm1525, %v1498
    %1531 = vst.msk [vmem:[%s1353 + $0x118] sm:$0x7f] %vm1525, %v1500
    %1532 = vst.msk [vmem:[%s1353 + $0x1c0] sm:$0x7f] %vm1525, %v1502
    %1533 = vst.msk [vmem:[%s1353 + $0x1f8] sm:$0x7f] %vm1525, %v1504
    %1534 = vst.msk [vmem:[%s1353 + $0x230] sm:$0x7f] %vm1525, %v1506
    %1535 = vst.msk [vmem:[%s1353 + $0x268] sm:$0x7f] %vm1525, %v1508
    %1536 = vst.msk [vmem:[%s1353 + $0x2a0] sm:$0x7f] %vm1525, %v1510
    %1537 = vst.msk [vmem:[%s1353 + $0x2d8] sm:$0x7f] %vm1525, %v1512
    %v1538 = vrot.slane %v1126, 2
    %v1539 = vrot.slane %v1131, 2
    %v1540 = vrot.slane %v1136, 2
    %v1541 = vrot.slane %v1141, 2
    %v1542 = vrot.slane %v1146, 2
    %v1543 = vrot.slane %v1151, 2
    %v1544 = vrot.slane %v1166, 2
    %v1545 = vrot.slane %v1171, 2
    %v1546 = vrot.slane %v1176, 2
    %v1547 = vrot.slane %v1181, 2
    %v1548 = vrot.slane %v1186, 2
    %v1549 = vrot.slane %v1191, 2
    %vm1562 = vcmask 259072
    %1563 = vst.msk [vmem:[%s1353 + $0x8] sm:$0x3f] %vm1562, %v1538
    %1564 = vst.msk [vmem:[%s1353 + $0x40] sm:$0x3f] %vm1562, %v1539
    %1565 = vst.msk [vmem:[%s1353 + $0x78] sm:$0x3f] %vm1562, %v1540
    %1566 = vst.msk [vmem:[%s1353 + $0xb0] sm:$0x3f] %vm1562, %v1541
    %1567 = vst.msk [vmem:[%s1353 + $0xe8] sm:$0x3f] %vm1562, %v1542
    %1568 = vst.msk [vmem:[%s1353 + $0x120] sm:$0x3f] %vm1562, %v1543
    %1569 = vst.msk [vmem:[%s1353 + $0x1c8] sm:$0x3f] %vm1562, %v1544
    %1570 = vst.msk [vmem:[%s1353 + $0x200] sm:$0x3f] %vm1562, %v1545
    %1571 = vst.msk [vmem:[%s1353 + $0x238] sm:$0x3f] %vm1562, %v1546
    %1572 = vst.msk [vmem:[%s1353 + $0x270] sm:$0x3f] %vm1562, %v1547
    %1573 = vst.msk [vmem:[%s1353 + $0x2a8] sm:$0x3f] %vm1562, %v1548
    %1574 = vst.msk [vmem:[%s1353 + $0x2e0] sm:$0x3f] %vm1562, %v1549
    %v1577 = vrot.slane %v1156, 6
    %v1578 = vrot.slane %v1196, 6
    %1579 = vrot.lane.b32.xlu0 %v1329, 32
    %v1580 = vpop.permute.xlu0 %1579
    %1581 = vrot.lane.b32.xlu0 %v1330, 32
    %v1582 = vpop.permute.xlu0 %1581
    %1583 = vrot.lane.b32.xlu0 %v1331, 32
    %v1584 = vpop.permute.xlu0 %1583
    %1585 = vrot.lane.b32.xlu0 %v1332, 32
    %v1586 = vpop.permute.xlu0 %1585
    %1587 = vrot.lane.b32.xlu0 %v1333, 32
    %v1588 = vpop.permute.xlu0 %1587
    %1589 = vrot.lane.b32.xlu0 %v1334, 32
    %v1590 = vpop.permute.xlu0 %1589
    %1591 = vrot.lane.b32.xlu0 %v1577, 32
    %v1592 = vpop.permute.xlu0 %1591
    %1593 = vrot.lane.b32.xlu0 %v1335, 32
    %v1594 = vpop.permute.xlu0 %1593
    %1595 = vrot.lane.b32.xlu0 %v1336, 32
    %v1596 = vpop.permute.xlu0 %1595
    %1597 = vrot.lane.b32.xlu0 %v1337, 32
    %v1598 = vpop.permute.xlu0 %1597
    %1599 = vrot.lane.b32.xlu0 %v1338, 32
    %v1600 = vpop.permute.xlu0 %1599
    %1601 = vrot.lane.b32.xlu0 %v1339, 32
    %v1602 = vpop.permute.xlu0 %1601
    %1603 = vrot.lane.b32.xlu0 %v1340, 32
    %v1604 = vpop.permute.xlu0 %1603
    %1605 = vrot.lane.b32.xlu0 %v1578, 32
    %v1606 = vpop.permute.xlu0 %1605
    %s1621 = scalar_lea.vmem [#allocation2], 56
    %vm1622 = vcmask 523522
    %1623 = vst.msk [vmem:[%s1621 + $0x8] sm:$0xfc] %vm1622, %v1580
    %1624 = vst.msk [vmem:[%s1621 + $0x40] sm:$0xfc] %vm1622, %v1582
    %1625 = vst.msk [vmem:[%s1621 + $0x78] sm:$0xfc] %vm1622, %v1584
    %1626 = vst.msk [vmem:[%s1621 + $0xb0] sm:$0xfc] %vm1622, %v1586
    %1627 = vst.msk [vmem:[%s1621 + $0xe8] sm:$0xfc] %vm1622, %v1588
    %1628 = vst.msk [vmem:[%s1621 + $0x120] sm:$0xfc] %vm1622, %v1590
    %1629 = vst.msk [vmem:[%s1621 + $0x158] sm:$0xfc] %vm1622, %v1592
    %1630 = vst.msk [vmem:[%s1621 + $0x1c8] sm:$0xfc] %vm1622, %v1594
    %1631 = vst.msk [vmem:[%s1621 + $0x200] sm:$0xfc] %vm1622, %v1596
    %1632 = vst.msk [vmem:[%s1621 + $0x238] sm:$0xfc] %vm1622, %v1598
    %1633 = vst.msk [vmem:[%s1621 + $0x270] sm:$0xfc] %vm1622, %v1600
    %1634 = vst.msk [vmem:[%s1621 + $0x2a8] sm:$0xfc] %vm1622, %v1602
    %1635 = vst.msk [vmem:[%s1621 + $0x2e0] sm:$0xfc] %vm1622, %v1604
    %1636 = vst.msk [vmem:[%s1621 + $0x318] sm:$0xfc] %vm1622, %v1606
    %v1637 = vrot.slane %v1156, 7
    %v1638 = vrot.slane %v1196, 7
    %1639 = vrot.lane.b32.xlu0 %v1367, 64
    %v1640 = vpop.permute.xlu0 %1639
    %1641 = vrot.lane.b32.xlu0 %v1368, 64
    %v1642 = vpop.permute.xlu0 %1641
    %1643 = vrot.lane.b32.xlu0 %v1369, 64
    %v1644 = vpop.permute.xlu0 %1643
    %1645 = vrot.lane.b32.xlu0 %v1370, 64
    %v1646 = vpop.permute.xlu0 %1645
    %1647 = vrot.lane.b32.xlu0 %v1371, 64
    %v1648 = vpop.permute.xlu0 %1647
    %1649 = vrot.lane.b32.xlu0 %v1372, 64
    %v1650 = vpop.permute.xlu0 %1649
    %1651 = vrot.lane.b32.xlu0 %v1637, 64
    %v1652 = vpop.permute.xlu0 %1651
    %1653 = vrot.lane.b32.xlu0 %v1373, 64
    %v1654 = vpop.permute.xlu0 %1653
    %1655 = vrot.lane.b32.xlu0 %v1374, 64
    %v1656 = vpop.permute.xlu0 %1655
    %1657 = vrot.lane.b32.xlu0 %v1375, 64
    %v1658 = vpop.permute.xlu0 %1657
    %1659 = vrot.lane.b32.xlu0 %v1376, 64
    %v1660 = vpop.permute.xlu0 %1659
    %1661 = vrot.lane.b32.xlu0 %v1377, 64
    %v1662 = vpop.permute.xlu0 %1661
    %1663 = vrot.lane.b32.xlu0 %v1378, 64
    %v1664 = vpop.permute.xlu0 %1663
    %1665 = vrot.lane.b32.xlu0 %v1638, 64
    %v1666 = vpop.permute.xlu0 %1665
    %vm1681 = vcmask 785921
    %1682 = vst.msk [vmem:[%s1621 + $0x8] sm:$0xfe] %vm1681, %v1640
    %1683 = vst.msk [vmem:[%s1621 + $0x40] sm:$0xfe] %vm1681, %v1642
    %1684 = vst.msk [vmem:[%s1621 + $0x78] sm:$0xfe] %vm1681, %v1644
    %1685 = vst.msk [vmem:[%s1621 + $0xb0] sm:$0xfe] %vm1681, %v1646
    %1686 = vst.msk [vmem:[%s1621 + $0xe8] sm:$0xfe] %vm1681, %v1648
    %1687 = vst.msk [vmem:[%s1621 + $0x120] sm:$0xfe] %vm1681, %v1650
    %1688 = vst.msk [vmem:[%s1621 + $0x158] sm:$0xfe] %vm1681, %v1652
    %1689 = vst.msk [vmem:[%s1621 + $0x1c8] sm:$0xfe] %vm1681, %v1654
    %1690 = vst.msk [vmem:[%s1621 + $0x200] sm:$0xfe] %vm1681, %v1656
    %1691 = vst.msk [vmem:[%s1621 + $0x238] sm:$0xfe] %vm1681, %v1658
    %1692 = vst.msk [vmem:[%s1621 + $0x270] sm:$0xfe] %vm1681, %v1660
    %1693 = vst.msk [vmem:[%s1621 + $0x2a8] sm:$0xfe] %vm1681, %v1662
    %1694 = vst.msk [vmem:[%s1621 + $0x2e0] sm:$0xfe] %vm1681, %v1664
    %1695 = vst.msk [vmem:[%s1621 + $0x318] sm:$0xfe] %vm1681, %v1666
    %1696 = vrot.lane.b32.xlu0 %v1126, 96
    %v1697 = vpop.permute.xlu0 %1696
    %1698 = vrot.lane.b32.xlu0 %v1131, 96
    %v1699 = vpop.permute.xlu0 %1698
    %1700 = vrot.lane.b32.xlu0 %v1136, 96
    %v1701 = vpop.permute.xlu0 %1700
    %1702 = vrot.lane.b32.xlu0 %v1141, 96
    %v1703 = vpop.permute.xlu0 %1702
    %1704 = vrot.lane.b32.xlu0 %v1146, 96
    %v1705 = vpop.permute.xlu0 %1704
    %1706 = vrot.lane.b32.xlu0 %v1151, 96
    %v1707 = vpop.permute.xlu0 %1706
    %1708 = vrot.lane.b32.xlu0 %v1156, 96
    %v1709 = vpop.permute.xlu0 %1708
    %1710 = vrot.lane.b32.xlu0 %v1166, 96
    %v1711 = vpop.permute.xlu0 %1710
    %1712 = vrot.lane.b32.xlu0 %v1171, 96
    %v1713 = vpop.permute.xlu0 %1712
    %1714 = vrot.lane.b32.xlu0 %v1176, 96
    %v1715 = vpop.permute.xlu0 %1714
    %1716 = vrot.lane.b32.xlu0 %v1181, 96
    %v1717 = vpop.permute.xlu0 %1716
    %1718 = vrot.lane.b32.xlu0 %v1186, 96
    %v1719 = vpop.permute.xlu0 %1718
    %1720 = vrot.lane.b32.xlu0 %v1191, 96
    %v1721 = vpop.permute.xlu0 %1720
    %1722 = vrot.lane.b32.xlu0 %v1196, 96
    %v1723 = vpop.permute.xlu0 %1722
    %vm1738 = vcmask 1048320
    %1739 = vst.msk [vmem:[%s1621 + $0x8] sm:$0xff] %vm1738, %v1697
    %1740 = vst.msk [vmem:[%s1621 + $0x40] sm:$0xff] %vm1738, %v1699
    %1741 = vst.msk [vmem:[%s1621 + $0x78] sm:$0xff] %vm1738, %v1701
    %1742 = vst.msk [vmem:[%s1621 + $0xb0] sm:$0xff] %vm1738, %v1703
    %1743 = vst.msk [vmem:[%s1621 + $0xe8] sm:$0xff] %vm1738, %v1705
    %1744 = vst.msk [vmem:[%s1621 + $0x120] sm:$0xff] %vm1738, %v1707
    %1745 = vst.msk [vmem:[%s1621 + $0x158] sm:$0xff] %vm1738, %v1709
    %1746 = vst.msk [vmem:[%s1621 + $0x1c8] sm:$0xff] %vm1738, %v1711
    %1747 = vst.msk [vmem:[%s1621 + $0x200] sm:$0xff] %vm1738, %v1713
    %1748 = vst.msk [vmem:[%s1621 + $0x238] sm:$0xff] %vm1738, %v1715
    %1749 = vst.msk [vmem:[%s1621 + $0x270] sm:$0xff] %vm1738, %v1717
    %1750 = vst.msk [vmem:[%s1621 + $0x2a8] sm:$0xff] %vm1738, %v1719
    %1751 = vst.msk [vmem:[%s1621 + $0x2e0] sm:$0xff] %vm1738, %v1721
    %1752 = vst.msk [vmem:[%s1621 + $0x318] sm:$0xff] %vm1738, %v1723
    %v1753 = vrot.slane %v1156, 1
    %v1754 = vrot.slane %v1196, 1
    %vm1769 = vcmask 260096
    %1770 = vst.msk [vmem:[%s1621 + $0x10] sm:$0x7f] %vm1769, %v1477
    %1771 = vst.msk [vmem:[%s1621 + $0x48] sm:$0x7f] %vm1769, %v1478
    %1772 = vst.msk [vmem:[%s1621 + $0x80] sm:$0x7f] %vm1769, %v1479
    %1773 = vst.msk [vmem:[%s1621 + $0xb8] sm:$0x7f] %vm1769, %v1480
    %1774 = vst.msk [vmem:[%s1621 + $0xf0] sm:$0x7f] %vm1769, %v1481
    %1775 = vst.msk [vmem:[%s1621 + $0x128] sm:$0x7f] %vm1769, %v1482
    %1776 = vst.msk [vmem:[%s1621 + $0x160] sm:$0x7f] %vm1769, %v1753
    %1777 = vst.msk [vmem:[%s1621 + $0x1d0] sm:$0x7f] %vm1769, %v1483
    %1778 = vst.msk [vmem:[%s1621 + $0x208] sm:$0x7f] %vm1769, %v1484
    %1779 = vst.msk [vmem:[%s1621 + $0x240] sm:$0x7f] %vm1769, %v1485
    %1780 = vst.msk [vmem:[%s1621 + $0x278] sm:$0x7f] %vm1769, %v1486
    %1781 = vst.msk [vmem:[%s1621 + $0x2b0] sm:$0x7f] %vm1769, %v1487
    %1782 = vst.msk [vmem:[%s1621 + $0x2e8] sm:$0x7f] %vm1769, %v1488
    %1783 = vst.msk [vmem:[%s1621 + $0x320] sm:$0x7f] %vm1769, %v1754
    %v1784 = vrot.slane %v1156, 2
    %v1785 = vrot.slane %v1196, 2
    %1786 = vrot.lane.b32.xlu0 %v1538, 32
    %v1787 = vpop.permute.xlu0 %1786
    %1788 = vrot.lane.b32.xlu0 %v1539, 32
    %v1789 = vpop.permute.xlu0 %1788
    %1790 = vrot.lane.b32.xlu0 %v1540, 32
    %v1791 = vpop.permute.xlu0 %1790
    %1792 = vrot.lane.b32.xlu0 %v1541, 32
    %v1793 = vpop.permute.xlu0 %1792
    %1794 = vrot.lane.b32.xlu0 %v1542, 32
    %v1795 = vpop.permute.xlu0 %1794
    %1796 = vrot.lane.b32.xlu0 %v1543, 32
    %v1797 = vpop.permute.xlu0 %1796
    %1798 = vrot.lane.b32.xlu0 %v1784, 32
    %v1799 = vpop.permute.xlu0 %1798
    %1800 = vrot.lane.b32.xlu0 %v1544, 32
    %v1801 = vpop.permute.xlu0 %1800
    %1802 = vrot.lane.b32.xlu0 %v1545, 32
    %v1803 = vpop.permute.xlu0 %1802
    %1804 = vrot.lane.b32.xlu0 %v1546, 32
    %v1805 = vpop.permute.xlu0 %1804
    %1806 = vrot.lane.b32.xlu0 %v1547, 32
    %v1807 = vpop.permute.xlu0 %1806
    %1808 = vrot.lane.b32.xlu0 %v1548, 32
    %v1809 = vpop.permute.xlu0 %1808
    %1810 = vrot.lane.b32.xlu0 %v1549, 32
    %v1811 = vpop.permute.xlu0 %1810
    %1812 = vrot.lane.b32.xlu0 %v1785, 32
    %v1813 = vpop.permute.xlu0 %1812
    %vm1828 = vcmask 521472
    %1829 = vst.msk [vmem:[%s1621 + $0x10] sm:$0x3f] %vm1828, %v1787
    %1830 = vst.msk [vmem:[%s1621 + $0x48] sm:$0x3f] %vm1828, %v1789
    %1831 = vst.msk [vmem:[%s1621 + $0x80] sm:$0x3f] %vm1828, %v1791
    %1832 = vst.msk [vmem:[%s1621 + $0xb8] sm:$0x3f] %vm1828, %v1793
    %1833 = vst.msk [vmem:[%s1621 + $0xf0] sm:$0x3f] %vm1828, %v1795
    %1834 = vst.msk [vmem:[%s1621 + $0x128] sm:$0x3f] %vm1828, %v1797
    %1835 = vst.msk [vmem:[%s1621 + $0x160] sm:$0x3f] %vm1828, %v1799
    %1836 = vst.msk [vmem:[%s1621 + $0x1d0] sm:$0x3f] %vm1828, %v1801
    %1837 = vst.msk [vmem:[%s1621 + $0x208] sm:$0x3f] %vm1828, %v1803
    %1838 = vst.msk [vmem:[%s1621 + $0x240] sm:$0x3f] %vm1828, %v1805
    %1839 = vst.msk [vmem:[%s1621 + $0x278] sm:$0x3f] %vm1828, %v1807
    %1840 = vst.msk [vmem:[%s1621 + $0x2b0] sm:$0x3f] %vm1828, %v1809
    %1841 = vst.msk [vmem:[%s1621 + $0x2e8] sm:$0x3f] %vm1828, %v1811
    %1842 = vst.msk [vmem:[%s1621 + $0x320] sm:$0x3f] %vm1828, %v1813
    %v1845 = vrot.slane %v1161, 6
    %v1846 = vrot.slane %v1201, 6
    %1847 = vrot.lane.b32.xlu0 %v1329, 64
    %v1848 = vpop.permute.xlu0 %1847
    %1849 = vrot.lane.b32.xlu0 %v1330, 64
    %v1850 = vpop.permute.xlu0 %1849
    %1851 = vrot.lane.b32.xlu0 %v1331, 64
    %v1852 = vpop.permute.xlu0 %1851
    %1853 = vrot.lane.b32.xlu0 %v1332, 64
    %v1854 = vpop.permute.xlu0 %1853
    %1855 = vrot.lane.b32.xlu0 %v1333, 64
    %v1856 = vpop.permute.xlu0 %1855
    %1857 = vrot.lane.b32.xlu0 %v1334, 64
    %v1858 = vpop.permute.xlu0 %1857
    %1859 = vrot.lane.b32.xlu0 %v1577, 64
    %v1860 = vpop.permute.xlu0 %1859
    %1861 = vrot.lane.b32.xlu0 %v1845, 64
    %v1862 = vpop.permute.xlu0 %1861
    %1863 = vrot.lane.b32.xlu0 %v1335, 64
    %v1864 = vpop.permute.xlu0 %1863
    %1865 = vrot.lane.b32.xlu0 %v1336, 64
    %v1866 = vpop.permute.xlu0 %1865
    %1867 = vrot.lane.b32.xlu0 %v1337, 64
    %v1868 = vpop.permute.xlu0 %1867
    %1869 = vrot.lane.b32.xlu0 %v1338, 64
    %v1870 = vpop.permute.xlu0 %1869
    %1871 = vrot.lane.b32.xlu0 %v1339, 64
    %v1872 = vpop.permute.xlu0 %1871
    %1873 = vrot.lane.b32.xlu0 %v1340, 64
    %v1874 = vpop.permute.xlu0 %1873
    %1875 = vrot.lane.b32.xlu0 %v1578, 64
    %v1876 = vpop.permute.xlu0 %1875
    %1877 = vrot.lane.b32.xlu0 %v1846, 64
    %v1878 = vpop.permute.xlu0 %1877
    %vm1895 = vcmask 785922
    %1896 = vst.msk [vmem:[#allocation2 + $0x10] sm:$0xfc] %vm1895, %v1848
    %1897 = vst.msk [vmem:[#allocation2 + $0x48] sm:$0xfc] %vm1895, %v1850
    %1898 = vst.msk [vmem:[#allocation2 + $0x80] sm:$0xfc] %vm1895, %v1852
    %1899 = vst.msk [vmem:[#allocation2 + $0xb8] sm:$0xfc] %vm1895, %v1854
    %1900 = vst.msk [vmem:[#allocation2 + $0xf0] sm:$0xfc] %vm1895, %v1856
    %1901 = vst.msk [vmem:[#allocation2 + $0x128] sm:$0xfc] %vm1895, %v1858
    %1902 = vst.msk [vmem:[#allocation2 + $0x160] sm:$0xfc] %vm1895, %v1860
    %1903 = vst.msk [vmem:[#allocation2 + $0x198] sm:$0xfc] %vm1895, %v1862
    %1904 = vst.msk [vmem:[#allocation2 + $0x1d0] sm:$0xfc] %vm1895, %v1864
    %1905 = vst.msk [vmem:[#allocation2 + $0x208] sm:$0xfc] %vm1895, %v1866
    %1906 = vst.msk [vmem:[#allocation2 + $0x240] sm:$0xfc] %vm1895, %v1868
    %1907 = vst.msk [vmem:[#allocation2 + $0x278] sm:$0xfc] %vm1895, %v1870
    %1908 = vst.msk [vmem:[#allocation2 + $0x2b0] sm:$0xfc] %vm1895, %v1872
    %1909 = vst.msk [vmem:[#allocation2 + $0x2e8] sm:$0xfc] %vm1895, %v1874
    %1910 = vst.msk [vmem:[#allocation2 + $0x320] sm:$0xfc] %vm1895, %v1876
    %1911 = vst.msk [vmem:[#allocation2 + $0x358] sm:$0xfc] %vm1895, %v1878
    %v1912 = vrot.slane %v1161, 7
    %v1913 = vrot.slane %v1201, 7
    %1914 = vrot.lane.b32.xlu0 %v1367, 96
    %v1915 = vpop.permute.xlu0 %1914
    %1916 = vrot.lane.b32.xlu0 %v1368, 96
    %v1917 = vpop.permute.xlu0 %1916
    %1918 = vrot.lane.b32.xlu0 %v1369, 96
    %v1919 = vpop.permute.xlu0 %1918
    %1920 = vrot.lane.b32.xlu0 %v1370, 96
    %v1921 = vpop.permute.xlu0 %1920
    %1922 = vrot.lane.b32.xlu0 %v1371, 96
    %v1923 = vpop.permute.xlu0 %1922
    %1924 = vrot.lane.b32.xlu0 %v1372, 96
    %v1925 = vpop.permute.xlu0 %1924
    %1926 = vrot.lane.b32.xlu0 %v1637, 96
    %v1927 = vpop.permute.xlu0 %1926
    %1928 = vrot.lane.b32.xlu0 %v1912, 96
    %v1929 = vpop.permute.xlu0 %1928
    %1930 = vrot.lane.b32.xlu0 %v1373, 96
    %v1931 = vpop.permute.xlu0 %1930
    %1932 = vrot.lane.b32.xlu0 %v1374, 96
    %v1933 = vpop.permute.xlu0 %1932
    %1934 = vrot.lane.b32.xlu0 %v1375, 96
    %v1935 = vpop.permute.xlu0 %1934
    %1936 = vrot.lane.b32.xlu0 %v1376, 96
    %v1937 = vpop.permute.xlu0 %1936
    %1938 = vrot.lane.b32.xlu0 %v1377, 96
    %v1939 = vpop.permute.xlu0 %1938
    %1940 = vrot.lane.b32.xlu0 %v1378, 96
    %v1941 = vpop.permute.xlu0 %1940
    %1942 = vrot.lane.b32.xlu0 %v1638, 96
    %v1943 = vpop.permute.xlu0 %1942
    %1944 = vrot.lane.b32.xlu0 %v1913, 96
    %v1945 = vpop.permute.xlu0 %1944
    %vm1962 = vcmask 1048321
    %1963 = vst.msk [vmem:[#allocation2 + $0x10] sm:$0xfe] %vm1962, %v1915
    %1964 = vst.msk [vmem:[#allocation2 + $0x48] sm:$0xfe] %vm1962, %v1917
    %1965 = vst.msk [vmem:[#allocation2 + $0x80] sm:$0xfe] %vm1962, %v1919
    %1966 = vst.msk [vmem:[#allocation2 + $0xb8] sm:$0xfe] %vm1962, %v1921
    %1967 = vst.msk [vmem:[#allocation2 + $0xf0] sm:$0xfe] %vm1962, %v1923
    %1968 = vst.msk [vmem:[#allocation2 + $0x128] sm:$0xfe] %vm1962, %v1925
    %1969 = vst.msk [vmem:[#allocation2 + $0x160] sm:$0xfe] %vm1962, %v1927
    %1970 = vst.msk [vmem:[#allocation2 + $0x198] sm:$0xfe] %vm1962, %v1929
    %1971 = vst.msk [vmem:[#allocation2 + $0x1d0] sm:$0xfe] %vm1962, %v1931
    %1972 = vst.msk [vmem:[#allocation2 + $0x208] sm:$0xfe] %vm1962, %v1933
    %1973 = vst.msk [vmem:[#allocation2 + $0x240] sm:$0xfe] %vm1962, %v1935
    %1974 = vst.msk [vmem:[#allocation2 + $0x278] sm:$0xfe] %vm1962, %v1937
    %1975 = vst.msk [vmem:[#allocation2 + $0x2b0] sm:$0xfe] %vm1962, %v1939
    %1976 = vst.msk [vmem:[#allocation2 + $0x2e8] sm:$0xfe] %vm1962, %v1941
    %1977 = vst.msk [vmem:[#allocation2 + $0x320] sm:$0xfe] %vm1962, %v1943
    %1978 = vst.msk [vmem:[#allocation2 + $0x358] sm:$0xfe] %vm1962, %v1945
    %1979 = vst.msk [vmem:[#allocation2 + $0x18] sm:$0xff] %vm1210, %v1126
    %1980 = vst.msk [vmem:[#allocation2 + $0x50] sm:$0xff] %vm1210, %v1131
    %1981 = vst.msk [vmem:[#allocation2 + $0x88] sm:$0xff] %vm1210, %v1136
    %1982 = vst.msk [vmem:[#allocation2 + $0xc0] sm:$0xff] %vm1210, %v1141
    %1983 = vst.msk [vmem:[#allocation2 + $0xf8] sm:$0xff] %vm1210, %v1146
    %1984 = vst.msk [vmem:[#allocation2 + $0x130] sm:$0xff] %vm1210, %v1151
    %1985 = vst.msk [vmem:[#allocation2 + $0x168] sm:$0xff] %vm1210, %v1156
    %1986 = vst.msk [vmem:[#allocation2 + $0x1a0] sm:$0xff] %vm1210, %v1161
    %1987 = vst.msk [vmem:[#allocation2 + $0x1d8] sm:$0xff] %vm1210, %v1166
    %1988 = vst.msk [vmem:[#allocation2 + $0x210] sm:$0xff] %vm1210, %v1171
    %1989 = vst.msk [vmem:[#allocation2 + $0x248] sm:$0xff] %vm1210, %v1176
    %1990 = vst.msk [vmem:[#allocation2 + $0x280] sm:$0xff] %vm1210, %v1181
    %1991 = vst.msk [vmem:[#allocation2 + $0x2b8] sm:$0xff] %vm1210, %v1186
    %1992 = vst.msk [vmem:[#allocation2 + $0x2f0] sm:$0xff] %vm1210, %v1191
    %1993 = vst.msk [vmem:[#allocation2 + $0x328] sm:$0xff] %vm1210, %v1196
    %1994 = vst.msk [vmem:[#allocation2 + $0x360] sm:$0xff] %vm1210, %v1201
    %v1995 = vrot.slane %v1161, 1
    %v1996 = vrot.slane %v1201, 1
    %1997 = vrot.lane.b32.xlu0 %v1477, 32
    %v1998 = vpop.permute.xlu0 %1997
    %1999 = vrot.lane.b32.xlu0 %v1478, 32
    %v2000 = vpop.permute.xlu0 %1999
    %2001 = vrot.lane.b32.xlu0 %v1479, 32
    %v2002 = vpop.permute.xlu0 %2001
    %2003 = vrot.lane.b32.xlu0 %v1480, 32
    %v2004 = vpop.permute.xlu0 %2003
    %2005 = vrot.lane.b32.xlu0 %v1481, 32
    %v2006 = vpop.permute.xlu0 %2005
    %2007 = vrot.lane.b32.xlu0 %v1482, 32
    %v2008 = vpop.permute.xlu0 %2007
    %2009 = vrot.lane.b32.xlu0 %v1753, 32
    %v2010 = vpop.permute.xlu0 %2009
    %2011 = vrot.lane.b32.xlu0 %v1995, 32
    %v2012 = vpop.permute.xlu0 %2011
    %2013 = vrot.lane.b32.xlu0 %v1483, 32
    %v2014 = vpop.permute.xlu0 %2013
    %2015 = vrot.lane.b32.xlu0 %v1484, 32
    %v2016 = vpop.permute.xlu0 %2015
    %2017 = vrot.lane.b32.xlu0 %v1485, 32
    %v2018 = vpop.permute.xlu0 %2017
    %2019 = vrot.lane.b32.xlu0 %v1486, 32
    %v2020 = vpop.permute.xlu0 %2019
    %2021 = vrot.lane.b32.xlu0 %v1487, 32
    %v2022 = vpop.permute.xlu0 %2021
    %2023 = vrot.lane.b32.xlu0 %v1488, 32
    %v2024 = vpop.permute.xlu0 %2023
    %2025 = vrot.lane.b32.xlu0 %v1754, 32
    %v2026 = vpop.permute.xlu0 %2025
    %2027 = vrot.lane.b32.xlu0 %v1996, 32
    %v2028 = vpop.permute.xlu0 %2027
    %vm2045 = vcmask 522496
    %2046 = vst.msk [vmem:[#allocation2 + $0x18] sm:$0x7f] %vm2045, %v1998
    %2047 = vst.msk [vmem:[#allocation2 + $0x50] sm:$0x7f] %vm2045, %v2000
    %2048 = vst.msk [vmem:[#allocation2 + $0x88] sm:$0x7f] %vm2045, %v2002
    %2049 = vst.msk [vmem:[#allocation2 + $0xc0] sm:$0x7f] %vm2045, %v2004
    %2050 = vst.msk [vmem:[#allocation2 + $0xf8] sm:$0x7f] %vm2045, %v2006
    %2051 = vst.msk [vmem:[#allocation2 + $0x130] sm:$0x7f] %vm2045, %v2008
    %2052 = vst.msk [vmem:[#allocation2 + $0x168] sm:$0x7f] %vm2045, %v2010
    %2053 = vst.msk [vmem:[#allocation2 + $0x1a0] sm:$0x7f] %vm2045, %v2012
    %2054 = vst.msk [vmem:[#allocation2 + $0x1d8] sm:$0x7f] %vm2045, %v2014
    %2055 = vst.msk [vmem:[#allocation2 + $0x210] sm:$0x7f] %vm2045, %v2016
    %2056 = vst.msk [vmem:[#allocation2 + $0x248] sm:$0x7f] %vm2045, %v2018
    %2057 = vst.msk [vmem:[#allocation2 + $0x280] sm:$0x7f] %vm2045, %v2020
    %2058 = vst.msk [vmem:[#allocation2 + $0x2b8] sm:$0x7f] %vm2045, %v2022
    %2059 = vst.msk [vmem:[#allocation2 + $0x2f0] sm:$0x7f] %vm2045, %v2024
    %2060 = vst.msk [vmem:[#allocation2 + $0x328] sm:$0x7f] %vm2045, %v2026
    %2061 = vst.msk [vmem:[#allocation2 + $0x360] sm:$0x7f] %vm2045, %v2028
    %v2062 = vrot.slane %v1161, 2
    %v2063 = vrot.slane %v1201, 2
    %2064 = vrot.lane.b32.xlu0 %v1538, 64
    %v2065 = vpop.permute.xlu0 %2064
    %2066 = vrot.lane.b32.xlu0 %v1539, 64
    %v2067 = vpop.permute.xlu0 %2066
    %2068 = vrot.lane.b32.xlu0 %v1540, 64
    %v2069 = vpop.permute.xlu0 %2068
    %2070 = vrot.lane.b32.xlu0 %v1541, 64
    %v2071 = vpop.permute.xlu0 %2070
    %2072 = vrot.lane.b32.xlu0 %v1542, 64
    %v2073 = vpop.permute.xlu0 %2072
    %2074 = vrot.lane.b32.xlu0 %v1543, 64
    %v2075 = vpop.permute.xlu0 %2074
    %2076 = vrot.lane.b32.xlu0 %v1784, 64
    %v2077 = vpop.permute.xlu0 %2076
    %2078 = vrot.lane.b32.xlu0 %v2062, 64
    %v2079 = vpop.permute.xlu0 %2078
    %2080 = vrot.lane.b32.xlu0 %v1544, 64
    %v2081 = vpop.permute.xlu0 %2080
    %2082 = vrot.lane.b32.xlu0 %v1545, 64
    %v2083 = vpop.permute.xlu0 %2082
    %2084 = vrot.lane.b32.xlu0 %v1546, 64
    %v2085 = vpop.permute.xlu0 %2084
    %2086 = vrot.lane.b32.xlu0 %v1547, 64
    %v2087 = vpop.permute.xlu0 %2086
    %2088 = vrot.lane.b32.xlu0 %v1548, 64
    %v2089 = vpop.permute.xlu0 %2088
    %2090 = vrot.lane.b32.xlu0 %v1549, 64
    %v2091 = vpop.permute.xlu0 %2090
    %2092 = vrot.lane.b32.xlu0 %v1785, 64
    %v2093 = vpop.permute.xlu0 %2092
    %2094 = vrot.lane.b32.xlu0 %v2063, 64
    %v2095 = vpop.permute.xlu0 %2094
    %vm2112 = vcmask 783872
    %2113 = vst.msk [vmem:[#allocation2 + $0x18] sm:$0x3f] %vm2112, %v2065
    %2114 = vst.msk [vmem:[#allocation2 + $0x50] sm:$0x3f] %vm2112, %v2067
    %2115 = vst.msk [vmem:[#allocation2 + $0x88] sm:$0x3f] %vm2112, %v2069
    %2116 = vst.msk [vmem:[#allocation2 + $0xc0] sm:$0x3f] %vm2112, %v2071
    %2117 = vst.msk [vmem:[#allocation2 + $0xf8] sm:$0x3f] %vm2112, %v2073
    %2118 = vst.msk [vmem:[#allocation2 + $0x130] sm:$0x3f] %vm2112, %v2075
    %2119 = vst.msk [vmem:[#allocation2 + $0x168] sm:$0x3f] %vm2112, %v2077
    %2120 = vst.msk [vmem:[#allocation2 + $0x1a0] sm:$0x3f] %vm2112, %v2079
    %2121 = vst.msk [vmem:[#allocation2 + $0x1d8] sm:$0x3f] %vm2112, %v2081
    %2122 = vst.msk [vmem:[#allocation2 + $0x210] sm:$0x3f] %vm2112, %v2083
    %2123 = vst.msk [vmem:[#allocation2 + $0x248] sm:$0x3f] %vm2112, %v2085
    %2124 = vst.msk [vmem:[#allocation2 + $0x280] sm:$0x3f] %vm2112, %v2087
    %2125 = vst.msk [vmem:[#allocation2 + $0x2b8] sm:$0x3f] %vm2112, %v2089
    %2126 = vst.msk [vmem:[#allocation2 + $0x2f0] sm:$0x3f] %vm2112, %v2091
    %2127 = vst.msk [vmem:[#allocation2 + $0x328] sm:$0x3f] %vm2112, %v2093
    %2128 = vst.msk [vmem:[#allocation2 + $0x360] sm:$0x3f] %vm2112, %v2095
    %2129 = vrot.lane.b32.xlu0 %v1330, 96
    %v2130 = vpop.permute.xlu0 %2129
    %2131 = vrot.lane.b32.xlu0 %v1331, 96
    %v2132 = vpop.permute.xlu0 %2131
    %2133 = vrot.lane.b32.xlu0 %v1332, 96
    %v2134 = vpop.permute.xlu0 %2133
    %2135 = vrot.lane.b32.xlu0 %v1333, 96
    %v2136 = vpop.permute.xlu0 %2135
    %2137 = vrot.lane.b32.xlu0 %v1334, 96
    %v2138 = vpop.permute.xlu0 %2137
    %2139 = vrot.lane.b32.xlu0 %v1577, 96
    %v2140 = vpop.permute.xlu0 %2139
    %2141 = vrot.lane.b32.xlu0 %v1845, 96
    %v2142 = vpop.permute.xlu0 %2141
    %2143 = vrot.lane.b32.xlu0 %v1336, 96
    %v2144 = vpop.permute.xlu0 %2143
    %2145 = vrot.lane.b32.xlu0 %v1337, 96
    %v2146 = vpop.permute.xlu0 %2145
    %2147 = vrot.lane.b32.xlu0 %v1338, 96
    %v2148 = vpop.permute.xlu0 %2147
    %2149 = vrot.lane.b32.xlu0 %v1339, 96
    %v2150 = vpop.permute.xlu0 %2149
    %2151 = vrot.lane.b32.xlu0 %v1340, 96
    %v2152 = vpop.permute.xlu0 %2151
    %2153 = vrot.lane.b32.xlu0 %v1578, 96
    %v2154 = vpop.permute.xlu0 %2153
    %2155 = vrot.lane.b32.xlu0 %v1846, 96
    %v2156 = vpop.permute.xlu0 %2155
    %vm2171 = vcmask 1048322
    %2172 = vst.msk [vmem:[#allocation2 + $0x18] sm:$0xfc] %vm2171, %v2130
    %2173 = vst.msk [vmem:[#allocation2 + $0x50] sm:$0xfc] %vm2171, %v2132
    %2174 = vst.msk [vmem:[#allocation2 + $0x88] sm:$0xfc] %vm2171, %v2134
    %2175 = vst.msk [vmem:[#allocation2 + $0xc0] sm:$0xfc] %vm2171, %v2136
    %2176 = vst.msk [vmem:[#allocation2 + $0xf8] sm:$0xfc] %vm2171, %v2138
    %2177 = vst.msk [vmem:[#allocation2 + $0x130] sm:$0xfc] %vm2171, %v2140
    %2178 = vst.msk [vmem:[#allocation2 + $0x168] sm:$0xfc] %vm2171, %v2142
    %2179 = vst.msk [vmem:[#allocation2 + $0x1d8] sm:$0xfc] %vm2171, %v2144
    %2180 = vst.msk [vmem:[#allocation2 + $0x210] sm:$0xfc] %vm2171, %v2146
    %2181 = vst.msk [vmem:[#allocation2 + $0x248] sm:$0xfc] %vm2171, %v2148
    %2182 = vst.msk [vmem:[#allocation2 + $0x280] sm:$0xfc] %vm2171, %v2150
    %2183 = vst.msk [vmem:[#allocation2 + $0x2b8] sm:$0xfc] %vm2171, %v2152
    %2184 = vst.msk [vmem:[#allocation2 + $0x2f0] sm:$0xfc] %vm2171, %v2154
    %2185 = vst.msk [vmem:[#allocation2 + $0x328] sm:$0xfc] %vm2171, %v2156
    %vm2200 = vcmask 261121
    %2201 = vst.msk [vmem:[#allocation2 + $0x20] sm:$0xfe] %vm2200, %v1368
    %2202 = vst.msk [vmem:[#allocation2 + $0x58] sm:$0xfe] %vm2200, %v1369
    %2203 = vst.msk [vmem:[#allocation2 + $0x90] sm:$0xfe] %vm2200, %v1370
    %2204 = vst.msk [vmem:[#allocation2 + $0xc8] sm:$0xfe] %vm2200, %v1371
    %2205 = vst.msk [vmem:[#allocation2 + $0x100] sm:$0xfe] %vm2200, %v1372
    %2206 = vst.msk [vmem:[#allocation2 + $0x138] sm:$0xfe] %vm2200, %v1637
    %2207 = vst.msk [vmem:[#allocation2 + $0x170] sm:$0xfe] %vm2200, %v1912
    %2208 = vst.msk [vmem:[#allocation2 + $0x1e0] sm:$0xfe] %vm2200, %v1374
    %2209 = vst.msk [vmem:[#allocation2 + $0x218] sm:$0xfe] %vm2200, %v1375
    %2210 = vst.msk [vmem:[#allocation2 + $0x250] sm:$0xfe] %vm2200, %v1376
    %2211 = vst.msk [vmem:[#allocation2 + $0x288] sm:$0xfe] %vm2200, %v1377
    %2212 = vst.msk [vmem:[#allocation2 + $0x2c0] sm:$0xfe] %vm2200, %v1378
    %2213 = vst.msk [vmem:[#allocation2 + $0x2f8] sm:$0xfe] %vm2200, %v1638
    %2214 = vst.msk [vmem:[#allocation2 + $0x330] sm:$0xfe] %vm2200, %v1913
    %2215 = vrot.lane.b32.xlu0 %v1131, 32
    %v2216 = vpop.permute.xlu0 %2215
    %2217 = vrot.lane.b32.xlu0 %v1136, 32
    %v2218 = vpop.permute.xlu0 %2217
    %2219 = vrot.lane.b32.xlu0 %v1141, 32
    %v2220 = vpop.permute.xlu0 %2219
    %2221 = vrot.lane.b32.xlu0 %v1146, 32
    %v2222 = vpop.permute.xlu0 %2221
    %2223 = vrot.lane.b32.xlu0 %v1151, 32
    %v2224 = vpop.permute.xlu0 %2223
    %2225 = vrot.lane.b32.xlu0 %v1156, 32
    %v2226 = vpop.permute.xlu0 %2225
    %2227 = vrot.lane.b32.xlu0 %v1161, 32
    %v2228 = vpop.permute.xlu0 %2227
    %2229 = vrot.lane.b32.xlu0 %v1171, 32
    %v2230 = vpop.permute.xlu0 %2229
    %2231 = vrot.lane.b32.xlu0 %v1176, 32
    %v2232 = vpop.permute.xlu0 %2231
    %2233 = vrot.lane.b32.xlu0 %v1181, 32
    %v2234 = vpop.permute.xlu0 %2233
    %2235 = vrot.lane.b32.xlu0 %v1186, 32
    %v2236 = vpop.permute.xlu0 %2235
    %2237 = vrot.lane.b32.xlu0 %v1191, 32
    %v2238 = vpop.permute.xlu0 %2237
    %2239 = vrot.lane.b32.xlu0 %v1196, 32
    %v2240 = vpop.permute.xlu0 %2239
    %2241 = vrot.lane.b32.xlu0 %v1201, 32
    %v2242 = vpop.permute.xlu0 %2241
    %vm2257 = vcmask 523520
    %2258 = vst.msk [vmem:[#allocation2 + $0x20] sm:$0xff] %vm2257, %v2216
    %2259 = vst.msk [vmem:[#allocation2 + $0x58] sm:$0xff] %vm2257, %v2218
    %2260 = vst.msk [vmem:[#allocation2 + $0x90] sm:$0xff] %vm2257, %v2220
    %2261 = vst.msk [vmem:[#allocation2 + $0xc8] sm:$0xff] %vm2257, %v2222
    %2262 = vst.msk [vmem:[#allocation2 + $0x100] sm:$0xff] %vm2257, %v2224
    %2263 = vst.msk [vmem:[#allocation2 + $0x138] sm:$0xff] %vm2257, %v2226
    %2264 = vst.msk [vmem:[#allocation2 + $0x170] sm:$0xff] %vm2257, %v2228
    %2265 = vst.msk [vmem:[#allocation2 + $0x1e0] sm:$0xff] %vm2257, %v2230
    %2266 = vst.msk [vmem:[#allocation2 + $0x218] sm:$0xff] %vm2257, %v2232
    %2267 = vst.msk [vmem:[#allocation2 + $0x250] sm:$0xff] %vm2257, %v2234
    %2268 = vst.msk [vmem:[#allocation2 + $0x288] sm:$0xff] %vm2257, %v2236
    %2269 = vst.msk [vmem:[#allocation2 + $0x2c0] sm:$0xff] %vm2257, %v2238
    %2270 = vst.msk [vmem:[#allocation2 + $0x2f8] sm:$0xff] %vm2257, %v2240
    %2271 = vst.msk [vmem:[#allocation2 + $0x330] sm:$0xff] %vm2257, %v2242
    %2272 = vrot.lane.b32.xlu0 %v1478, 64
    %v2273 = vpop.permute.xlu0 %2272
    %2274 = vrot.lane.b32.xlu0 %v1479, 64
    %v2275 = vpop.permute.xlu0 %2274
    %2276 = vrot.lane.b32.xlu0 %v1480, 64
    %v2277 = vpop.permute.xlu0 %2276
    %2278 = vrot.lane.b32.xlu0 %v1481, 64
    %v2279 = vpop.permute.xlu0 %2278
    %2280 = vrot.lane.b32.xlu0 %v1482, 64
    %v2281 = vpop.permute.xlu0 %2280
    %2282 = vrot.lane.b32.xlu0 %v1753, 64
    %v2283 = vpop.permute.xlu0 %2282
    %2284 = vrot.lane.b32.xlu0 %v1995, 64
    %v2285 = vpop.permute.xlu0 %2284
    %2286 = vrot.lane.b32.xlu0 %v1484, 64
    %v2287 = vpop.permute.xlu0 %2286
    %2288 = vrot.lane.b32.xlu0 %v1485, 64
    %v2289 = vpop.permute.xlu0 %2288
    %2290 = vrot.lane.b32.xlu0 %v1486, 64
    %v2291 = vpop.permute.xlu0 %2290
    %2292 = vrot.lane.b32.xlu0 %v1487, 64
    %v2293 = vpop.permute.xlu0 %2292
    %2294 = vrot.lane.b32.xlu0 %v1488, 64
    %v2295 = vpop.permute.xlu0 %2294
    %2296 = vrot.lane.b32.xlu0 %v1754, 64
    %v2297 = vpop.permute.xlu0 %2296
    %2298 = vrot.lane.b32.xlu0 %v1996, 64
    %v2299 = vpop.permute.xlu0 %2298
    %vm2314 = vcmask 784896
    %2315 = vst.msk [vmem:[#allocation2 + $0x20] sm:$0x7f] %vm2314, %v2273
    %2316 = vst.msk [vmem:[#allocation2 + $0x58] sm:$0x7f] %vm2314, %v2275
    %2317 = vst.msk [vmem:[#allocation2 + $0x90] sm:$0x7f] %vm2314, %v2277
    %2318 = vst.msk [vmem:[#allocation2 + $0xc8] sm:$0x7f] %vm2314, %v2279
    %2319 = vst.msk [vmem:[#allocation2 + $0x100] sm:$0x7f] %vm2314, %v2281
    %2320 = vst.msk [vmem:[#allocation2 + $0x138] sm:$0x7f] %vm2314, %v2283
    %2321 = vst.msk [vmem:[#allocation2 + $0x170] sm:$0x7f] %vm2314, %v2285
    %2322 = vst.msk [vmem:[#allocation2 + $0x1e0] sm:$0x7f] %vm2314, %v2287
    %2323 = vst.msk [vmem:[#allocation2 + $0x218] sm:$0x7f] %vm2314, %v2289
    %2324 = vst.msk [vmem:[#allocation2 + $0x250] sm:$0x7f] %vm2314, %v2291
    %2325 = vst.msk [vmem:[#allocation2 + $0x288] sm:$0x7f] %vm2314, %v2293
    %2326 = vst.msk [vmem:[#allocation2 + $0x2c0] sm:$0x7f] %vm2314, %v2295
    %2327 = vst.msk [vmem:[#allocation2 + $0x2f8] sm:$0x7f] %vm2314, %v2297
    %2328 = vst.msk [vmem:[#allocation2 + $0x330] sm:$0x7f] %vm2314, %v2299
    %2329 = vrot.lane.b32.xlu0 %v1539, 96
    %v2330 = vpop.permute.xlu0 %2329
    %2331 = vrot.lane.b32.xlu0 %v1540, 96
    %v2332 = vpop.permute.xlu0 %2331
    %2333 = vrot.lane.b32.xlu0 %v1541, 96
    %v2334 = vpop.permute.xlu0 %2333
    %2335 = vrot.lane.b32.xlu0 %v1542, 96
    %v2336 = vpop.permute.xlu0 %2335
    %2337 = vrot.lane.b32.xlu0 %v1543, 96
    %v2338 = vpop.permute.xlu0 %2337
    %2339 = vrot.lane.b32.xlu0 %v1784, 96
    %v2340 = vpop.permute.xlu0 %2339
    %2341 = vrot.lane.b32.xlu0 %v2062, 96
    %v2342 = vpop.permute.xlu0 %2341
    %2343 = vrot.lane.b32.xlu0 %v1545, 96
    %v2344 = vpop.permute.xlu0 %2343
    %2345 = vrot.lane.b32.xlu0 %v1546, 96
    %v2346 = vpop.permute.xlu0 %2345
    %2347 = vrot.lane.b32.xlu0 %v1547, 96
    %v2348 = vpop.permute.xlu0 %2347
    %2349 = vrot.lane.b32.xlu0 %v1548, 96
    %v2350 = vpop.permute.xlu0 %2349
    %2351 = vrot.lane.b32.xlu0 %v1549, 96
    %v2352 = vpop.permute.xlu0 %2351
    %2353 = vrot.lane.b32.xlu0 %v1785, 96
    %v2354 = vpop.permute.xlu0 %2353
    %2355 = vrot.lane.b32.xlu0 %v2063, 96
    %v2356 = vpop.permute.xlu0 %2355
    %vm2371 = vcmask 1046272
    %2372 = vst.msk [vmem:[#allocation2 + $0x20] sm:$0x3f] %vm2371, %v2330
    %2373 = vst.msk [vmem:[#allocation2 + $0x58] sm:$0x3f] %vm2371, %v2332
    %2374 = vst.msk [vmem:[#allocation2 + $0x90] sm:$0x3f] %vm2371, %v2334
    %2375 = vst.msk [vmem:[#allocation2 + $0xc8] sm:$0x3f] %vm2371, %v2336
    %2376 = vst.msk [vmem:[#allocation2 + $0x100] sm:$0x3f] %vm2371, %v2338
    %2377 = vst.msk [vmem:[#allocation2 + $0x138] sm:$0x3f] %vm2371, %v2340
    %2378 = vst.msk [vmem:[#allocation2 + $0x170] sm:$0x3f] %vm2371, %v2342
    %2379 = vst.msk [vmem:[#allocation2 + $0x1e0] sm:$0x3f] %vm2371, %v2344
    %2380 = vst.msk [vmem:[#allocation2 + $0x218] sm:$0x3f] %vm2371, %v2346
    %2381 = vst.msk [vmem:[#allocation2 + $0x250] sm:$0x3f] %vm2371, %v2348
    %2382 = vst.msk [vmem:[#allocation2 + $0x288] sm:$0x3f] %vm2371, %v2350
    %2383 = vst.msk [vmem:[#allocation2 + $0x2c0] sm:$0x3f] %vm2371, %v2352
    %2384 = vst.msk [vmem:[#allocation2 + $0x2f8] sm:$0x3f] %vm2371, %v2354
    %2385 = vst.msk [vmem:[#allocation2 + $0x330] sm:$0x3f] %vm2371, %v2356
    %2390 = vst.msk [vmem:[#allocation2 + $0x28] sm:$0xfc] %vm1354, %v1331
    %2391 = vst.msk [vmem:[#allocation2 + $0x60] sm:$0xfc] %vm1354, %v1332
    %2392 = vst.msk [vmem:[#allocation2 + $0x98] sm:$0xfc] %vm1354, %v1333
    %2393 = vst.msk [vmem:[#allocation2 + $0xd0] sm:$0xfc] %vm1354, %v1334
    %2394 = vst.msk [vmem:[#allocation2 + $0x108] sm:$0xfc] %vm1354, %v1577
    %2395 = vst.msk [vmem:[#allocation2 + $0x140] sm:$0xfc] %vm1354, %v1845
    %2396 = vst.msk [vmem:[#allocation2 + $0x1e8] sm:$0xfc] %vm1354, %v1337
    %2397 = vst.msk [vmem:[#allocation2 + $0x220] sm:$0xfc] %vm1354, %v1338
    %2398 = vst.msk [vmem:[#allocation2 + $0x258] sm:$0xfc] %vm1354, %v1339
    %2399 = vst.msk [vmem:[#allocation2 + $0x290] sm:$0xfc] %vm1354, %v1340
    %2400 = vst.msk [vmem:[#allocation2 + $0x2c8] sm:$0xfc] %vm1354, %v1578
    %2401 = vst.msk [vmem:[#allocation2 + $0x300] sm:$0xfc] %vm1354, %v1846
    %2402 = vrot.lane.b32.xlu0 %v1637, 32
    %v2403 = vpop.permute.xlu0 %2402
    %2404 = vrot.lane.b32.xlu0 %v1912, 32
    %v2405 = vpop.permute.xlu0 %2404
    %2406 = vrot.lane.b32.xlu0 %v1638, 32
    %v2407 = vpop.permute.xlu0 %2406
    %2408 = vrot.lane.b32.xlu0 %v1913, 32
    %v2409 = vpop.permute.xlu0 %2408
    %2414 = vst.msk [vmem:[#allocation2 + $0x28] sm:$0xfe] %vm1415, %v1384
    %2415 = vst.msk [vmem:[#allocation2 + $0x60] sm:$0xfe] %vm1415, %v1386
    %2416 = vst.msk [vmem:[#allocation2 + $0x98] sm:$0xfe] %vm1415, %v1388
    %2417 = vst.msk [vmem:[#allocation2 + $0xd0] sm:$0xfe] %vm1415, %v1390
    %2418 = vst.msk [vmem:[#allocation2 + $0x108] sm:$0xfe] %vm1415, %v2403
    %2419 = vst.msk [vmem:[#allocation2 + $0x140] sm:$0xfe] %vm1415, %v2405
    %2420 = vst.msk [vmem:[#allocation2 + $0x1e8] sm:$0xfe] %vm1415, %v1396
    %2421 = vst.msk [vmem:[#allocation2 + $0x220] sm:$0xfe] %vm1415, %v1398
    %2422 = vst.msk [vmem:[#allocation2 + $0x258] sm:$0xfe] %vm1415, %v1400
    %2423 = vst.msk [vmem:[#allocation2 + $0x290] sm:$0xfe] %vm1415, %v1402
    %2424 = vst.msk [vmem:[#allocation2 + $0x2c8] sm:$0xfe] %vm1415, %v2407
    %2425 = vst.msk [vmem:[#allocation2 + $0x300] sm:$0xfe] %vm1415, %v2409
    %2426 = vrot.lane.b32.xlu0 %v1156, 64
    %v2427 = vpop.permute.xlu0 %2426
    %2428 = vrot.lane.b32.xlu0 %v1161, 64
    %v2429 = vpop.permute.xlu0 %2428
    %2430 = vrot.lane.b32.xlu0 %v1196, 64
    %v2431 = vpop.permute.xlu0 %2430
    %2432 = vrot.lane.b32.xlu0 %v1201, 64
    %v2433 = vpop.permute.xlu0 %2432
    %2438 = vst.msk [vmem:[#allocation2 + $0x28] sm:$0xff] %vm1464, %v1433
    %2439 = vst.msk [vmem:[#allocation2 + $0x60] sm:$0xff] %vm1464, %v1435
    %2440 = vst.msk [vmem:[#allocation2 + $0x98] sm:$0xff] %vm1464, %v1437
    %2441 = vst.msk [vmem:[#allocation2 + $0xd0] sm:$0xff] %vm1464, %v1439
    %2442 = vst.msk [vmem:[#allocation2 + $0x108] sm:$0xff] %vm1464, %v2427
    %2443 = vst.msk [vmem:[#allocation2 + $0x140] sm:$0xff] %vm1464, %v2429
    %2444 = vst.msk [vmem:[#allocation2 + $0x1e8] sm:$0xff] %vm1464, %v1445
    %2445 = vst.msk [vmem:[#allocation2 + $0x220] sm:$0xff] %vm1464, %v1447
    %2446 = vst.msk [vmem:[#allocation2 + $0x258] sm:$0xff] %vm1464, %v1449
    %2447 = vst.msk [vmem:[#allocation2 + $0x290] sm:$0xff] %vm1464, %v1451
    %2448 = vst.msk [vmem:[#allocation2 + $0x2c8] sm:$0xff] %vm1464, %v2431
    %2449 = vst.msk [vmem:[#allocation2 + $0x300] sm:$0xff] %vm1464, %v2433
    %2450 = vrot.lane.b32.xlu0 %v1753, 96
    %v2451 = vpop.permute.xlu0 %2450
    %2452 = vrot.lane.b32.xlu0 %v1995, 96
    %v2453 = vpop.permute.xlu0 %2452
    %2454 = vrot.lane.b32.xlu0 %v1754, 96
    %v2455 = vpop.permute.xlu0 %2454
    %2456 = vrot.lane.b32.xlu0 %v1996, 96
    %v2457 = vpop.permute.xlu0 %2456
    %2462 = vst.msk [vmem:[#allocation2 + $0x28] sm:$0x7f] %vm1525, %v1494
    %2463 = vst.msk [vmem:[#allocation2 + $0x60] sm:$0x7f] %vm1525, %v1496
    %2464 = vst.msk [vmem:[#allocation2 + $0x98] sm:$0x7f] %vm1525, %v1498
    %2465 = vst.msk [vmem:[#allocation2 + $0xd0] sm:$0x7f] %vm1525, %v1500
    %2466 = vst.msk [vmem:[#allocation2 + $0x108] sm:$0x7f] %vm1525, %v2451
    %2467 = vst.msk [vmem:[#allocation2 + $0x140] sm:$0x7f] %vm1525, %v2453
    %2468 = vst.msk [vmem:[#allocation2 + $0x1e8] sm:$0x7f] %vm1525, %v1506
    %2469 = vst.msk [vmem:[#allocation2 + $0x220] sm:$0x7f] %vm1525, %v1508
    %2470 = vst.msk [vmem:[#allocation2 + $0x258] sm:$0x7f] %vm1525, %v1510
    %2471 = vst.msk [vmem:[#allocation2 + $0x290] sm:$0x7f] %vm1525, %v1512
    %2472 = vst.msk [vmem:[#allocation2 + $0x2c8] sm:$0x7f] %vm1525, %v2455
    %2473 = vst.msk [vmem:[#allocation2 + $0x300] sm:$0x7f] %vm1525, %v2457
    %2478 = vst.msk [vmem:[#allocation2 + $0x30] sm:$0x3f] %vm1562, %v1540
    %2479 = vst.msk [vmem:[#allocation2 + $0x68] sm:$0x3f] %vm1562, %v1541
    %2480 = vst.msk [vmem:[#allocation2 + $0xa0] sm:$0x3f] %vm1562, %v1542
    %2481 = vst.msk [vmem:[#allocation2 + $0xd8] sm:$0x3f] %vm1562, %v1543
    %2482 = vst.msk [vmem:[#allocation2 + $0x110] sm:$0x3f] %vm1562, %v1784
    %2483 = vst.msk [vmem:[#allocation2 + $0x148] sm:$0x3f] %vm1562, %v2062
    %2484 = vst.msk [vmem:[#allocation2 + $0x1f0] sm:$0x3f] %vm1562, %v1546
    %2485 = vst.msk [vmem:[#allocation2 + $0x228] sm:$0x3f] %vm1562, %v1547
    %2486 = vst.msk [vmem:[#allocation2 + $0x260] sm:$0x3f] %vm1562, %v1548
    %2487 = vst.msk [vmem:[#allocation2 + $0x298] sm:$0x3f] %vm1562, %v1549
    %2488 = vst.msk [vmem:[#allocation2 + $0x2d0] sm:$0x3f] %vm1562, %v1785
    %2489 = vst.msk [vmem:[#allocation2 + $0x308] sm:$0x3f] %vm1562, %v2063
    %v2490 = vld [vmem:[#allocation2] sm:$0xff]
    %v2491 = vld [vmem:[#allocation2 + $0x8] sm:$0xff]
    %v2492 = vld [vmem:[#allocation2 + $0x10] sm:$0xff]
    %v2493 = vld [vmem:[#allocation2 + $0x18] sm:$0xff]
    %v2494 = vld [vmem:[#allocation2 + $0x20] sm:$0xff]
    %v2495 = vld [vmem:[#allocation2 + $0x28] sm:$0xff]
    %v2496 = vld [vmem:[#allocation2 + $0x30] sm:$0xff]
    %v2497 = vld [vmem:[#allocation2 + $0x38] sm:$0xff]
    %v2498 = vld [vmem:[#allocation2 + $0x40] sm:$0xff]
    %v2499 = vld [vmem:[#allocation2 + $0x48] sm:$0xff]
    %v2500 = vld [vmem:[#allocation2 + $0x50] sm:$0xff]
    %v2501 = vld [vmem:[#allocation2 + $0x58] sm:$0xff]
    %v2502 = vld [vmem:[#allocation2 + $0x60] sm:$0xff]
    %v2503 = vld [vmem:[#allocation2 + $0x68] sm:$0xff]
    %v2504 = vld [vmem:[#allocation2 + $0x70] sm:$0xff]
    %v2505 = vld [vmem:[#allocation2 + $0x78] sm:$0xff]
    %v2506 = vld [vmem:[#allocation2 + $0x80] sm:$0xff]
    %v2507 = vld [vmem:[#allocation2 + $0x88] sm:$0xff]
    %v2508 = vld [vmem:[#allocation2 + $0x90] sm:$0xff]
    %v2509 = vld [vmem:[#allocation2 + $0x98] sm:$0xff]
    %v2510 = vld [vmem:[#allocation2 + $0xa0] sm:$0xff]
    %v2511 = vld [vmem:[#allocation2 + $0xa8] sm:$0xff]
    %v2512 = vld [vmem:[#allocation2 + $0xb0] sm:$0xff]
    %v2513 = vld [vmem:[#allocation2 + $0xb8] sm:$0xff]
    %v2514 = vld [vmem:[#allocation2 + $0xc0] sm:$0xff]
    %v2515 = vld [vmem:[#allocation2 + $0xc8] sm:$0xff]
    %v2516 = vld [vmem:[#allocation2 + $0xd0] sm:$0xff]
    %v2517 = vld [vmem:[#allocation2 + $0xd8] sm:$0xff]
    %v2518 = vld [vmem:[#allocation2 + $0xe0] sm:$0xff]
    %v2519 = vld [vmem:[#allocation2 + $0xe8] sm:$0xff]
    %v2520 = vld [vmem:[#allocation2 + $0xf0] sm:$0xff]
    %v2521 = vld [vmem:[#allocation2 + $0xf8] sm:$0xff]
    %v2522 = vld [vmem:[#allocation2 + $0x100] sm:$0xff]
    %v2523 = vld [vmem:[#allocation2 + $0x108] sm:$0xff]
    %v2524 = vld [vmem:[#allocation2 + $0x110] sm:$0xff]
    %v2525 = vld [vmem:[#allocation2 + $0x118] sm:$0xff]
    %v2526 = vld [vmem:[#allocation2 + $0x120] sm:$0xff]
    %v2527 = vld [vmem:[#allocation2 + $0x128] sm:$0xff]
    %v2528 = vld [vmem:[#allocation2 + $0x130] sm:$0xff]
    %v2529 = vld [vmem:[#allocation2 + $0x138] sm:$0xff]
    %v2530 = vld [vmem:[#allocation2 + $0x140] sm:$0xff]
    %v2531 = vld [vmem:[#allocation2 + $0x148] sm:$0xff]
    %v2532 = vld [vmem:[#allocation2 + $0x150] sm:$0xff]
    %v2533 = vld [vmem:[#allocation2 + $0x158] sm:$0xff]
    %v2534 = vld [vmem:[#allocation2 + $0x160] sm:$0xff]
    %v2535 = vld [vmem:[#allocation2 + $0x168] sm:$0xff]
    %v2536 = vld [vmem:[#allocation2 + $0x170] sm:$0xff]
    %v2537 = vld [vmem:[#allocation2 + $0x178] sm:$0xff]
    %v2538 = vld [vmem:[#allocation2 + $0x180] sm:$0xff]
    %v2539 = vld [vmem:[#allocation2 + $0x188] sm:$0xff]
    %v2540 = vld [vmem:[#allocation2 + $0x190] sm:$0xff]
    %v2541 = vld [vmem:[#allocation2 + $0x198] sm:$0xff]
    %v2542 = vld [vmem:[#allocation2 + $0x1a0] sm:$0xff]
    %v2543 = vld [vmem:[#allocation2 + $0x1a8] sm:$0xff]
    %v2544 = vld [vmem:[#allocation2 + $0x1b0] sm:$0xff]
    %v2545 = vld [vmem:[#allocation2 + $0x1b8] sm:$0xff]
    %v2546 = vld [vmem:[#allocation2 + $0x1c0] sm:$0xff]
    %v2547 = vld [vmem:[#allocation2 + $0x1c8] sm:$0xff]
    %v2548 = vld [vmem:[#allocation2 + $0x1d0] sm:$0xff]
    %v2549 = vld [vmem:[#allocation2 + $0x1d8] sm:$0xff]
    %v2550 = vld [vmem:[#allocation2 + $0x1e0] sm:$0xff]
    %v2551 = vld [vmem:[#allocation2 + $0x1e8] sm:$0xff]
    %v2552 = vld [vmem:[#allocation2 + $0x1f0] sm:$0xff]
    %v2553 = vld [vmem:[#allocation2 + $0x1f8] sm:$0xff]
    %v2554 = vld [vmem:[#allocation2 + $0x200] sm:$0xff]
    %v2555 = vld [vmem:[#allocation2 + $0x208] sm:$0xff]
    %v2556 = vld [vmem:[#allocation2 + $0x210] sm:$0xff]
    %v2557 = vld [vmem:[#allocation2 + $0x218] sm:$0xff]
    %v2558 = vld [vmem:[#allocation2 + $0x220] sm:$0xff]
    %v2559 = vld [vmem:[#allocation2 + $0x228] sm:$0xff]
    %v2560 = vld [vmem:[#allocation2 + $0x230] sm:$0xff]
    %v2561 = vld [vmem:[#allocation2 + $0x238] sm:$0xff]
    %v2562 = vld [vmem:[#allocation2 + $0x240] sm:$0xff]
    %v2563 = vld [vmem:[#allocation2 + $0x248] sm:$0xff]
    %v2564 = vld [vmem:[#allocation2 + $0x250] sm:$0xff]
    %v2565 = vld [vmem:[#allocation2 + $0x258] sm:$0xff]
    %v2566 = vld [vmem:[#allocation2 + $0x260] sm:$0xff]
    %v2567 = vld [vmem:[#allocation2 + $0x268] sm:$0xff]
    %v2568 = vld [vmem:[#allocation2 + $0x270] sm:$0xff]
    %v2569 = vld [vmem:[#allocation2 + $0x278] sm:$0xff]
    %v2570 = vld [vmem:[#allocation2 + $0x280] sm:$0xff]
    %v2571 = vld [vmem:[#allocation2 + $0x288] sm:$0xff]
    %v2572 = vld [vmem:[#allocation2 + $0x290] sm:$0xff]
    %v2573 = vld [vmem:[#allocation2 + $0x298] sm:$0xff]
    %v2574 = vld [vmem:[#allocation2 + $0x2a0] sm:$0xff]
    %v2575 = vld [vmem:[#allocation2 + $0x2a8] sm:$0xff]
    %v2576 = vld [vmem:[#allocation2 + $0x2b0] sm:$0xff]
    %v2577 = vld [vmem:[#allocation2 + $0x2b8] sm:$0xff]
    %v2578 = vld [vmem:[#allocation2 + $0x2c0] sm:$0xff]
    %v2579 = vld [vmem:[#allocation2 + $0x2c8] sm:$0xff]
    %v2580 = vld [vmem:[#allocation2 + $0x2d0] sm:$0xff]
    %v2581 = vld [vmem:[#allocation2 + $0x2d8] sm:$0xff]
    %v2582 = vld [vmem:[#allocation2 + $0x2e0] sm:$0xff]
    %v2583 = vld [vmem:[#allocation2 + $0x2e8] sm:$0xff]
    %v2584 = vld [vmem:[#allocation2 + $0x2f0] sm:$0xff]
    %v2585 = vld [vmem:[#allocation2 + $0x2f8] sm:$0xff]
    %v2586 = vld [vmem:[#allocation2 + $0x300] sm:$0xff]
    %v2587 = vld [vmem:[#allocation2 + $0x308] sm:$0xff]
    %v2588 = vld [vmem:[#allocation2 + $0x310] sm:$0xff]
    %v2589 = vld [vmem:[#allocation2 + $0x318] sm:$0xff]
    %v2590 = vld [vmem:[#allocation2 + $0x320] sm:$0xff]
    %v2591 = vld [vmem:[#allocation2 + $0x328] sm:$0xff]
    %v2592 = vld [vmem:[#allocation2 + $0x330] sm:$0xff]
    %v2593 = vld [vmem:[#allocation2 + $0x338] sm:$0xff]
    %v2594 = vld [vmem:[#allocation2 + $0x340] sm:$0xff]
    %v2595 = vld [vmem:[#allocation2 + $0x348] sm:$0xff]
    %v2596 = vld [vmem:[#allocation2 + $0x350] sm:$0xff]
    %v2597 = vld [vmem:[#allocation2 + $0x358] sm:$0xff]
    %v2598 = vld [vmem:[#allocation2 + $0x360] sm:$0xff]
    %v2599 = vld [vmem:[#allocation2 + $0x368] sm:$0xff]
    %v2600 = vld [vmem:[#allocation2 + $0x370] sm:$0xff]
    %v2601 = vld [vmem:[#allocation2 + $0x378] sm:$0xff]
    %v2602 = vld [vmem:[%s5] sm:$0xff]
    %v2603 = vld [vmem:[%s5 + $0x8] sm:$0xff]
    %v2604 = vld [vmem:[%s5 + $0x10] sm:$0xff]
    %v2605 = vld [vmem:[%s5 + $0x18] sm:$0xff]
    %v2606 = vld [vmem:[%s5 + $0x20] sm:$0xff]
    %v2607 = vld [vmem:[%s5 + $0x28] sm:$0xff]
    %v2608 = vld [vmem:[%s5 + $0x30] sm:$0xff]
    %v2609 = vld [vmem:[%s5 + $0x38] sm:$0xff]
    %v2610 = vld [vmem:[%s5 + $0x40] sm:$0xff]
    %v2611 = vld [vmem:[%s5 + $0x48] sm:$0xff]
    %v2612 = vld [vmem:[%s5 + $0x50] sm:$0xff]
    %v2613 = vld [vmem:[%s5 + $0x58] sm:$0xff]
    %v2614 = vld [vmem:[%s5 + $0x60] sm:$0xff]
    %v2615 = vld [vmem:[%s5 + $0x68] sm:$0xff]
    %v2616 = vld [vmem:[%s5 + $0x70] sm:$0xff]
    %v2617 = vld [vmem:[%s5 + $0x78] sm:$0xff]
    %v2618 = vld [vmem:[%s5 + $0x80] sm:$0xff]
    %v2619 = vld [vmem:[%s5 + $0x88] sm:$0xff]
    %v2620 = vld [vmem:[%s5 + $0x90] sm:$0xff]
    %v2621 = vld [vmem:[%s5 + $0x98] sm:$0xff]
    %v2622 = vld [vmem:[%s5 + $0xa0] sm:$0xff]
    %v2623 = vld [vmem:[%s5 + $0xa8] sm:$0xff]
    %v2624 = vld [vmem:[%s5 + $0xb0] sm:$0xff]
    %v2625 = vld [vmem:[%s5 + $0xb8] sm:$0xff]
    %v2626 = vld [vmem:[%s5 + $0xc0] sm:$0xff]
    %v2627 = vld [vmem:[%s5 + $0xc8] sm:$0xff]
    %v2628 = vld [vmem:[%s5 + $0xd0] sm:$0xff]
    %v2629 = vld [vmem:[%s5 + $0xd8] sm:$0xff]
    %v2630 = vld [vmem:[%s5 + $0xe0] sm:$0xff]
    %v2631 = vld [vmem:[%s5 + $0xe8] sm:$0xff]
    %v2632 = vld [vmem:[%s5 + $0xf0] sm:$0xff]
    %v2633 = vld [vmem:[%s5 + $0xf8] sm:$0xff]
    %v2634 = vld [vmem:[%s5 + $0x100] sm:$0xff]
    %v2635 = vld [vmem:[%s5 + $0x108] sm:$0xff]
    %v2636 = vld [vmem:[%s5 + $0x110] sm:$0xff]
    %v2637 = vld [vmem:[%s5 + $0x118] sm:$0xff]
    %v2638 = vld [vmem:[%s5 + $0x120] sm:$0xff]
    %v2639 = vld [vmem:[%s5 + $0x128] sm:$0xff]
    %v2640 = vld [vmem:[%s5 + $0x130] sm:$0xff]
    %v2641 = vld [vmem:[%s5 + $0x138] sm:$0xff]
    %v2642 = vld [vmem:[%s5 + $0x140] sm:$0xff]
    %v2643 = vld [vmem:[%s5 + $0x148] sm:$0xff]
    %v2644 = vld [vmem:[%s5 + $0x150] sm:$0xff]
    %v2645 = vld [vmem:[%s5 + $0x158] sm:$0xff]
    %v2646 = vld [vmem:[%s5 + $0x160] sm:$0xff]
    %v2647 = vld [vmem:[%s5 + $0x168] sm:$0xff]
    %v2648 = vld [vmem:[%s5 + $0x170] sm:$0xff]
    %v2649 = vld [vmem:[%s5 + $0x178] sm:$0xff]
    %v2650 = vld [vmem:[%s5 + $0x180] sm:$0xff]
    %v2651 = vld [vmem:[%s5 + $0x188] sm:$0xff]
    %v2652 = vld [vmem:[%s5 + $0x190] sm:$0xff]
    %v2653 = vld [vmem:[%s5 + $0x198] sm:$0xff]
    %v2654 = vld [vmem:[%s5 + $0x1a0] sm:$0xff]
    %v2655 = vld [vmem:[%s5 + $0x1a8] sm:$0xff]
    %v2656 = vld [vmem:[%s5 + $0x1b0] sm:$0xff]
    %v2657 = vld [vmem:[%s5 + $0x1b8] sm:$0xff]
    %v2658 = vld [vmem:[%s5 + $0x1c0] sm:$0xff]
    %v2659 = vld [vmem:[%s5 + $0x1c8] sm:$0xff]
    %v2660 = vld [vmem:[%s5 + $0x1d0] sm:$0xff]
    %v2661 = vld [vmem:[%s5 + $0x1d8] sm:$0xff]
    %v2662 = vld [vmem:[%s5 + $0x1e0] sm:$0xff]
    %v2663 = vld [vmem:[%s5 + $0x1e8] sm:$0xff]
    %v2664 = vld [vmem:[%s5 + $0x1f0] sm:$0xff]
    %v2665 = vld [vmem:[%s5 + $0x1f8] sm:$0xff]
    %v2666 = vld [vmem:[%s5 + $0x200] sm:$0xff]
    %v2667 = vld [vmem:[%s5 + $0x208] sm:$0xff]
    %v2668 = vld [vmem:[%s5 + $0x210] sm:$0xff]
    %v2669 = vld [vmem:[%s5 + $0x218] sm:$0xff]
    %v2670 = vld [vmem:[%s5 + $0x220] sm:$0xff]
    %v2671 = vld [vmem:[%s5 + $0x228] sm:$0xff]
    %v2672 = vld [vmem:[%s5 + $0x230] sm:$0xff]
    %v2673 = vld [vmem:[%s5 + $0x238] sm:$0xff]
    %v2674 = vld [vmem:[%s5 + $0x240] sm:$0xff]
    %v2675 = vld [vmem:[%s5 + $0x248] sm:$0xff]
    %v2676 = vld [vmem:[%s5 + $0x250] sm:$0xff]
    %v2677 = vld [vmem:[%s5 + $0x258] sm:$0xff]
    %v2678 = vld [vmem:[%s5 + $0x260] sm:$0xff]
    %v2679 = vld [vmem:[%s5 + $0x268] sm:$0xff]
    %v2680 = vld [vmem:[%s5 + $0x270] sm:$0xff]
    %v2681 = vld [vmem:[%s5 + $0x278] sm:$0xff]
    %v2682 = vld [vmem:[%s5 + $0x280] sm:$0xff]
    %v2683 = vld [vmem:[%s5 + $0x288] sm:$0xff]
    %v2684 = vld [vmem:[%s5 + $0x290] sm:$0xff]
    %v2685 = vld [vmem:[%s5 + $0x298] sm:$0xff]
    %v2686 = vld [vmem:[%s5 + $0x2a0] sm:$0xff]
    %v2687 = vld [vmem:[%s5 + $0x2a8] sm:$0xff]
    %v2688 = vld [vmem:[%s5 + $0x2b0] sm:$0xff]
    %v2689 = vld [vmem:[%s5 + $0x2b8] sm:$0xff]
    %v2690 = vld [vmem:[%s5 + $0x2c0] sm:$0xff]
    %v2691 = vld [vmem:[%s5 + $0x2c8] sm:$0xff]
    %v2692 = vld [vmem:[%s5 + $0x2d0] sm:$0xff]
    %v2693 = vld [vmem:[%s5 + $0x2d8] sm:$0xff]
    %v2694 = vld [vmem:[%s5 + $0x2e0] sm:$0xff]
    %v2695 = vld [vmem:[%s5 + $0x2e8] sm:$0xff]
    %v2696 = vld [vmem:[%s5 + $0x2f0] sm:$0xff]
    %v2697 = vld [vmem:[%s5 + $0x2f8] sm:$0xff]
    %v2698 = vld [vmem:[%s5 + $0x300] sm:$0xff]
    %v2699 = vld [vmem:[%s5 + $0x308] sm:$0xff]
    %v2700 = vld [vmem:[%s5 + $0x310] sm:$0xff]
    %v2701 = vld [vmem:[%s5 + $0x318] sm:$0xff]
    %v2702 = vld [vmem:[%s6] sm:$0x1]
    %v2704 = vlaneseq
    %v2705 = vshrl.u32 %v2704, 7
    %v2706 = vsub.s32 0, %v2705
    %v2707 = vrot.slane %v2702, %v2706
    %v2710 = vsel %vm1210, %v2496, 0
    %v2713 = vsel %vm1210, %v2503, 0
    %v2716 = vsel %vm1210, %v2510, 0
    %v2719 = vsel %vm1210, %v2517, 0
    %v2722 = vsel %vm1210, %v2524, 0
    %v2725 = vsel %vm1210, %v2531, 0
    %v2728 = vsel %vm1210, %v2538, 0
    %v2731 = vsel %vm1210, %v2545, 0
    %v2734 = vsel %vm1210, %v2552, 0
    %v2737 = vsel %vm1210, %v2559, 0
    %v2740 = vsel %vm1210, %v2566, 0
    %v2743 = vsel %vm1210, %v2573, 0
    %v2746 = vsel %vm1210, %v2580, 0
    %v2749 = vsel %vm1210, %v2587, 0
    %v2752 = vsel %vm1210, %v2594, 0
    %v2755 = vsel %vm1210, %v2601, 0
    %2757 = vmatprep.subr.mxu0 0.0
    %2758 = vmatpush1.msra.mxu0 %v2602
    %2759 = vmatprep.subr.mxu0 0.0
    %2760 = vmatpush1.msra.mxu0 %v2603
    %2761 = vmatprep.subr.mxu0 0.0
    %2762 = vmatpush1.msra.mxu0 %v2604
    %2763 = vmatprep.subr.mxu0 0.0
    %2764 = vmatpush1.msra.mxu0 %v2605
    %2765 = vmatprep.subr.mxu0 0.0
    %2766 = vmatpush1.msra.mxu0 %v2606
    %2767 = vmatprep.subr.mxu0 0.0
    %2768 = vmatpush1.msra.mxu0 %v2607
    %2769 = vmatprep.subr.mxu0 0.0
    %2770 = vmatpush1.msra.mxu0 %v2608
    %2771 = vmatprep.subr.mxu0 0.0
    %2772 = vmatpush1.msra.mxu0 %v2609
    %2773 = vmatprep.subr.mxu0 0.0
    %2774 = vmatpush1.msra.mxu0 %v2610
    %2775 = vmatprep.subr.mxu0 0.0
    %2776 = vmatpush1.msra.mxu0 %v2611
    %2777 = vmatprep.subr.mxu0 0.0
    %2778 = vmatpush1.msra.mxu0 %v2612
    %2779 = vmatprep.subr.mxu0 0.0
    %2780 = vmatpush1.msra.mxu0 %v2613
    %2781 = vmatprep.subr.mxu0 0.0
    %2782 = vmatpush1.msra.mxu0 %v2614
    %2783 = vmatprep.subr.mxu0 0.0
    %2784 = vmatpush1.msra.mxu0 %v2615
    %2785 = vmatprep.subr.mxu0 0.0
    %2786 = vmatpush1.msra.mxu0 %v2616
    %2787 = vmatprep.subr.mxu0 0.0
    %2788 = vmatpush1.msra.mxu0 %v2617
    %2789 = vmatprep.subr.mxu0 0.0
    %2790 = vmatpush1.msra.mxu0 %v2618
    %2791 = vmatprep.subr.mxu0 0.0
    %2792 = vmatpush1.msra.mxu0 %v2619
    %2793 = vmatprep.subr.mxu0 0.0
    %2794 = vmatpush1.msra.mxu0 %v2620
    %2795 = vmatprep.subr.mxu0 0.0
    %2796 = vmatpush1.msra.mxu0 %v2621
    %2797 = vmatprep.subr.mxu0 0.0
    %2798 = vmatpush1.msra.mxu0 %v2622
    %2799 = vmatprep.subr.mxu0 0.0
    %2800 = vmatpush1.msra.mxu0 %v2623
    %2801 = vmatprep.subr.mxu0 0.0
    %2802 = vmatpush1.msra.mxu0 %v2624
    %2803 = vmatprep.subr.mxu0 0.0
    %2804 = vmatpush1.msra.mxu0 %v2625
    %2805 = vmatprep.subr.mxu0 0.0
    %2806 = vmatpush1.msra.mxu0 %v2626
    %2807 = vmatprep.subr.mxu0 0.0
    %2808 = vmatpush1.msra.mxu0 %v2627
    %2809 = vmatprep.subr.mxu0 0.0
    %2810 = vmatpush1.msra.mxu0 %v2628
    %2811 = vmatprep.subr.mxu0 0.0
    %2812 = vmatpush1.msra.mxu0 %v2629
    %2813 = vmatprep.subr.mxu0 0.0
    %2814 = vmatpush1.msra.mxu0 %v2630
    %2815 = vmatprep.subr.mxu0 0.0
    %2816 = vmatpush1.msra.mxu0 %v2631
    %2817 = vmatprep.subr.mxu0 0.0
    %2818 = vmatpush1.msra.mxu0 %v2632
    %2819 = vmatprep.subr.mxu0 0.0
    %2820 = vmatpush1.msra.mxu0 %v2633
    %2821 = vmatprep.mubr.f32.mxu0 %v2491
    %2822 = vmatmul.mubr.f32.gmra.mrb[0].mxu0 %v2490
    %v2823 = vpop.f32.mrb[0].mxu0
    %v2824 = vadd.f32 %v2707, %v2823
    %v2825 = vpop.f32.mrb[0].mxu0
    %2826 = vmatprep.mubr.f32.mxu0 %v2498
    %2827 = vmatmul.mubr.f32.gmra.mrb[0].mxu0 %v2497
    %v2828 = vpop.f32.mrb[0].mxu0
    %v2829 = vadd.f32 %v2707, %v2828
    %v2830 = vpop.f32.mrb[0].mxu0
    %2831 = vmatprep.mubr.f32.mxu0 %v2505
    %2832 = vmatmul.mubr.f32.gmra.mrb[0].mxu0 %v2504
    %v2833 = vpop.f32.mrb[0].mxu0
    %v2834 = vadd.f32 %v2707, %v2833
    %v2835 = vpop.f32.mrb[0].mxu0
    %2836 = vmatprep.mubr.f32.mxu0 %v2512
    %2837 = vmatmul.mubr.f32.gmra.mrb[0].mxu0 %v2511
    %v2838 = vpop.f32.mrb[0].mxu0
    %v2839 = vadd.f32 %v2707, %v2838
    %v2840 = vpop.f32.mrb[0].mxu0
    %2841 = vmatprep.mubr.f32.mxu0 %v2519
    %2842 = vmatmul.mubr.f32.gmra.mrb[0].mxu0 %v2518
    %v2843 = vpop.f32.mrb[0].mxu0
    %v2844 = vadd.f32 %v2707, %v2843
    %v2845 = vpop.f32.mrb[0].mxu0
    %2846 = vmatprep.mubr.f32.mxu0 %v2526
    %2847 = vmatmul.mubr.f32.gmra.mrb[0].mxu0 %v2525
    %v2848 = vpop.f32.mrb[0].mxu0
    %v2849 = vadd.f32 %v2707, %v2848
    %v2850 = vpop.f32.mrb[0].mxu0
    %2851 = vmatprep.mubr.f32.mxu0 %v2533
    %2852 = vmatmul.mubr.f32.gmra.mrb[0].mxu0 %v2532
    %v2853 = vpop.f32.mrb[0].mxu0
    %v2854 = vadd.f32 %v2707, %v2853
    %v2855 = vpop.f32.mrb[0].mxu0
    %2856 = vmatprep.mubr.f32.mxu0 %v2540
    %2857 = vmatmul.mubr.f32.gmra.mrb[0].mxu0 %v2539
    %v2858 = vpop.f32.mrb[0].mxu0
    %v2859 = vadd.f32 %v2707, %v2858
    %v2860 = vpop.f32.mrb[0].mxu0
    %2861 = vmatprep.mubr.f32.mxu0 %v2547
    %2862 = vmatmul.mubr.f32.gmra.mrb[0].mxu0 %v2546
    %v2863 = vpop.f32.mrb[0].mxu0
    %v2864 = vadd.f32 %v2707, %v2863
    %v2865 = vpop.f32.mrb[0].mxu0
    %2866 = vmatprep.mubr.f32.mxu0 %v2554
    %2867 = vmatmul.mubr.f32.gmra.mrb[0].mxu0 %v2553
    %v2868 = vpop.f32.mrb[0].mxu0
    %v2869 = vadd.f32 %v2707, %v2868
    %v2870 = vpop.f32.mrb[0].mxu0
    %2871 = vmatprep.mubr.f32.mxu0 %v2561
    %2872 = vmatmul.mubr.f32.gmra.mrb[0].mxu0 %v2560
    %v2873 = vpop.f32.mrb[0].mxu0
    %v2874 = vadd.f32 %v2707, %v2873
    %v2875 = vpop.f32.mrb[0].mxu0
    %2876 = vmatprep.mubr.f32.mxu0 %v2568
    %2877 = vmatmul.mubr.f32.gmra.mrb[0].mxu0 %v2567
    %v2878 = vpop.f32.mrb[0].mxu0
    %v2879 = vadd.f32 %v2707, %v2878
    %v2880 = vpop.f32.mrb[0].mxu0
    %2881 = vmatprep.mubr.f32.mxu0 %v2575
    %2882 = vmatmul.mubr.f32.gmra.mrb[0].mxu0 %v2574
    %v2883 = vpop.f32.mrb[0].mxu0
    %v2884 = vadd.f32 %v2707, %v2883
    %v2885 = vpop.f32.mrb[0].mxu0
    %2886 = vmatprep.mubr.f32.mxu0 %v2582
    %2887 = vmatmul.mubr.f32.gmra.mrb[0].mxu0 %v2581
    %v2888 = vpop.f32.mrb[0].mxu0
    %v2889 = vadd.f32 %v2707, %v2888
    %v2890 = vpop.f32.mrb[0].mxu0
    %2891 = vmatprep.mubr.f32.mxu0 %v2589
    %2892 = vmatmul.mubr.f32.gmra.mrb[0].mxu0 %v2588
    %v2893 = vpop.f32.mrb[0].mxu0
    %v2894 = vadd.f32 %v2707, %v2893
    %v2895 = vpop.f32.mrb[0].mxu0
    %2896 = vmatprep.mubr.f32.mxu0 %v2596
    %2897 = vmatmul.mubr.f32.gmra.mrb[0].mxu0 %v2595
    %v2898 = vpop.f32.mrb[0].mxu0
    %v2899 = vadd.f32 %v2707, %v2898
    %v2900 = vpop.f32.mrb[0].mxu0
    %2901 = vdwg.mxu0
    %2902 = vmatprep.subr.mxu0 0.0
    %2903 = vmatpush1.msra.mxu0 %v2634
    %2904 = vmatprep.subr.mxu0 0.0
    %2905 = vmatpush1.msra.mxu0 %v2635
    %2906 = vmatprep.subr.mxu0 0.0
    %2907 = vmatpush1.msra.mxu0 %v2636
    %2908 = vmatprep.subr.mxu0 0.0
    %2909 = vmatpush1.msra.mxu0 %v2637
    %2910 = vmatprep.subr.mxu0 0.0
    %2911 = vmatpush1.msra.mxu0 %v2638
    %2912 = vmatprep.subr.mxu0 0.0
    %2913 = vmatpush1.msra.mxu0 %v2639
    %2914 = vmatprep.subr.mxu0 0.0
    %2915 = vmatpush1.msra.mxu0 %v2640
    %2916 = vmatprep.subr.mxu0 0.0
    %2917 = vmatpush1.msra.mxu0 %v2641
    %2918 = vmatprep.subr.mxu0 0.0
    %2919 = vmatpush1.msra.mxu0 %v2642
    %2920 = vmatprep.subr.mxu0 0.0
    %2921 = vmatpush1.msra.mxu0 %v2643
    %2922 = vmatprep.subr.mxu0 0.0
    %2923 = vmatpush1.msra.mxu0 %v2644
    %2924 = vmatprep.subr.mxu0 0.0
    %2925 = vmatpush1.msra.mxu0 %v2645
    %2926 = vmatprep.subr.mxu0 0.0
    %2927 = vmatpush1.msra.mxu0 %v2646
    %2928 = vmatprep.subr.mxu0 0.0
    %2929 = vmatpush1.msra.mxu0 %v2647
    %2930 = vmatprep.subr.mxu0 0.0
    %2931 = vmatpush1.msra.mxu0 %v2648
    %2932 = vmatprep.subr.mxu0 0.0
    %2933 = vmatpush1.msra.mxu0 %v2649
    %2934 = vmatprep.subr.mxu0 0.0
    %2935 = vmatpush1.msra.mxu0 %v2650
    %2936 = vmatprep.subr.mxu0 0.0
    %2937 = vmatpush1.msra.mxu0 %v2651
    %2938 = vmatprep.subr.mxu0 0.0
    %2939 = vmatpush1.msra.mxu0 %v2652
    %2940 = vmatprep.subr.mxu0 0.0
    %2941 = vmatpush1.msra.mxu0 %v2653
    %2942 = vmatprep.subr.mxu0 0.0
    %2943 = vmatpush1.msra.mxu0 %v2654
    %2944 = vmatprep.subr.mxu0 0.0
    %2945 = vmatpush1.msra.mxu0 %v2655
    %2946 = vmatprep.subr.mxu0 0.0
    %2947 = vmatpush1.msra.mxu0 %v2656
    %2948 = vmatprep.subr.mxu0 0.0
    %2949 = vmatpush1.msra.mxu0 %v2657
    %2950 = vmatprep.subr.mxu0 0.0
    %2951 = vmatpush1.msra.mxu0 %v2658
    %2952 = vmatprep.subr.mxu0 0.0
    %2953 = vmatpush1.msra.mxu0 %v2659
    %2954 = vmatprep.subr.mxu0 0.0
    %2955 = vmatpush1.msra.mxu0 %v2660
    %2956 = vmatprep.subr.mxu0 0.0
    %2957 = vmatpush1.msra.mxu0 %v2661
    %2958 = vmatprep.subr.mxu0 0.0
    %2959 = vmatpush1.msra.mxu0 %v2662
    %2960 = vmatprep.subr.mxu0 0.0
    %2961 = vmatpush1.msra.mxu0 %v2663
    %2962 = vmatprep.subr.mxu0 0.0
    %2963 = vmatpush1.msra.mxu0 %v2664
    %2964 = vmatprep.subr.mxu0 0.0
    %2965 = vmatpush1.msra.mxu0 %v2665
    %2966 = vmatprep.mubr.f32.mxu0 %v2493
    %2967 = vmatmul.mubr.f32.gmra.mrb[0].mxu0 %v2492
    %v2968 = vpop.f32.mrb[0].mxu0
    %v2969 = vadd.f32 %v2824, %v2968
    %v2970 = vpop.f32.mrb[0].mxu0
    %2971 = vmatprep.mubr.f32.mxu0 %v2500
    %2972 = vmatmul.mubr.f32.gmra.mrb[0].mxu0 %v2499
    %v2973 = vpop.f32.mrb[0].mxu0
    %v2974 = vadd.f32 %v2829, %v2973
    %v2975 = vpop.f32.mrb[0].mxu0
    %2976 = vmatprep.mubr.f32.mxu0 %v2507
    %2977 = vmatmul.mubr.f32.gmra.mrb[0].mxu0 %v2506
    %v2978 = vpop.f32.mrb[0].mxu0
    %v2979 = vadd.f32 %v2834, %v2978
    %v2980 = vpop.f32.mrb[0].mxu0
    %2981 = vmatprep.mubr.f32.mxu0 %v2514
    %2982 = vmatmul.mubr.f32.gmra.mrb[0].mxu0 %v2513
    %v2983 = vpop.f32.mrb[0].mxu0
    %v2984 = vadd.f32 %v2839, %v2983
    %v2985 = vpop.f32.mrb[0].mxu0
    %2986 = vmatprep.mubr.f32.mxu0 %v2521
    %2987 = vmatmul.mubr.f32.gmra.mrb[0].mxu0 %v2520
    %v2988 = vpop.f32.mrb[0].mxu0
    %v2989 = vadd.f32 %v2844, %v2988
    %v2990 = vpop.f32.mrb[0].mxu0
    %2991 = vmatprep.mubr.f32.mxu0 %v2528
    %2992 = vmatmul.mubr.f32.gmra.mrb[0].mxu0 %v2527
    %v2993 = vpop.f32.mrb[0].mxu0
    %v2994 = vadd.f32 %v2849, %v2993
    %v2995 = vpop.f32.mrb[0].mxu0
    %2996 = vmatprep.mubr.f32.mxu0 %v2535
    %2997 = vmatmul.mubr.f32.gmra.mrb[0].mxu0 %v2534
    %v2998 = vpop.f32.mrb[0].mxu0
    %v2999 = vadd.f32 %v2854, %v2998
    %v3000 = vpop.f32.mrb[0].mxu0
    %3001 = vmatprep.mubr.f32.mxu0 %v2542
    %3002 = vmatmul.mubr.f32.gmra.mrb[0].mxu0 %v2541
    %v3003 = vpop.f32.mrb[0].mxu0
    %v3004 = vadd.f32 %v2859, %v3003
    %v3005 = vpop.f32.mrb[0].mxu0
    %3006 = vmatprep.mubr.f32.mxu0 %v2549
    %3007 = vmatmul.mubr.f32.gmra.mrb[0].mxu0 %v2548
    %v3008 = vpop.f32.mrb[0].mxu0
    %v3009 = vadd.f32 %v2864, %v3008
    %v3010 = vpop.f32.mrb[0].mxu0
    %3011 = vmatprep.mubr.f32.mxu0 %v2556
    %3012 = vmatmul.mubr.f32.gmra.mrb[0].mxu0 %v2555
    %v3013 = vpop.f32.mrb[0].mxu0
    %v3014 = vadd.f32 %v2869, %v3013
    %v3015 = vpop.f32.mrb[0].mxu0
    %3016 = vmatprep.mubr.f32.mxu0 %v2563
    %3017 = vmatmul.mubr.f32.gmra.mrb[0].mxu0 %v2562
    %v3018 = vpop.f32.mrb[0].mxu0
    %v3019 = vadd.f32 %v2874, %v3018
    %v3020 = vpop.f32.mrb[0].mxu0
    %3021 = vmatprep.mubr.f32.mxu0 %v2570
    %3022 = vmatmul.mubr.f32.gmra.mrb[0].mxu0 %v2569
    %v3023 = vpop.f32.mrb[0].mxu0
    %v3024 = vadd.f32 %v2879, %v3023
    %v3025 = vpop.f32.mrb[0].mxu0
    %3026 = vmatprep.mubr.f32.mxu0 %v2577
    %3027 = vmatmul.mubr.f32.gmra.mrb[0].mxu0 %v2576
    %v3028 = vpop.f32.mrb[0].mxu0
    %v3029 = vadd.f32 %v2884, %v3028
    %v3030 = vpop.f32.mrb[0].mxu0
    %3031 = vmatprep.mubr.f32.mxu0 %v2584
    %3032 = vmatmul.mubr.f32.gmra.mrb[0].mxu0 %v2583
    %v3033 = vpop.f32.mrb[0].mxu0
    %v3034 = vadd.f32 %v2889, %v3033
    %v3035 = vpop.f32.mrb[0].mxu0
    %3036 = vmatprep.mubr.f32.mxu0 %v2591
    %3037 = vmatmul.mubr.f32.gmra.mrb[0].mxu0 %v2590
    %v3038 = vpop.f32.mrb[0].mxu0
    %v3039 = vadd.f32 %v2894, %v3038
    %v3040 = vpop.f32.mrb[0].mxu0
    %3041 = vmatprep.mubr.f32.mxu0 %v2598
    %3042 = vmatmul.mubr.f32.gmra.mrb[0].mxu0 %v2597
    %v3043 = vpop.f32.mrb[0].mxu0
    %v3044 = vadd.f32 %v2899, %v3043
    %v3045 = vpop.f32.mrb[0].mxu0
    %3046 = vdwg.mxu0
    %3047 = vmatprep.subr.mxu0 0.0
    %3048 = vmatpush1.msra.mxu0 %v2666
    %3049 = vmatprep.subr.mxu0 0.0
    %3050 = vmatpush1.msra.mxu0 %v2667
    %3051 = vmatprep.subr.mxu0 0.0
    %3052 = vmatpush1.msra.mxu0 %v2668
    %3053 = vmatprep.subr.mxu0 0.0
    %3054 = vmatpush1.msra.mxu0 %v2669
    %3055 = vmatprep.subr.mxu0 0.0
    %3056 = vmatpush1.msra.mxu0 %v2670
    %3057 = vmatprep.subr.mxu0 0.0
    %3058 = vmatpush1.msra.mxu0 %v2671
    %3059 = vmatprep.subr.mxu0 0.0
    %3060 = vmatpush1.msra.mxu0 %v2672
    %3061 = vmatprep.subr.mxu0 0.0
    %3062 = vmatpush1.msra.mxu0 %v2673
    %3063 = vmatprep.subr.mxu0 0.0
    %3064 = vmatpush1.msra.mxu0 %v2674
    %3065 = vmatprep.subr.mxu0 0.0
    %3066 = vmatpush1.msra.mxu0 %v2675
    %3067 = vmatprep.subr.mxu0 0.0
    %3068 = vmatpush1.msra.mxu0 %v2676
    %3069 = vmatprep.subr.mxu0 0.0
    %3070 = vmatpush1.msra.mxu0 %v2677
    %3071 = vmatprep.subr.mxu0 0.0
    %3072 = vmatpush1.msra.mxu0 %v2678
    %3073 = vmatprep.subr.mxu0 0.0
    %3074 = vmatpush1.msra.mxu0 %v2679
    %3075 = vmatprep.subr.mxu0 0.0
    %3076 = vmatpush1.msra.mxu0 %v2680
    %3077 = vmatprep.subr.mxu0 0.0
    %3078 = vmatpush1.msra.mxu0 %v2681
    %3079 = vmatprep.subr.mxu0 0.0
    %3080 = vmatpush1.msra.mxu0 %v2682
    %3081 = vmatprep.subr.mxu0 0.0
    %3082 = vmatpush1.msra.mxu0 %v2683
    %3083 = vmatprep.subr.mxu0 0.0
    %3084 = vmatpush1.msra.mxu0 %v2684
    %3085 = vmatprep.subr.mxu0 0.0
    %3086 = vmatpush1.msra.mxu0 %v2685
    %3087 = vmatprep.subr.mxu0 0.0
    %3088 = vmatpush1.msra.mxu0 %v2686
    %3089 = vmatprep.subr.mxu0 0.0
    %3090 = vmatpush1.msra.mxu0 %v2687
    %3091 = vmatprep.subr.mxu0 0.0
    %3092 = vmatpush1.msra.mxu0 %v2688
    %3093 = vmatprep.subr.mxu0 0.0
    %3094 = vmatpush1.msra.mxu0 %v2689
    %3095 = vmatprep.subr.mxu0 0.0
    %3096 = vmatpush1.msra.mxu0 %v2690
    %3097 = vmatprep.subr.mxu0 0.0
    %3098 = vmatpush1.msra.mxu0 %v2691
    %3099 = vmatprep.subr.mxu0 0.0
    %3100 = vmatpush1.msra.mxu0 %v2692
    %3101 = vmatprep.subr.mxu0 0.0
    %3102 = vmatpush1.msra.mxu0 %v2693
    %3103 = vmatprep.subr.mxu0 0.0
    %3104 = vmatpush1.msra.mxu0 %v2694
    %3105 = vmatprep.subr.mxu0 0.0
    %3106 = vmatpush1.msra.mxu0 %v2695
    %3107 = vmatprep.subr.mxu0 0.0
    %3108 = vmatpush1.msra.mxu0 %v2696
    %3109 = vmatprep.subr.mxu0 0.0
    %3110 = vmatpush1.msra.mxu0 %v2697
    %3111 = vmatprep.mubr.f32.mxu0 %v2495
    %3112 = vmatmul.mubr.f32.gmra.mrb[0].mxu0 %v2494
    %v3113 = vpop.f32.mrb[0].mxu0
    %v3114 = vadd.f32 %v2969, %v3113
    %v3115 = vpop.f32.mrb[0].mxu0
    %3116 = vmatprep.mubr.f32.mxu0 %v2502
    %3117 = vmatmul.mubr.f32.gmra.mrb[0].mxu0 %v2501
    %v3118 = vpop.f32.mrb[0].mxu0
    %v3119 = vadd.f32 %v2974, %v3118
    %v3120 = vpop.f32.mrb[0].mxu0
    %3121 = vmatprep.mubr.f32.mxu0 %v2509
    %3122 = vmatmul.mubr.f32.gmra.mrb[0].mxu0 %v2508
    %v3123 = vpop.f32.mrb[0].mxu0
    %v3124 = vadd.f32 %v2979, %v3123
    %v3125 = vpop.f32.mrb[0].mxu0
    %3126 = vmatprep.mubr.f32.mxu0 %v2516
    %3127 = vmatmul.mubr.f32.gmra.mrb[0].mxu0 %v2515
    %v3128 = vpop.f32.mrb[0].mxu0
    %v3129 = vadd.f32 %v2984, %v3128
    %v3130 = vpop.f32.mrb[0].mxu0
    %3131 = vmatprep.mubr.f32.mxu0 %v2523
    %3132 = vmatmul.mubr.f32.gmra.mrb[0].mxu0 %v2522
    %v3133 = vpop.f32.mrb[0].mxu0
    %v3134 = vadd.f32 %v2989, %v3133
    %v3135 = vpop.f32.mrb[0].mxu0
    %3136 = vmatprep.mubr.f32.mxu0 %v2530
    %3137 = vmatmul.mubr.f32.gmra.mrb[0].mxu0 %v2529
    %v3138 = vpop.f32.mrb[0].mxu0
    %v3139 = vadd.f32 %v2994, %v3138
    %v3140 = vpop.f32.mrb[0].mxu0
    %3141 = vmatprep.mubr.f32.mxu0 %v2537
    %3142 = vmatmul.mubr.f32.gmra.mrb[0].mxu0 %v2536
    %v3143 = vpop.f32.mrb[0].mxu0
    %v3144 = vadd.f32 %v2999, %v3143
    %v3145 = vpop.f32.mrb[0].mxu0
    %3146 = vmatprep.mubr.f32.mxu0 %v2544
    %3147 = vmatmul.mubr.f32.gmra.mrb[0].mxu0 %v2543
    %v3148 = vpop.f32.mrb[0].mxu0
    %v3149 = vadd.f32 %v3004, %v3148
    %v3150 = vpop.f32.mrb[0].mxu0
    %3151 = vmatprep.mubr.f32.mxu0 %v2551
    %3152 = vmatmul.mubr.f32.gmra.mrb[0].mxu0 %v2550
    %v3153 = vpop.f32.mrb[0].mxu0
    %v3154 = vadd.f32 %v3009, %v3153
    %v3155 = vpop.f32.mrb[0].mxu0
    %3156 = vmatprep.mubr.f32.mxu0 %v2558
    %3157 = vmatmul.mubr.f32.gmra.mrb[0].mxu0 %v2557
    %v3158 = vpop.f32.mrb[0].mxu0
    %v3159 = vadd.f32 %v3014, %v3158
    %v3160 = vpop.f32.mrb[0].mxu0
    %3161 = vmatprep.mubr.f32.mxu0 %v2565
    %3162 = vmatmul.mubr.f32.gmra.mrb[0].mxu0 %v2564
    %v3163 = vpop.f32.mrb[0].mxu0
    %v3164 = vadd.f32 %v3019, %v3163
    %v3165 = vpop.f32.mrb[0].mxu0
    %3166 = vmatprep.mubr.f32.mxu0 %v2572
    %3167 = vmatmul.mubr.f32.gmra.mrb[0].mxu0 %v2571
    %v3168 = vpop.f32.mrb[0].mxu0
    %v3169 = vadd.f32 %v3024, %v3168
    %v3170 = vpop.f32.mrb[0].mxu0
    %3171 = vmatprep.mubr.f32.mxu0 %v2579
    %3172 = vmatmul.mubr.f32.gmra.mrb[0].mxu0 %v2578
    %v3173 = vpop.f32.mrb[0].mxu0
    %v3174 = vadd.f32 %v3029, %v3173
    %v3175 = vpop.f32.mrb[0].mxu0
    %3176 = vmatprep.mubr.f32.mxu0 %v2586
    %3177 = vmatmul.mubr.f32.gmra.mrb[0].mxu0 %v2585
    %v3178 = vpop.f32.mrb[0].mxu0
    %v3179 = vadd.f32 %v3034, %v3178
    %v3180 = vpop.f32.mrb[0].mxu0
    %3181 = vmatprep.mubr.f32.mxu0 %v2593
    %3182 = vmatmul.mubr.f32.gmra.mrb[0].mxu0 %v2592
    %v3183 = vpop.f32.mrb[0].mxu0
    %v3184 = vadd.f32 %v3039, %v3183
    %v3185 = vpop.f32.mrb[0].mxu0
    %3186 = vmatprep.mubr.f32.mxu0 %v2600
    %3187 = vmatmul.mubr.f32.gmra.mrb[0].mxu0 %v2599
    %v3188 = vpop.f32.mrb[0].mxu0
    %v3189 = vadd.f32 %v3044, %v3188
    %v3190 = vpop.f32.mrb[0].mxu0
    %3191 = vdwg.mxu0
    %3192 = vmatprep.subr.mxu0 0.0
    %3193 = vmatpush1.msra.mxu0 %v2698
    %3194 = vmatprep.subr.mxu0 0.0
    %3195 = vmatpush1.msra.mxu0 %v2699
    %3196 = vmatprep.subr.mxu0 0.0
    %3197 = vmatpush1.msra.mxu0 %v2700
    %3198 = vmatprep.subr.mxu0 0.0
    %3199 = vmatpush1.msra.mxu0 %v2701
    %3200 = vmatprep.subr.mxu0 0.0
    %3201 = vmatpush1.msra.mxu0 0.0
    %3202 = vmatprep.subr.mxu0 0.0
    %3203 = vmatpush1.msra.mxu0 0.0
    %3204 = vmatprep.subr.mxu0 0.0
    %3205 = vmatpush1.msra.mxu0 0.0
    %3206 = vmatprep.subr.mxu0 0.0
    %3207 = vmatpush1.msra.mxu0 0.0
    %3208 = vmatprep.subr.mxu0 0.0
    %3209 = vmatpush1.msra.mxu0 0.0
    %3210 = vmatprep.subr.mxu0 0.0
    %3211 = vmatpush1.msra.mxu0 0.0
    %3212 = vmatprep.subr.mxu0 0.0
    %3213 = vmatpush1.msra.mxu0 0.0
    %3214 = vmatprep.subr.mxu0 0.0
    %3215 = vmatpush1.msra.mxu0 0.0
    %3216 = vmatprep.subr.mxu0 0.0
    %3217 = vmatpush1.msra.mxu0 0.0
    %3218 = vmatprep.subr.mxu0 0.0
    %3219 = vmatpush1.msra.mxu0 0.0
    %3220 = vmatprep.subr.mxu0 0.0
    %3221 = vmatpush1.msra.mxu0 0.0
    %3222 = vmatprep.subr.mxu0 0.0
    %3223 = vmatpush1.msra.mxu0 0.0
    %3224 = vmatprep.subr.mxu0 0.0
    %3225 = vmatpush1.msra.mxu0 0.0
    %3226 = vmatprep.subr.mxu0 0.0
    %3227 = vmatpush1.msra.mxu0 0.0
    %3228 = vmatprep.subr.mxu0 0.0
    %3229 = vmatpush1.msra.mxu0 0.0
    %3230 = vmatprep.subr.mxu0 0.0
    %3231 = vmatpush1.msra.mxu0 0.0
    %3232 = vmatprep.subr.mxu0 0.0
    %3233 = vmatpush1.msra.mxu0 0.0
    %3234 = vmatprep.subr.mxu0 0.0
    %3235 = vmatpush1.msra.mxu0 0.0
    %3236 = vmatprep.subr.mxu0 0.0
    %3237 = vmatpush1.msra.mxu0 0.0
    %3238 = vmatprep.subr.mxu0 0.0
    %3239 = vmatpush1.msra.mxu0 0.0
    %3240 = vmatprep.subr.mxu0 0.0
    %3241 = vmatpush1.msra.mxu0 0.0
    %3242 = vmatprep.subr.mxu0 0.0
    %3243 = vmatpush1.msra.mxu0 0.0
    %3244 = vmatprep.subr.mxu0 0.0
    %3245 = vmatpush1.msra.mxu0 0.0
    %3246 = vmatprep.subr.mxu0 0.0
    %3247 = vmatpush1.msra.mxu0 0.0
    %3248 = vmatprep.subr.mxu0 0.0
    %3249 = vmatpush1.msra.mxu0 0.0
    %3250 = vmatprep.subr.mxu0 0.0
    %3251 = vmatpush1.msra.mxu0 0.0
    %3252 = vmatprep.subr.mxu0 0.0
    %3253 = vmatpush1.msra.mxu0 0.0
    %3254 = vmatprep.subr.mxu0 0.0
    %3255 = vmatpush1.msra.mxu0 0.0
    %3256 = vmatprep.mubr.f32.mxu0 0.0
    %3257 = vmatmul.mubr.f32.gmra.mrb[0].mxu0 %v2710
    %v3258 = vpop.f32.mrb[0].mxu0
    %v3259 = vadd.f32 %v3114, %v3258
    %v3260 = vpop.f32.mrb[0].mxu0
    %3261 = vmatprep.mubr.f32.mxu0 0.0
    %3262 = vmatmul.mubr.f32.gmra.mrb[0].mxu0 %v2713
    %v3263 = vpop.f32.mrb[0].mxu0
    %v3264 = vadd.f32 %v3119, %v3263
    %v3265 = vpop.f32.mrb[0].mxu0
    %3266 = vmatprep.mubr.f32.mxu0 0.0
    %3267 = vmatmul.mubr.f32.gmra.mrb[0].mxu0 %v2716
    %v3268 = vpop.f32.mrb[0].mxu0
    %v3269 = vadd.f32 %v3124, %v3268
    %v3270 = vpop.f32.mrb[0].mxu0
    %3271 = vmatprep.mubr.f32.mxu0 0.0
    %3272 = vmatmul.mubr.f32.gmra.mrb[0].mxu0 %v2719
    %v3273 = vpop.f32.mrb[0].mxu0
    %v3274 = vadd.f32 %v3129, %v3273
    %v3275 = vpop.f32.mrb[0].mxu0
    %3276 = vmatprep.mubr.f32.mxu0 0.0
    %3277 = vmatmul.mubr.f32.gmra.mrb[0].mxu0 %v2722
    %v3278 = vpop.f32.mrb[0].mxu0
    %v3279 = vadd.f32 %v3134, %v3278
    %v3280 = vpop.f32.mrb[0].mxu0
    %3281 = vmatprep.mubr.f32.mxu0 0.0
    %3282 = vmatmul.mubr.f32.gmra.mrb[0].mxu0 %v2725
    %v3283 = vpop.f32.mrb[0].mxu0
    %v3284 = vadd.f32 %v3139, %v3283
    %v3285 = vpop.f32.mrb[0].mxu0
    %3286 = vmatprep.mubr.f32.mxu0 0.0
    %3287 = vmatmul.mubr.f32.gmra.mrb[0].mxu0 %v2728
    %v3288 = vpop.f32.mrb[0].mxu0
    %v3289 = vadd.f32 %v3144, %v3288
    %v3290 = vpop.f32.mrb[0].mxu0
    %3291 = vmatprep.mubr.f32.mxu0 0.0
    %3292 = vmatmul.mubr.f32.gmra.mrb[0].mxu0 %v2731
    %v3293 = vpop.f32.mrb[0].mxu0
    %v3294 = vadd.f32 %v3149, %v3293
    %v3295 = vpop.f32.mrb[0].mxu0
    %3296 = vmatprep.mubr.f32.mxu0 0.0
    %3297 = vmatmul.mubr.f32.gmra.mrb[0].mxu0 %v2734
    %v3298 = vpop.f32.mrb[0].mxu0
    %v3299 = vadd.f32 %v3154, %v3298
    %v3300 = vpop.f32.mrb[0].mxu0
    %3301 = vmatprep.mubr.f32.mxu0 0.0
    %3302 = vmatmul.mubr.f32.gmra.mrb[0].mxu0 %v2737
    %v3303 = vpop.f32.mrb[0].mxu0
    %v3304 = vadd.f32 %v3159, %v3303
    %v3305 = vpop.f32.mrb[0].mxu0
    %3306 = vmatprep.mubr.f32.mxu0 0.0
    %3307 = vmatmul.mubr.f32.gmra.mrb[0].mxu0 %v2740
    %v3308 = vpop.f32.mrb[0].mxu0
    %v3309 = vadd.f32 %v3164, %v3308
    %v3310 = vpop.f32.mrb[0].mxu0
    %3311 = vmatprep.mubr.f32.mxu0 0.0
    %3312 = vmatmul.mubr.f32.gmra.mrb[0].mxu0 %v2743
    %v3313 = vpop.f32.mrb[0].mxu0
    %v3314 = vadd.f32 %v3169, %v3313
    %v3315 = vpop.f32.mrb[0].mxu0
    %3316 = vmatprep.mubr.f32.mxu0 0.0
    %3317 = vmatmul.mubr.f32.gmra.mrb[0].mxu0 %v2746
    %v3318 = vpop.f32.mrb[0].mxu0
    %v3319 = vadd.f32 %v3174, %v3318
    %v3320 = vpop.f32.mrb[0].mxu0
    %3321 = vmatprep.mubr.f32.mxu0 0.0
    %3322 = vmatmul.mubr.f32.gmra.mrb[0].mxu0 %v2749
    %v3323 = vpop.f32.mrb[0].mxu0
    %v3324 = vadd.f32 %v3179, %v3323
    %v3325 = vpop.f32.mrb[0].mxu0
    %3326 = vmatprep.mubr.f32.mxu0 0.0
    %3327 = vmatmul.mubr.f32.gmra.mrb[0].mxu0 %v2752
    %v3328 = vpop.f32.mrb[0].mxu0
    %v3329 = vadd.f32 %v3184, %v3328
    %v3330 = vpop.f32.mrb[0].mxu0
    %3331 = vmatprep.mubr.f32.mxu0 0.0
    %3332 = vmatmul.mubr.f32.gmra.mrb[0].mxu0 %v2755
    %v3333 = vpop.f32.mrb[0].mxu0
    %v3334 = vadd.f32 %v3189, %v3333
    %v3335 = vpop.f32.mrb[0].mxu0
    %3336 = vdwg.mxu0
    %v3337 = vmax.f32 %v3259, 0.0
    %v3338 = vmax.f32 %v3264, 0.0
    %v3339 = vmax.f32 %v3269, 0.0
    %v3340 = vmax.f32 %v3274, 0.0
    %v3341 = vmax.f32 %v3279, 0.0
    %v3342 = vmax.f32 %v3284, 0.0
    %v3343 = vmax.f32 %v3289, 0.0
    %v3344 = vmax.f32 %v3294, 0.0
    %v3345 = vmax.f32 %v3299, 0.0
    %v3346 = vmax.f32 %v3304, 0.0
    %v3347 = vmax.f32 %v3309, 0.0
    %v3348 = vmax.f32 %v3314, 0.0
    %v3349 = vmax.f32 %v3319, 0.0
    %v3350 = vmax.f32 %v3324, 0.0
    %v3351 = vmax.f32 %v3329, 0.0
    %v3352 = vmax.f32 %v3334, 0.0
    %v3356 = vunpack.c.l.s4 1983009808
    %v3357 = vunpack.c.0.s8 %v3356
    %v3358 = vlaneseq
    %v3359 = vshrl.u32 %v3358, 7
    %v3360 = vsub.s32 %v3357, %v3359
    %v3361 = vrot.slane %v3337, %v3360
    %v3363 = vunpack.c.l.s4 1983009808
    %v3364 = vunpack.c.0.s8 %v3363
    %v3365 = vlaneseq
    %v3366 = vshrl.u32 %v3365, 7
    %v3367 = vsub.s32 %v3364, %v3366
    %v3368 = vrot.slane %v3345, %v3367
    %vm3369 = vcmask 1044484
    %v3370 = vsel %vm3369, %v3361, %v3361
    %vm3371 = vcmask 1046534
    %v3372 = vsel %vm3371, %v3361, %v3370
    %v3373 = vrot.slane %v3368, 7
    %vm3374 = vcmask 1041409
    %v3375 = vsel %vm3374, %v3373, %v3372
    %vm3376 = vcmask 1043459
    %v3377 = vsel %vm3376, %v3373, %v3375
    %vm3378 = vcmask 1045509
    %v3379 = vsel %vm3378, %v3373, %v3377
    %vm3380 = vcmask 1047559
    %v3381 = vsel %vm3380, %v3373, %v3379
    %vm3383 = vcmask 517120
    %3384 = vst.msk [vmem:[#allocation3] sm:$0x3] %vm3383, %v3381
    %v3385 = vrot.slane %v3361, 1
    %v3386 = vsel %vm3369, %v3385, %v3385
    %v3387 = vsel %vm3371, %v3385, %v3386
    %v3388 = vsel %vm3374, %v3368, %v3387
    %v3389 = vsel %vm3376, %v3368, %v3388
    %v3390 = vsel %vm3378, %v3368, %v3389
    %v3391 = vsel %vm3380, %v3368, %v3390
    %3392 = vrot.lane.b32.xlu0 %v3391, 64
    %v3393 = vpop.permute.xlu0 %3392
    %vm3395 = vcmask 1041920
    %3396 = vst.msk [vmem:[#allocation3] sm:$0x3] %vm3395, %v3393
    %v3397 = vcombine.high %v3361, %v3361
    %v3398 = vcombine.high %v3368, %v3368
    %v3399 = vsel %vm3369, %v3397, %v3397
    %v3400 = vsel %vm3371, %v3397, %v3399
    %v3401 = vrot.slane %v3398, 7
    %v3402 = vsel %vm3374, %v3401, %v3400
    %v3403 = vsel %vm3376, %v3401, %v3402
    %v3404 = vsel %vm3378, %v3401, %v3403
    %v3405 = vsel %vm3380, %v3401, %v3404
    %3407 = vst.msk [vmem:[#allocation3 + $0x2] sm:$0x3] %vm3383, %v3405
    %v3408 = vrot.slane %v3397, 1
    %v3409 = vsel %vm3369, %v3408, %v3408
    %v3410 = vsel %vm3371, %v3408, %v3409
    %v3411 = vsel %vm3374, %v3398, %v3410
    %v3412 = vsel %vm3376, %v3398, %v3411
    %v3413 = vsel %vm3378, %v3398, %v3412
    %v3414 = vsel %vm3380, %v3398, %v3413
    %3415 = vrot.lane.b32.xlu0 %v3414, 64
    %v3416 = vpop.permute.xlu0 %3415
    %3418 = vst.msk [vmem:[#allocation3 + $0x2] sm:$0x3] %vm3395, %v3416
    %v3419 = vcombine.high %v3337, %v3337
    %v3421 = vunpack.c.l.s4 1983009808
    %v3422 = vunpack.c.0.s8 %v3421
    %v3423 = vlaneseq
    %v3424 = vshrl.u32 %v3423, 7
    %v3425 = vsub.s32 %v3422, %v3424
    %v3426 = vrot.slane %v3419, %v3425
    %v3427 = vcombine.high %v3345, %v3345
    %v3429 = vunpack.c.l.s4 1983009808
    %v3430 = vunpack.c.0.s8 %v3429
    %v3431 = vlaneseq
    %v3432 = vshrl.u32 %v3431, 7
    %v3433 = vsub.s32 %v3430, %v3432
    %v3434 = vrot.slane %v3427, %v3433
    %v3435 = vsel %vm3369, %v3426, %v3426
    %v3436 = vsel %vm3371, %v3426, %v3435
    %v3437 = vrot.slane %v3434, 7
    %v3438 = vsel %vm3374, %v3437, %v3436
    %v3439 = vsel %vm3376, %v3437, %v3438
    %v3440 = vsel %vm3378, %v3437, %v3439
    %v3441 = vsel %vm3380, %v3437, %v3440
    %3443 = vst.msk [vmem:[#allocation3 + $0x4] sm:$0x3] %vm3383, %v3441
    %v3444 = vrot.slane %v3426, 1
    %v3445 = vsel %vm3369, %v3444, %v3444
    %v3446 = vsel %vm3371, %v3444, %v3445
    %v3447 = vsel %vm3374, %v3434, %v3446
    %v3448 = vsel %vm3376, %v3434, %v3447
    %v3449 = vsel %vm3378, %v3434, %v3448
    %v3450 = vsel %vm3380, %v3434, %v3449
    %3451 = vrot.lane.b32.xlu0 %v3450, 64
    %v3452 = vpop.permute.xlu0 %3451
    %3454 = vst.msk [vmem:[#allocation3 + $0x4] sm:$0x3] %vm3395, %v3452
    %v3455 = vcombine.high %v3426, %v3426
    %v3456 = vcombine.high %v3434, %v3434
    %v3457 = vsel %vm3369, %v3455, %v3455
    %v3458 = vsel %vm3371, %v3455, %v3457
    %v3459 = vrot.slane %v3456, 7
    %v3460 = vsel %vm3374, %v3459, %v3458
    %v3461 = vsel %vm3376, %v3459, %v3460
    %v3462 = vsel %vm3378, %v3459, %v3461
    %v3463 = vsel %vm3380, %v3459, %v3462
    %3465 = vst.msk [vmem:[#allocation3 + $0x6] sm:$0x3] %vm3383, %v3463
    %v3466 = vrot.slane %v3455, 1
    %v3467 = vsel %vm3369, %v3466, %v3466
    %v3468 = vsel %vm3371, %v3466, %v3467
    %v3469 = vsel %vm3374, %v3456, %v3468
    %v3470 = vsel %vm3376, %v3456, %v3469
    %v3471 = vsel %vm3378, %v3456, %v3470
    %v3472 = vsel %vm3380, %v3456, %v3471
    %3473 = vrot.lane.b32.xlu0 %v3472, 64
    %v3474 = vpop.permute.xlu0 %3473
    %3476 = vst.msk [vmem:[#allocation3 + $0x6] sm:$0x3] %vm3395, %v3474
    %v3480 = vunpack.c.l.s4 1983009808
    %v3481 = vunpack.c.0.s8 %v3480
    %v3482 = vlaneseq
    %v3483 = vshrl.u32 %v3482, 7
    %v3484 = vsub.s32 %v3481, %v3483
    %v3485 = vrot.slane %v3338, %v3484
    %v3487 = vunpack.c.l.s4 1983009808
    %v3488 = vunpack.c.0.s8 %v3487
    %v3489 = vlaneseq
    %v3490 = vshrl.u32 %v3489, 7
    %v3491 = vsub.s32 %v3488, %v3490
    %v3492 = vrot.slane %v3346, %v3491
    %v3493 = vsel %vm3369, %v3485, %v3485
    %v3494 = vsel %vm3371, %v3485, %v3493
    %v3495 = vrot.slane %v3492, 7
    %v3496 = vsel %vm3374, %v3495, %v3494
    %v3497 = vsel %vm3376, %v3495, %v3496
    %v3498 = vsel %vm3378, %v3495, %v3497
    %v3499 = vsel %vm3380, %v3495, %v3498
    %3501 = vst.msk [vmem:[#allocation3 + $0x8] sm:$0x3] %vm3383, %v3499
    %v3502 = vrot.slane %v3485, 1
    %v3503 = vsel %vm3369, %v3502, %v3502
    %v3504 = vsel %vm3371, %v3502, %v3503
    %v3505 = vsel %vm3374, %v3492, %v3504
    %v3506 = vsel %vm3376, %v3492, %v3505
    %v3507 = vsel %vm3378, %v3492, %v3506
    %v3508 = vsel %vm3380, %v3492, %v3507
    %3509 = vrot.lane.b32.xlu0 %v3508, 64
    %v3510 = vpop.permute.xlu0 %3509
    %3512 = vst.msk [vmem:[#allocation3 + $0x8] sm:$0x3] %vm3395, %v3510
    %v3513 = vcombine.high %v3485, %v3485
    %v3514 = vcombine.high %v3492, %v3492
    %v3515 = vsel %vm3369, %v3513, %v3513
    %v3516 = vsel %vm3371, %v3513, %v3515
    %v3517 = vrot.slane %v3514, 7
    %v3518 = vsel %vm3374, %v3517, %v3516
    %v3519 = vsel %vm3376, %v3517, %v3518
    %v3520 = vsel %vm3378, %v3517, %v3519
    %v3521 = vsel %vm3380, %v3517, %v3520
    %3523 = vst.msk [vmem:[#allocation3 + $0xa] sm:$0x3] %vm3383, %v3521
    %v3524 = vrot.slane %v3513, 1
    %v3525 = vsel %vm3369, %v3524, %v3524
    %v3526 = vsel %vm3371, %v3524, %v3525
    %v3527 = vsel %vm3374, %v3514, %v3526
    %v3528 = vsel %vm3376, %v3514, %v3527
    %v3529 = vsel %vm3378, %v3514, %v3528
    %v3530 = vsel %vm3380, %v3514, %v3529
    %3531 = vrot.lane.b32.xlu0 %v3530, 64
    %v3532 = vpop.permute.xlu0 %3531
    %3534 = vst.msk [vmem:[#allocation3 + $0xa] sm:$0x3] %vm3395, %v3532
    %v3535 = vcombine.high %v3338, %v3338
    %v3537 = vunpack.c.l.s4 1983009808
    %v3538 = vunpack.c.0.s8 %v3537
    %v3539 = vlaneseq
    %v3540 = vshrl.u32 %v3539, 7
    %v3541 = vsub.s32 %v3538, %v3540
    %v3542 = vrot.slane %v3535, %v3541
    %v3543 = vcombine.high %v3346, %v3346
    %v3545 = vunpack.c.l.s4 1983009808
    %v3546 = vunpack.c.0.s8 %v3545
    %v3547 = vlaneseq
    %v3548 = vshrl.u32 %v3547, 7
    %v3549 = vsub.s32 %v3546, %v3548
    %v3550 = vrot.slane %v3543, %v3549
    %v3551 = vsel %vm3369, %v3542, %v3542
    %v3552 = vsel %vm3371, %v3542, %v3551
    %v3553 = vrot.slane %v3550, 7
    %v3554 = vsel %vm3374, %v3553, %v3552
    %v3555 = vsel %vm3376, %v3553, %v3554
    %v3556 = vsel %vm3378, %v3553, %v3555
    %v3557 = vsel %vm3380, %v3553, %v3556
    %3559 = vst.msk [vmem:[#allocation3 + $0xc] sm:$0x3] %vm3383, %v3557
    %v3560 = vrot.slane %v3542, 1
    %v3561 = vsel %vm3369, %v3560, %v3560
    %v3562 = vsel %vm3371, %v3560, %v3561
    %v3563 = vsel %vm3374, %v3550, %v3562
    %v3564 = vsel %vm3376, %v3550, %v3563
    %v3565 = vsel %vm3378, %v3550, %v3564
    %v3566 = vsel %vm3380, %v3550, %v3565
    %3567 = vrot.lane.b32.xlu0 %v3566, 64
    %v3568 = vpop.permute.xlu0 %3567
    %3570 = vst.msk [vmem:[#allocation3 + $0xc] sm:$0x3] %vm3395, %v3568
    %v3571 = vcombine.high %v3542, %v3542
    %v3572 = vcombine.high %v3550, %v3550
    %v3573 = vsel %vm3369, %v3571, %v3571
    %v3574 = vsel %vm3371, %v3571, %v3573
    %v3575 = vrot.slane %v3572, 7
    %v3576 = vsel %vm3374, %v3575, %v3574
    %v3577 = vsel %vm3376, %v3575, %v3576
    %v3578 = vsel %vm3378, %v3575, %v3577
    %v3579 = vsel %vm3380, %v3575, %v3578
    %3581 = vst.msk [vmem:[#allocation3 + $0xe] sm:$0x3] %vm3383, %v3579
    %v3582 = vrot.slane %v3571, 1
    %v3583 = vsel %vm3369, %v3582, %v3582
    %v3584 = vsel %vm3371, %v3582, %v3583
    %v3585 = vsel %vm3374, %v3572, %v3584
    %v3586 = vsel %vm3376, %v3572, %v3585
    %v3587 = vsel %vm3378, %v3572, %v3586
    %v3588 = vsel %vm3380, %v3572, %v3587
    %3589 = vrot.lane.b32.xlu0 %v3588, 64
    %v3590 = vpop.permute.xlu0 %3589
    %3592 = vst.msk [vmem:[#allocation3 + $0xe] sm:$0x3] %vm3395, %v3590
    %v3596 = vunpack.c.l.s4 1983009808
    %v3597 = vunpack.c.0.s8 %v3596
    %v3598 = vlaneseq
    %v3599 = vshrl.u32 %v3598, 7
    %v3600 = vsub.s32 %v3597, %v3599
    %v3601 = vrot.slane %v3339, %v3600
    %v3603 = vunpack.c.l.s4 1983009808
    %v3604 = vunpack.c.0.s8 %v3603
    %v3605 = vlaneseq
    %v3606 = vshrl.u32 %v3605, 7
    %v3607 = vsub.s32 %v3604, %v3606
    %v3608 = vrot.slane %v3347, %v3607
    %v3609 = vsel %vm3369, %v3601, %v3601
    %v3610 = vsel %vm3371, %v3601, %v3609
    %v3611 = vrot.slane %v3608, 7
    %v3612 = vsel %vm3374, %v3611, %v3610
    %v3613 = vsel %vm3376, %v3611, %v3612
    %v3614 = vsel %vm3378, %v3611, %v3613
    %v3615 = vsel %vm3380, %v3611, %v3614
    %3617 = vst.msk [vmem:[#allocation3 + $0x10] sm:$0x3] %vm3383, %v3615
    %v3618 = vrot.slane %v3601, 1
    %v3619 = vsel %vm3369, %v3618, %v3618
    %v3620 = vsel %vm3371, %v3618, %v3619
    %v3621 = vsel %vm3374, %v3608, %v3620
    %v3622 = vsel %vm3376, %v3608, %v3621
    %v3623 = vsel %vm3378, %v3608, %v3622
    %v3624 = vsel %vm3380, %v3608, %v3623
    %3625 = vrot.lane.b32.xlu0 %v3624, 64
    %v3626 = vpop.permute.xlu0 %3625
    %3628 = vst.msk [vmem:[#allocation3 + $0x10] sm:$0x3] %vm3395, %v3626
    %v3629 = vcombine.high %v3601, %v3601
    %v3630 = vcombine.high %v3608, %v3608
    %v3631 = vsel %vm3369, %v3629, %v3629
    %v3632 = vsel %vm3371, %v3629, %v3631
    %v3633 = vrot.slane %v3630, 7
    %v3634 = vsel %vm3374, %v3633, %v3632
    %v3635 = vsel %vm3376, %v3633, %v3634
    %v3636 = vsel %vm3378, %v3633, %v3635
    %v3637 = vsel %vm3380, %v3633, %v3636
    %3639 = vst.msk [vmem:[#allocation3 + $0x12] sm:$0x3] %vm3383, %v3637
    %v3640 = vrot.slane %v3629, 1
    %v3641 = vsel %vm3369, %v3640, %v3640
    %v3642 = vsel %vm3371, %v3640, %v3641
    %v3643 = vsel %vm3374, %v3630, %v3642
    %v3644 = vsel %vm3376, %v3630, %v3643
    %v3645 = vsel %vm3378, %v3630, %v3644
    %v3646 = vsel %vm3380, %v3630, %v3645
    %3647 = vrot.lane.b32.xlu0 %v3646, 64
    %v3648 = vpop.permute.xlu0 %3647
    %3650 = vst.msk [vmem:[#allocation3 + $0x12] sm:$0x3] %vm3395, %v3648
    %v3651 = vcombine.high %v3339, %v3339
    %v3653 = vunpack.c.l.s4 1983009808
    %v3654 = vunpack.c.0.s8 %v3653
    %v3655 = vlaneseq
    %v3656 = vshrl.u32 %v3655, 7
    %v3657 = vsub.s32 %v3654, %v3656
    %v3658 = vrot.slane %v3651, %v3657
    %v3659 = vcombine.high %v3347, %v3347
    %v3661 = vunpack.c.l.s4 1983009808
    %v3662 = vunpack.c.0.s8 %v3661
    %v3663 = vlaneseq
    %v3664 = vshrl.u32 %v3663, 7
    %v3665 = vsub.s32 %v3662, %v3664
    %v3666 = vrot.slane %v3659, %v3665
    %v3667 = vsel %vm3369, %v3658, %v3658
    %v3668 = vsel %vm3371, %v3658, %v3667
    %v3669 = vrot.slane %v3666, 7
    %v3670 = vsel %vm3374, %v3669, %v3668
    %v3671 = vsel %vm3376, %v3669, %v3670
    %v3672 = vsel %vm3378, %v3669, %v3671
    %v3673 = vsel %vm3380, %v3669, %v3672
    %3675 = vst.msk [vmem:[#allocation3 + $0x14] sm:$0x3] %vm3383, %v3673
    %v3676 = vrot.slane %v3658, 1
    %v3677 = vsel %vm3369, %v3676, %v3676
    %v3678 = vsel %vm3371, %v3676, %v3677
    %v3679 = vsel %vm3374, %v3666, %v3678
    %v3680 = vsel %vm3376, %v3666, %v3679
    %v3681 = vsel %vm3378, %v3666, %v3680
    %v3682 = vsel %vm3380, %v3666, %v3681
    %3683 = vrot.lane.b32.xlu0 %v3682, 64
    %v3684 = vpop.permute.xlu0 %3683
    %3686 = vst.msk [vmem:[#allocation3 + $0x14] sm:$0x3] %vm3395, %v3684
    %v3687 = vcombine.high %v3658, %v3658
    %v3688 = vcombine.high %v3666, %v3666
    %v3689 = vsel %vm3369, %v3687, %v3687
    %v3690 = vsel %vm3371, %v3687, %v3689
    %v3691 = vrot.slane %v3688, 7
    %v3692 = vsel %vm3374, %v3691, %v3690
    %v3693 = vsel %vm3376, %v3691, %v3692
    %v3694 = vsel %vm3378, %v3691, %v3693
    %v3695 = vsel %vm3380, %v3691, %v3694
    %3697 = vst.msk [vmem:[#allocation3 + $0x16] sm:$0x3] %vm3383, %v3695
    %v3698 = vrot.slane %v3687, 1
    %v3699 = vsel %vm3369, %v3698, %v3698
    %v3700 = vsel %vm3371, %v3698, %v3699
    %v3701 = vsel %vm3374, %v3688, %v3700
    %v3702 = vsel %vm3376, %v3688, %v3701
    %v3703 = vsel %vm3378, %v3688, %v3702
    %v3704 = vsel %vm3380, %v3688, %v3703
    %3705 = vrot.lane.b32.xlu0 %v3704, 64
    %v3706 = vpop.permute.xlu0 %3705
    %3708 = vst.msk [vmem:[#allocation3 + $0x16] sm:$0x3] %vm3395, %v3706
    %v3712 = vunpack.c.l.s4 1983009808
    %v3713 = vunpack.c.0.s8 %v3712
    %v3714 = vlaneseq
    %v3715 = vshrl.u32 %v3714, 7
    %v3716 = vsub.s32 %v3713, %v3715
    %v3717 = vrot.slane %v3340, %v3716
    %v3719 = vunpack.c.l.s4 1983009808
    %v3720 = vunpack.c.0.s8 %v3719
    %v3721 = vlaneseq
    %v3722 = vshrl.u32 %v3721, 7
    %v3723 = vsub.s32 %v3720, %v3722
    %v3724 = vrot.slane %v3348, %v3723
    %v3725 = vsel %vm3369, %v3717, %v3717
    %v3726 = vsel %vm3371, %v3717, %v3725
    %v3727 = vrot.slane %v3724, 7
    %v3728 = vsel %vm3374, %v3727, %v3726
    %v3729 = vsel %vm3376, %v3727, %v3728
    %v3730 = vsel %vm3378, %v3727, %v3729
    %v3731 = vsel %vm3380, %v3727, %v3730
    %3733 = vst.msk [vmem:[#allocation3 + $0x18] sm:$0x3] %vm3383, %v3731
    %v3734 = vrot.slane %v3717, 1
    %v3735 = vsel %vm3369, %v3734, %v3734
    %v3736 = vsel %vm3371, %v3734, %v3735
    %v3737 = vsel %vm3374, %v3724, %v3736
    %v3738 = vsel %vm3376, %v3724, %v3737
    %v3739 = vsel %vm3378, %v3724, %v3738
    %v3740 = vsel %vm3380, %v3724, %v3739
    %3741 = vrot.lane.b32.xlu0 %v3740, 64
    %v3742 = vpop.permute.xlu0 %3741
    %3744 = vst.msk [vmem:[#allocation3 + $0x18] sm:$0x3] %vm3395, %v3742
    %v3745 = vcombine.high %v3717, %v3717
    %v3746 = vcombine.high %v3724, %v3724
    %v3747 = vsel %vm3369, %v3745, %v3745
    %v3748 = vsel %vm3371, %v3745, %v3747
    %v3749 = vrot.slane %v3746, 7
    %v3750 = vsel %vm3374, %v3749, %v3748
    %v3751 = vsel %vm3376, %v3749, %v3750
    %v3752 = vsel %vm3378, %v3749, %v3751
    %v3753 = vsel %vm3380, %v3749, %v3752
    %3755 = vst.msk [vmem:[#allocation3 + $0x1a] sm:$0x3] %vm3383, %v3753
    %v3756 = vrot.slane %v3745, 1
    %v3757 = vsel %vm3369, %v3756, %v3756
    %v3758 = vsel %vm3371, %v3756, %v3757
    %v3759 = vsel %vm3374, %v3746, %v3758
    %v3760 = vsel %vm3376, %v3746, %v3759
    %v3761 = vsel %vm3378, %v3746, %v3760
    %v3762 = vsel %vm3380, %v3746, %v3761
    %3763 = vrot.lane.b32.xlu0 %v3762, 64
    %v3764 = vpop.permute.xlu0 %3763
    %3766 = vst.msk [vmem:[#allocation3 + $0x1a] sm:$0x3] %vm3395, %v3764
    %v3767 = vcombine.high %v3340, %v3340
    %v3769 = vunpack.c.l.s4 1983009808
    %v3770 = vunpack.c.0.s8 %v3769
    %v3771 = vlaneseq
    %v3772 = vshrl.u32 %v3771, 7
    %v3773 = vsub.s32 %v3770, %v3772
    %v3774 = vrot.slane %v3767, %v3773
    %v3775 = vcombine.high %v3348, %v3348
    %v3777 = vunpack.c.l.s4 1983009808
    %v3778 = vunpack.c.0.s8 %v3777
    %v3779 = vlaneseq
    %v3780 = vshrl.u32 %v3779, 7
    %v3781 = vsub.s32 %v3778, %v3780
    %v3782 = vrot.slane %v3775, %v3781
    %v3783 = vsel %vm3369, %v3774, %v3774
    %v3784 = vsel %vm3371, %v3774, %v3783
    %v3785 = vrot.slane %v3782, 7
    %v3786 = vsel %vm3374, %v3785, %v3784
    %v3787 = vsel %vm3376, %v3785, %v3786
    %v3788 = vsel %vm3378, %v3785, %v3787
    %v3789 = vsel %vm3380, %v3785, %v3788
    %3791 = vst.msk [vmem:[#allocation3 + $0x1c] sm:$0x3] %vm3383, %v3789
    %v3792 = vrot.slane %v3774, 1
    %v3793 = vsel %vm3369, %v3792, %v3792
    %v3794 = vsel %vm3371, %v3792, %v3793
    %v3795 = vsel %vm3374, %v3782, %v3794
    %v3796 = vsel %vm3376, %v3782, %v3795
    %v3797 = vsel %vm3378, %v3782, %v3796
    %v3798 = vsel %vm3380, %v3782, %v3797
    %3799 = vrot.lane.b32.xlu0 %v3798, 64
    %v3800 = vpop.permute.xlu0 %3799
    %3802 = vst.msk [vmem:[#allocation3 + $0x1c] sm:$0x3] %vm3395, %v3800
    %v3803 = vcombine.high %v3774, %v3774
    %v3804 = vcombine.high %v3782, %v3782
    %v3805 = vsel %vm3369, %v3803, %v3803
    %v3806 = vsel %vm3371, %v3803, %v3805
    %v3807 = vrot.slane %v3804, 7
    %v3808 = vsel %vm3374, %v3807, %v3806
    %v3809 = vsel %vm3376, %v3807, %v3808
    %v3810 = vsel %vm3378, %v3807, %v3809
    %v3811 = vsel %vm3380, %v3807, %v3810
    %3813 = vst.msk [vmem:[#allocation3 + $0x1e] sm:$0x3] %vm3383, %v3811
    %v3814 = vrot.slane %v3803, 1
    %v3815 = vsel %vm3369, %v3814, %v3814
    %v3816 = vsel %vm3371, %v3814, %v3815
    %v3817 = vsel %vm3374, %v3804, %v3816
    %v3818 = vsel %vm3376, %v3804, %v3817
    %v3819 = vsel %vm3378, %v3804, %v3818
    %v3820 = vsel %vm3380, %v3804, %v3819
    %3821 = vrot.lane.b32.xlu0 %v3820, 64
    %v3822 = vpop.permute.xlu0 %3821
    %3824 = vst.msk [vmem:[#allocation3 + $0x1e] sm:$0x3] %vm3395, %v3822
    %v3828 = vunpack.c.l.s4 1983009808
    %v3829 = vunpack.c.0.s8 %v3828
    %v3830 = vlaneseq
    %v3831 = vshrl.u32 %v3830, 7
    %v3832 = vsub.s32 %v3829, %v3831
    %v3833 = vrot.slane %v3341, %v3832
    %v3835 = vunpack.c.l.s4 1983009808
    %v3836 = vunpack.c.0.s8 %v3835
    %v3837 = vlaneseq
    %v3838 = vshrl.u32 %v3837, 7
    %v3839 = vsub.s32 %v3836, %v3838
    %v3840 = vrot.slane %v3349, %v3839
    %v3841 = vsel %vm3369, %v3833, %v3833
    %v3842 = vsel %vm3371, %v3833, %v3841
    %v3843 = vrot.slane %v3840, 7
    %v3844 = vsel %vm3374, %v3843, %v3842
    %v3845 = vsel %vm3376, %v3843, %v3844
    %v3846 = vsel %vm3378, %v3843, %v3845
    %v3847 = vsel %vm3380, %v3843, %v3846
    %3849 = vst.msk [vmem:[#allocation3 + $0x20] sm:$0x3] %vm3383, %v3847
    %v3850 = vrot.slane %v3833, 1
    %v3851 = vsel %vm3369, %v3850, %v3850
    %v3852 = vsel %vm3371, %v3850, %v3851
    %v3853 = vsel %vm3374, %v3840, %v3852
    %v3854 = vsel %vm3376, %v3840, %v3853
    %v3855 = vsel %vm3378, %v3840, %v3854
    %v3856 = vsel %vm3380, %v3840, %v3855
    %3857 = vrot.lane.b32.xlu0 %v3856, 64
    %v3858 = vpop.permute.xlu0 %3857
    %3860 = vst.msk [vmem:[#allocation3 + $0x20] sm:$0x3] %vm3395, %v3858
    %v3861 = vcombine.high %v3833, %v3833
    %v3862 = vcombine.high %v3840, %v3840
    %v3863 = vsel %vm3369, %v3861, %v3861
    %v3864 = vsel %vm3371, %v3861, %v3863
    %v3865 = vrot.slane %v3862, 7
    %v3866 = vsel %vm3374, %v3865, %v3864
    %v3867 = vsel %vm3376, %v3865, %v3866
    %v3868 = vsel %vm3378, %v3865, %v3867
    %v3869 = vsel %vm3380, %v3865, %v3868
    %3871 = vst.msk [vmem:[#allocation3 + $0x22] sm:$0x3] %vm3383, %v3869
    %v3872 = vrot.slane %v3861, 1
    %v3873 = vsel %vm3369, %v3872, %v3872
    %v3874 = vsel %vm3371, %v3872, %v3873
    %v3875 = vsel %vm3374, %v3862, %v3874
    %v3876 = vsel %vm3376, %v3862, %v3875
    %v3877 = vsel %vm3378, %v3862, %v3876
    %v3878 = vsel %vm3380, %v3862, %v3877
    %3879 = vrot.lane.b32.xlu0 %v3878, 64
    %v3880 = vpop.permute.xlu0 %3879
    %3882 = vst.msk [vmem:[#allocation3 + $0x22] sm:$0x3] %vm3395, %v3880
    %v3883 = vcombine.high %v3341, %v3341
    %v3885 = vunpack.c.l.s4 1983009808
    %v3886 = vunpack.c.0.s8 %v3885
    %v3887 = vlaneseq
    %v3888 = vshrl.u32 %v3887, 7
    %v3889 = vsub.s32 %v3886, %v3888
    %v3890 = vrot.slane %v3883, %v3889
    %v3891 = vcombine.high %v3349, %v3349
    %v3893 = vunpack.c.l.s4 1983009808
    %v3894 = vunpack.c.0.s8 %v3893
    %v3895 = vlaneseq
    %v3896 = vshrl.u32 %v3895, 7
    %v3897 = vsub.s32 %v3894, %v3896
    %v3898 = vrot.slane %v3891, %v3897
    %v3899 = vsel %vm3369, %v3890, %v3890
    %v3900 = vsel %vm3371, %v3890, %v3899
    %v3901 = vrot.slane %v3898, 7
    %v3902 = vsel %vm3374, %v3901, %v3900
    %v3903 = vsel %vm3376, %v3901, %v3902
    %v3904 = vsel %vm3378, %v3901, %v3903
    %v3905 = vsel %vm3380, %v3901, %v3904
    %3907 = vst.msk [vmem:[#allocation3 + $0x24] sm:$0x3] %vm3383, %v3905
    %v3908 = vrot.slane %v3890, 1
    %v3909 = vsel %vm3369, %v3908, %v3908
    %v3910 = vsel %vm3371, %v3908, %v3909
    %v3911 = vsel %vm3374, %v3898, %v3910
    %v3912 = vsel %vm3376, %v3898, %v3911
    %v3913 = vsel %vm3378, %v3898, %v3912
    %v3914 = vsel %vm3380, %v3898, %v3913
    %3915 = vrot.lane.b32.xlu0 %v3914, 64
    %v3916 = vpop.permute.xlu0 %3915
    %3918 = vst.msk [vmem:[#allocation3 + $0x24] sm:$0x3] %vm3395, %v3916
    %v3919 = vcombine.high %v3890, %v3890
    %v3920 = vcombine.high %v3898, %v3898
    %v3921 = vsel %vm3369, %v3919, %v3919
    %v3922 = vsel %vm3371, %v3919, %v3921
    %v3923 = vrot.slane %v3920, 7
    %v3924 = vsel %vm3374, %v3923, %v3922
    %v3925 = vsel %vm3376, %v3923, %v3924
    %v3926 = vsel %vm3378, %v3923, %v3925
    %v3927 = vsel %vm3380, %v3923, %v3926
    %3929 = vst.msk [vmem:[#allocation3 + $0x26] sm:$0x3] %vm3383, %v3927
    %v3930 = vrot.slane %v3919, 1
    %v3931 = vsel %vm3369, %v3930, %v3930
    %v3932 = vsel %vm3371, %v3930, %v3931
    %v3933 = vsel %vm3374, %v3920, %v3932
    %v3934 = vsel %vm3376, %v3920, %v3933
    %v3935 = vsel %vm3378, %v3920, %v3934
    %v3936 = vsel %vm3380, %v3920, %v3935
    %3937 = vrot.lane.b32.xlu0 %v3936, 64
    %v3938 = vpop.permute.xlu0 %3937
    %3940 = vst.msk [vmem:[#allocation3 + $0x26] sm:$0x3] %vm3395, %v3938
    %v3944 = vunpack.c.l.s4 1983009808
    %v3945 = vunpack.c.0.s8 %v3944
    %v3946 = vlaneseq
    %v3947 = vshrl.u32 %v3946, 7
    %v3948 = vsub.s32 %v3945, %v3947
    %v3949 = vrot.slane %v3342, %v3948
    %v3951 = vunpack.c.l.s4 1983009808
    %v3952 = vunpack.c.0.s8 %v3951
    %v3953 = vlaneseq
    %v3954 = vshrl.u32 %v3953, 7
    %v3955 = vsub.s32 %v3952, %v3954
    %v3956 = vrot.slane %v3350, %v3955
    %v3957 = vsel %vm3369, %v3949, %v3949
    %v3958 = vsel %vm3371, %v3949, %v3957
    %v3959 = vrot.slane %v3956, 7
    %v3960 = vsel %vm3374, %v3959, %v3958
    %v3961 = vsel %vm3376, %v3959, %v3960
    %v3962 = vsel %vm3378, %v3959, %v3961
    %v3963 = vsel %vm3380, %v3959, %v3962
    %3965 = vst.msk [vmem:[#allocation3 + $0x28] sm:$0x3] %vm3383, %v3963
    %v3966 = vrot.slane %v3949, 1
    %v3967 = vsel %vm3369, %v3966, %v3966
    %v3968 = vsel %vm3371, %v3966, %v3967
    %v3969 = vsel %vm3374, %v3956, %v3968
    %v3970 = vsel %vm3376, %v3956, %v3969
    %v3971 = vsel %vm3378, %v3956, %v3970
    %v3972 = vsel %vm3380, %v3956, %v3971
    %3973 = vrot.lane.b32.xlu0 %v3972, 64
    %v3974 = vpop.permute.xlu0 %3973
    %3976 = vst.msk [vmem:[#allocation3 + $0x28] sm:$0x3] %vm3395, %v3974
    %v3977 = vcombine.high %v3949, %v3949
    %v3978 = vcombine.high %v3956, %v3956
    %v3979 = vsel %vm3369, %v3977, %v3977
    %v3980 = vsel %vm3371, %v3977, %v3979
    %v3981 = vrot.slane %v3978, 7
    %v3982 = vsel %vm3374, %v3981, %v3980
    %v3983 = vsel %vm3376, %v3981, %v3982
    %v3984 = vsel %vm3378, %v3981, %v3983
    %v3985 = vsel %vm3380, %v3981, %v3984
    %3987 = vst.msk [vmem:[#allocation3 + $0x2a] sm:$0x3] %vm3383, %v3985
    %v3988 = vrot.slane %v3977, 1
    %v3989 = vsel %vm3369, %v3988, %v3988
    %v3990 = vsel %vm3371, %v3988, %v3989
    %v3991 = vsel %vm3374, %v3978, %v3990
    %v3992 = vsel %vm3376, %v3978, %v3991
    %v3993 = vsel %vm3378, %v3978, %v3992
    %v3994 = vsel %vm3380, %v3978, %v3993
    %3995 = vrot.lane.b32.xlu0 %v3994, 64
    %v3996 = vpop.permute.xlu0 %3995
    %3998 = vst.msk [vmem:[#allocation3 + $0x2a] sm:$0x3] %vm3395, %v3996
    %v3999 = vcombine.high %v3342, %v3342
    %v4001 = vunpack.c.l.s4 1983009808
    %v4002 = vunpack.c.0.s8 %v4001
    %v4003 = vlaneseq
    %v4004 = vshrl.u32 %v4003, 7
    %v4005 = vsub.s32 %v4002, %v4004
    %v4006 = vrot.slane %v3999, %v4005
    %v4007 = vcombine.high %v3350, %v3350
    %v4009 = vunpack.c.l.s4 1983009808
    %v4010 = vunpack.c.0.s8 %v4009
    %v4011 = vlaneseq
    %v4012 = vshrl.u32 %v4011, 7
    %v4013 = vsub.s32 %v4010, %v4012
    %v4014 = vrot.slane %v4007, %v4013
    %v4015 = vsel %vm3369, %v4006, %v4006
    %v4016 = vsel %vm3371, %v4006, %v4015
    %v4017 = vrot.slane %v4014, 7
    %v4018 = vsel %vm3374, %v4017, %v4016
    %v4019 = vsel %vm3376, %v4017, %v4018
    %v4020 = vsel %vm3378, %v4017, %v4019
    %v4021 = vsel %vm3380, %v4017, %v4020
    %4023 = vst.msk [vmem:[#allocation3 + $0x2c] sm:$0x3] %vm3383, %v4021
    %v4024 = vrot.slane %v4006, 1
    %v4025 = vsel %vm3369, %v4024, %v4024
    %v4026 = vsel %vm3371, %v4024, %v4025
    %v4027 = vsel %vm3374, %v4014, %v4026
    %v4028 = vsel %vm3376, %v4014, %v4027
    %v4029 = vsel %vm3378, %v4014, %v4028
    %v4030 = vsel %vm3380, %v4014, %v4029
    %4031 = vrot.lane.b32.xlu0 %v4030, 64
    %v4032 = vpop.permute.xlu0 %4031
    %4034 = vst.msk [vmem:[#allocation3 + $0x2c] sm:$0x3] %vm3395, %v4032
    %v4035 = vcombine.high %v4006, %v4006
    %v4036 = vcombine.high %v4014, %v4014
    %v4037 = vsel %vm3369, %v4035, %v4035
    %v4038 = vsel %vm3371, %v4035, %v4037
    %v4039 = vrot.slane %v4036, 7
    %v4040 = vsel %vm3374, %v4039, %v4038
    %v4041 = vsel %vm3376, %v4039, %v4040
    %v4042 = vsel %vm3378, %v4039, %v4041
    %v4043 = vsel %vm3380, %v4039, %v4042
    %4045 = vst.msk [vmem:[#allocation3 + $0x2e] sm:$0x3] %vm3383, %v4043
    %v4046 = vrot.slane %v4035, 1
    %v4047 = vsel %vm3369, %v4046, %v4046
    %v4048 = vsel %vm3371, %v4046, %v4047
    %v4049 = vsel %vm3374, %v4036, %v4048
    %v4050 = vsel %vm3376, %v4036, %v4049
    %v4051 = vsel %vm3378, %v4036, %v4050
    %v4052 = vsel %vm3380, %v4036, %v4051
    %4053 = vrot.lane.b32.xlu0 %v4052, 64
    %v4054 = vpop.permute.xlu0 %4053
    %4056 = vst.msk [vmem:[#allocation3 + $0x2e] sm:$0x3] %vm3395, %v4054
    %v4060 = vunpack.c.l.s4 1983009808
    %v4061 = vunpack.c.0.s8 %v4060
    %v4062 = vlaneseq
    %v4063 = vshrl.u32 %v4062, 7
    %v4064 = vsub.s32 %v4061, %v4063
    %v4065 = vrot.slane %v3343, %v4064
    %v4067 = vunpack.c.l.s4 1983009808
    %v4068 = vunpack.c.0.s8 %v4067
    %v4069 = vlaneseq
    %v4070 = vshrl.u32 %v4069, 7
    %v4071 = vsub.s32 %v4068, %v4070
    %v4072 = vrot.slane %v3351, %v4071
    %v4073 = vsel %vm3369, %v4065, %v4065
    %v4074 = vsel %vm3371, %v4065, %v4073
    %v4075 = vrot.slane %v4072, 7
    %v4076 = vsel %vm3374, %v4075, %v4074
    %v4077 = vsel %vm3376, %v4075, %v4076
    %v4078 = vsel %vm3378, %v4075, %v4077
    %v4079 = vsel %vm3380, %v4075, %v4078
    %4081 = vst.msk [vmem:[#allocation3 + $0x30] sm:$0x3] %vm3383, %v4079
    %v4082 = vrot.slane %v4065, 1
    %v4083 = vsel %vm3369, %v4082, %v4082
    %v4084 = vsel %vm3371, %v4082, %v4083
    %v4085 = vsel %vm3374, %v4072, %v4084
    %v4086 = vsel %vm3376, %v4072, %v4085
    %v4087 = vsel %vm3378, %v4072, %v4086
    %v4088 = vsel %vm3380, %v4072, %v4087
    %4089 = vrot.lane.b32.xlu0 %v4088, 64
    %v4090 = vpop.permute.xlu0 %4089
    %4092 = vst.msk [vmem:[#allocation3 + $0x30] sm:$0x3] %vm3395, %v4090
    %v4093 = vcombine.high %v4065, %v4065
    %v4094 = vcombine.high %v4072, %v4072
    %v4095 = vsel %vm3369, %v4093, %v4093
    %v4096 = vsel %vm3371, %v4093, %v4095
    %v4097 = vrot.slane %v4094, 7
    %v4098 = vsel %vm3374, %v4097, %v4096
    %v4099 = vsel %vm3376, %v4097, %v4098
    %v4100 = vsel %vm3378, %v4097, %v4099
    %v4101 = vsel %vm3380, %v4097, %v4100
    %4103 = vst.msk [vmem:[#allocation3 + $0x32] sm:$0x3] %vm3383, %v4101
    %v4104 = vrot.slane %v4093, 1
    %v4105 = vsel %vm3369, %v4104, %v4104
    %v4106 = vsel %vm3371, %v4104, %v4105
    %v4107 = vsel %vm3374, %v4094, %v4106
    %v4108 = vsel %vm3376, %v4094, %v4107
    %v4109 = vsel %vm3378, %v4094, %v4108
    %v4110 = vsel %vm3380, %v4094, %v4109
    %4111 = vrot.lane.b32.xlu0 %v4110, 64
    %v4112 = vpop.permute.xlu0 %4111
    %4114 = vst.msk [vmem:[#allocation3 + $0x32] sm:$0x3] %vm3395, %v4112
    %v4115 = vcombine.high %v3343, %v3343
    %v4117 = vunpack.c.l.s4 1983009808
    %v4118 = vunpack.c.0.s8 %v4117
    %v4119 = vlaneseq
    %v4120 = vshrl.u32 %v4119, 7
    %v4121 = vsub.s32 %v4118, %v4120
    %v4122 = vrot.slane %v4115, %v4121
    %v4123 = vcombine.high %v3351, %v3351
    %v4125 = vunpack.c.l.s4 1983009808
    %v4126 = vunpack.c.0.s8 %v4125
    %v4127 = vlaneseq
    %v4128 = vshrl.u32 %v4127, 7
    %v4129 = vsub.s32 %v4126, %v4128
    %v4130 = vrot.slane %v4123, %v4129
    %v4131 = vsel %vm3369, %v4122, %v4122
    %v4132 = vsel %vm3371, %v4122, %v4131
    %v4133 = vrot.slane %v4130, 7
    %v4134 = vsel %vm3374, %v4133, %v4132
    %v4135 = vsel %vm3376, %v4133, %v4134
    %v4136 = vsel %vm3378, %v4133, %v4135
    %v4137 = vsel %vm3380, %v4133, %v4136
    %4139 = vst.msk [vmem:[#allocation3 + $0x34] sm:$0x3] %vm3383, %v4137
    %v4140 = vrot.slane %v4122, 1
    %v4141 = vsel %vm3369, %v4140, %v4140
    %v4142 = vsel %vm3371, %v4140, %v4141
    %v4143 = vsel %vm3374, %v4130, %v4142
    %v4144 = vsel %vm3376, %v4130, %v4143
    %v4145 = vsel %vm3378, %v4130, %v4144
    %v4146 = vsel %vm3380, %v4130, %v4145
    %4147 = vrot.lane.b32.xlu0 %v4146, 64
    %v4148 = vpop.permute.xlu0 %4147
    %4150 = vst.msk [vmem:[#allocation3 + $0x34] sm:$0x3] %vm3395, %v4148
    %v4151 = vcombine.high %v4122, %v4122
    %v4152 = vcombine.high %v4130, %v4130
    %v4153 = vsel %vm3369, %v4151, %v4151
    %v4154 = vsel %vm3371, %v4151, %v4153
    %v4155 = vrot.slane %v4152, 7
    %v4156 = vsel %vm3374, %v4155, %v4154
    %v4157 = vsel %vm3376, %v4155, %v4156
    %v4158 = vsel %vm3378, %v4155, %v4157
    %v4159 = vsel %vm3380, %v4155, %v4158
    %4161 = vst.msk [vmem:[#allocation3 + $0x36] sm:$0x3] %vm3383, %v4159
    %v4162 = vrot.slane %v4151, 1
    %v4163 = vsel %vm3369, %v4162, %v4162
    %v4164 = vsel %vm3371, %v4162, %v4163
    %v4165 = vsel %vm3374, %v4152, %v4164
    %v4166 = vsel %vm3376, %v4152, %v4165
    %v4167 = vsel %vm3378, %v4152, %v4166
    %v4168 = vsel %vm3380, %v4152, %v4167
    %4169 = vrot.lane.b32.xlu0 %v4168, 64
    %v4170 = vpop.permute.xlu0 %4169
    %4172 = vst.msk [vmem:[#allocation3 + $0x36] sm:$0x3] %vm3395, %v4170
    %v4176 = vunpack.c.l.s4 1983009808
    %v4177 = vunpack.c.0.s8 %v4176
    %v4178 = vlaneseq
    %v4179 = vshrl.u32 %v4178, 7
    %v4180 = vsub.s32 %v4177, %v4179
    %v4181 = vrot.slane %v3344, %v4180
    %v4183 = vunpack.c.l.s4 1983009808
    %v4184 = vunpack.c.0.s8 %v4183
    %v4185 = vlaneseq
    %v4186 = vshrl.u32 %v4185, 7
    %v4187 = vsub.s32 %v4184, %v4186
    %v4188 = vrot.slane %v3352, %v4187
    %v4189 = vsel %vm3369, %v4181, %v4181
    %v4190 = vsel %vm3371, %v4181, %v4189
    %v4191 = vrot.slane %v4188, 7
    %v4192 = vsel %vm3374, %v4191, %v4190
    %v4193 = vsel %vm3376, %v4191, %v4192
    %v4194 = vsel %vm3378, %v4191, %v4193
    %v4195 = vsel %vm3380, %v4191, %v4194
    %4197 = vst.msk [vmem:[#allocation3 + $0x38] sm:$0x3] %vm3383, %v4195
    %v4198 = vrot.slane %v4181, 1
    %v4199 = vsel %vm3369, %v4198, %v4198
    %v4200 = vsel %vm3371, %v4198, %v4199
    %v4201 = vsel %vm3374, %v4188, %v4200
    %v4202 = vsel %vm3376, %v4188, %v4201
    %v4203 = vsel %vm3378, %v4188, %v4202
    %v4204 = vsel %vm3380, %v4188, %v4203
    %4205 = vrot.lane.b32.xlu0 %v4204, 64
    %v4206 = vpop.permute.xlu0 %4205
    %4208 = vst.msk [vmem:[#allocation3 + $0x38] sm:$0x3] %vm3395, %v4206
    %v4209 = vcombine.high %v4181, %v4181
    %v4210 = vcombine.high %v4188, %v4188
    %v4211 = vsel %vm3369, %v4209, %v4209
    %v4212 = vsel %vm3371, %v4209, %v4211
    %v4213 = vrot.slane %v4210, 7
    %v4214 = vsel %vm3374, %v4213, %v4212
    %v4215 = vsel %vm3376, %v4213, %v4214
    %v4216 = vsel %vm3378, %v4213, %v4215
    %v4217 = vsel %vm3380, %v4213, %v4216
    %4219 = vst.msk [vmem:[#allocation3 + $0x3a] sm:$0x3] %vm3383, %v4217
    %v4220 = vrot.slane %v4209, 1
    %v4221 = vsel %vm3369, %v4220, %v4220
    %v4222 = vsel %vm3371, %v4220, %v4221
    %v4223 = vsel %vm3374, %v4210, %v4222
    %v4224 = vsel %vm3376, %v4210, %v4223
    %v4225 = vsel %vm3378, %v4210, %v4224
    %v4226 = vsel %vm3380, %v4210, %v4225
    %4227 = vrot.lane.b32.xlu0 %v4226, 64
    %v4228 = vpop.permute.xlu0 %4227
    %4230 = vst.msk [vmem:[#allocation3 + $0x3a] sm:$0x3] %vm3395, %v4228
    %v4231 = vcombine.high %v3344, %v3344
    %v4233 = vunpack.c.l.s4 1983009808
    %v4234 = vunpack.c.0.s8 %v4233
    %v4235 = vlaneseq
    %v4236 = vshrl.u32 %v4235, 7
    %v4237 = vsub.s32 %v4234, %v4236
    %v4238 = vrot.slane %v4231, %v4237
    %v4239 = vcombine.high %v3352, %v3352
    %v4241 = vunpack.c.l.s4 1983009808
    %v4242 = vunpack.c.0.s8 %v4241
    %v4243 = vlaneseq
    %v4244 = vshrl.u32 %v4243, 7
    %v4245 = vsub.s32 %v4242, %v4244
    %v4246 = vrot.slane %v4239, %v4245
    %v4247 = vsel %vm3369, %v4238, %v4238
    %v4248 = vsel %vm3371, %v4238, %v4247
    %v4249 = vrot.slane %v4246, 7
    %v4250 = vsel %vm3374, %v4249, %v4248
    %v4251 = vsel %vm3376, %v4249, %v4250
    %v4252 = vsel %vm3378, %v4249, %v4251
    %v4253 = vsel %vm3380, %v4249, %v4252
    %4255 = vst.msk [vmem:[#allocation3 + $0x3c] sm:$0x3] %vm3383, %v4253
    %v4256 = vrot.slane %v4238, 1
    %v4257 = vsel %vm3369, %v4256, %v4256
    %v4258 = vsel %vm3371, %v4256, %v4257
    %v4259 = vsel %vm3374, %v4246, %v4258
    %v4260 = vsel %vm3376, %v4246, %v4259
    %v4261 = vsel %vm3378, %v4246, %v4260
    %v4262 = vsel %vm3380, %v4246, %v4261
    %4263 = vrot.lane.b32.xlu0 %v4262, 64
    %v4264 = vpop.permute.xlu0 %4263
    %4266 = vst.msk [vmem:[#allocation3 + $0x3c] sm:$0x3] %vm3395, %v4264
    %v4267 = vcombine.high %v4238, %v4238
    %v4268 = vcombine.high %v4246, %v4246
    %v4269 = vsel %vm3369, %v4267, %v4267
    %v4270 = vsel %vm3371, %v4267, %v4269
    %v4271 = vrot.slane %v4268, 7
    %v4272 = vsel %vm3374, %v4271, %v4270
    %v4273 = vsel %vm3376, %v4271, %v4272
    %v4274 = vsel %vm3378, %v4271, %v4273
    %v4275 = vsel %vm3380, %v4271, %v4274
    %4277 = vst.msk [vmem:[#allocation3 + $0x3e] sm:$0x3] %vm3383, %v4275
    %v4278 = vrot.slane %v4267, 1
    %v4279 = vsel %vm3369, %v4278, %v4278
    %v4280 = vsel %vm3371, %v4278, %v4279
    %v4281 = vsel %vm3374, %v4268, %v4280
    %v4282 = vsel %vm3376, %v4268, %v4281
    %v4283 = vsel %vm3378, %v4268, %v4282
    %v4284 = vsel %vm3380, %v4268, %v4283
    %4285 = vrot.lane.b32.xlu0 %v4284, 64
    %v4286 = vpop.permute.xlu0 %4285
    %4288 = vst.msk [vmem:[#allocation3 + $0x3e] sm:$0x3] %vm3395, %v4286
    %v4289 = vld [vmem:[#allocation3] sm:$0xff]
    %v4290 = vld [vmem:[#allocation3 + $0x8] sm:$0xff]
    %v4291 = vld [vmem:[#allocation3 + $0x10] sm:$0xff]
    %v4292 = vld [vmem:[#allocation3 + $0x18] sm:$0xff]
    %v4293 = vld [vmem:[#allocation3 + $0x20] sm:$0xff]
    %v4294 = vld [vmem:[#allocation3 + $0x28] sm:$0xff]
    %v4295 = vld [vmem:[#allocation3 + $0x30] sm:$0xff]
    %v4296 = vld [vmem:[#allocation3 + $0x38] sm:$0xff]
    %v4297 = vld [vmem:[%s7] sm:$0xff]
    %v4298 = vld [vmem:[%s7 + $0x8] sm:$0xff]
    %v4299 = vld [vmem:[%s7 + $0x10] sm:$0xff]
    %v4300 = vld [vmem:[%s7 + $0x18] sm:$0xff]
    %v4301 = vld [vmem:[%s7 + $0x20] sm:$0xff]
    %v4302 = vld [vmem:[%s7 + $0x28] sm:$0xff]
    %v4303 = vld [vmem:[%s7 + $0x30] sm:$0xff]
    %v4304 = vld [vmem:[%s7 + $0x38] sm:$0xff]
    %v4305 = vld [vmem:[%s7 + $0x40] sm:$0xff]
    %v4306 = vld [vmem:[%s7 + $0x48] sm:$0xff]
    %v4307 = vld [vmem:[%s7 + $0x50] sm:$0xff]
    %v4308 = vld [vmem:[%s7 + $0x58] sm:$0xff]
    %v4309 = vld [vmem:[%s7 + $0x60] sm:$0xff]
    %v4310 = vld [vmem:[%s7 + $0x68] sm:$0xff]
    %v4311 = vld [vmem:[%s7 + $0x70] sm:$0xff]
    %v4312 = vld [vmem:[%s7 + $0x78] sm:$0xff]
    %v4313 = vld [vmem:[%s7 + $0x80] sm:$0xff]
    %v4314 = vld [vmem:[%s7 + $0x88] sm:$0xff]
    %v4315 = vld [vmem:[%s7 + $0x90] sm:$0xff]
    %v4316 = vld [vmem:[%s7 + $0x98] sm:$0xff]
    %v4317 = vld [vmem:[%s7 + $0xa0] sm:$0xff]
    %v4318 = vld [vmem:[%s7 + $0xa8] sm:$0xff]
    %v4319 = vld [vmem:[%s7 + $0xb0] sm:$0xff]
    %v4320 = vld [vmem:[%s7 + $0xb8] sm:$0xff]
    %v4321 = vld [vmem:[%s7 + $0xc0] sm:$0xff]
    %v4322 = vld [vmem:[%s7 + $0xc8] sm:$0xff]
    %v4323 = vld [vmem:[%s7 + $0xd0] sm:$0xff]
    %v4324 = vld [vmem:[%s7 + $0xd8] sm:$0xff]
    %v4325 = vld [vmem:[%s7 + $0xe0] sm:$0xff]
    %v4326 = vld [vmem:[%s7 + $0xe8] sm:$0xff]
    %v4327 = vld [vmem:[%s7 + $0xf0] sm:$0xff]
    %v4328 = vld [vmem:[%s7 + $0xf8] sm:$0xff]
    %v4329 = vld [vmem:[%s7 + $0x100] sm:$0xff]
    %v4330 = vld [vmem:[%s7 + $0x108] sm:$0xff]
    %v4331 = vld [vmem:[%s7 + $0x110] sm:$0xff]
    %v4332 = vld [vmem:[%s7 + $0x118] sm:$0xff]
    %v4333 = vld [vmem:[%s7 + $0x120] sm:$0xff]
    %v4334 = vld [vmem:[%s7 + $0x128] sm:$0xff]
    %v4335 = vld [vmem:[%s7 + $0x130] sm:$0xff]
    %v4336 = vld [vmem:[%s7 + $0x138] sm:$0xff]
    %v4337 = vld [vmem:[%s7 + $0x140] sm:$0xff]
    %v4338 = vld [vmem:[%s7 + $0x148] sm:$0xff]
    %v4339 = vld [vmem:[%s7 + $0x150] sm:$0xff]
    %v4340 = vld [vmem:[%s7 + $0x158] sm:$0xff]
    %v4341 = vld [vmem:[%s7 + $0x160] sm:$0xff]
    %v4342 = vld [vmem:[%s7 + $0x168] sm:$0xff]
    %v4343 = vld [vmem:[%s7 + $0x170] sm:$0xff]
    %v4344 = vld [vmem:[%s7 + $0x178] sm:$0xff]
    %v4345 = vld [vmem:[%s7 + $0x180] sm:$0xff]
    %v4346 = vld [vmem:[%s7 + $0x188] sm:$0xff]
    %v4347 = vld [vmem:[%s7 + $0x190] sm:$0xff]
    %v4348 = vld [vmem:[%s7 + $0x198] sm:$0xff]
    %v4349 = vld [vmem:[%s7 + $0x1a0] sm:$0xff]
    %v4350 = vld [vmem:[%s7 + $0x1a8] sm:$0xff]
    %v4351 = vld [vmem:[%s7 + $0x1b0] sm:$0xff]
    %v4352 = vld [vmem:[%s7 + $0x1b8] sm:$0xff]
    %v4353 = vld [vmem:[%s7 + $0x1c0] sm:$0xff]
    %v4354 = vld [vmem:[%s7 + $0x1c8] sm:$0xff]
    %v4355 = vld [vmem:[%s7 + $0x1d0] sm:$0xff]
    %v4356 = vld [vmem:[%s7 + $0x1d8] sm:$0xff]
    %v4357 = vld [vmem:[%s7 + $0x1e0] sm:$0xff]
    %v4358 = vld [vmem:[%s7 + $0x1e8] sm:$0xff]
    %v4359 = vld [vmem:[%s7 + $0x1f0] sm:$0xff]
    %v4360 = vld [vmem:[%s7 + $0x1f8] sm:$0xff]
    %v4361 = vld [vmem:[%s7 + $0x200] sm:$0xff]
    %v4362 = vld [vmem:[%s7 + $0x208] sm:$0xff]
    %v4363 = vld [vmem:[%s7 + $0x210] sm:$0xff]
    %v4364 = vld [vmem:[%s7 + $0x218] sm:$0xff]
    %v4365 = vld [vmem:[%s7 + $0x220] sm:$0xff]
    %v4366 = vld [vmem:[%s7 + $0x228] sm:$0xff]
    %v4367 = vld [vmem:[%s7 + $0x230] sm:$0xff]
    %v4368 = vld [vmem:[%s7 + $0x238] sm:$0xff]
    %v4369 = vld [vmem:[%s7 + $0x240] sm:$0xff]
    %v4370 = vld [vmem:[%s7 + $0x248] sm:$0xff]
    %v4371 = vld [vmem:[%s7 + $0x250] sm:$0xff]
    %v4372 = vld [vmem:[%s7 + $0x258] sm:$0xff]
    %v4373 = vld [vmem:[%s7 + $0x260] sm:$0xff]
    %v4374 = vld [vmem:[%s7 + $0x268] sm:$0xff]
    %v4375 = vld [vmem:[%s7 + $0x270] sm:$0xff]
    %v4376 = vld [vmem:[%s7 + $0x278] sm:$0xff]
    %v4377 = vld [vmem:[%s7 + $0x280] sm:$0xff]
    %v4378 = vld [vmem:[%s7 + $0x288] sm:$0xff]
    %v4379 = vld [vmem:[%s7 + $0x290] sm:$0xff]
    %v4380 = vld [vmem:[%s7 + $0x298] sm:$0xff]
    %v4381 = vld [vmem:[%s7 + $0x2a0] sm:$0xff]
    %v4382 = vld [vmem:[%s7 + $0x2a8] sm:$0xff]
    %v4383 = vld [vmem:[%s7 + $0x2b0] sm:$0xff]
    %v4384 = vld [vmem:[%s7 + $0x2b8] sm:$0xff]
    %v4385 = vld [vmem:[%s7 + $0x2c0] sm:$0xff]
    %v4386 = vld [vmem:[%s7 + $0x2c8] sm:$0xff]
    %v4387 = vld [vmem:[%s7 + $0x2d0] sm:$0xff]
    %v4388 = vld [vmem:[%s7 + $0x2d8] sm:$0xff]
    %v4389 = vld [vmem:[%s7 + $0x2e0] sm:$0xff]
    %v4390 = vld [vmem:[%s7 + $0x2e8] sm:$0xff]
    %v4391 = vld [vmem:[%s7 + $0x2f0] sm:$0xff]
    %v4392 = vld [vmem:[%s7 + $0x2f8] sm:$0xff]
    %v4393 = vld [vmem:[%s7 + $0x300] sm:$0xff]
    %v4394 = vld [vmem:[%s7 + $0x308] sm:$0xff]
    %v4395 = vld [vmem:[%s7 + $0x310] sm:$0xff]
    %v4396 = vld [vmem:[%s7 + $0x318] sm:$0xff]
    %v4397 = vld [vmem:[%s7 + $0x320] sm:$0xff]
    %v4398 = vld [vmem:[%s7 + $0x328] sm:$0xff]
    %v4399 = vld [vmem:[%s7 + $0x330] sm:$0xff]
    %v4400 = vld [vmem:[%s7 + $0x338] sm:$0xff]
    %v4401 = vld [vmem:[%s7 + $0x340] sm:$0xff]
    %v4402 = vld [vmem:[%s7 + $0x348] sm:$0xff]
    %v4403 = vld [vmem:[%s7 + $0x350] sm:$0xff]
    %v4404 = vld [vmem:[%s7 + $0x358] sm:$0xff]
    %v4405 = vld [vmem:[%s7 + $0x360] sm:$0xff]
    %v4406 = vld [vmem:[%s7 + $0x368] sm:$0xff]
    %v4407 = vld [vmem:[%s7 + $0x370] sm:$0xff]
    %v4408 = vld [vmem:[%s7 + $0x378] sm:$0xff]
    %v4409 = vld [vmem:[%s7 + $0x380] sm:$0xff]
    %v4410 = vld [vmem:[%s7 + $0x388] sm:$0xff]
    %v4411 = vld [vmem:[%s7 + $0x390] sm:$0xff]
    %v4412 = vld [vmem:[%s7 + $0x398] sm:$0xff]
    %v4413 = vld [vmem:[%s7 + $0x3a0] sm:$0xff]
    %v4414 = vld [vmem:[%s7 + $0x3a8] sm:$0xff]
    %v4415 = vld [vmem:[%s7 + $0x3b0] sm:$0xff]
    %v4416 = vld [vmem:[%s7 + $0x3b8] sm:$0xff]
    %v4417 = vld [vmem:[%s7 + $0x3c0] sm:$0xff]
    %v4418 = vld [vmem:[%s7 + $0x3c8] sm:$0xff]
    %v4419 = vld [vmem:[%s7 + $0x3d0] sm:$0xff]
    %v4420 = vld [vmem:[%s7 + $0x3d8] sm:$0xff]
    %v4421 = vld [vmem:[%s7 + $0x3e0] sm:$0xff]
    %v4422 = vld [vmem:[%s7 + $0x3e8] sm:$0xff]
    %v4423 = vld [vmem:[%s7 + $0x3f0] sm:$0xff]
    %v4424 = vld [vmem:[%s7 + $0x3f8] sm:$0xff]
    %v4425 = vld [vmem:[%s7 + $0x400] sm:$0xff]
    %v4426 = vld [vmem:[%s7 + $0x408] sm:$0xff]
    %v4427 = vld [vmem:[%s7 + $0x410] sm:$0xff]
    %v4428 = vld [vmem:[%s7 + $0x418] sm:$0xff]
    %v4429 = vld [vmem:[%s7 + $0x420] sm:$0xff]
    %v4430 = vld [vmem:[%s7 + $0x428] sm:$0xff]
    %v4431 = vld [vmem:[%s7 + $0x430] sm:$0xff]
    %v4432 = vld [vmem:[%s7 + $0x438] sm:$0xff]
    %v4433 = vld [vmem:[%s7 + $0x440] sm:$0xff]
    %v4434 = vld [vmem:[%s7 + $0x448] sm:$0xff]
    %v4435 = vld [vmem:[%s7 + $0x450] sm:$0xff]
    %v4436 = vld [vmem:[%s7 + $0x458] sm:$0xff]
    %v4437 = vld [vmem:[%s7 + $0x460] sm:$0xff]
    %v4438 = vld [vmem:[%s7 + $0x468] sm:$0xff]
    %v4439 = vld [vmem:[%s7 + $0x470] sm:$0xff]
    %v4440 = vld [vmem:[%s7 + $0x478] sm:$0xff]
    %v4441 = vld [vmem:[%s7 + $0x480] sm:$0xff]
    %v4442 = vld [vmem:[%s7 + $0x488] sm:$0xff]
    %v4443 = vld [vmem:[%s7 + $0x490] sm:$0xff]
    %v4444 = vld [vmem:[%s7 + $0x498] sm:$0xff]
    %v4445 = vld [vmem:[%s7 + $0x4a0] sm:$0xff]
    %v4446 = vld [vmem:[%s7 + $0x4a8] sm:$0xff]
    %v4447 = vld [vmem:[%s7 + $0x4b0] sm:$0xff]
    %v4448 = vld [vmem:[%s7 + $0x4b8] sm:$0xff]
    %v4449 = vld [vmem:[%s7 + $0x4c0] sm:$0xff]
    %v4450 = vld [vmem:[%s7 + $0x4c8] sm:$0xff]
    %v4451 = vld [vmem:[%s7 + $0x4d0] sm:$0xff]
    %v4452 = vld [vmem:[%s7 + $0x4d8] sm:$0xff]
    %v4453 = vld [vmem:[%s7 + $0x4e0] sm:$0xff]
    %v4454 = vld [vmem:[%s7 + $0x4e8] sm:$0xff]
    %v4455 = vld [vmem:[%s7 + $0x4f0] sm:$0xff]
    %v4456 = vld [vmem:[%s7 + $0x4f8] sm:$0xff]
    %v4457 = vld [vmem:[%s7 + $0x500] sm:$0xff]
    %v4458 = vld [vmem:[%s7 + $0x508] sm:$0xff]
    %v4459 = vld [vmem:[%s7 + $0x510] sm:$0xff]
    %v4460 = vld [vmem:[%s7 + $0x518] sm:$0xff]
    %v4461 = vld [vmem:[%s7 + $0x520] sm:$0xff]
    %v4462 = vld [vmem:[%s7 + $0x528] sm:$0xff]
    %v4463 = vld [vmem:[%s7 + $0x530] sm:$0xff]
    %v4464 = vld [vmem:[%s7 + $0x538] sm:$0xff]
    %v4465 = vld [vmem:[%s7 + $0x540] sm:$0xff]
    %v4466 = vld [vmem:[%s7 + $0x548] sm:$0xff]
    %v4467 = vld [vmem:[%s7 + $0x550] sm:$0xff]
    %v4468 = vld [vmem:[%s7 + $0x558] sm:$0xff]
    %v4469 = vld [vmem:[%s7 + $0x560] sm:$0xff]
    %v4470 = vld [vmem:[%s7 + $0x568] sm:$0xff]
    %v4471 = vld [vmem:[%s7 + $0x570] sm:$0xff]
    %v4472 = vld [vmem:[%s7 + $0x578] sm:$0xff]
    %v4473 = vld [vmem:[%s7 + $0x580] sm:$0xff]
    %v4474 = vld [vmem:[%s7 + $0x588] sm:$0xff]
    %v4475 = vld [vmem:[%s7 + $0x590] sm:$0xff]
    %v4476 = vld [vmem:[%s7 + $0x598] sm:$0xff]
    %v4477 = vld [vmem:[%s7 + $0x5a0] sm:$0xff]
    %v4478 = vld [vmem:[%s7 + $0x5a8] sm:$0xff]
    %v4479 = vld [vmem:[%s7 + $0x5b0] sm:$0xff]
    %v4480 = vld [vmem:[%s7 + $0x5b8] sm:$0xff]
    %v4481 = vld [vmem:[%s7 + $0x5c0] sm:$0xff]
    %v4482 = vld [vmem:[%s7 + $0x5c8] sm:$0xff]
    %v4483 = vld [vmem:[%s7 + $0x5d0] sm:$0xff]
    %v4484 = vld [vmem:[%s7 + $0x5d8] sm:$0xff]
    %v4485 = vld [vmem:[%s7 + $0x5e0] sm:$0xff]
    %v4486 = vld [vmem:[%s7 + $0x5e8] sm:$0xff]
    %v4487 = vld [vmem:[%s7 + $0x5f0] sm:$0xff]
    %v4488 = vld [vmem:[%s7 + $0x5f8] sm:$0xff]
    %v4489 = vld [vmem:[%s7 + $0x600] sm:$0xff]
    %v4490 = vld [vmem:[%s7 + $0x608] sm:$0xff]
    %v4491 = vld [vmem:[%s7 + $0x610] sm:$0xff]
    %v4492 = vld [vmem:[%s7 + $0x618] sm:$0xff]
    %v4493 = vld [vmem:[%s7 + $0x620] sm:$0xff]
    %v4494 = vld [vmem:[%s7 + $0x628] sm:$0xff]
    %v4495 = vld [vmem:[%s7 + $0x630] sm:$0xff]
    %v4496 = vld [vmem:[%s7 + $0x638] sm:$0xff]
    %v4497 = vld [vmem:[%s7 + $0x640] sm:$0xff]
    %v4498 = vld [vmem:[%s7 + $0x648] sm:$0xff]
    %v4499 = vld [vmem:[%s7 + $0x650] sm:$0xff]
    %v4500 = vld [vmem:[%s7 + $0x658] sm:$0xff]
    %v4501 = vld [vmem:[%s7 + $0x660] sm:$0xff]
    %v4502 = vld [vmem:[%s7 + $0x668] sm:$0xff]
    %v4503 = vld [vmem:[%s7 + $0x670] sm:$0xff]
    %v4504 = vld [vmem:[%s7 + $0x678] sm:$0xff]
    %v4505 = vld [vmem:[%s7 + $0x680] sm:$0xff]
    %v4506 = vld [vmem:[%s7 + $0x688] sm:$0xff]
    %v4507 = vld [vmem:[%s7 + $0x690] sm:$0xff]
    %v4508 = vld [vmem:[%s7 + $0x698] sm:$0xff]
    %v4509 = vld [vmem:[%s7 + $0x6a0] sm:$0xff]
    %v4510 = vld [vmem:[%s7 + $0x6a8] sm:$0xff]
    %v4511 = vld [vmem:[%s7 + $0x6b0] sm:$0xff]
    %v4512 = vld [vmem:[%s7 + $0x6b8] sm:$0xff]
    %v4513 = vld [vmem:[%s7 + $0x6c0] sm:$0xff]
    %v4514 = vld [vmem:[%s7 + $0x6c8] sm:$0xff]
    %v4515 = vld [vmem:[%s7 + $0x6d0] sm:$0xff]
    %v4516 = vld [vmem:[%s7 + $0x6d8] sm:$0xff]
    %v4517 = vld [vmem:[%s7 + $0x6e0] sm:$0xff]
    %v4518 = vld [vmem:[%s7 + $0x6e8] sm:$0xff]
    %v4519 = vld [vmem:[%s7 + $0x6f0] sm:$0xff]
    %v4520 = vld [vmem:[%s7 + $0x6f8] sm:$0xff]
    %v4521 = vld [vmem:[%s7 + $0x700] sm:$0xff]
    %v4522 = vld [vmem:[%s7 + $0x708] sm:$0xff]
    %v4523 = vld [vmem:[%s7 + $0x710] sm:$0xff]
    %v4524 = vld [vmem:[%s7 + $0x718] sm:$0xff]
    %v4525 = vld [vmem:[%s7 + $0x720] sm:$0xff]
    %v4526 = vld [vmem:[%s7 + $0x728] sm:$0xff]
    %v4527 = vld [vmem:[%s7 + $0x730] sm:$0xff]
    %v4528 = vld [vmem:[%s7 + $0x738] sm:$0xff]
    %v4529 = vld [vmem:[%s7 + $0x740] sm:$0xff]
    %v4530 = vld [vmem:[%s7 + $0x748] sm:$0xff]
    %v4531 = vld [vmem:[%s7 + $0x750] sm:$0xff]
    %v4532 = vld [vmem:[%s7 + $0x758] sm:$0xff]
    %v4533 = vld [vmem:[%s7 + $0x760] sm:$0xff]
    %v4534 = vld [vmem:[%s7 + $0x768] sm:$0xff]
    %v4535 = vld [vmem:[%s7 + $0x770] sm:$0xff]
    %v4536 = vld [vmem:[%s7 + $0x778] sm:$0xff]
    %v4537 = vld [vmem:[%s7 + $0x780] sm:$0xff]
    %v4538 = vld [vmem:[%s7 + $0x788] sm:$0xff]
    %v4539 = vld [vmem:[%s7 + $0x790] sm:$0xff]
    %v4540 = vld [vmem:[%s7 + $0x798] sm:$0xff]
    %v4541 = vld [vmem:[%s7 + $0x7a0] sm:$0xff]
    %v4542 = vld [vmem:[%s7 + $0x7a8] sm:$0xff]
    %v4543 = vld [vmem:[%s7 + $0x7b0] sm:$0xff]
    %v4544 = vld [vmem:[%s7 + $0x7b8] sm:$0xff]
    %v4545 = vld [vmem:[%s7 + $0x7c0] sm:$0xff]
    %v4546 = vld [vmem:[%s7 + $0x7c8] sm:$0xff]
    %v4547 = vld [vmem:[%s7 + $0x7d0] sm:$0xff]
    %v4548 = vld [vmem:[%s7 + $0x7d8] sm:$0xff]
    %v4549 = vld [vmem:[%s7 + $0x7e0] sm:$0xff]
    %v4550 = vld [vmem:[%s7 + $0x7e8] sm:$0xff]
    %v4551 = vld [vmem:[%s7 + $0x7f0] sm:$0xff]
    %v4552 = vld [vmem:[%s7 + $0x7f8] sm:$0xff]
    %v4553 = vld [vmem:[%s7 + $0x800] sm:$0xff]
    %v4554 = vld [vmem:[%s7 + $0x808] sm:$0xff]
    %v4555 = vld [vmem:[%s7 + $0x810] sm:$0xff]
    %v4556 = vld [vmem:[%s7 + $0x818] sm:$0xff]
    %v4557 = vld [vmem:[%s7 + $0x820] sm:$0xff]
    %v4558 = vld [vmem:[%s7 + $0x828] sm:$0xff]
    %v4559 = vld [vmem:[%s7 + $0x830] sm:$0xff]
    %v4560 = vld [vmem:[%s7 + $0x838] sm:$0xff]
    %v4561 = vld [vmem:[%s7 + $0x840] sm:$0xff]
    %v4562 = vld [vmem:[%s7 + $0x848] sm:$0xff]
    %v4563 = vld [vmem:[%s7 + $0x850] sm:$0xff]
    %v4564 = vld [vmem:[%s7 + $0x858] sm:$0xff]
    %v4565 = vld [vmem:[%s7 + $0x860] sm:$0xff]
    %v4566 = vld [vmem:[%s7 + $0x868] sm:$0xff]
    %v4567 = vld [vmem:[%s7 + $0x870] sm:$0xff]
    %v4568 = vld [vmem:[%s7 + $0x878] sm:$0xff]
    %v4569 = vld [vmem:[%s7 + $0x880] sm:$0xff]
    %v4570 = vld [vmem:[%s7 + $0x888] sm:$0xff]
    %v4571 = vld [vmem:[%s7 + $0x890] sm:$0xff]
    %v4572 = vld [vmem:[%s7 + $0x898] sm:$0xff]
    %v4573 = vld [vmem:[%s7 + $0x8a0] sm:$0xff]
    %v4574 = vld [vmem:[%s7 + $0x8a8] sm:$0xff]
    %v4575 = vld [vmem:[%s7 + $0x8b0] sm:$0xff]
    %v4576 = vld [vmem:[%s7 + $0x8b8] sm:$0xff]
    %v4577 = vld [vmem:[%s7 + $0x8c0] sm:$0xff]
    %v4578 = vld [vmem:[%s7 + $0x8c8] sm:$0xff]
    %v4579 = vld [vmem:[%s7 + $0x8d0] sm:$0xff]
    %v4580 = vld [vmem:[%s7 + $0x8d8] sm:$0xff]
    %v4581 = vld [vmem:[%s7 + $0x8e0] sm:$0xff]
    %v4582 = vld [vmem:[%s7 + $0x8e8] sm:$0xff]
    %v4583 = vld [vmem:[%s7 + $0x8f0] sm:$0xff]
    %v4584 = vld [vmem:[%s7 + $0x8f8] sm:$0xff]
    %v4585 = vld [vmem:[%s7 + $0x900] sm:$0xff]
    %v4586 = vld [vmem:[%s7 + $0x908] sm:$0xff]
    %v4587 = vld [vmem:[%s7 + $0x910] sm:$0xff]
    %v4588 = vld [vmem:[%s7 + $0x918] sm:$0xff]
    %v4589 = vld [vmem:[%s7 + $0x920] sm:$0xff]
    %v4590 = vld [vmem:[%s7 + $0x928] sm:$0xff]
    %v4591 = vld [vmem:[%s7 + $0x930] sm:$0xff]
    %v4592 = vld [vmem:[%s7 + $0x938] sm:$0xff]
    %v4593 = vld [vmem:[%s7 + $0x940] sm:$0xff]
    %v4594 = vld [vmem:[%s7 + $0x948] sm:$0xff]
    %v4595 = vld [vmem:[%s7 + $0x950] sm:$0xff]
    %v4596 = vld [vmem:[%s7 + $0x958] sm:$0xff]
    %v4597 = vld [vmem:[%s7 + $0x960] sm:$0xff]
    %v4598 = vld [vmem:[%s7 + $0x968] sm:$0xff]
    %v4599 = vld [vmem:[%s7 + $0x970] sm:$0xff]
    %v4600 = vld [vmem:[%s7 + $0x978] sm:$0xff]
    %v4601 = vld [vmem:[%s7 + $0x980] sm:$0xff]
    %v4602 = vld [vmem:[%s7 + $0x988] sm:$0xff]
    %v4603 = vld [vmem:[%s7 + $0x990] sm:$0xff]
    %v4604 = vld [vmem:[%s7 + $0x998] sm:$0xff]
    %v4605 = vld [vmem:[%s7 + $0x9a0] sm:$0xff]
    %v4606 = vld [vmem:[%s7 + $0x9a8] sm:$0xff]
    %v4607 = vld [vmem:[%s7 + $0x9b0] sm:$0xff]
    %v4608 = vld [vmem:[%s7 + $0x9b8] sm:$0xff]
    %v4609 = vld [vmem:[%s7 + $0x9c0] sm:$0xff]
    %v4610 = vld [vmem:[%s7 + $0x9c8] sm:$0xff]
    %v4611 = vld [vmem:[%s7 + $0x9d0] sm:$0xff]
    %v4612 = vld [vmem:[%s7 + $0x9d8] sm:$0xff]
    %v4613 = vld [vmem:[%s7 + $0x9e0] sm:$0xff]
    %v4614 = vld [vmem:[%s7 + $0x9e8] sm:$0xff]
    %v4615 = vld [vmem:[%s7 + $0x9f0] sm:$0xff]
    %v4616 = vld [vmem:[%s7 + $0x9f8] sm:$0xff]
    %v4617 = vld [vmem:[%s7 + $0xa00] sm:$0xff]
    %v4618 = vld [vmem:[%s7 + $0xa08] sm:$0xff]
    %v4619 = vld [vmem:[%s7 + $0xa10] sm:$0xff]
    %v4620 = vld [vmem:[%s7 + $0xa18] sm:$0xff]
    %v4621 = vld [vmem:[%s7 + $0xa20] sm:$0xff]
    %v4622 = vld [vmem:[%s7 + $0xa28] sm:$0xff]
    %v4623 = vld [vmem:[%s7 + $0xa30] sm:$0xff]
    %v4624 = vld [vmem:[%s7 + $0xa38] sm:$0xff]
    %v4625 = vld [vmem:[%s7 + $0xa40] sm:$0xff]
    %v4626 = vld [vmem:[%s7 + $0xa48] sm:$0xff]
    %v4627 = vld [vmem:[%s7 + $0xa50] sm:$0xff]
    %v4628 = vld [vmem:[%s7 + $0xa58] sm:$0xff]
    %v4629 = vld [vmem:[%s7 + $0xa60] sm:$0xff]
    %v4630 = vld [vmem:[%s7 + $0xa68] sm:$0xff]
    %v4631 = vld [vmem:[%s7 + $0xa70] sm:$0xff]
    %v4632 = vld [vmem:[%s7 + $0xa78] sm:$0xff]
    %v4633 = vld [vmem:[%s7 + $0xa80] sm:$0xff]
    %v4634 = vld [vmem:[%s7 + $0xa88] sm:$0xff]
    %v4635 = vld [vmem:[%s7 + $0xa90] sm:$0xff]
    %v4636 = vld [vmem:[%s7 + $0xa98] sm:$0xff]
    %v4637 = vld [vmem:[%s7 + $0xaa0] sm:$0xff]
    %v4638 = vld [vmem:[%s7 + $0xaa8] sm:$0xff]
    %v4639 = vld [vmem:[%s7 + $0xab0] sm:$0xff]
    %v4640 = vld [vmem:[%s7 + $0xab8] sm:$0xff]
    %v4641 = vld [vmem:[%s7 + $0xac0] sm:$0xff]
    %v4642 = vld [vmem:[%s7 + $0xac8] sm:$0xff]
    %v4643 = vld [vmem:[%s7 + $0xad0] sm:$0xff]
    %v4644 = vld [vmem:[%s7 + $0xad8] sm:$0xff]
    %v4645 = vld [vmem:[%s7 + $0xae0] sm:$0xff]
    %v4646 = vld [vmem:[%s7 + $0xae8] sm:$0xff]
    %v4647 = vld [vmem:[%s7 + $0xaf0] sm:$0xff]
    %v4648 = vld [vmem:[%s7 + $0xaf8] sm:$0xff]
    %v4649 = vld [vmem:[%s7 + $0xb00] sm:$0xff]
    %v4650 = vld [vmem:[%s7 + $0xb08] sm:$0xff]
    %v4651 = vld [vmem:[%s7 + $0xb10] sm:$0xff]
    %v4652 = vld [vmem:[%s7 + $0xb18] sm:$0xff]
    %v4653 = vld [vmem:[%s7 + $0xb20] sm:$0xff]
    %v4654 = vld [vmem:[%s7 + $0xb28] sm:$0xff]
    %v4655 = vld [vmem:[%s7 + $0xb30] sm:$0xff]
    %v4656 = vld [vmem:[%s7 + $0xb38] sm:$0xff]
    %v4657 = vld [vmem:[%s7 + $0xb40] sm:$0xff]
    %v4658 = vld [vmem:[%s7 + $0xb48] sm:$0xff]
    %v4659 = vld [vmem:[%s7 + $0xb50] sm:$0xff]
    %v4660 = vld [vmem:[%s7 + $0xb58] sm:$0xff]
    %v4661 = vld [vmem:[%s7 + $0xb60] sm:$0xff]
    %v4662 = vld [vmem:[%s7 + $0xb68] sm:$0xff]
    %v4663 = vld [vmem:[%s7 + $0xb70] sm:$0xff]
    %v4664 = vld [vmem:[%s7 + $0xb78] sm:$0xff]
    %v4665 = vld [vmem:[%s7 + $0xb80] sm:$0xff]
    %v4666 = vld [vmem:[%s7 + $0xb88] sm:$0xff]
    %v4667 = vld [vmem:[%s7 + $0xb90] sm:$0xff]
    %v4668 = vld [vmem:[%s7 + $0xb98] sm:$0xff]
    %v4669 = vld [vmem:[%s7 + $0xba0] sm:$0xff]
    %v4670 = vld [vmem:[%s7 + $0xba8] sm:$0xff]
    %v4671 = vld [vmem:[%s7 + $0xbb0] sm:$0xff]
    %v4672 = vld [vmem:[%s7 + $0xbb8] sm:$0xff]
    %v4673 = vld [vmem:[%s7 + $0xbc0] sm:$0xff]
    %v4674 = vld [vmem:[%s7 + $0xbc8] sm:$0xff]
    %v4675 = vld [vmem:[%s7 + $0xbd0] sm:$0xff]
    %v4676 = vld [vmem:[%s7 + $0xbd8] sm:$0xff]
    %v4677 = vld [vmem:[%s7 + $0xbe0] sm:$0xff]
    %v4678 = vld [vmem:[%s7 + $0xbe8] sm:$0xff]
    %v4679 = vld [vmem:[%s7 + $0xbf0] sm:$0xff]
    %v4680 = vld [vmem:[%s7 + $0xbf8] sm:$0xff]
    %v4681 = vld [vmem:[%s7 + $0xc00] sm:$0xff]
    %v4682 = vld [vmem:[%s7 + $0xc08] sm:$0xff]
    %v4683 = vld [vmem:[%s7 + $0xc10] sm:$0xff]
    %v4684 = vld [vmem:[%s7 + $0xc18] sm:$0xff]
    %v4685 = vld [vmem:[%s7 + $0xc20] sm:$0xff]
    %v4686 = vld [vmem:[%s7 + $0xc28] sm:$0xff]
    %v4687 = vld [vmem:[%s7 + $0xc30] sm:$0xff]
    %v4688 = vld [vmem:[%s7 + $0xc38] sm:$0xff]
    %v4689 = vld [vmem:[%s7 + $0xc40] sm:$0xff]
    %v4690 = vld [vmem:[%s7 + $0xc48] sm:$0xff]
    %v4691 = vld [vmem:[%s7 + $0xc50] sm:$0xff]
    %v4692 = vld [vmem:[%s7 + $0xc58] sm:$0xff]
    %v4693 = vld [vmem:[%s7 + $0xc60] sm:$0xff]
    %v4694 = vld [vmem:[%s7 + $0xc68] sm:$0xff]
    %v4695 = vld [vmem:[%s7 + $0xc70] sm:$0xff]
    %v4696 = vld [vmem:[%s7 + $0xc78] sm:$0xff]
    %v4697 = vld [vmem:[%s7 + $0xc80] sm:$0xff]
    %v4698 = vld [vmem:[%s7 + $0xc88] sm:$0xff]
    %v4699 = vld [vmem:[%s7 + $0xc90] sm:$0xff]
    %v4700 = vld [vmem:[%s7 + $0xc98] sm:$0xff]
    %v4701 = vld [vmem:[%s7 + $0xca0] sm:$0xff]
    %v4702 = vld [vmem:[%s7 + $0xca8] sm:$0xff]
    %v4703 = vld [vmem:[%s7 + $0xcb0] sm:$0xff]
    %v4704 = vld [vmem:[%s7 + $0xcb8] sm:$0xff]
    %v4705 = vld [vmem:[%s7 + $0xcc0] sm:$0xff]
    %v4706 = vld [vmem:[%s7 + $0xcc8] sm:$0xff]
    %v4707 = vld [vmem:[%s7 + $0xcd0] sm:$0xff]
    %v4708 = vld [vmem:[%s7 + $0xcd8] sm:$0xff]
    %v4709 = vld [vmem:[%s7 + $0xce0] sm:$0xff]
    %v4710 = vld [vmem:[%s7 + $0xce8] sm:$0xff]
    %v4711 = vld [vmem:[%s7 + $0xcf0] sm:$0xff]
    %v4712 = vld [vmem:[%s7 + $0xcf8] sm:$0xff]
    %v4713 = vld [vmem:[%s7 + $0xd00] sm:$0xff]
    %v4714 = vld [vmem:[%s7 + $0xd08] sm:$0xff]
    %v4715 = vld [vmem:[%s7 + $0xd10] sm:$0xff]
    %v4716 = vld [vmem:[%s7 + $0xd18] sm:$0xff]
    %v4717 = vld [vmem:[%s7 + $0xd20] sm:$0xff]
    %v4718 = vld [vmem:[%s7 + $0xd28] sm:$0xff]
    %v4719 = vld [vmem:[%s7 + $0xd30] sm:$0xff]
    %v4720 = vld [vmem:[%s7 + $0xd38] sm:$0xff]
    %v4721 = vld [vmem:[%s7 + $0xd40] sm:$0xff]
    %v4722 = vld [vmem:[%s7 + $0xd48] sm:$0xff]
    %v4723 = vld [vmem:[%s7 + $0xd50] sm:$0xff]
    %v4724 = vld [vmem:[%s7 + $0xd58] sm:$0xff]
    %v4725 = vld [vmem:[%s7 + $0xd60] sm:$0xff]
    %v4726 = vld [vmem:[%s7 + $0xd68] sm:$0xff]
    %v4727 = vld [vmem:[%s7 + $0xd70] sm:$0xff]
    %v4728 = vld [vmem:[%s7 + $0xd78] sm:$0xff]
    %v4729 = vld [vmem:[%s7 + $0xd80] sm:$0xff]
    %v4730 = vld [vmem:[%s7 + $0xd88] sm:$0xff]
    %v4731 = vld [vmem:[%s7 + $0xd90] sm:$0xff]
    %v4732 = vld [vmem:[%s7 + $0xd98] sm:$0xff]
    %v4733 = vld [vmem:[%s7 + $0xda0] sm:$0xff]
    %v4734 = vld [vmem:[%s7 + $0xda8] sm:$0xff]
    %v4735 = vld [vmem:[%s7 + $0xdb0] sm:$0xff]
    %v4736 = vld [vmem:[%s7 + $0xdb8] sm:$0xff]
    %v4737 = vld [vmem:[%s7 + $0xdc0] sm:$0xff]
    %v4738 = vld [vmem:[%s7 + $0xdc8] sm:$0xff]
    %v4739 = vld [vmem:[%s7 + $0xdd0] sm:$0xff]
    %v4740 = vld [vmem:[%s7 + $0xdd8] sm:$0xff]
    %v4741 = vld [vmem:[%s7 + $0xde0] sm:$0xff]
    %v4742 = vld [vmem:[%s7 + $0xde8] sm:$0xff]
    %v4743 = vld [vmem:[%s7 + $0xdf0] sm:$0xff]
    %v4744 = vld [vmem:[%s7 + $0xdf8] sm:$0xff]
    %v4745 = vld [vmem:[%s7 + $0xe00] sm:$0xff]
    %v4746 = vld [vmem:[%s7 + $0xe08] sm:$0xff]
    %v4747 = vld [vmem:[%s7 + $0xe10] sm:$0xff]
    %v4748 = vld [vmem:[%s7 + $0xe18] sm:$0xff]
    %v4749 = vld [vmem:[%s7 + $0xe20] sm:$0xff]
    %v4750 = vld [vmem:[%s7 + $0xe28] sm:$0xff]
    %v4751 = vld [vmem:[%s7 + $0xe30] sm:$0xff]
    %v4752 = vld [vmem:[%s7 + $0xe38] sm:$0xff]
    %v4753 = vld [vmem:[%s7 + $0xe40] sm:$0xff]
    %v4754 = vld [vmem:[%s7 + $0xe48] sm:$0xff]
    %v4755 = vld [vmem:[%s7 + $0xe50] sm:$0xff]
    %v4756 = vld [vmem:[%s7 + $0xe58] sm:$0xff]
    %v4757 = vld [vmem:[%s7 + $0xe60] sm:$0xff]
    %v4758 = vld [vmem:[%s7 + $0xe68] sm:$0xff]
    %v4759 = vld [vmem:[%s7 + $0xe70] sm:$0xff]
    %v4760 = vld [vmem:[%s7 + $0xe78] sm:$0xff]
    %v4761 = vld [vmem:[%s7 + $0xe80] sm:$0xff]
    %v4762 = vld [vmem:[%s7 + $0xe88] sm:$0xff]
    %v4763 = vld [vmem:[%s7 + $0xe90] sm:$0xff]
    %v4764 = vld [vmem:[%s7 + $0xe98] sm:$0xff]
    %v4765 = vld [vmem:[%s7 + $0xea0] sm:$0xff]
    %v4766 = vld [vmem:[%s7 + $0xea8] sm:$0xff]
    %v4767 = vld [vmem:[%s7 + $0xeb0] sm:$0xff]
    %v4768 = vld [vmem:[%s7 + $0xeb8] sm:$0xff]
    %v4769 = vld [vmem:[%s7 + $0xec0] sm:$0xff]
    %v4770 = vld [vmem:[%s7 + $0xec8] sm:$0xff]
    %v4771 = vld [vmem:[%s7 + $0xed0] sm:$0xff]
    %v4772 = vld [vmem:[%s7 + $0xed8] sm:$0xff]
    %v4773 = vld [vmem:[%s7 + $0xee0] sm:$0xff]
    %v4774 = vld [vmem:[%s7 + $0xee8] sm:$0xff]
    %v4775 = vld [vmem:[%s7 + $0xef0] sm:$0xff]
    %v4776 = vld [vmem:[%s7 + $0xef8] sm:$0xff]
    %v4777 = vld [vmem:[%s7 + $0xf00] sm:$0xff]
    %v4778 = vld [vmem:[%s7 + $0xf08] sm:$0xff]
    %v4779 = vld [vmem:[%s7 + $0xf10] sm:$0xff]
    %v4780 = vld [vmem:[%s7 + $0xf18] sm:$0xff]
    %v4781 = vld [vmem:[%s7 + $0xf20] sm:$0xff]
    %v4782 = vld [vmem:[%s7 + $0xf28] sm:$0xff]
    %v4783 = vld [vmem:[%s7 + $0xf30] sm:$0xff]
    %v4784 = vld [vmem:[%s7 + $0xf38] sm:$0xff]
    %v4785 = vld [vmem:[%s7 + $0xf40] sm:$0xff]
    %v4786 = vld [vmem:[%s7 + $0xf48] sm:$0xff]
    %v4787 = vld [vmem:[%s7 + $0xf50] sm:$0xff]
    %v4788 = vld [vmem:[%s7 + $0xf58] sm:$0xff]
    %v4789 = vld [vmem:[%s7 + $0xf60] sm:$0xff]
    %v4790 = vld [vmem:[%s7 + $0xf68] sm:$0xff]
    %v4791 = vld [vmem:[%s7 + $0xf70] sm:$0xff]
    %v4792 = vld [vmem:[%s7 + $0xf78] sm:$0xff]
    %v4793 = vld [vmem:[%s7 + $0xf80] sm:$0xff]
    %v4794 = vld [vmem:[%s7 + $0xf88] sm:$0xff]
    %v4795 = vld [vmem:[%s7 + $0xf90] sm:$0xff]
    %v4796 = vld [vmem:[%s7 + $0xf98] sm:$0xff]
    %v4797 = vld [vmem:[%s7 + $0xfa0] sm:$0xff]
    %v4798 = vld [vmem:[%s7 + $0xfa8] sm:$0xff]
    %v4799 = vld [vmem:[%s7 + $0xfb0] sm:$0xff]
    %v4800 = vld [vmem:[%s7 + $0xfb8] sm:$0xff]
    %v4801 = vld [vmem:[%s7 + $0xfc0] sm:$0xff]
    %v4802 = vld [vmem:[%s7 + $0xfc8] sm:$0xff]
    %v4803 = vld [vmem:[%s7 + $0xfd0] sm:$0xff]
    %v4804 = vld [vmem:[%s7 + $0xfd8] sm:$0xff]
    %v4805 = vld [vmem:[%s7 + $0xfe0] sm:$0xff]
    %v4806 = vld [vmem:[%s7 + $0xfe8] sm:$0xff]
    %v4807 = vld [vmem:[%s7 + $0xff0] sm:$0xff]
    %v4808 = vld [vmem:[%s7 + $0xff8] sm:$0xff]
    %v4809 = vld [vmem:[%s8] sm:$0x1]
    %v4811 = vlaneseq
    %v4812 = vshrl.u32 %v4811, 7
    %v4813 = vsub.s32 0, %v4812
    %v4814 = vrot.slane %v4809, %v4813
    %v4824 = vcombine.high %v4289, %v4289
    %v4826 = vunpack.c.l.s4 1983009808
    %v4827 = vunpack.c.0.s8 %v4826
    %v4828 = vlaneseq
    %v4829 = vshrl.u32 %v4828, 7
    %v4830 = vsub.s32 %v4827, %v4829
    %v4831 = vrot.slane %v4289, %v4830
    %v4833 = vunpack.c.l.s4 1983009808
    %v4834 = vunpack.c.0.s8 %v4833
    %v4835 = vlaneseq
    %v4836 = vshrl.u32 %v4835, 7
    %v4837 = vsub.s32 %v4834, %v4836
    %v4838 = vrot.slane %v4824, %v4837
    %v4839 = vcombine.high %v4831, %v4831
    %v4840 = vcombine.high %v4838, %v4838
    %v4841 = vcombine.high %v4290, %v4290
    %v4843 = vunpack.c.l.s4 1983009808
    %v4844 = vunpack.c.0.s8 %v4843
    %v4845 = vlaneseq
    %v4846 = vshrl.u32 %v4845, 7
    %v4847 = vsub.s32 %v4844, %v4846
    %v4848 = vrot.slane %v4290, %v4847
    %v4850 = vunpack.c.l.s4 1983009808
    %v4851 = vunpack.c.0.s8 %v4850
    %v4852 = vlaneseq
    %v4853 = vshrl.u32 %v4852, 7
    %v4854 = vsub.s32 %v4851, %v4853
    %v4855 = vrot.slane %v4841, %v4854
    %v4856 = vcombine.high %v4848, %v4848
    %v4857 = vcombine.high %v4855, %v4855
    %v4858 = vcombine.high %v4291, %v4291
    %v4860 = vunpack.c.l.s4 1983009808
    %v4861 = vunpack.c.0.s8 %v4860
    %v4862 = vlaneseq
    %v4863 = vshrl.u32 %v4862, 7
    %v4864 = vsub.s32 %v4861, %v4863
    %v4865 = vrot.slane %v4291, %v4864
    %v4867 = vunpack.c.l.s4 1983009808
    %v4868 = vunpack.c.0.s8 %v4867
    %v4869 = vlaneseq
    %v4870 = vshrl.u32 %v4869, 7
    %v4871 = vsub.s32 %v4868, %v4870
    %v4872 = vrot.slane %v4858, %v4871
    %v4873 = vcombine.high %v4865, %v4865
    %v4874 = vcombine.high %v4872, %v4872
    %v4875 = vcombine.high %v4292, %v4292
    %v4877 = vunpack.c.l.s4 1983009808
    %v4878 = vunpack.c.0.s8 %v4877
    %v4879 = vlaneseq
    %v4880 = vshrl.u32 %v4879, 7
    %v4881 = vsub.s32 %v4878, %v4880
    %v4882 = vrot.slane %v4292, %v4881
    %v4884 = vunpack.c.l.s4 1983009808
    %v4885 = vunpack.c.0.s8 %v4884
    %v4886 = vlaneseq
    %v4887 = vshrl.u32 %v4886, 7
    %v4888 = vsub.s32 %v4885, %v4887
    %v4889 = vrot.slane %v4875, %v4888
    %v4890 = vcombine.high %v4882, %v4882
    %v4891 = vcombine.high %v4889, %v4889
    %v4892 = vcombine.high %v4293, %v4293
    %v4894 = vunpack.c.l.s4 1983009808
    %v4895 = vunpack.c.0.s8 %v4894
    %v4896 = vlaneseq
    %v4897 = vshrl.u32 %v4896, 7
    %v4898 = vsub.s32 %v4895, %v4897
    %v4899 = vrot.slane %v4293, %v4898
    %v4901 = vunpack.c.l.s4 1983009808
    %v4902 = vunpack.c.0.s8 %v4901
    %v4903 = vlaneseq
    %v4904 = vshrl.u32 %v4903, 7
    %v4905 = vsub.s32 %v4902, %v4904
    %v4906 = vrot.slane %v4892, %v4905
    %v4907 = vcombine.high %v4899, %v4899
    %v4908 = vcombine.high %v4906, %v4906
    %v4909 = vcombine.high %v4294, %v4294
    %v4911 = vunpack.c.l.s4 1983009808
    %v4912 = vunpack.c.0.s8 %v4911
    %v4913 = vlaneseq
    %v4914 = vshrl.u32 %v4913, 7
    %v4915 = vsub.s32 %v4912, %v4914
    %v4916 = vrot.slane %v4294, %v4915
    %v4918 = vunpack.c.l.s4 1983009808
    %v4919 = vunpack.c.0.s8 %v4918
    %v4920 = vlaneseq
    %v4921 = vshrl.u32 %v4920, 7
    %v4922 = vsub.s32 %v4919, %v4921
    %v4923 = vrot.slane %v4909, %v4922
    %v4924 = vcombine.high %v4916, %v4916
    %v4925 = vcombine.high %v4923, %v4923
    %v4926 = vcombine.high %v4295, %v4295
    %v4928 = vunpack.c.l.s4 1983009808
    %v4929 = vunpack.c.0.s8 %v4928
    %v4930 = vlaneseq
    %v4931 = vshrl.u32 %v4930, 7
    %v4932 = vsub.s32 %v4929, %v4931
    %v4933 = vrot.slane %v4295, %v4932
    %v4935 = vunpack.c.l.s4 1983009808
    %v4936 = vunpack.c.0.s8 %v4935
    %v4937 = vlaneseq
    %v4938 = vshrl.u32 %v4937, 7
    %v4939 = vsub.s32 %v4936, %v4938
    %v4940 = vrot.slane %v4926, %v4939
    %v4941 = vcombine.high %v4933, %v4933
    %v4942 = vcombine.high %v4940, %v4940
    %v4943 = vcombine.high %v4296, %v4296
    %v4945 = vunpack.c.l.s4 1983009808
    %v4946 = vunpack.c.0.s8 %v4945
    %v4947 = vlaneseq
    %v4948 = vshrl.u32 %v4947, 7
    %v4949 = vsub.s32 %v4946, %v4948
    %v4950 = vrot.slane %v4296, %v4949
    %v4952 = vunpack.c.l.s4 1983009808
    %v4953 = vunpack.c.0.s8 %v4952
    %v4954 = vlaneseq
    %v4955 = vshrl.u32 %v4954, 7
    %v4956 = vsub.s32 %v4953, %v4955
    %v4957 = vrot.slane %v4943, %v4956
    %v4958 = vcombine.high %v4950, %v4950
    %v4959 = vcombine.high %v4957, %v4957
    %4992 = vmatprep.subr.mxu0 0.0
    %4993 = vmatpush1.msra.mxu0 %v4297
    %4994 = vmatprep.subr.mxu0 0.0
    %4995 = vmatpush1.msra.mxu0 %v4298
    %4996 = vmatprep.subr.mxu0 0.0
    %4997 = vmatpush1.msra.mxu0 %v4299
    %4998 = vmatprep.subr.mxu0 0.0
    %4999 = vmatpush1.msra.mxu0 %v4300
    %5000 = vmatprep.subr.mxu0 0.0
    %5001 = vmatpush1.msra.mxu0 %v4301
    %5002 = vmatprep.subr.mxu0 0.0
    %5003 = vmatpush1.msra.mxu0 %v4302
    %5004 = vmatprep.subr.mxu0 0.0
    %5005 = vmatpush1.msra.mxu0 %v4303
    %5006 = vmatprep.subr.mxu0 0.0
    %5007 = vmatpush1.msra.mxu0 %v4304
    %5008 = vmatprep.subr.mxu0 0.0
    %5009 = vmatpush1.msra.mxu0 %v4305
    %5010 = vmatprep.subr.mxu0 0.0
    %5011 = vmatpush1.msra.mxu0 %v4306
    %5012 = vmatprep.subr.mxu0 0.0
    %5013 = vmatpush1.msra.mxu0 %v4307
    %5014 = vmatprep.subr.mxu0 0.0
    %5015 = vmatpush1.msra.mxu0 %v4308
    %5016 = vmatprep.subr.mxu0 0.0
    %5017 = vmatpush1.msra.mxu0 %v4309
    %5018 = vmatprep.subr.mxu0 0.0
    %5019 = vmatpush1.msra.mxu0 %v4310
    %5020 = vmatprep.subr.mxu0 0.0
    %5021 = vmatpush1.msra.mxu0 %v4311
    %5022 = vmatprep.subr.mxu0 0.0
    %5023 = vmatpush1.msra.mxu0 %v4312
    %5024 = vmatprep.subr.mxu0 0.0
    %5025 = vmatpush1.msra.mxu0 %v4313
    %5026 = vmatprep.subr.mxu0 0.0
    %5027 = vmatpush1.msra.mxu0 %v4314
    %5028 = vmatprep.subr.mxu0 0.0
    %5029 = vmatpush1.msra.mxu0 %v4315
    %5030 = vmatprep.subr.mxu0 0.0
    %5031 = vmatpush1.msra.mxu0 %v4316
    %5032 = vmatprep.subr.mxu0 0.0
    %5033 = vmatpush1.msra.mxu0 %v4317
    %5034 = vmatprep.subr.mxu0 0.0
    %5035 = vmatpush1.msra.mxu0 %v4318
    %5036 = vmatprep.subr.mxu0 0.0
    %5037 = vmatpush1.msra.mxu0 %v4319
    %5038 = vmatprep.subr.mxu0 0.0
    %5039 = vmatpush1.msra.mxu0 %v4320
    %5040 = vmatprep.subr.mxu0 0.0
    %5041 = vmatpush1.msra.mxu0 %v4321
    %5042 = vmatprep.subr.mxu0 0.0
    %5043 = vmatpush1.msra.mxu0 %v4322
    %5044 = vmatprep.subr.mxu0 0.0
    %5045 = vmatpush1.msra.mxu0 %v4323
    %5046 = vmatprep.subr.mxu0 0.0
    %5047 = vmatpush1.msra.mxu0 %v4324
    %5048 = vmatprep.subr.mxu0 0.0
    %5049 = vmatpush1.msra.mxu0 %v4325
    %5050 = vmatprep.subr.mxu0 0.0
    %5051 = vmatpush1.msra.mxu0 %v4326
    %5052 = vmatprep.subr.mxu0 0.0
    %5053 = vmatpush1.msra.mxu0 %v4327
    %5054 = vmatprep.subr.mxu0 0.0
    %5055 = vmatpush1.msra.mxu0 %v4328
    %5056 = vmatprep.mubr.f32.mxu0 %v4839
    %5057 = vmatmul.mubr.f32.gmra.mrb[0].mxu0 %v4831
    %v5058 = vpop.f32.mrb[0].mxu0
    %v5059 = vadd.f32 %v4814, %v5058
    %v5060 = vpop.f32.mrb[0].mxu0
    %5061 = vdwg.mxu0
    %5062 = vmatprep.subr.mxu0 0.0
    %5063 = vmatpush1.msra.mxu0 %v4329
    %5064 = vmatprep.subr.mxu0 0.0
    %5065 = vmatpush1.msra.mxu0 %v4330
    %5066 = vmatprep.subr.mxu0 0.0
    %5067 = vmatpush1.msra.mxu0 %v4331
    %5068 = vmatprep.subr.mxu0 0.0
    %5069 = vmatpush1.msra.mxu0 %v4332
    %5070 = vmatprep.subr.mxu0 0.0
    %5071 = vmatpush1.msra.mxu0 %v4333
    %5072 = vmatprep.subr.mxu0 0.0
    %5073 = vmatpush1.msra.mxu0 %v4334
    %5074 = vmatprep.subr.mxu0 0.0
    %5075 = vmatpush1.msra.mxu0 %v4335
    %5076 = vmatprep.subr.mxu0 0.0
    %5077 = vmatpush1.msra.mxu0 %v4336
    %5078 = vmatprep.subr.mxu0 0.0
    %5079 = vmatpush1.msra.mxu0 %v4337
    %5080 = vmatprep.subr.mxu0 0.0
    %5081 = vmatpush1.msra.mxu0 %v4338
    %5082 = vmatprep.subr.mxu0 0.0
    %5083 = vmatpush1.msra.mxu0 %v4339
    %5084 = vmatprep.subr.mxu0 0.0
    %5085 = vmatpush1.msra.mxu0 %v4340
    %5086 = vmatprep.subr.mxu0 0.0
    %5087 = vmatpush1.msra.mxu0 %v4341
    %5088 = vmatprep.subr.mxu0 0.0
    %5089 = vmatpush1.msra.mxu0 %v4342
    %5090 = vmatprep.subr.mxu0 0.0
    %5091 = vmatpush1.msra.mxu0 %v4343
    %5092 = vmatprep.subr.mxu0 0.0
    %5093 = vmatpush1.msra.mxu0 %v4344
    %5094 = vmatprep.subr.mxu0 0.0
    %5095 = vmatpush1.msra.mxu0 %v4345
    %5096 = vmatprep.subr.mxu0 0.0
    %5097 = vmatpush1.msra.mxu0 %v4346
    %5098 = vmatprep.subr.mxu0 0.0
    %5099 = vmatpush1.msra.mxu0 %v4347
    %5100 = vmatprep.subr.mxu0 0.0
    %5101 = vmatpush1.msra.mxu0 %v4348
    %5102 = vmatprep.subr.mxu0 0.0
    %5103 = vmatpush1.msra.mxu0 %v4349
    %5104 = vmatprep.subr.mxu0 0.0
    %5105 = vmatpush1.msra.mxu0 %v4350
    %5106 = vmatprep.subr.mxu0 0.0
    %5107 = vmatpush1.msra.mxu0 %v4351
    %5108 = vmatprep.subr.mxu0 0.0
    %5109 = vmatpush1.msra.mxu0 %v4352
    %5110 = vmatprep.subr.mxu0 0.0
    %5111 = vmatpush1.msra.mxu0 %v4353
    %5112 = vmatprep.subr.mxu0 0.0
    %5113 = vmatpush1.msra.mxu0 %v4354
    %5114 = vmatprep.subr.mxu0 0.0
    %5115 = vmatpush1.msra.mxu0 %v4355
    %5116 = vmatprep.subr.mxu0 0.0
    %5117 = vmatpush1.msra.mxu0 %v4356
    %5118 = vmatprep.subr.mxu0 0.0
    %5119 = vmatpush1.msra.mxu0 %v4357
    %5120 = vmatprep.subr.mxu0 0.0
    %5121 = vmatpush1.msra.mxu0 %v4358
    %5122 = vmatprep.subr.mxu0 0.0
    %5123 = vmatpush1.msra.mxu0 %v4359
    %5124 = vmatprep.subr.mxu0 0.0
    %5125 = vmatpush1.msra.mxu0 %v4360
    %5126 = vmatprep.mubr.f32.mxu0 %v4840
    %5127 = vmatmul.mubr.f32.gmra.mrb[0].mxu0 %v4838
    %v5128 = vpop.f32.mrb[0].mxu0
    %v5129 = vadd.f32 %v5059, %v5128
    %v5130 = vpop.f32.mrb[0].mxu0
    %5131 = vdwg.mxu0
    %5132 = vmatprep.subr.mxu0 0.0
    %5133 = vmatpush1.msra.mxu0 %v4361
    %5134 = vmatprep.subr.mxu0 0.0
    %5135 = vmatpush1.msra.mxu0 %v4362
    %5136 = vmatprep.subr.mxu0 0.0
    %5137 = vmatpush1.msra.mxu0 %v4363
    %5138 = vmatprep.subr.mxu0 0.0
    %5139 = vmatpush1.msra.mxu0 %v4364
    %5140 = vmatprep.subr.mxu0 0.0
    %5141 = vmatpush1.msra.mxu0 %v4365
    %5142 = vmatprep.subr.mxu0 0.0
    %5143 = vmatpush1.msra.mxu0 %v4366
    %5144 = vmatprep.subr.mxu0 0.0
    %5145 = vmatpush1.msra.mxu0 %v4367
    %5146 = vmatprep.subr.mxu0 0.0
    %5147 = vmatpush1.msra.mxu0 %v4368
    %5148 = vmatprep.subr.mxu0 0.0
    %5149 = vmatpush1.msra.mxu0 %v4369
    %5150 = vmatprep.subr.mxu0 0.0
    %5151 = vmatpush1.msra.mxu0 %v4370
    %5152 = vmatprep.subr.mxu0 0.0
    %5153 = vmatpush1.msra.mxu0 %v4371
    %5154 = vmatprep.subr.mxu0 0.0
    %5155 = vmatpush1.msra.mxu0 %v4372
    %5156 = vmatprep.subr.mxu0 0.0
    %5157 = vmatpush1.msra.mxu0 %v4373
    %5158 = vmatprep.subr.mxu0 0.0
    %5159 = vmatpush1.msra.mxu0 %v4374
    %5160 = vmatprep.subr.mxu0 0.0
    %5161 = vmatpush1.msra.mxu0 %v4375
    %5162 = vmatprep.subr.mxu0 0.0
    %5163 = vmatpush1.msra.mxu0 %v4376
    %5164 = vmatprep.subr.mxu0 0.0
    %5165 = vmatpush1.msra.mxu0 %v4377
    %5166 = vmatprep.subr.mxu0 0.0
    %5167 = vmatpush1.msra.mxu0 %v4378
    %5168 = vmatprep.subr.mxu0 0.0
    %5169 = vmatpush1.msra.mxu0 %v4379
    %5170 = vmatprep.subr.mxu0 0.0
    %5171 = vmatpush1.msra.mxu0 %v4380
    %5172 = vmatprep.subr.mxu0 0.0
    %5173 = vmatpush1.msra.mxu0 %v4381
    %5174 = vmatprep.subr.mxu0 0.0
    %5175 = vmatpush1.msra.mxu0 %v4382
    %5176 = vmatprep.subr.mxu0 0.0
    %5177 = vmatpush1.msra.mxu0 %v4383
    %5178 = vmatprep.subr.mxu0 0.0
    %5179 = vmatpush1.msra.mxu0 %v4384
    %5180 = vmatprep.subr.mxu0 0.0
    %5181 = vmatpush1.msra.mxu0 %v4385
    %5182 = vmatprep.subr.mxu0 0.0
    %5183 = vmatpush1.msra.mxu0 %v4386
    %5184 = vmatprep.subr.mxu0 0.0
    %5185 = vmatpush1.msra.mxu0 %v4387
    %5186 = vmatprep.subr.mxu0 0.0
    %5187 = vmatpush1.msra.mxu0 %v4388
    %5188 = vmatprep.subr.mxu0 0.0
    %5189 = vmatpush1.msra.mxu0 %v4389
    %5190 = vmatprep.subr.mxu0 0.0
    %5191 = vmatpush1.msra.mxu0 %v4390
    %5192 = vmatprep.subr.mxu0 0.0
    %5193 = vmatpush1.msra.mxu0 %v4391
    %5194 = vmatprep.subr.mxu0 0.0
    %5195 = vmatpush1.msra.mxu0 %v4392
    %5196 = vmatprep.mubr.f32.mxu0 %v4856
    %5197 = vmatmul.mubr.f32.gmra.mrb[0].mxu0 %v4848
    %v5198 = vpop.f32.mrb[0].mxu0
    %v5199 = vadd.f32 %v5129, %v5198
    %v5200 = vpop.f32.mrb[0].mxu0
    %5201 = vdwg.mxu0
    %5202 = vmatprep.subr.mxu0 0.0
    %5203 = vmatpush1.msra.mxu0 %v4393
    %5204 = vmatprep.subr.mxu0 0.0
    %5205 = vmatpush1.msra.mxu0 %v4394
    %5206 = vmatprep.subr.mxu0 0.0
    %5207 = vmatpush1.msra.mxu0 %v4395
    %5208 = vmatprep.subr.mxu0 0.0
    %5209 = vmatpush1.msra.mxu0 %v4396
    %5210 = vmatprep.subr.mxu0 0.0
    %5211 = vmatpush1.msra.mxu0 %v4397
    %5212 = vmatprep.subr.mxu0 0.0
    %5213 = vmatpush1.msra.mxu0 %v4398
    %5214 = vmatprep.subr.mxu0 0.0
    %5215 = vmatpush1.msra.mxu0 %v4399
    %5216 = vmatprep.subr.mxu0 0.0
    %5217 = vmatpush1.msra.mxu0 %v4400
    %5218 = vmatprep.subr.mxu0 0.0
    %5219 = vmatpush1.msra.mxu0 %v4401
    %5220 = vmatprep.subr.mxu0 0.0
    %5221 = vmatpush1.msra.mxu0 %v4402
    %5222 = vmatprep.subr.mxu0 0.0
    %5223 = vmatpush1.msra.mxu0 %v4403
    %5224 = vmatprep.subr.mxu0 0.0
    %5225 = vmatpush1.msra.mxu0 %v4404
    %5226 = vmatprep.subr.mxu0 0.0
    %5227 = vmatpush1.msra.mxu0 %v4405
    %5228 = vmatprep.subr.mxu0 0.0
    %5229 = vmatpush1.msra.mxu0 %v4406
    %5230 = vmatprep.subr.mxu0 0.0
    %5231 = vmatpush1.msra.mxu0 %v4407
    %5232 = vmatprep.subr.mxu0 0.0
    %5233 = vmatpush1.msra.mxu0 %v4408
    %5234 = vmatprep.subr.mxu0 0.0
    %5235 = vmatpush1.msra.mxu0 %v4409
    %5236 = vmatprep.subr.mxu0 0.0
    %5237 = vmatpush1.msra.mxu0 %v4410
    %5238 = vmatprep.subr.mxu0 0.0
    %5239 = vmatpush1.msra.mxu0 %v4411
    %5240 = vmatprep.subr.mxu0 0.0
    %5241 = vmatpush1.msra.mxu0 %v4412
    %5242 = vmatprep.subr.mxu0 0.0
    %5243 = vmatpush1.msra.mxu0 %v4413
    %5244 = vmatprep.subr.mxu0 0.0
    %5245 = vmatpush1.msra.mxu0 %v4414
    %5246 = vmatprep.subr.mxu0 0.0
    %5247 = vmatpush1.msra.mxu0 %v4415
    %5248 = vmatprep.subr.mxu0 0.0
    %5249 = vmatpush1.msra.mxu0 %v4416
    %5250 = vmatprep.subr.mxu0 0.0
    %5251 = vmatpush1.msra.mxu0 %v4417
    %5252 = vmatprep.subr.mxu0 0.0
    %5253 = vmatpush1.msra.mxu0 %v4418
    %5254 = vmatprep.subr.mxu0 0.0
    %5255 = vmatpush1.msra.mxu0 %v4419
    %5256 = vmatprep.subr.mxu0 0.0
    %5257 = vmatpush1.msra.mxu0 %v4420
    %5258 = vmatprep.subr.mxu0 0.0
    %5259 = vmatpush1.msra.mxu0 %v4421
    %5260 = vmatprep.subr.mxu0 0.0
    %5261 = vmatpush1.msra.mxu0 %v4422
    %5262 = vmatprep.subr.mxu0 0.0
    %5263 = vmatpush1.msra.mxu0 %v4423
    %5264 = vmatprep.subr.mxu0 0.0
    %5265 = vmatpush1.msra.mxu0 %v4424
    %5266 = vmatprep.mubr.f32.mxu0 %v4857
    %5267 = vmatmul.mubr.f32.gmra.mrb[0].mxu0 %v4855
    %v5268 = vpop.f32.mrb[0].mxu0
    %v5269 = vadd.f32 %v5199, %v5268
    %v5270 = vpop.f32.mrb[0].mxu0
    %5271 = vdwg.mxu0
    %5272 = vmatprep.subr.mxu0 0.0
    %5273 = vmatpush1.msra.mxu0 %v4425
    %5274 = vmatprep.subr.mxu0 0.0
    %5275 = vmatpush1.msra.mxu0 %v4426
    %5276 = vmatprep.subr.mxu0 0.0
    %5277 = vmatpush1.msra.mxu0 %v4427
    %5278 = vmatprep.subr.mxu0 0.0
    %5279 = vmatpush1.msra.mxu0 %v4428
    %5280 = vmatprep.subr.mxu0 0.0
    %5281 = vmatpush1.msra.mxu0 %v4429
    %5282 = vmatprep.subr.mxu0 0.0
    %5283 = vmatpush1.msra.mxu0 %v4430
    %5284 = vmatprep.subr.mxu0 0.0
    %5285 = vmatpush1.msra.mxu0 %v4431
    %5286 = vmatprep.subr.mxu0 0.0
    %5287 = vmatpush1.msra.mxu0 %v4432
    %5288 = vmatprep.subr.mxu0 0.0
    %5289 = vmatpush1.msra.mxu0 %v4433
    %5290 = vmatprep.subr.mxu0 0.0
    %5291 = vmatpush1.msra.mxu0 %v4434
    %5292 = vmatprep.subr.mxu0 0.0
    %5293 = vmatpush1.msra.mxu0 %v4435
    %5294 = vmatprep.subr.mxu0 0.0
    %5295 = vmatpush1.msra.mxu0 %v4436
    %5296 = vmatprep.subr.mxu0 0.0
    %5297 = vmatpush1.msra.mxu0 %v4437
    %5298 = vmatprep.subr.mxu0 0.0
    %5299 = vmatpush1.msra.mxu0 %v4438
    %5300 = vmatprep.subr.mxu0 0.0
    %5301 = vmatpush1.msra.mxu0 %v4439
    %5302 = vmatprep.subr.mxu0 0.0
    %5303 = vmatpush1.msra.mxu0 %v4440
    %5304 = vmatprep.subr.mxu0 0.0
    %5305 = vmatpush1.msra.mxu0 %v4441
    %5306 = vmatprep.subr.mxu0 0.0
    %5307 = vmatpush1.msra.mxu0 %v4442
    %5308 = vmatprep.subr.mxu0 0.0
    %5309 = vmatpush1.msra.mxu0 %v4443
    %5310 = vmatprep.subr.mxu0 0.0
    %5311 = vmatpush1.msra.mxu0 %v4444
    %5312 = vmatprep.subr.mxu0 0.0
    %5313 = vmatpush1.msra.mxu0 %v4445
    %5314 = vmatprep.subr.mxu0 0.0
    %5315 = vmatpush1.msra.mxu0 %v4446
    %5316 = vmatprep.subr.mxu0 0.0
    %5317 = vmatpush1.msra.mxu0 %v4447
    %5318 = vmatprep.subr.mxu0 0.0
    %5319 = vmatpush1.msra.mxu0 %v4448
    %5320 = vmatprep.subr.mxu0 0.0
    %5321 = vmatpush1.msra.mxu0 %v4449
    %5322 = vmatprep.subr.mxu0 0.0
    %5323 = vmatpush1.msra.mxu0 %v4450
    %5324 = vmatprep.subr.mxu0 0.0
    %5325 = vmatpush1.msra.mxu0 %v4451
    %5326 = vmatprep.subr.mxu0 0.0
    %5327 = vmatpush1.msra.mxu0 %v4452
    %5328 = vmatprep.subr.mxu0 0.0
    %5329 = vmatpush1.msra.mxu0 %v4453
    %5330 = vmatprep.subr.mxu0 0.0
    %5331 = vmatpush1.msra.mxu0 %v4454
    %5332 = vmatprep.subr.mxu0 0.0
    %5333 = vmatpush1.msra.mxu0 %v4455
    %5334 = vmatprep.subr.mxu0 0.0
    %5335 = vmatpush1.msra.mxu0 %v4456
    %5336 = vmatprep.mubr.f32.mxu0 %v4873
    %5337 = vmatmul.mubr.f32.gmra.mrb[0].mxu0 %v4865
    %v5338 = vpop.f32.mrb[0].mxu0
    %v5339 = vadd.f32 %v5269, %v5338
    %v5340 = vpop.f32.mrb[0].mxu0
    %5341 = vdwg.mxu0
    %5342 = vmatprep.subr.mxu0 0.0
    %5343 = vmatpush1.msra.mxu0 %v4457
    %5344 = vmatprep.subr.mxu0 0.0
    %5345 = vmatpush1.msra.mxu0 %v4458
    %5346 = vmatprep.subr.mxu0 0.0
    %5347 = vmatpush1.msra.mxu0 %v4459
    %5348 = vmatprep.subr.mxu0 0.0
    %5349 = vmatpush1.msra.mxu0 %v4460
    %5350 = vmatprep.subr.mxu0 0.0
    %5351 = vmatpush1.msra.mxu0 %v4461
    %5352 = vmatprep.subr.mxu0 0.0
    %5353 = vmatpush1.msra.mxu0 %v4462
    %5354 = vmatprep.subr.mxu0 0.0
    %5355 = vmatpush1.msra.mxu0 %v4463
    %5356 = vmatprep.subr.mxu0 0.0
    %5357 = vmatpush1.msra.mxu0 %v4464
    %5358 = vmatprep.subr.mxu0 0.0
    %5359 = vmatpush1.msra.mxu0 %v4465
    %5360 = vmatprep.subr.mxu0 0.0
    %5361 = vmatpush1.msra.mxu0 %v4466
    %5362 = vmatprep.subr.mxu0 0.0
    %5363 = vmatpush1.msra.mxu0 %v4467
    %5364 = vmatprep.subr.mxu0 0.0
    %5365 = vmatpush1.msra.mxu0 %v4468
    %5366 = vmatprep.subr.mxu0 0.0
    %5367 = vmatpush1.msra.mxu0 %v4469
    %5368 = vmatprep.subr.mxu0 0.0
    %5369 = vmatpush1.msra.mxu0 %v4470
    %5370 = vmatprep.subr.mxu0 0.0
    %5371 = vmatpush1.msra.mxu0 %v4471
    %5372 = vmatprep.subr.mxu0 0.0
    %5373 = vmatpush1.msra.mxu0 %v4472
    %5374 = vmatprep.subr.mxu0 0.0
    %5375 = vmatpush1.msra.mxu0 %v4473
    %5376 = vmatprep.subr.mxu0 0.0
    %5377 = vmatpush1.msra.mxu0 %v4474
    %5378 = vmatprep.subr.mxu0 0.0
    %5379 = vmatpush1.msra.mxu0 %v4475
    %5380 = vmatprep.subr.mxu0 0.0
    %5381 = vmatpush1.msra.mxu0 %v4476
    %5382 = vmatprep.subr.mxu0 0.0
    %5383 = vmatpush1.msra.mxu0 %v4477
    %5384 = vmatprep.subr.mxu0 0.0
    %5385 = vmatpush1.msra.mxu0 %v4478
    %5386 = vmatprep.subr.mxu0 0.0
    %5387 = vmatpush1.msra.mxu0 %v4479
    %5388 = vmatprep.subr.mxu0 0.0
    %5389 = vmatpush1.msra.mxu0 %v4480
    %5390 = vmatprep.subr.mxu0 0.0
    %5391 = vmatpush1.msra.mxu0 %v4481
    %5392 = vmatprep.subr.mxu0 0.0
    %5393 = vmatpush1.msra.mxu0 %v4482
    %5394 = vmatprep.subr.mxu0 0.0
    %5395 = vmatpush1.msra.mxu0 %v4483
    %5396 = vmatprep.subr.mxu0 0.0
    %5397 = vmatpush1.msra.mxu0 %v4484
    %5398 = vmatprep.subr.mxu0 0.0
    %5399 = vmatpush1.msra.mxu0 %v4485
    %5400 = vmatprep.subr.mxu0 0.0
    %5401 = vmatpush1.msra.mxu0 %v4486
    %5402 = vmatprep.subr.mxu0 0.0
    %5403 = vmatpush1.msra.mxu0 %v4487
    %5404 = vmatprep.subr.mxu0 0.0
    %5405 = vmatpush1.msra.mxu0 %v4488
    %5406 = vmatprep.mubr.f32.mxu0 %v4874
    %5407 = vmatmul.mubr.f32.gmra.mrb[0].mxu0 %v4872
    %v5408 = vpop.f32.mrb[0].mxu0
    %v5409 = vadd.f32 %v5339, %v5408
    %v5410 = vpop.f32.mrb[0].mxu0
    %5411 = vdwg.mxu0
    %5412 = vmatprep.subr.mxu0 0.0
    %5413 = vmatpush1.msra.mxu0 %v4489
    %5414 = vmatprep.subr.mxu0 0.0
    %5415 = vmatpush1.msra.mxu0 %v4490
    %5416 = vmatprep.subr.mxu0 0.0
    %5417 = vmatpush1.msra.mxu0 %v4491
    %5418 = vmatprep.subr.mxu0 0.0
    %5419 = vmatpush1.msra.mxu0 %v4492
    %5420 = vmatprep.subr.mxu0 0.0
    %5421 = vmatpush1.msra.mxu0 %v4493
    %5422 = vmatprep.subr.mxu0 0.0
    %5423 = vmatpush1.msra.mxu0 %v4494
    %5424 = vmatprep.subr.mxu0 0.0
    %5425 = vmatpush1.msra.mxu0 %v4495
    %5426 = vmatprep.subr.mxu0 0.0
    %5427 = vmatpush1.msra.mxu0 %v4496
    %5428 = vmatprep.subr.mxu0 0.0
    %5429 = vmatpush1.msra.mxu0 %v4497
    %5430 = vmatprep.subr.mxu0 0.0
    %5431 = vmatpush1.msra.mxu0 %v4498
    %5432 = vmatprep.subr.mxu0 0.0
    %5433 = vmatpush1.msra.mxu0 %v4499
    %5434 = vmatprep.subr.mxu0 0.0
    %5435 = vmatpush1.msra.mxu0 %v4500
    %5436 = vmatprep.subr.mxu0 0.0
    %5437 = vmatpush1.msra.mxu0 %v4501
    %5438 = vmatprep.subr.mxu0 0.0
    %5439 = vmatpush1.msra.mxu0 %v4502
    %5440 = vmatprep.subr.mxu0 0.0
    %5441 = vmatpush1.msra.mxu0 %v4503
    %5442 = vmatprep.subr.mxu0 0.0
    %5443 = vmatpush1.msra.mxu0 %v4504
    %5444 = vmatprep.subr.mxu0 0.0
    %5445 = vmatpush1.msra.mxu0 %v4505
    %5446 = vmatprep.subr.mxu0 0.0
    %5447 = vmatpush1.msra.mxu0 %v4506
    %5448 = vmatprep.subr.mxu0 0.0
    %5449 = vmatpush1.msra.mxu0 %v4507
    %5450 = vmatprep.subr.mxu0 0.0
    %5451 = vmatpush1.msra.mxu0 %v4508
    %5452 = vmatprep.subr.mxu0 0.0
    %5453 = vmatpush1.msra.mxu0 %v4509
    %5454 = vmatprep.subr.mxu0 0.0
    %5455 = vmatpush1.msra.mxu0 %v4510
    %5456 = vmatprep.subr.mxu0 0.0
    %5457 = vmatpush1.msra.mxu0 %v4511
    %5458 = vmatprep.subr.mxu0 0.0
    %5459 = vmatpush1.msra.mxu0 %v4512
    %5460 = vmatprep.subr.mxu0 0.0
    %5461 = vmatpush1.msra.mxu0 %v4513
    %5462 = vmatprep.subr.mxu0 0.0
    %5463 = vmatpush1.msra.mxu0 %v4514
    %5464 = vmatprep.subr.mxu0 0.0
    %5465 = vmatpush1.msra.mxu0 %v4515
    %5466 = vmatprep.subr.mxu0 0.0
    %5467 = vmatpush1.msra.mxu0 %v4516
    %5468 = vmatprep.subr.mxu0 0.0
    %5469 = vmatpush1.msra.mxu0 %v4517
    %5470 = vmatprep.subr.mxu0 0.0
    %5471 = vmatpush1.msra.mxu0 %v4518
    %5472 = vmatprep.subr.mxu0 0.0
    %5473 = vmatpush1.msra.mxu0 %v4519
    %5474 = vmatprep.subr.mxu0 0.0
    %5475 = vmatpush1.msra.mxu0 %v4520
    %5476 = vmatprep.mubr.f32.mxu0 %v4890
    %5477 = vmatmul.mubr.f32.gmra.mrb[0].mxu0 %v4882
    %v5478 = vpop.f32.mrb[0].mxu0
    %v5479 = vadd.f32 %v5409, %v5478
    %v5480 = vpop.f32.mrb[0].mxu0
    %5481 = vdwg.mxu0
    %5482 = vmatprep.subr.mxu0 0.0
    %5483 = vmatpush1.msra.mxu0 %v4521
    %5484 = vmatprep.subr.mxu0 0.0
    %5485 = vmatpush1.msra.mxu0 %v4522
    %5486 = vmatprep.subr.mxu0 0.0
    %5487 = vmatpush1.msra.mxu0 %v4523
    %5488 = vmatprep.subr.mxu0 0.0
    %5489 = vmatpush1.msra.mxu0 %v4524
    %5490 = vmatprep.subr.mxu0 0.0
    %5491 = vmatpush1.msra.mxu0 %v4525
    %5492 = vmatprep.subr.mxu0 0.0
    %5493 = vmatpush1.msra.mxu0 %v4526
    %5494 = vmatprep.subr.mxu0 0.0
    %5495 = vmatpush1.msra.mxu0 %v4527
    %5496 = vmatprep.subr.mxu0 0.0
    %5497 = vmatpush1.msra.mxu0 %v4528
    %5498 = vmatprep.subr.mxu0 0.0
    %5499 = vmatpush1.msra.mxu0 %v4529
    %5500 = vmatprep.subr.mxu0 0.0
    %5501 = vmatpush1.msra.mxu0 %v4530
    %5502 = vmatprep.subr.mxu0 0.0
    %5503 = vmatpush1.msra.mxu0 %v4531
    %5504 = vmatprep.subr.mxu0 0.0
    %5505 = vmatpush1.msra.mxu0 %v4532
    %5506 = vmatprep.subr.mxu0 0.0
    %5507 = vmatpush1.msra.mxu0 %v4533
    %5508 = vmatprep.subr.mxu0 0.0
    %5509 = vmatpush1.msra.mxu0 %v4534
    %5510 = vmatprep.subr.mxu0 0.0
    %5511 = vmatpush1.msra.mxu0 %v4535
    %5512 = vmatprep.subr.mxu0 0.0
    %5513 = vmatpush1.msra.mxu0 %v4536
    %5514 = vmatprep.subr.mxu0 0.0
    %5515 = vmatpush1.msra.mxu0 %v4537
    %5516 = vmatprep.subr.mxu0 0.0
    %5517 = vmatpush1.msra.mxu0 %v4538
    %5518 = vmatprep.subr.mxu0 0.0
    %5519 = vmatpush1.msra.mxu0 %v4539
    %5520 = vmatprep.subr.mxu0 0.0
    %5521 = vmatpush1.msra.mxu0 %v4540
    %5522 = vmatprep.subr.mxu0 0.0
    %5523 = vmatpush1.msra.mxu0 %v4541
    %5524 = vmatprep.subr.mxu0 0.0
    %5525 = vmatpush1.msra.mxu0 %v4542
    %5526 = vmatprep.subr.mxu0 0.0
    %5527 = vmatpush1.msra.mxu0 %v4543
    %5528 = vmatprep.subr.mxu0 0.0
    %5529 = vmatpush1.msra.mxu0 %v4544
    %5530 = vmatprep.subr.mxu0 0.0
    %5531 = vmatpush1.msra.mxu0 %v4545
    %5532 = vmatprep.subr.mxu0 0.0
    %5533 = vmatpush1.msra.mxu0 %v4546
    %5534 = vmatprep.subr.mxu0 0.0
    %5535 = vmatpush1.msra.mxu0 %v4547
    %5536 = vmatprep.subr.mxu0 0.0
    %5537 = vmatpush1.msra.mxu0 %v4548
    %5538 = vmatprep.subr.mxu0 0.0
    %5539 = vmatpush1.msra.mxu0 %v4549
    %5540 = vmatprep.subr.mxu0 0.0
    %5541 = vmatpush1.msra.mxu0 %v4550
    %5542 = vmatprep.subr.mxu0 0.0
    %5543 = vmatpush1.msra.mxu0 %v4551
    %5544 = vmatprep.subr.mxu0 0.0
    %5545 = vmatpush1.msra.mxu0 %v4552
    %5546 = vmatprep.mubr.f32.mxu0 %v4891
    %5547 = vmatmul.mubr.f32.gmra.mrb[0].mxu0 %v4889
    %v5548 = vpop.f32.mrb[0].mxu0
    %v5549 = vadd.f32 %v5479, %v5548
    %v5550 = vpop.f32.mrb[0].mxu0
    %5551 = vdwg.mxu0
    %5552 = vmatprep.subr.mxu0 0.0
    %5553 = vmatpush1.msra.mxu0 %v4553
    %5554 = vmatprep.subr.mxu0 0.0
    %5555 = vmatpush1.msra.mxu0 %v4554
    %5556 = vmatprep.subr.mxu0 0.0
    %5557 = vmatpush1.msra.mxu0 %v4555
    %5558 = vmatprep.subr.mxu0 0.0
    %5559 = vmatpush1.msra.mxu0 %v4556
    %5560 = vmatprep.subr.mxu0 0.0
    %5561 = vmatpush1.msra.mxu0 %v4557
    %5562 = vmatprep.subr.mxu0 0.0
    %5563 = vmatpush1.msra.mxu0 %v4558
    %5564 = vmatprep.subr.mxu0 0.0
    %5565 = vmatpush1.msra.mxu0 %v4559
    %5566 = vmatprep.subr.mxu0 0.0
    %5567 = vmatpush1.msra.mxu0 %v4560
    %5568 = vmatprep.subr.mxu0 0.0
    %5569 = vmatpush1.msra.mxu0 %v4561
    %5570 = vmatprep.subr.mxu0 0.0
    %5571 = vmatpush1.msra.mxu0 %v4562
    %5572 = vmatprep.subr.mxu0 0.0
    %5573 = vmatpush1.msra.mxu0 %v4563
    %5574 = vmatprep.subr.mxu0 0.0
    %5575 = vmatpush1.msra.mxu0 %v4564
    %5576 = vmatprep.subr.mxu0 0.0
    %5577 = vmatpush1.msra.mxu0 %v4565
    %5578 = vmatprep.subr.mxu0 0.0
    %5579 = vmatpush1.msra.mxu0 %v4566
    %5580 = vmatprep.subr.mxu0 0.0
    %5581 = vmatpush1.msra.mxu0 %v4567
    %5582 = vmatprep.subr.mxu0 0.0
    %5583 = vmatpush1.msra.mxu0 %v4568
    %5584 = vmatprep.subr.mxu0 0.0
    %5585 = vmatpush1.msra.mxu0 %v4569
    %5586 = vmatprep.subr.mxu0 0.0
    %5587 = vmatpush1.msra.mxu0 %v4570
    %5588 = vmatprep.subr.mxu0 0.0
    %5589 = vmatpush1.msra.mxu0 %v4571
    %5590 = vmatprep.subr.mxu0 0.0
    %5591 = vmatpush1.msra.mxu0 %v4572
    %5592 = vmatprep.subr.mxu0 0.0
    %5593 = vmatpush1.msra.mxu0 %v4573
    %5594 = vmatprep.subr.mxu0 0.0
    %5595 = vmatpush1.msra.mxu0 %v4574
    %5596 = vmatprep.subr.mxu0 0.0
    %5597 = vmatpush1.msra.mxu0 %v4575
    %5598 = vmatprep.subr.mxu0 0.0
    %5599 = vmatpush1.msra.mxu0 %v4576
    %5600 = vmatprep.subr.mxu0 0.0
    %5601 = vmatpush1.msra.mxu0 %v4577
    %5602 = vmatprep.subr.mxu0 0.0
    %5603 = vmatpush1.msra.mxu0 %v4578
    %5604 = vmatprep.subr.mxu0 0.0
    %5605 = vmatpush1.msra.mxu0 %v4579
    %5606 = vmatprep.subr.mxu0 0.0
    %5607 = vmatpush1.msra.mxu0 %v4580
    %5608 = vmatprep.subr.mxu0 0.0
    %5609 = vmatpush1.msra.mxu0 %v4581
    %5610 = vmatprep.subr.mxu0 0.0
    %5611 = vmatpush1.msra.mxu0 %v4582
    %5612 = vmatprep.subr.mxu0 0.0
    %5613 = vmatpush1.msra.mxu0 %v4583
    %5614 = vmatprep.subr.mxu0 0.0
    %5615 = vmatpush1.msra.mxu0 %v4584
    %5616 = vmatprep.mubr.f32.mxu0 %v4907
    %5617 = vmatmul.mubr.f32.gmra.mrb[0].mxu0 %v4899
    %v5618 = vpop.f32.mrb[0].mxu0
    %v5619 = vadd.f32 %v5549, %v5618
    %v5620 = vpop.f32.mrb[0].mxu0
    %5621 = vdwg.mxu0
    %5622 = vmatprep.subr.mxu0 0.0
    %5623 = vmatpush1.msra.mxu0 %v4585
    %5624 = vmatprep.subr.mxu0 0.0
    %5625 = vmatpush1.msra.mxu0 %v4586
    %5626 = vmatprep.subr.mxu0 0.0
    %5627 = vmatpush1.msra.mxu0 %v4587
    %5628 = vmatprep.subr.mxu0 0.0
    %5629 = vmatpush1.msra.mxu0 %v4588
    %5630 = vmatprep.subr.mxu0 0.0
    %5631 = vmatpush1.msra.mxu0 %v4589
    %5632 = vmatprep.subr.mxu0 0.0
    %5633 = vmatpush1.msra.mxu0 %v4590
    %5634 = vmatprep.subr.mxu0 0.0
    %5635 = vmatpush1.msra.mxu0 %v4591
    %5636 = vmatprep.subr.mxu0 0.0
    %5637 = vmatpush1.msra.mxu0 %v4592
    %5638 = vmatprep.subr.mxu0 0.0
    %5639 = vmatpush1.msra.mxu0 %v4593
    %5640 = vmatprep.subr.mxu0 0.0
    %5641 = vmatpush1.msra.mxu0 %v4594
    %5642 = vmatprep.subr.mxu0 0.0
    %5643 = vmatpush1.msra.mxu0 %v4595
    %5644 = vmatprep.subr.mxu0 0.0
    %5645 = vmatpush1.msra.mxu0 %v4596
    %5646 = vmatprep.subr.mxu0 0.0
    %5647 = vmatpush1.msra.mxu0 %v4597
    %5648 = vmatprep.subr.mxu0 0.0
    %5649 = vmatpush1.msra.mxu0 %v4598
    %5650 = vmatprep.subr.mxu0 0.0
    %5651 = vmatpush1.msra.mxu0 %v4599
    %5652 = vmatprep.subr.mxu0 0.0
    %5653 = vmatpush1.msra.mxu0 %v4600
    %5654 = vmatprep.subr.mxu0 0.0
    %5655 = vmatpush1.msra.mxu0 %v4601
    %5656 = vmatprep.subr.mxu0 0.0
    %5657 = vmatpush1.msra.mxu0 %v4602
    %5658 = vmatprep.subr.mxu0 0.0
    %5659 = vmatpush1.msra.mxu0 %v4603
    %5660 = vmatprep.subr.mxu0 0.0
    %5661 = vmatpush1.msra.mxu0 %v4604
    %5662 = vmatprep.subr.mxu0 0.0
    %5663 = vmatpush1.msra.mxu0 %v4605
    %5664 = vmatprep.subr.mxu0 0.0
    %5665 = vmatpush1.msra.mxu0 %v4606
    %5666 = vmatprep.subr.mxu0 0.0
    %5667 = vmatpush1.msra.mxu0 %v4607
    %5668 = vmatprep.subr.mxu0 0.0
    %5669 = vmatpush1.msra.mxu0 %v4608
    %5670 = vmatprep.subr.mxu0 0.0
    %5671 = vmatpush1.msra.mxu0 %v4609
    %5672 = vmatprep.subr.mxu0 0.0
    %5673 = vmatpush1.msra.mxu0 %v4610
    %5674 = vmatprep.subr.mxu0 0.0
    %5675 = vmatpush1.msra.mxu0 %v4611
    %5676 = vmatprep.subr.mxu0 0.0
    %5677 = vmatpush1.msra.mxu0 %v4612
    %5678 = vmatprep.subr.mxu0 0.0
    %5679 = vmatpush1.msra.mxu0 %v4613
    %5680 = vmatprep.subr.mxu0 0.0
    %5681 = vmatpush1.msra.mxu0 %v4614
    %5682 = vmatprep.subr.mxu0 0.0
    %5683 = vmatpush1.msra.mxu0 %v4615
    %5684 = vmatprep.subr.mxu0 0.0
    %5685 = vmatpush1.msra.mxu0 %v4616
    %5686 = vmatprep.mubr.f32.mxu0 %v4908
    %5687 = vmatmul.mubr.f32.gmra.mrb[0].mxu0 %v4906
    %v5688 = vpop.f32.mrb[0].mxu0
    %v5689 = vadd.f32 %v5619, %v5688
    %v5690 = vpop.f32.mrb[0].mxu0
    %5691 = vdwg.mxu0
    %5692 = vmatprep.subr.mxu0 0.0
    %5693 = vmatpush1.msra.mxu0 %v4617
    %5694 = vmatprep.subr.mxu0 0.0
    %5695 = vmatpush1.msra.mxu0 %v4618
    %5696 = vmatprep.subr.mxu0 0.0
    %5697 = vmatpush1.msra.mxu0 %v4619
    %5698 = vmatprep.subr.mxu0 0.0
    %5699 = vmatpush1.msra.mxu0 %v4620
    %5700 = vmatprep.subr.mxu0 0.0
    %5701 = vmatpush1.msra.mxu0 %v4621
    %5702 = vmatprep.subr.mxu0 0.0
    %5703 = vmatpush1.msra.mxu0 %v4622
    %5704 = vmatprep.subr.mxu0 0.0
    %5705 = vmatpush1.msra.mxu0 %v4623
    %5706 = vmatprep.subr.mxu0 0.0
    %5707 = vmatpush1.msra.mxu0 %v4624
    %5708 = vmatprep.subr.mxu0 0.0
    %5709 = vmatpush1.msra.mxu0 %v4625
    %5710 = vmatprep.subr.mxu0 0.0
    %5711 = vmatpush1.msra.mxu0 %v4626
    %5712 = vmatprep.subr.mxu0 0.0
    %5713 = vmatpush1.msra.mxu0 %v4627
    %5714 = vmatprep.subr.mxu0 0.0
    %5715 = vmatpush1.msra.mxu0 %v4628
    %5716 = vmatprep.subr.mxu0 0.0
    %5717 = vmatpush1.msra.mxu0 %v4629
    %5718 = vmatprep.subr.mxu0 0.0
    %5719 = vmatpush1.msra.mxu0 %v4630
    %5720 = vmatprep.subr.mxu0 0.0
    %5721 = vmatpush1.msra.mxu0 %v4631
    %5722 = vmatprep.subr.mxu0 0.0
    %5723 = vmatpush1.msra.mxu0 %v4632
    %5724 = vmatprep.subr.mxu0 0.0
    %5725 = vmatpush1.msra.mxu0 %v4633
    %5726 = vmatprep.subr.mxu0 0.0
    %5727 = vmatpush1.msra.mxu0 %v4634
    %5728 = vmatprep.subr.mxu0 0.0
    %5729 = vmatpush1.msra.mxu0 %v4635
    %5730 = vmatprep.subr.mxu0 0.0
    %5731 = vmatpush1.msra.mxu0 %v4636
    %5732 = vmatprep.subr.mxu0 0.0
    %5733 = vmatpush1.msra.mxu0 %v4637
    %5734 = vmatprep.subr.mxu0 0.0
    %5735 = vmatpush1.msra.mxu0 %v4638
    %5736 = vmatprep.subr.mxu0 0.0
    %5737 = vmatpush1.msra.mxu0 %v4639
    %5738 = vmatprep.subr.mxu0 0.0
    %5739 = vmatpush1.msra.mxu0 %v4640
    %5740 = vmatprep.subr.mxu0 0.0
    %5741 = vmatpush1.msra.mxu0 %v4641
    %5742 = vmatprep.subr.mxu0 0.0
    %5743 = vmatpush1.msra.mxu0 %v4642
    %5744 = vmatprep.subr.mxu0 0.0
    %5745 = vmatpush1.msra.mxu0 %v4643
    %5746 = vmatprep.subr.mxu0 0.0
    %5747 = vmatpush1.msra.mxu0 %v4644
    %5748 = vmatprep.subr.mxu0 0.0
    %5749 = vmatpush1.msra.mxu0 %v4645
    %5750 = vmatprep.subr.mxu0 0.0
    %5751 = vmatpush1.msra.mxu0 %v4646
    %5752 = vmatprep.subr.mxu0 0.0
    %5753 = vmatpush1.msra.mxu0 %v4647
    %5754 = vmatprep.subr.mxu0 0.0
    %5755 = vmatpush1.msra.mxu0 %v4648
    %5756 = vmatprep.mubr.f32.mxu0 %v4924
    %5757 = vmatmul.mubr.f32.gmra.mrb[0].mxu0 %v4916
    %v5758 = vpop.f32.mrb[0].mxu0
    %v5759 = vadd.f32 %v5689, %v5758
    %v5760 = vpop.f32.mrb[0].mxu0
    %5761 = vdwg.mxu0
    %5762 = vmatprep.subr.mxu0 0.0
    %5763 = vmatpush1.msra.mxu0 %v4649
    %5764 = vmatprep.subr.mxu0 0.0
    %5765 = vmatpush1.msra.mxu0 %v4650
    %5766 = vmatprep.subr.mxu0 0.0
    %5767 = vmatpush1.msra.mxu0 %v4651
    %5768 = vmatprep.subr.mxu0 0.0
    %5769 = vmatpush1.msra.mxu0 %v4652
    %5770 = vmatprep.subr.mxu0 0.0
    %5771 = vmatpush1.msra.mxu0 %v4653
    %5772 = vmatprep.subr.mxu0 0.0
    %5773 = vmatpush1.msra.mxu0 %v4654
    %5774 = vmatprep.subr.mxu0 0.0
    %5775 = vmatpush1.msra.mxu0 %v4655
    %5776 = vmatprep.subr.mxu0 0.0
    %5777 = vmatpush1.msra.mxu0 %v4656
    %5778 = vmatprep.subr.mxu0 0.0
    %5779 = vmatpush1.msra.mxu0 %v4657
    %5780 = vmatprep.subr.mxu0 0.0
    %5781 = vmatpush1.msra.mxu0 %v4658
    %5782 = vmatprep.subr.mxu0 0.0
    %5783 = vmatpush1.msra.mxu0 %v4659
    %5784 = vmatprep.subr.mxu0 0.0
    %5785 = vmatpush1.msra.mxu0 %v4660
    %5786 = vmatprep.subr.mxu0 0.0
    %5787 = vmatpush1.msra.mxu0 %v4661
    %5788 = vmatprep.subr.mxu0 0.0
    %5789 = vmatpush1.msra.mxu0 %v4662
    %5790 = vmatprep.subr.mxu0 0.0
    %5791 = vmatpush1.msra.mxu0 %v4663
    %5792 = vmatprep.subr.mxu0 0.0
    %5793 = vmatpush1.msra.mxu0 %v4664
    %5794 = vmatprep.subr.mxu0 0.0
    %5795 = vmatpush1.msra.mxu0 %v4665
    %5796 = vmatprep.subr.mxu0 0.0
    %5797 = vmatpush1.msra.mxu0 %v4666
    %5798 = vmatprep.subr.mxu0 0.0
    %5799 = vmatpush1.msra.mxu0 %v4667
    %5800 = vmatprep.subr.mxu0 0.0
    %5801 = vmatpush1.msra.mxu0 %v4668
    %5802 = vmatprep.subr.mxu0 0.0
    %5803 = vmatpush1.msra.mxu0 %v4669
    %5804 = vmatprep.subr.mxu0 0.0
    %5805 = vmatpush1.msra.mxu0 %v4670
    %5806 = vmatprep.subr.mxu0 0.0
    %5807 = vmatpush1.msra.mxu0 %v4671
    %5808 = vmatprep.subr.mxu0 0.0
    %5809 = vmatpush1.msra.mxu0 %v4672
    %5810 = vmatprep.subr.mxu0 0.0
    %5811 = vmatpush1.msra.mxu0 %v4673
    %5812 = vmatprep.subr.mxu0 0.0
    %5813 = vmatpush1.msra.mxu0 %v4674
    %5814 = vmatprep.subr.mxu0 0.0
    %5815 = vmatpush1.msra.mxu0 %v4675
    %5816 = vmatprep.subr.mxu0 0.0
    %5817 = vmatpush1.msra.mxu0 %v4676
    %5818 = vmatprep.subr.mxu0 0.0
    %5819 = vmatpush1.msra.mxu0 %v4677
    %5820 = vmatprep.subr.mxu0 0.0
    %5821 = vmatpush1.msra.mxu0 %v4678
    %5822 = vmatprep.subr.mxu0 0.0
    %5823 = vmatpush1.msra.mxu0 %v4679
    %5824 = vmatprep.subr.mxu0 0.0
    %5825 = vmatpush1.msra.mxu0 %v4680
    %5826 = vmatprep.mubr.f32.mxu0 %v4925
    %5827 = vmatmul.mubr.f32.gmra.mrb[0].mxu0 %v4923
    %v5828 = vpop.f32.mrb[0].mxu0
    %v5829 = vadd.f32 %v5759, %v5828
    %v5830 = vpop.f32.mrb[0].mxu0
    %5831 = vdwg.mxu0
    %5832 = vmatprep.subr.mxu0 0.0
    %5833 = vmatpush1.msra.mxu0 %v4681
    %5834 = vmatprep.subr.mxu0 0.0
    %5835 = vmatpush1.msra.mxu0 %v4682
    %5836 = vmatprep.subr.mxu0 0.0
    %5837 = vmatpush1.msra.mxu0 %v4683
    %5838 = vmatprep.subr.mxu0 0.0
    %5839 = vmatpush1.msra.mxu0 %v4684
    %5840 = vmatprep.subr.mxu0 0.0
    %5841 = vmatpush1.msra.mxu0 %v4685
    %5842 = vmatprep.subr.mxu0 0.0
    %5843 = vmatpush1.msra.mxu0 %v4686
    %5844 = vmatprep.subr.mxu0 0.0
    %5845 = vmatpush1.msra.mxu0 %v4687
    %5846 = vmatprep.subr.mxu0 0.0
    %5847 = vmatpush1.msra.mxu0 %v4688
    %5848 = vmatprep.subr.mxu0 0.0
    %5849 = vmatpush1.msra.mxu0 %v4689
    %5850 = vmatprep.subr.mxu0 0.0
    %5851 = vmatpush1.msra.mxu0 %v4690
    %5852 = vmatprep.subr.mxu0 0.0
    %5853 = vmatpush1.msra.mxu0 %v4691
    %5854 = vmatprep.subr.mxu0 0.0
    %5855 = vmatpush1.msra.mxu0 %v4692
    %5856 = vmatprep.subr.mxu0 0.0
    %5857 = vmatpush1.msra.mxu0 %v4693
    %5858 = vmatprep.subr.mxu0 0.0
    %5859 = vmatpush1.msra.mxu0 %v4694
    %5860 = vmatprep.subr.mxu0 0.0
    %5861 = vmatpush1.msra.mxu0 %v4695
    %5862 = vmatprep.subr.mxu0 0.0
    %5863 = vmatpush1.msra.mxu0 %v4696
    %5864 = vmatprep.subr.mxu0 0.0
    %5865 = vmatpush1.msra.mxu0 %v4697
    %5866 = vmatprep.subr.mxu0 0.0
    %5867 = vmatpush1.msra.mxu0 %v4698
    %5868 = vmatprep.subr.mxu0 0.0
    %5869 = vmatpush1.msra.mxu0 %v4699
    %5870 = vmatprep.subr.mxu0 0.0
    %5871 = vmatpush1.msra.mxu0 %v4700
    %5872 = vmatprep.subr.mxu0 0.0
    %5873 = vmatpush1.msra.mxu0 %v4701
    %5874 = vmatprep.subr.mxu0 0.0
    %5875 = vmatpush1.msra.mxu0 %v4702
    %5876 = vmatprep.subr.mxu0 0.0
    %5877 = vmatpush1.msra.mxu0 %v4703
    %5878 = vmatprep.subr.mxu0 0.0
    %5879 = vmatpush1.msra.mxu0 %v4704
    %5880 = vmatprep.subr.mxu0 0.0
    %5881 = vmatpush1.msra.mxu0 %v4705
    %5882 = vmatprep.subr.mxu0 0.0
    %5883 = vmatpush1.msra.mxu0 %v4706
    %5884 = vmatprep.subr.mxu0 0.0
    %5885 = vmatpush1.msra.mxu0 %v4707
    %5886 = vmatprep.subr.mxu0 0.0
    %5887 = vmatpush1.msra.mxu0 %v4708
    %5888 = vmatprep.subr.mxu0 0.0
    %5889 = vmatpush1.msra.mxu0 %v4709
    %5890 = vmatprep.subr.mxu0 0.0
    %5891 = vmatpush1.msra.mxu0 %v4710
    %5892 = vmatprep.subr.mxu0 0.0
    %5893 = vmatpush1.msra.mxu0 %v4711
    %5894 = vmatprep.subr.mxu0 0.0
    %5895 = vmatpush1.msra.mxu0 %v4712
    %5896 = vmatprep.mubr.f32.mxu0 %v4941
    %5897 = vmatmul.mubr.f32.gmra.mrb[0].mxu0 %v4933
    %v5898 = vpop.f32.mrb[0].mxu0
    %v5899 = vadd.f32 %v5829, %v5898
    %v5900 = vpop.f32.mrb[0].mxu0
    %5901 = vdwg.mxu0
    %5902 = vmatprep.subr.mxu0 0.0
    %5903 = vmatpush1.msra.mxu0 %v4713
    %5904 = vmatprep.subr.mxu0 0.0
    %5905 = vmatpush1.msra.mxu0 %v4714
    %5906 = vmatprep.subr.mxu0 0.0
    %5907 = vmatpush1.msra.mxu0 %v4715
    %5908 = vmatprep.subr.mxu0 0.0
    %5909 = vmatpush1.msra.mxu0 %v4716
    %5910 = vmatprep.subr.mxu0 0.0
    %5911 = vmatpush1.msra.mxu0 %v4717
    %5912 = vmatprep.subr.mxu0 0.0
    %5913 = vmatpush1.msra.mxu0 %v4718
    %5914 = vmatprep.subr.mxu0 0.0
    %5915 = vmatpush1.msra.mxu0 %v4719
    %5916 = vmatprep.subr.mxu0 0.0
    %5917 = vmatpush1.msra.mxu0 %v4720
    %5918 = vmatprep.subr.mxu0 0.0
    %5919 = vmatpush1.msra.mxu0 %v4721
    %5920 = vmatprep.subr.mxu0 0.0
    %5921 = vmatpush1.msra.mxu0 %v4722
    %5922 = vmatprep.subr.mxu0 0.0
    %5923 = vmatpush1.msra.mxu0 %v4723
    %5924 = vmatprep.subr.mxu0 0.0
    %5925 = vmatpush1.msra.mxu0 %v4724
    %5926 = vmatprep.subr.mxu0 0.0
    %5927 = vmatpush1.msra.mxu0 %v4725
    %5928 = vmatprep.subr.mxu0 0.0
    %5929 = vmatpush1.msra.mxu0 %v4726
    %5930 = vmatprep.subr.mxu0 0.0
    %5931 = vmatpush1.msra.mxu0 %v4727
    %5932 = vmatprep.subr.mxu0 0.0
    %5933 = vmatpush1.msra.mxu0 %v4728
    %5934 = vmatprep.subr.mxu0 0.0
    %5935 = vmatpush1.msra.mxu0 %v4729
    %5936 = vmatprep.subr.mxu0 0.0
    %5937 = vmatpush1.msra.mxu0 %v4730
    %5938 = vmatprep.subr.mxu0 0.0
    %5939 = vmatpush1.msra.mxu0 %v4731
    %5940 = vmatprep.subr.mxu0 0.0
    %5941 = vmatpush1.msra.mxu0 %v4732
    %5942 = vmatprep.subr.mxu0 0.0
    %5943 = vmatpush1.msra.mxu0 %v4733
    %5944 = vmatprep.subr.mxu0 0.0
    %5945 = vmatpush1.msra.mxu0 %v4734
    %5946 = vmatprep.subr.mxu0 0.0
    %5947 = vmatpush1.msra.mxu0 %v4735
    %5948 = vmatprep.subr.mxu0 0.0
    %5949 = vmatpush1.msra.mxu0 %v4736
    %5950 = vmatprep.subr.mxu0 0.0
    %5951 = vmatpush1.msra.mxu0 %v4737
    %5952 = vmatprep.subr.mxu0 0.0
    %5953 = vmatpush1.msra.mxu0 %v4738
    %5954 = vmatprep.subr.mxu0 0.0
    %5955 = vmatpush1.msra.mxu0 %v4739
    %5956 = vmatprep.subr.mxu0 0.0
    %5957 = vmatpush1.msra.mxu0 %v4740
    %5958 = vmatprep.subr.mxu0 0.0
    %5959 = vmatpush1.msra.mxu0 %v4741
    %5960 = vmatprep.subr.mxu0 0.0
    %5961 = vmatpush1.msra.mxu0 %v4742
    %5962 = vmatprep.subr.mxu0 0.0
    %5963 = vmatpush1.msra.mxu0 %v4743
    %5964 = vmatprep.subr.mxu0 0.0
    %5965 = vmatpush1.msra.mxu0 %v4744
    %5966 = vmatprep.mubr.f32.mxu0 %v4942
    %5967 = vmatmul.mubr.f32.gmra.mrb[0].mxu0 %v4940
    %v5968 = vpop.f32.mrb[0].mxu0
    %v5969 = vadd.f32 %v5899, %v5968
    %v5970 = vpop.f32.mrb[0].mxu0
    %5971 = vdwg.mxu0
    %5972 = vmatprep.subr.mxu0 0.0
    %5973 = vmatpush1.msra.mxu0 %v4745
    %5974 = vmatprep.subr.mxu0 0.0
    %5975 = vmatpush1.msra.mxu0 %v4746
    %5976 = vmatprep.subr.mxu0 0.0
    %5977 = vmatpush1.msra.mxu0 %v4747
    %5978 = vmatprep.subr.mxu0 0.0
    %5979 = vmatpush1.msra.mxu0 %v4748
    %5980 = vmatprep.subr.mxu0 0.0
    %5981 = vmatpush1.msra.mxu0 %v4749
    %5982 = vmatprep.subr.mxu0 0.0
    %5983 = vmatpush1.msra.mxu0 %v4750
    %5984 = vmatprep.subr.mxu0 0.0
    %5985 = vmatpush1.msra.mxu0 %v4751
    %5986 = vmatprep.subr.mxu0 0.0
    %5987 = vmatpush1.msra.mxu0 %v4752
    %5988 = vmatprep.subr.mxu0 0.0
    %5989 = vmatpush1.msra.mxu0 %v4753
    %5990 = vmatprep.subr.mxu0 0.0
    %5991 = vmatpush1.msra.mxu0 %v4754
    %5992 = vmatprep.subr.mxu0 0.0
    %5993 = vmatpush1.msra.mxu0 %v4755
    %5994 = vmatprep.subr.mxu0 0.0
    %5995 = vmatpush1.msra.mxu0 %v4756
    %5996 = vmatprep.subr.mxu0 0.0
    %5997 = vmatpush1.msra.mxu0 %v4757
    %5998 = vmatprep.subr.mxu0 0.0
    %5999 = vmatpush1.msra.mxu0 %v4758
    %6000 = vmatprep.subr.mxu0 0.0
    %6001 = vmatpush1.msra.mxu0 %v4759
    %6002 = vmatprep.subr.mxu0 0.0
    %6003 = vmatpush1.msra.mxu0 %v4760
    %6004 = vmatprep.subr.mxu0 0.0
    %6005 = vmatpush1.msra.mxu0 %v4761
    %6006 = vmatprep.subr.mxu0 0.0
    %6007 = vmatpush1.msra.mxu0 %v4762
    %6008 = vmatprep.subr.mxu0 0.0
    %6009 = vmatpush1.msra.mxu0 %v4763
    %6010 = vmatprep.subr.mxu0 0.0
    %6011 = vmatpush1.msra.mxu0 %v4764
    %6012 = vmatprep.subr.mxu0 0.0
    %6013 = vmatpush1.msra.mxu0 %v4765
    %6014 = vmatprep.subr.mxu0 0.0
    %6015 = vmatpush1.msra.mxu0 %v4766
    %6016 = vmatprep.subr.mxu0 0.0
    %6017 = vmatpush1.msra.mxu0 %v4767
    %6018 = vmatprep.subr.mxu0 0.0
    %6019 = vmatpush1.msra.mxu0 %v4768
    %6020 = vmatprep.subr.mxu0 0.0
    %6021 = vmatpush1.msra.mxu0 %v4769
    %6022 = vmatprep.subr.mxu0 0.0
    %6023 = vmatpush1.msra.mxu0 %v4770
    %6024 = vmatprep.subr.mxu0 0.0
    %6025 = vmatpush1.msra.mxu0 %v4771
    %6026 = vmatprep.subr.mxu0 0.0
    %6027 = vmatpush1.msra.mxu0 %v4772
    %6028 = vmatprep.subr.mxu0 0.0
    %6029 = vmatpush1.msra.mxu0 %v4773
    %6030 = vmatprep.subr.mxu0 0.0
    %6031 = vmatpush1.msra.mxu0 %v4774
    %6032 = vmatprep.subr.mxu0 0.0
    %6033 = vmatpush1.msra.mxu0 %v4775
    %6034 = vmatprep.subr.mxu0 0.0
    %6035 = vmatpush1.msra.mxu0 %v4776
    %6036 = vmatprep.mubr.f32.mxu0 %v4958
    %6037 = vmatmul.mubr.f32.gmra.mrb[0].mxu0 %v4950
    %v6038 = vpop.f32.mrb[0].mxu0
    %v6039 = vadd.f32 %v5969, %v6038
    %v6040 = vpop.f32.mrb[0].mxu0
    %6041 = vdwg.mxu0
    %6042 = vmatprep.subr.mxu0 0.0
    %6043 = vmatpush1.msra.mxu0 %v4777
    %6044 = vmatprep.subr.mxu0 0.0
    %6045 = vmatpush1.msra.mxu0 %v4778
    %6046 = vmatprep.subr.mxu0 0.0
    %6047 = vmatpush1.msra.mxu0 %v4779
    %6048 = vmatprep.subr.mxu0 0.0
    %6049 = vmatpush1.msra.mxu0 %v4780
    %6050 = vmatprep.subr.mxu0 0.0
    %6051 = vmatpush1.msra.mxu0 %v4781
    %6052 = vmatprep.subr.mxu0 0.0
    %6053 = vmatpush1.msra.mxu0 %v4782
    %6054 = vmatprep.subr.mxu0 0.0
    %6055 = vmatpush1.msra.mxu0 %v4783
    %6056 = vmatprep.subr.mxu0 0.0
    %6057 = vmatpush1.msra.mxu0 %v4784
    %6058 = vmatprep.subr.mxu0 0.0
    %6059 = vmatpush1.msra.mxu0 %v4785
    %6060 = vmatprep.subr.mxu0 0.0
    %6061 = vmatpush1.msra.mxu0 %v4786
    %6062 = vmatprep.subr.mxu0 0.0
    %6063 = vmatpush1.msra.mxu0 %v4787
    %6064 = vmatprep.subr.mxu0 0.0
    %6065 = vmatpush1.msra.mxu0 %v4788
    %6066 = vmatprep.subr.mxu0 0.0
    %6067 = vmatpush1.msra.mxu0 %v4789
    %6068 = vmatprep.subr.mxu0 0.0
    %6069 = vmatpush1.msra.mxu0 %v4790
    %6070 = vmatprep.subr.mxu0 0.0
    %6071 = vmatpush1.msra.mxu0 %v4791
    %6072 = vmatprep.subr.mxu0 0.0
    %6073 = vmatpush1.msra.mxu0 %v4792
    %6074 = vmatprep.subr.mxu0 0.0
    %6075 = vmatpush1.msra.mxu0 %v4793
    %6076 = vmatprep.subr.mxu0 0.0
    %6077 = vmatpush1.msra.mxu0 %v4794
    %6078 = vmatprep.subr.mxu0 0.0
    %6079 = vmatpush1.msra.mxu0 %v4795
    %6080 = vmatprep.subr.mxu0 0.0
    %6081 = vmatpush1.msra.mxu0 %v4796
    %6082 = vmatprep.subr.mxu0 0.0
    %6083 = vmatpush1.msra.mxu0 %v4797
    %6084 = vmatprep.subr.mxu0 0.0
    %6085 = vmatpush1.msra.mxu0 %v4798
    %6086 = vmatprep.subr.mxu0 0.0
    %6087 = vmatpush1.msra.mxu0 %v4799
    %6088 = vmatprep.subr.mxu0 0.0
    %6089 = vmatpush1.msra.mxu0 %v4800
    %6090 = vmatprep.subr.mxu0 0.0
    %6091 = vmatpush1.msra.mxu0 %v4801
    %6092 = vmatprep.subr.mxu0 0.0
    %6093 = vmatpush1.msra.mxu0 %v4802
    %6094 = vmatprep.subr.mxu0 0.0
    %6095 = vmatpush1.msra.mxu0 %v4803
    %6096 = vmatprep.subr.mxu0 0.0
    %6097 = vmatpush1.msra.mxu0 %v4804
    %6098 = vmatprep.subr.mxu0 0.0
    %6099 = vmatpush1.msra.mxu0 %v4805
    %6100 = vmatprep.subr.mxu0 0.0
    %6101 = vmatpush1.msra.mxu0 %v4806
    %6102 = vmatprep.subr.mxu0 0.0
    %6103 = vmatpush1.msra.mxu0 %v4807
    %6104 = vmatprep.subr.mxu0 0.0
    %6105 = vmatpush1.msra.mxu0 %v4808
    %6106 = vmatprep.mubr.f32.mxu0 %v4959
    %6107 = vmatmul.mubr.f32.gmra.mrb[0].mxu0 %v4957
    %v6108 = vpop.f32.mrb[0].mxu0
    %v6109 = vadd.f32 %v6039, %v6108
    %v6110 = vpop.f32.mrb[0].mxu0
    %6111 = vdwg.mxu0
    %6112 = vst.msk [vmem:[#allocation4] sm:$0x3] %vm3383, %v6109
    // Predicated region
    $region38: #{forward.1} parent=1 // pred_check
      _
    $region39: #{forward.1} parent=1 // pred_check_branch
      %6114 = sbr.rel (0) target = $region41
    $region40: #{forward.1} parent=1 // pred_region
      %s6116 = ssub.s32 32, 32
      %6117 = vsyncadd [#allocation5], %s6116
      %s6119 = sshll.u32 [#allocation4], 4
      %s6120 = int_to_ptr.vmem [resolvable:$true] %s6119
      %6122 = dma.vmem_to_hbm [thread:$0]  %s6120, 32, %s9, [#allocation5]
    $region41: #{forward.1} parent=1 // pred_fallthru
      _
    // Predicated region
    $region42: #{forward.1} parent=1 // pred_check
      _
    $region43: #{forward.1} parent=1 // pred_check_branch
      %6124 = sbr.rel (0) target = $region45
    $region44: #{forward.1} parent=1 // pred_region
      %6125 = dma.done [#allocation5], 32
    $region45: #{forward.1} parent=1 // pred_fallthru
      _
    %6126 = vsyncpa [#allocation5], 1

</llo_original>
